<compile_context>
chip_gen: v7x
topology: tpu7x:2x2x1
jax: 0.10.0
libtpu: 0.0.40
codegen_flags: <defaults>
</compile_context>

<pallas_src>
import functools

import jax
import jax.numpy as jnp
from jax import lax
from jax.experimental import pallas as pl
from jax.experimental.pallas import tpu as pltpu


# ----------------------------------------------------------------------------
# Fused bidirectional ConvGRU kernel.
# grid = (direction, time); hidden state lives in VMEM scratch (padded).
# ----------------------------------------------------------------------------
def _bigru_kernel(x_ref, w_h_zr_ref, w_x_all_ref, b_zr_ref, w_h_q_ref, b_q_ref,
                  out_ref,
                  pad_h_ref, pad_rh_ref, pad_x_ref, z_ref, xq_ref,
                  *, T, center, TH, mxu_dtype):
    d = pl.program_id(0)          # 0 = forward, 1 = reverse
    t = pl.program_id(1)

    B, Hp2, Wp2, Ch = pad_h_ref.shape
    H, W = Hp2 - 2, Wp2 - 2
    Cin = pad_x_ref.shape[-1]
    n_chunks = H // TH
    M = B * TH * W                # rows per gate matmul (per chunk)

    @pl.when(t == 0)
    def _():
        # zero initial hidden state and all zero-padding borders (per direction)
        pad_h_ref[...] = jnp.zeros(pad_h_ref.shape, pad_h_ref.dtype)
        pad_rh_ref[...] = jnp.zeros(pad_rh_ref.shape, pad_rh_ref.dtype)
        pad_x_ref[...] = jnp.zeros(pad_x_ref.shape, pad_x_ref.dtype)

    # current frame into the padded-x interior (borders stay zero)
    pad_x_ref[:, 1:H + 1, 1:W + 1, :] = x_ref[...]

    # timestep whose hidden state is the "center frame" for this direction
    write_t = jnp.where(d == 0, center, T - 1 - center)

    def im2col(ref, r0, C):
        # (B, TH+2, W+2, C) padded chunk -> (M, 9*C) tap matrix
        blk = ref[:, pl.ds(r0, TH + 2), :, :]
        taps = [blk[:, dy:dy + TH, dx:dx + W, :]
                for dy in range(3) for dx in range(3)]
        return jnp.concatenate(taps, axis=-1).reshape(M, 9 * C)

    def dot32(a, w_ref):
        return jnp.dot(a.astype(mxu_dtype), w_ref[...],
                       preferred_element_type=jnp.float32)

    # ---- pass A: fused z|r gates + cached x-contribution of q ---------------
    def pass_a(c, carry):
        r0 = pl.multiple_of(c * TH, TH)
        h_taps = im2col(pad_h_ref, r0, Ch)           # (M, 9*Ch)
        x_taps = im2col(pad_x_ref, r0, Cin)          # (M, 9*Cin)
        pre_x = dot32(x_taps, w_x_all_ref)           # (M, 3*Ch): [z|r|q] x-part
        zr = jax.nn.sigmoid(dot32(h_taps, w_h_zr_ref)
                            + pre_x[:, :2 * Ch] + b_zr_ref[...])
        zr = zr.reshape(B, TH, W, 2 * Ch)
        h_old = pad_h_ref[:, pl.ds(r0 + 1, TH), 1:W + 1, :]
        z_ref[:, pl.ds(r0, TH), :, :] = zr[..., :Ch]
        pad_rh_ref[:, pl.ds(r0 + 1, TH), 1:W + 1, :] = zr[..., Ch:] * h_old
        xq_ref[:, pl.ds(r0, TH), :, :] = pre_x[:, 2 * Ch:].reshape(B, TH, W, Ch)
        return carry

    lax.fori_loop(0, n_chunks, pass_a, 0)

    # ---- pass B: q gate + GRU update (+ center-frame output) ---------------
    def pass_b(c, carry):
        r0 = pl.multiple_of(c * TH, TH)
        rh_taps = im2col(pad_rh_ref, r0, Ch)         # (M, 9*Ch)
        xq = xq_ref[:, pl.ds(r0, TH), :, :].reshape(M, Ch)
        q = jnp.tanh(dot32(rh_taps, w_h_q_ref) + xq + b_q_ref[...])
        q = q.reshape(B, TH, W, Ch)
        z = z_ref[:, pl.ds(r0, TH), :, :]
        h_old = pad_h_ref[:, pl.ds(r0 + 1, TH), 1:W + 1, :]
        h_new = (1.0 - z) * h_old + z * q
        pad_h_ref[:, pl.ds(r0 + 1, TH), 1:W + 1, :] = h_new

        @pl.when(t == write_t)
        def _():
            out_ref[:, pl.ds(r0, TH), :, :] = h_new
        return carry

    lax.fori_loop(0, n_chunks, pass_b, 0)


def conv_bigru_centers(x_nhwc, gru_params, *, mxu_dtype=jnp.bfloat16,
                       row_tile=None):
    """Run the ConvGRU in both directions; return the two center-frame states.

    x_nhwc: (B, T, H, W, Cin).  Returns (h_fwd_center, h_rev_center), each
    (B, H, W, Ch), where h_rev_center equals out_rev[:, ::-1][:, T//2].
    """
    B, T, H, W, Cin = x_nhwc.shape
    wz, bz, wr, br, wq, bq = gru_params
    Ch = wz.shape[-1]
    center = T // 2

    if row_tile is None:                       # target ~256 matmul rows/chunk
        row_tile = max(1, min(H, 256 // max(B * W, 1)))
        while H % row_tile:
            row_tile -= 1
    TH = row_tile

    def split_hx(w):                           # (3,3,Ch+Cin,Cout) -> h/x parts
        cout = w.shape[-1]
        w_h = w[:, :, :Ch, :].reshape(9 * Ch, cout)
        w_x = w[:, :, Ch:, :].reshape(9 * Cin, cout)
        return w_h, w_x

    wzr = jnp.concatenate([wz, wr], axis=-1)           # fused z|r gate
    wzr_h, wzr_x = split_hx(wzr)
    wq_h, wq_x = split_hx(wq)
    w_x_all = jnp.concatenate([wzr_x, wq_x], axis=-1)  # x-part of all 3 gates
    b_zr = jnp.concatenate([bz, br], axis=-1)

    wzr_h = wzr_h.astype(mxu_dtype)
    w_x_all = w_x_all.astype(mxu_dtype)
    wq_h = wq_h.astype(mxu_dtype)

    kernel = functools.partial(_bigru_kernel, T=T, center=center, TH=TH,
                               mxu_dtype=mxu_dtype)

    # TODO(synk): for long T with small spatial tiles, process several
    # timesteps per grid step (pltpu.emit_pipeline over T) to amortize the
    # per-step pipeline overhead.
    out = pl.pallas_call(
        kernel,
        out_shape=jax.ShapeDtypeStruct((2, B, H, W, Ch), jnp.float32),
        grid=(2, T),
        in_specs=[
            pl.BlockSpec((B, None, H, W, Cin),
                         lambda d, t: (0, d * (T - 1) + (1 - 2 * d) * t,
                                       0, 0, 0)),
            pl.BlockSpec((9 * Ch, 2 * Ch), lambda d, t: (0, 0)),
            pl.BlockSpec((9 * Cin, 3 * Ch), lambda d, t: (0, 0)),
            pl.BlockSpec((1, 2 * Ch), lambda d, t: (0, 0)),
            pl.BlockSpec((9 * Ch, Ch), lambda d, t: (0, 0)),
            pl.BlockSpec((1, Ch), lambda d, t: (0, 0)),
        ],
        out_specs=pl.BlockSpec((None, B, H, W, Ch),
                               lambda d, t: (d, 0, 0, 0, 0)),
        scratch_shapes=[
            pltpu.VMEM((B, H + 2, W + 2, Ch), jnp.float32),   # padded h
            pltpu.VMEM((B, H + 2, W + 2, Ch), jnp.float32),   # padded r*h
            pltpu.VMEM((B, H + 2, W + 2, Cin), jnp.float32),  # padded x_t
            pltpu.VMEM((B, H, W, Ch), jnp.float32),           # z gate
            pltpu.VMEM((B, H, W, Ch), jnp.float32),           # x->q contrib
        ],
        compiler_params=pltpu.CompilerParams(
            dimension_semantics=("parallel", "arbitrary"),
            # explicit, conservative scratch budget (fits v7x's 64 MiB VMEM)
            vmem_limit_bytes=32 * 1024 * 1024),
    )(x_nhwc, wzr_h, w_x_all, b_zr, wq_h, bq)
    return out[0], out[1]


# ----------------------------------------------------------------------------
# BiGRU forward (eval-mode semantics; training-only wInter branch is skipped)
# ----------------------------------------------------------------------------
def bigru_forward(x, params, *, mxu_dtype=jnp.bfloat16):
    # x: (B, T, C, H, W) (PyTorch layout) -> (B, C, H, W) NCHW
    # TODO(synk): training-mode wInter branch (mid-sequence hidden-state tap,
    # batch-concat of inter_result) is training-only and not implemented.
    gru_params = params["gru"]
    w1, b1 = params["conv1x1"]
    B, T, C, H, W = x.shape
    x_nhwc = jnp.transpose(x, (0, 1, 3, 4, 2))           # (B, T, H, W, C)

    h_fwd, h_rev = conv_bigru_centers(x_nhwc, gru_params, mxu_dtype=mxu_dtype)
    feat = jnp.concatenate([h_fwd, h_rev], axis=-1)      # (B, H, W, 2*Ch)

    # final 1x1 conv: single small matmul, left to XLA (per perf review)
    y = jnp.dot(feat.reshape(-1, feat.shape[-1]), w1,
                precision=jax.lax.Precision.HIGHEST) + b1[0]
    y = y.reshape(B, H, W, -1)
    return jnp.transpose(y, (0, 3, 1, 2))                # NCHW


# ----------------------------------------------------------------------------
# Pure-JAX reference (dtype-aware so the bf16-MXU path can be checked tightly)
# ----------------------------------------------------------------------------
def _conv3x3_ref(x, w, b, dtype):
    prec = (jax.lax.Precision.HIGHEST if dtype == jnp.float32
            else jax.lax.Precision.DEFAULT)
    y = jax.lax.conv_general_dilated(
        x.astype(dtype), w.astype(dtype), window_strides=(1, 1),
        padding="SAME", dimension_numbers=("NHWC", "HWIO", "NHWC"),
        preferred_element_type=jnp.float32, precision=prec)
    return y + b


def _gru_ref(x_seq, gru_params, dtype):
    wz, bz, wr, br, wq, bq = gru_params
    B, T, H, W, _ = x_seq.shape
    Ch = wz.shape[-1]
    h = jnp.zeros((B, H, W, Ch), jnp.float32)
    outs = []
    for t in range(T):
        xt = x_seq[:, t]
        hx = jnp.concatenate([h, xt], axis=-1)
        z = jax.nn.sigmoid(_conv3x3_ref(hx, wz, bz, dtype))
        r = jax.nn.sigmoid(_conv3x3_ref(hx, wr, br, dtype))
        q = jnp.tanh(_conv3x3_ref(jnp.concatenate([r * h, xt], -1),
                                  wq, bq, dtype))
        h = (1.0 - z) * h + z * q
        outs.append(h)
    return jnp.stack(outs, axis=1)


def _bigru_ref(x, params, dtype=jnp.float32):
    gru_params = params["gru"]
    w1, b1 = params["conv1x1"]
    B, T, C, H, W = x.shape
    center = T // 2
    x_nhwc = jnp.transpose(x, (0, 1, 3, 4, 2))
    out_fwd = _gru_ref(x_nhwc, gru_params, dtype)
    rev_rev = _gru_ref(x_nhwc[:, ::-1], gru_params, dtype)[:, ::-1]
    feat = jnp.concatenate([out_fwd[:, center], rev_rev[:, center]], axis=-1)
    y = jnp.einsum("bhwc,cd->bhwd", feat, w1,
                   precision=jax.lax.Precision.HIGHEST) + b1[0]
    return jnp.transpose(y, (0, 3, 1, 2))


# ----------------------------------------------------------------------------
if __name__ == "__main__":
    key = jax.random.PRNGKey(0)
    B, T, C, H, W = 2, 4, 8, 16, 16
    hidden = C   # input_dim == hidden_dim (required by the module's 1x1 conv)

    ks = jax.random.split(key, 9)

    def w3(k):
        return 0.1 * jax.random.normal(k, (3, 3, hidden + C, hidden),
                                       jnp.float32)

    def bias(k):
        return 0.1 * jax.random.normal(k, (1, hidden), jnp.float32)

    gru_params = (w3(ks[0]), bias(ks[1]),    # convz
                  w3(ks[2]), bias(ks[3]),    # convr
                  w3(ks[4]), bias(ks[5]))    # convq
    w1 = 0.1 * jax.random.normal(ks[6], (2 * hidden, C), jnp.float32)
    b1 = 0.1 * jax.random.normal(ks[7], (1, C), jnp.float32)
    params = {"gru": gru_params, "conv1x1": (w1, b1)}

    x = jax.random.normal(ks[8], (B, T, C, H, W), jnp.float32)

    # 1) exact-math path (f32 MXU operands) vs f32 reference
    out_f32 = jax.block_until_ready(
        bigru_forward(x, params, mxu_dtype=jnp.float32))
    ref_f32 = jax.block_until_ready(_bigru_ref(x, params, dtype=jnp.float32))
    assert out_f32.shape == (B, C, H, W), out_f32.shape
    err32 = float(jnp.max(jnp.abs(out_f32 - ref_f32)))
    assert err32 < 5e-3, f"f32 max abs error {err32}"

    # 2) performance path (bf16 MXU operands, f32 accumulate + elementwise)
    out_bf16 = jax.block_until_ready(
        bigru_forward(x, params, mxu_dtype=jnp.bfloat16))
    ref_bf16 = jax.block_until_ready(_bigru_ref(x, params, dtype=jnp.bfloat16))
    err16 = float(jnp.max(jnp.abs(out_bf16 - ref_bf16)))
    assert err16 < 5e-3, f"bf16 max abs error {err16}"

    print("KERNEL_OK")
</pallas_src>

<mosaic_0001>
module attributes {stable_mosaic.version = 11 : i64} {
  func.func @_bigru_kernel(%arg0: i32, %arg1: i32, %arg2: memref<2x1x16x16x8xf32, #tpu.memory_space<vmem>>, %arg3: memref<72x16xf32, #tpu.memory_space<vmem>>, %arg4: memref<72x24xf32, #tpu.memory_space<vmem>>, %arg5: memref<1x16xf32, #tpu.memory_space<vmem>>, %arg6: memref<72x8xf32, #tpu.memory_space<vmem>>, %arg7: memref<1x8xf32, #tpu.memory_space<vmem>>, %arg8: memref<1x2x16x16x8xf32, #tpu.memory_space<vmem>>, %arg9: memref<2x18x18x8xf32, #tpu.memory_space<vmem>>, %arg10: memref<2x18x18x8xf32, #tpu.memory_space<vmem>>, %arg11: memref<2x18x18x8xf32, #tpu.memory_space<vmem>>, %arg12: memref<2x16x16x8xf32, #tpu.memory_space<vmem>>, %arg13: memref<2x16x16x8xf32, #tpu.memory_space<vmem>>) attributes {dimension_semantics = [#tpu.dimension_semantics<parallel>, #tpu.dimension_semantics<arbitrary>], iteration_bounds = array<i64: 2, 4>, scalar_prefetch = 0 : i64, scratch_operands = 5 : i64, tpu.core_type = #tpu.core_type<tc>, window_params = [{transform_indices = @transform_0, window_bounds = array<i64: 2, 1, 16, 16, 8>}, {pipeline_mode = #tpu.pipeline_mode<synchronous>, transform_indices = @transform_1, window_bounds = array<i64: 72, 16>}, {pipeline_mode = #tpu.pipeline_mode<synchronous>, transform_indices = @transform_2, window_bounds = array<i64: 72, 24>}, {pipeline_mode = #tpu.pipeline_mode<synchronous>, transform_indices = @transform_3, window_bounds = array<i64: 1, 16>}, {pipeline_mode = #tpu.pipeline_mode<synchronous>, transform_indices = @transform_4, window_bounds = array<i64: 72, 8>}, {pipeline_mode = #tpu.pipeline_mode<synchronous>, transform_indices = @transform_5, window_bounds = array<i64: 1, 8>}, {transform_indices = @transform_6, window_bounds = array<i64: 1, 2, 16, 16, 8>}]} {
    %c0_i32 = arith.constant 0 : i32
    %0 = arith.cmpi eq, %arg1, %c0_i32 : i32
    %1 = arith.extui %0 : i1 to i32
    %c0_i32_0 = arith.constant 0 : i32
    %2 = arith.cmpi ne, %1, %c0_i32_0 : i32
    scf.if %2 {
      %cst = arith.constant 0.000000e+00 : f32
      %10 = vector.broadcast %cst : f32 to vector<2x18x18x8xf32>
      %c0_17 = arith.constant 0 : index
      %c0_18 = arith.constant 0 : index
      %c0_19 = arith.constant 0 : index
      %c0_20 = arith.constant 0 : index
      %11 = vector.load %arg9[%c0_17, %c0_18, %c0_19, %c0_20] : memref<2x18x18x8xf32, #tpu.memory_space<vmem>>, vector<2x18x18x8xf32>
      tpu.vector_store %arg9[%c0_17, %c0_18, %c0_19, %c0_20], %10 {strides = array<i32>} : memref<2x18x18x8xf32, #tpu.memory_space<vmem>>, vector<2x18x18x8xf32>,
      %cst_21 = arith.constant 0.000000e+00 : f32
      %12 = vector.broadcast %cst_21 : f32 to vector<2x18x18x8xf32>
      %c0_22 = arith.constant 0 : index
      %c0_23 = arith.constant 0 : index
      %c0_24 = arith.constant 0 : index
      %c0_25 = arith.constant 0 : index
      %13 = vector.load %arg10[%c0_22, %c0_23, %c0_24, %c0_25] : memref<2x18x18x8xf32, #tpu.memory_space<vmem>>, vector<2x18x18x8xf32>
      tpu.vector_store %arg10[%c0_22, %c0_23, %c0_24, %c0_25], %12 {strides = array<i32>} : memref<2x18x18x8xf32, #tpu.memory_space<vmem>>, vector<2x18x18x8xf32>,
      %cst_26 = arith.constant 0.000000e+00 : f32
      %14 = vector.broadcast %cst_26 : f32 to vector<2x18x18x8xf32>
      %c0_27 = arith.constant 0 : index
      %c0_28 = arith.constant 0 : index
      %c0_29 = arith.constant 0 : index
      %c0_30 = arith.constant 0 : index
      %15 = vector.load %arg11[%c0_27, %c0_28, %c0_29, %c0_30] : memref<2x18x18x8xf32, #tpu.memory_space<vmem>>, vector<2x18x18x8xf32>
      tpu.vector_store %arg11[%c0_27, %c0_28, %c0_29, %c0_30], %14 {strides = array<i32>} : memref<2x18x18x8xf32, #tpu.memory_space<vmem>>, vector<2x18x18x8xf32>,
    } else {
    }
    %c0 = arith.constant 0 : index
    %c0_1 = arith.constant 0 : index
    %c0_2 = arith.constant 0 : index
    %c0_3 = arith.constant 0 : index
    %c0_4 = arith.constant 0 : index
    %3 = vector.load %arg2[%c0, %c0_1, %c0_2, %c0_3, %c0_4] : memref<2x1x16x16x8xf32, #tpu.memory_space<vmem>>, vector<2x1x16x16x8xf32>
    %4 = vector.shape_cast %3 : vector<2x1x16x16x8xf32> to vector<2x16x16x8xf32>
    %c0_5 = arith.constant 0 : index
    %c1 = arith.constant 1 : index
    %c1_6 = arith.constant 1 : index
    %c0_7 = arith.constant 0 : index
    %5 = vector.load %arg11[%c0_5, %c1, %c1_6, %c0_7] : memref<2x18x18x8xf32, #tpu.memory_space<vmem>>, vector<2x16x16x8xf32>
    tpu.vector_store %arg11[%c0_5, %c1, %c1_6, %c0_7], %4 {strides = array<i32>} : memref<2x18x18x8xf32, #tpu.memory_space<vmem>>, vector<2x16x16x8xf32>,
    %c0_i32_8 = arith.constant 0 : i32
    %6 = arith.cmpi eq, %arg0, %c0_i32_8 : i32
    %c2_i32 = arith.constant 2 : i32
    %c1_i32 = arith.constant 1 : i32
    %7 = arith.select %6, %c2_i32, %c1_i32 : i32
    %c0_i32_9 = arith.constant 0 : i32
    %c2_i32_10 = arith.constant 2 : i32
    %8 = arith.addi %c0_i32_9, %c2_i32_10 : i32
    %c1_i32_11 = arith.constant 1 : i32
    scf.for %arg14 = %c0_i32_9 to %8 step %c1_i32_11  : i32 {
      %c8_i32 = arith.constant 8 : i32
      %10 = arith.muli %arg14, %c8_i32 : i32
      %11 = tpu.assume_multiple %10, 8 : i32
      %c0_17 = arith.constant 0 : index
      %12 = arith.index_cast %11 : i32 to index
      %c0_18 = arith.constant 0 : index
      %c0_19 = arith.constant 0 : index
      %13 = vector.load %arg9[%c0_17, %12, %c0_18, %c0_19] : memref<2x18x18x8xf32, #tpu.memory_space<vmem>>, vector<2x10x18x8xf32>
      %14 = vector.extract_strided_slice %13 {offsets = [0, 0, 0, 0], sizes = [2, 8, 16, 8], strides = [1, 1, 1, 1]} : vector<2x10x18x8xf32> to vector<2x8x16x8xf32>
      %15 = vector.extract_strided_slice %13 {offsets = [0, 0, 1, 0], sizes = [2, 8, 16, 8], strides = [1, 1, 1, 1]} : vector<2x10x18x8xf32> to vector<2x8x16x8xf32>
      %16 = vector.extract_strided_slice %13 {offsets = [0, 0, 2, 0], sizes = [2, 8, 16, 8], strides = [1, 1, 1, 1]} : vector<2x10x18x8xf32> to vector<2x8x16x8xf32>
      %17 = vector.extract_strided_slice %13 {offsets = [0, 1, 0, 0], sizes = [2, 8, 16, 8], strides = [1, 1, 1, 1]} : vector<2x10x18x8xf32> to vector<2x8x16x8xf32>
      %18 = vector.extract_strided_slice %13 {offsets = [0, 1, 1, 0], sizes = [2, 8, 16, 8], strides = [1, 1, 1, 1]} : vector<2x10x18x8xf32> to vector<2x8x16x8xf32>
      %19 = vector.extract_strided_slice %13 {offsets = [0, 1, 2, 0], sizes = [2, 8, 16, 8], strides = [1, 1, 1, 1]} : vector<2x10x18x8xf32> to vector<2x8x16x8xf32>
      %20 = vector.extract_strided_slice %13 {offsets = [0, 2, 0, 0], sizes = [2, 8, 16, 8], strides = [1, 1, 1, 1]} : vector<2x10x18x8xf32> to vector<2x8x16x8xf32>
      %21 = vector.extract_strided_slice %13 {offsets = [0, 2, 1, 0], sizes = [2, 8, 16, 8], strides = [1, 1, 1, 1]} : vector<2x10x18x8xf32> to vector<2x8x16x8xf32>
      %22 = vector.extract_strided_slice %13 {offsets = [0, 2, 2, 0], sizes = [2, 8, 16, 8], strides = [1, 1, 1, 1]} : vector<2x10x18x8xf32> to vector<2x8x16x8xf32>
      %23 = tpu.concatenate %14, %15, %16, %17, %18, %19, %20, %21, %22 in 3 : vector<2x8x16x8xf32>, vector<2x8x16x8xf32>, vector<2x8x16x8xf32>, vector<2x8x16x8xf32>, vector<2x8x16x8xf32>, vector<2x8x16x8xf32>, vector<2x8x16x8xf32>, vector<2x8x16x8xf32>, vector<2x8x16x8xf32> -> vector<2x8x16x72xf32>
      %24 = vector.shape_cast %23 : vector<2x8x16x72xf32> to vector<256x72xf32>
      %c0_20 = arith.constant 0 : index
      %25 = arith.index_cast %11 : i32 to index
      %c0_21 = arith.constant 0 : index
      %c0_22 = arith.constant 0 : index
      %26 = vector.load %arg11[%c0_20, %25, %c0_21, %c0_22] : memref<2x18x18x8xf32, #tpu.memory_space<vmem>>, vector<2x10x18x8xf32>
      %27 = vector.extract_strided_slice %26 {offsets = [0, 0, 0, 0], sizes = [2, 8, 16, 8], strides = [1, 1, 1, 1]} : vector<2x10x18x8xf32> to vector<2x8x16x8xf32>
      %28 = vector.extract_strided_slice %26 {offsets = [0, 0, 1, 0], sizes = [2, 8, 16, 8], strides = [1, 1, 1, 1]} : vector<2x10x18x8xf32> to vector<2x8x16x8xf32>
      %29 = vector.extract_strided_slice %26 {offsets = [0, 0, 2, 0], sizes = [2, 8, 16, 8], strides = [1, 1, 1, 1]} : vector<2x10x18x8xf32> to vector<2x8x16x8xf32>
      %30 = vector.extract_strided_slice %26 {offsets = [0, 1, 0, 0], sizes = [2, 8, 16, 8], strides = [1, 1, 1, 1]} : vector<2x10x18x8xf32> to vector<2x8x16x8xf32>
      %31 = vector.extract_strided_slice %26 {offsets = [0, 1, 1, 0], sizes = [2, 8, 16, 8], strides = [1, 1, 1, 1]} : vector<2x10x18x8xf32> to vector<2x8x16x8xf32>
      %32 = vector.extract_strided_slice %26 {offsets = [0, 1, 2, 0], sizes = [2, 8, 16, 8], strides = [1, 1, 1, 1]} : vector<2x10x18x8xf32> to vector<2x8x16x8xf32>
      %33 = vector.extract_strided_slice %26 {offsets = [0, 2, 0, 0], sizes = [2, 8, 16, 8], strides = [1, 1, 1, 1]} : vector<2x10x18x8xf32> to vector<2x8x16x8xf32>
      %34 = vector.extract_strided_slice %26 {offsets = [0, 2, 1, 0], sizes = [2, 8, 16, 8], strides = [1, 1, 1, 1]} : vector<2x10x18x8xf32> to vector<2x8x16x8xf32>
      %35 = vector.extract_strided_slice %26 {offsets = [0, 2, 2, 0], sizes = [2, 8, 16, 8], strides = [1, 1, 1, 1]} : vector<2x10x18x8xf32> to vector<2x8x16x8xf32>
      %36 = tpu.concatenate %27, %28, %29, %30, %31, %32, %33, %34, %35 in 3 : vector<2x8x16x8xf32>, vector<2x8x16x8xf32>, vector<2x8x16x8xf32>, vector<2x8x16x8xf32>, vector<2x8x16x8xf32>, vector<2x8x16x8xf32>, vector<2x8x16x8xf32>, vector<2x8x16x8xf32>, vector<2x8x16x8xf32> -> vector<2x8x16x72xf32>
      %37 = vector.shape_cast %36 : vector<2x8x16x72xf32> to vector<256x72xf32>
      %c0_23 = arith.constant 0 : index
      %c0_24 = arith.constant 0 : index
      %38 = vector.load %arg4[%c0_23, %c0_24] : memref<72x24xf32, #tpu.memory_space<vmem>>, vector<72x24xf32>
      %cst = arith.constant dense<0.000000e+00> : vector<256x24xf32>
      %39 = tpu.matmul %37, %38, %cst {dimension_numbers = #tpu.dot_dimension_numbers<[1], [0], [0], [1], [0, 0, 1, 1], [], []>} : vector<256x72xf32>, vector<72x24xf32>, vector<256x24xf32> -> vector<256x24xf32>
      %c0_25 = arith.constant 0 : index
      %c0_26 = arith.constant 0 : index
      %40 = vector.load %arg3[%c0_25, %c0_26] : memref<72x16xf32, #tpu.memory_space<vmem>>, vector<72x16xf32>
      %cst_27 = arith.constant dense<0.000000e+00> : vector<256x16xf32>
      %41 = tpu.matmul %24, %40, %cst_27 {dimension_numbers = #tpu.dot_dimension_numbers<[1], [0], [0], [1], [0, 0, 1, 1], [], []>} : vector<256x72xf32>, vector<72x16xf32>, vector<256x16xf32> -> vector<256x16xf32>
      %42 = vector.extract_strided_slice %39 {offsets = [0, 0], sizes = [256, 16], strides = [1, 1]} : vector<256x24xf32> to vector<256x16xf32>
      %43 = arith.addf %41, %42 : vector<256x16xf32>
      %c0_28 = arith.constant 0 : index
      %c0_29 = arith.constant 0 : index
      %44 = vector.load %arg5[%c0_28, %c0_29] : memref<1x16xf32, #tpu.memory_space<vmem>>, vector<1x16xf32>
      %45 = vector.broadcast %44 : vector<1x16xf32> to vector<256x16xf32>
      %46 = arith.addf %43, %45 : vector<256x16xf32>
      %47 = arith.negf %46 : vector<256x16xf32>
      %48 = math.exp %47 : vector<256x16xf32>
      %cst_30 = arith.constant 1.000000e+00 : f32
      %49 = vector.broadcast %cst_30 : f32 to vector<256x16xf32>
      %50 = arith.addf %49, %48 : vector<256x16xf32>
      %51 = arith.divf %49, %50 : vector<256x16xf32>
      %52 = vector.shape_cast %51 : vector<256x16xf32> to vector<2x8x16x16xf32>
      %c1_i32_31 = arith.constant 1 : i32
      %53 = arith.addi %11, %c1_i32_31 : i32
      %c0_32 = arith.constant 0 : index
      %54 = arith.index_cast %53 : i32 to index
      %c1_33 = arith.constant 1 : index
      %c0_34 = arith.constant 0 : index
      %55 = vector.load %arg9[%c0_32, %54, %c1_33, %c0_34] : memref<2x18x18x8xf32, #tpu.memory_space<vmem>>, vector<2x8x16x8xf32>
      %56 = vector.extract_strided_slice %52 {offsets = [0, 0, 0, 0], sizes = [2, 8, 16, 8], strides = [1, 1, 1, 1]} : vector<2x8x16x16xf32> to vector<2x8x16x8xf32>
      %c0_35 = arith.constant 0 : index
      %57 = arith.index_cast %11 : i32 to index
      %c0_36 = arith.constant 0 : index
      %c0_37 = arith.constant 0 : index
      %58 = vector.load %arg12[%c0_35, %57, %c0_36, %c0_37] : memref<2x16x16x8xf32, #tpu.memory_space<vmem>>, vector<2x8x16x8xf32>
      tpu.vector_store %arg12[%c0_35, %57, %c0_36, %c0_37], %56 {strides = array<i32>} : memref<2x16x16x8xf32, #tpu.memory_space<vmem>>, vector<2x8x16x8xf32>,
      %59 = vector.extract_strided_slice %52 {offsets = [0, 0, 0, 8], sizes = [2, 8, 16, 8], strides = [1, 1, 1, 1]} : vector<2x8x16x16xf32> to vector<2x8x16x8xf32>
      %60 = arith.mulf %59, %55 : vector<2x8x16x8xf32>
      %c1_i32_38 = arith.constant 1 : i32
      %61 = arith.addi %11, %c1_i32_38 : i32
      %c0_39 = arith.constant 0 : index
      %62 = arith.index_cast %61 : i32 to index
      %c1_40 = arith.constant 1 : index
      %c0_41 = arith.constant 0 : index
      %63 = vector.load %arg10[%c0_39, %62, %c1_40, %c0_41] : memref<2x18x18x8xf32, #tpu.memory_space<vmem>>, vector<2x8x16x8xf32>
      tpu.vector_store %arg10[%c0_39, %62, %c1_40, %c0_41], %60 {strides = array<i32>} : memref<2x18x18x8xf32, #tpu.memory_space<vmem>>, vector<2x8x16x8xf32>,
      %64 = vector.extract_strided_slice %39 {offsets = [0, 16], sizes = [256, 8], strides = [1, 1]} : vector<256x24xf32> to vector<256x8xf32>
      %65 = vector.shape_cast %64 : vector<256x8xf32> to vector<2x8x16x8xf32>
      %c0_42 = arith.constant 0 : index
      %66 = arith.index_cast %11 : i32 to index
      %c0_43 = arith.constant 0 : index
      %c0_44 = arith.constant 0 : index
      %67 = vector.load %arg13[%c0_42, %66, %c0_43, %c0_44] : memref<2x16x16x8xf32, #tpu.memory_space<vmem>>, vector<2x8x16x8xf32>
      tpu.vector_store %arg13[%c0_42, %66, %c0_43, %c0_44], %65 {strides = array<i32>} : memref<2x16x16x8xf32, #tpu.memory_space<vmem>>, vector<2x8x16x8xf32>,
    }
    %c2_i32_12 = arith.constant 2 : i32
    %c0_i32_13 = arith.constant 0 : i32
    %c2_i32_14 = arith.constant 2 : i32
    %9 = arith.addi %c0_i32_13, %c2_i32_14 : i32
    %c1_i32_15 = arith.constant 1 : i32
    scf.for %arg14 = %c0_i32_13 to %9 step %c1_i32_15  : i32 {
      %c8_i32 = arith.constant 8 : i32
      %10 = arith.muli %arg14, %c8_i32 : i32
      %11 = tpu.assume_multiple %10, 8 : i32
      %c0_17 = arith.constant 0 : index
      %12 = arith.index_cast %11 : i32 to index
      %c0_18 = arith.constant 0 : index
      %c0_19 = arith.constant 0 : index
      %13 = vector.load %arg10[%c0_17, %12, %c0_18, %c0_19] : memref<2x18x18x8xf32, #tpu.memory_space<vmem>>, vector<2x10x18x8xf32>
      %14 = vector.extract_strided_slice %13 {offsets = [0, 0, 0, 0], sizes = [2, 8, 16, 8], strides = [1, 1, 1, 1]} : vector<2x10x18x8xf32> to vector<2x8x16x8xf32>
      %15 = vector.extract_strided_slice %13 {offsets = [0, 0, 1, 0], sizes = [2, 8, 16, 8], strides = [1, 1, 1, 1]} : vector<2x10x18x8xf32> to vector<2x8x16x8xf32>
      %16 = vector.extract_strided_slice %13 {offsets = [0, 0, 2, 0], sizes = [2, 8, 16, 8], strides = [1, 1, 1, 1]} : vector<2x10x18x8xf32> to vector<2x8x16x8xf32>
      %17 = vector.extract_strided_slice %13 {offsets = [0, 1, 0, 0], sizes = [2, 8, 16, 8], strides = [1, 1, 1, 1]} : vector<2x10x18x8xf32> to vector<2x8x16x8xf32>
      %18 = vector.extract_strided_slice %13 {offsets = [0, 1, 1, 0], sizes = [2, 8, 16, 8], strides = [1, 1, 1, 1]} : vector<2x10x18x8xf32> to vector<2x8x16x8xf32>
      %19 = vector.extract_strided_slice %13 {offsets = [0, 1, 2, 0], sizes = [2, 8, 16, 8], strides = [1, 1, 1, 1]} : vector<2x10x18x8xf32> to vector<2x8x16x8xf32>
      %20 = vector.extract_strided_slice %13 {offsets = [0, 2, 0, 0], sizes = [2, 8, 16, 8], strides = [1, 1, 1, 1]} : vector<2x10x18x8xf32> to vector<2x8x16x8xf32>
      %21 = vector.extract_strided_slice %13 {offsets = [0, 2, 1, 0], sizes = [2, 8, 16, 8], strides = [1, 1, 1, 1]} : vector<2x10x18x8xf32> to vector<2x8x16x8xf32>
      %22 = vector.extract_strided_slice %13 {offsets = [0, 2, 2, 0], sizes = [2, 8, 16, 8], strides = [1, 1, 1, 1]} : vector<2x10x18x8xf32> to vector<2x8x16x8xf32>
      %23 = tpu.concatenate %14, %15, %16, %17, %18, %19, %20, %21, %22 in 3 : vector<2x8x16x8xf32>, vector<2x8x16x8xf32>, vector<2x8x16x8xf32>, vector<2x8x16x8xf32>, vector<2x8x16x8xf32>, vector<2x8x16x8xf32>, vector<2x8x16x8xf32>, vector<2x8x16x8xf32>, vector<2x8x16x8xf32> -> vector<2x8x16x72xf32>
      %24 = vector.shape_cast %23 : vector<2x8x16x72xf32> to vector<256x72xf32>
      %c0_20 = arith.constant 0 : index
      %25 = arith.index_cast %11 : i32 to index
      %c0_21 = arith.constant 0 : index
      %c0_22 = arith.constant 0 : index
      %26 = vector.load %arg13[%c0_20, %25, %c0_21, %c0_22] : memref<2x16x16x8xf32, #tpu.memory_space<vmem>>, vector<2x8x16x8xf32>
      %27 = vector.shape_cast %26 : vector<2x8x16x8xf32> to vector<256x8xf32>
      %c0_23 = arith.constant 0 : index
      %c0_24 = arith.constant 0 : index
      %28 = vector.load %arg6[%c0_23, %c0_24] : memref<72x8xf32, #tpu.memory_space<vmem>>, vector<72x8xf32>
      %cst = arith.constant dense<0.000000e+00> : vector<256x8xf32>
      %29 = tpu.matmul %24, %28, %cst {dimension_numbers = #tpu.dot_dimension_numbers<[1], [0], [0], [1], [0, 0, 1, 1], [], []>} : vector<256x72xf32>, vector<72x8xf32>, vector<256x8xf32> -> vector<256x8xf32>
      %30 = arith.addf %29, %27 : vector<256x8xf32>
      %c0_25 = arith.constant 0 : index
      %c0_26 = arith.constant 0 : index
      %31 = vector.load %arg7[%c0_25, %c0_26] : memref<1x8xf32, #tpu.memory_space<vmem>>, vector<1x8xf32>
      %32 = vector.broadcast %31 : vector<1x8xf32> to vector<256x8xf32>
      %33 = arith.addf %30, %32 : vector<256x8xf32>
      %34 = math.tanh %33 : vector<256x8xf32>
      %35 = vector.shape_cast %34 : vector<256x8xf32> to vector<2x8x16x8xf32>
      %c0_27 = arith.constant 0 : index
      %36 = arith.index_cast %11 : i32 to index
      %c0_28 = arith.constant 0 : index
      %c0_29 = arith.constant 0 : index
      %37 = vector.load %arg12[%c0_27, %36, %c0_28, %c0_29] : memref<2x16x16x8xf32, #tpu.memory_space<vmem>>, vector<2x8x16x8xf32>
      %c1_i32_30 = arith.constant 1 : i32
      %38 = arith.addi %11, %c1_i32_30 : i32
      %c0_31 = arith.constant 0 : index
      %39 = arith.index_cast %38 : i32 to index
      %c1_32 = arith.constant 1 : index
      %c0_33 = arith.constant 0 : index
      %40 = vector.load %arg9[%c0_31, %39, %c1_32, %c0_33] : memref<2x18x18x8xf32, #tpu.memory_space<vmem>>, vector<2x8x16x8xf32>
      %cst_34 = arith.constant 1.000000e+00 : f32
      %41 = vector.broadcast %cst_34 : f32 to vector<2x8x16x8xf32>
      %42 = arith.subf %41, %37 : vector<2x8x16x8xf32>
      %43 = arith.mulf %42, %40 : vector<2x8x16x8xf32>
      %44 = arith.mulf %37, %35 : vector<2x8x16x8xf32>
      %45 = arith.addf %43, %44 : vector<2x8x16x8xf32>
      %c1_i32_35 = arith.constant 1 : i32
      %46 = arith.addi %11, %c1_i32_35 : i32
      %c0_36 = arith.constant 0 : index
      %47 = arith.index_cast %46 : i32 to index
      %c1_37 = arith.constant 1 : index
      %c0_38 = arith.constant 0 : index
      %48 = vector.load %arg9[%c0_36, %47, %c1_37, %c0_38] : memref<2x18x18x8xf32, #tpu.memory_space<vmem>>, vector<2x8x16x8xf32>
      tpu.vector_store %arg9[%c0_36, %47, %c1_37, %c0_38], %45 {strides = array<i32>} : memref<2x18x18x8xf32, #tpu.memory_space<vmem>>, vector<2x8x16x8xf32>,
      %49 = arith.cmpi eq, %arg1, %7 : i32
      %50 = arith.extui %49 : i1 to i32
      %c0_i32_39 = arith.constant 0 : i32
      %51 = arith.cmpi ne, %50, %c0_i32_39 : i32
      scf.if %51 {
        %c0_40 = arith.constant 0 : index
        %c0_41 = arith.constant 0 : index
        %52 = arith.index_cast %11 : i32 to index
        %c0_42 = arith.constant 0 : index
        %c0_43 = arith.constant 0 : index
        %53 = vector.load %arg8[%c0_40, %c0_41, %52, %c0_42, %c0_43] : memref<1x2x16x16x8xf32, #tpu.memory_space<vmem>>, vector<1x2x8x16x8xf32>
        %54 = vector.shape_cast %53 : vector<1x2x8x16x8xf32> to vector<2x8x16x8xf32>
        %55 = vector.shape_cast %45 : vector<2x8x16x8xf32> to vector<1x2x8x16x8xf32>
        tpu.vector_store %arg8[%c0_40, %c0_41, %52, %c0_42, %c0_43], %55 {strides = array<i32>} : memref<1x2x16x16x8xf32, #tpu.memory_space<vmem>>, vector<1x2x8x16x8xf32>,
      } else {
      }
    }
    %c2_i32_16 = arith.constant 2 : i32
    return
  }
  func.func @transform_0(%arg0: i32, %arg1: i32) -> (i32, i32, i32, i32, i32) {
    %c3_i32 = arith.constant 3 : i32
    %0 = arith.muli %arg0, %c3_i32 : i32
    %c2_i32 = arith.constant 2 : i32
    %1 = arith.muli %c2_i32, %arg0 : i32
    %c1_i32 = arith.constant 1 : i32
    %2 = arith.subi %c1_i32, %1 : i32
    %3 = arith.muli %2, %arg1 : i32
    %4 = arith.addi %0, %3 : i32
    %c0_i32 = arith.constant 0 : i32
    %c0_i32_0 = arith.constant 0 : i32
    %c0_i32_1 = arith.constant 0 : i32
    %c0_i32_2 = arith.constant 0 : i32
    %c0_i32_3 = arith.constant 0 : i32
    return %c0_i32, %4, %c0_i32_0, %c0_i32_1, %c0_i32_2 : i32, i32, i32, i32, i32
  }
  func.func @transform_1(%arg0: i32, %arg1: i32) -> (i32, i32) {
    %c0_i32 = arith.constant 0 : i32
    %c0_i32_0 = arith.constant 0 : i32
    %c0_i32_1 = arith.constant 0 : i32
    return %c0_i32, %c0_i32_0 : i32, i32
  }
  func.func @transform_2(%arg0: i32, %arg1: i32) -> (i32, i32) {
    %c0_i32 = arith.constant 0 : i32
    %c0_i32_0 = arith.constant 0 : i32
    %c0_i32_1 = arith.constant 0 : i32
    return %c0_i32, %c0_i32_0 : i32, i32
  }
  func.func @transform_3(%arg0: i32, %arg1: i32) -> (i32, i32) {
    %c0_i32 = arith.constant 0 : i32
    %c0_i32_0 = arith.constant 0 : i32
    %c0_i32_1 = arith.constant 0 : i32
    return %c0_i32, %c0_i32_0 : i32, i32
  }
  func.func @transform_4(%arg0: i32, %arg1: i32) -> (i32, i32) {
    %c0_i32 = arith.constant 0 : i32
    %c0_i32_0 = arith.constant 0 : i32
    %c0_i32_1 = arith.constant 0 : i32
    return %c0_i32, %c0_i32_0 : i32, i32
  }
  func.func @transform_5(%arg0: i32, %arg1: i32) -> (i32, i32) {
    %c0_i32 = arith.constant 0 : i32
    %c0_i32_0 = arith.constant 0 : i32
    %c0_i32_1 = arith.constant 0 : i32
    return %c0_i32, %c0_i32_0 : i32, i32
  }
  func.func @transform_6(%arg0: i32, %arg1: i32) -> (i32, i32, i32, i32, i32) {
    %c0_i32 = arith.constant 0 : i32
    %c0_i32_0 = arith.constant 0 : i32
    %c0_i32_1 = arith.constant 0 : i32
    %c0_i32_2 = arith.constant 0 : i32
    %c0_i32_3 = arith.constant 0 : i32
    return %arg0, %c0_i32, %c0_i32_0, %c0_i32_1, %c0_i32_2 : i32, i32, i32, i32, i32
  }
}

</mosaic_0001>

<llo_original>
// kernel: tpu_custom_call.1
$region0: #{tpu_custom_call.1}
  #allocation0 [shape = 'u32[]', space=smem, size = 0x4, offset = 0x4, fixed_abs, tag = 'smem constant byte address 0x4 - core index']
  #allocation1 [shape = 'u32[144,128]{1,0:T(1,128)}', space=vmem, size = 0x12000, scoped, tag = 'internal scratch']
  #allocation2 [shape = 'f32[2,18,18,8]{3,2,1,0:T(8,128)}', space=vmem, size = 0x6c000, scoped, tag = 'scratch operand']
  #allocation3 [shape = 'f32[2,18,18,8]{3,2,1,0:T(8,128)}', space=vmem, size = 0x6c000, scoped, tag = 'scratch operand']
  #allocation4 [shape = 'f32[2,18,18,8]{3,2,1,0:T(8,128)}', space=vmem, size = 0x6c000, scoped, tag = 'scratch operand']
  #allocation5 [shape = 'f32[2,16,16,8]{3,2,1,0:T(8,128)}', space=vmem, size = 0x40000, scoped, tag = 'scratch operand']
  #allocation6 [shape = 'f32[2,16,16,8]{3,2,1,0:T(8,128)}', space=vmem, size = 0x40000, scoped, tag = 'scratch operand']
  %s0 = inlined_call_operand.vmem [shape: f32[2,4,16,16,8], index: 0, kind: input, shape index: {}]
  %s1 = inlined_call_operand.vmem [shape: f32[72,16], index: 1, kind: input, shape index: {}]
  %s2 = inlined_call_operand.vmem [shape: f32[72,24], index: 2, kind: input, shape index: {}]
  %s3 = inlined_call_operand.vmem [shape: f32[1,16], index: 3, kind: input, shape index: {}]
  %s4 = inlined_call_operand.vmem [shape: f32[72,8], index: 4, kind: input, shape index: {}]
  %s5 = inlined_call_operand.vmem [shape: f32[1,8], index: 5, kind: input, shape index: {}]
  %s6 = inlined_call_operand.vmem [shape: f32[2,2,16,16,8], index: 6, kind: output, shape index: {}]
  %s7 = sld [smem:[#allocation0]]
  $region117: #{tpu_custom_call.1} parent=0
    _
  %s9 = ssub.s32 1, %s7
  %s10 = scalar_select 0, %s9, %s7
  $region1: #{tpu_custom_call.1} parent=0
    #allocation7 [shape = 'u8[524288]{0}', space=vmem, size = 0x80000, scoped, tag = 'input window, operand 0']
    loop: start=0, step=1, limit=10
    $region2: #{tpu_custom_call.1} parent=1 // loop_pre_header
      _
    $region3: #{tpu_custom_call.1} parent=1 // loop_header
      %s12 = sphi 0, %s16
      %p13 = scmp.ge.s32.totalorder %s12, 10
      %s19 = sphi 0, %s31
      %s20 = sphi 0, %s27
      %s21 = sphi 0, %s19
      %s22 = sphi 0, %s20
      %s23 = sphi 0, %s21
      %s24 = sphi 0, %s22
      %s44 = sphi 0, %s46
      %s47 = sphi 0, %s44
      %s48 = sphi 0, %s47
      %s64 = sphi 0, %s48
      %s68 = sphi 0, %s68
      %s70 = sphi 0, %s68
      %s71 = sphi 0, %s70
      %s85 = sphi 0, %s71
      %s89 = sphi 0, %s89
      %s91 = sphi 0, %s89
      %s92 = sphi 0, %s91
      %s106 = sphi 0, %s92
      %s110 = sphi 0, %s110
      %s112 = sphi 0, %s110
      %s113 = sphi 0, %s112
      %s127 = sphi 0, %s113
      %s131 = sphi 0, %s131
      %s133 = sphi 0, %s131
      %s134 = sphi 0, %s133
      %s148 = sphi 0, %s134
      %s152 = sphi 0, %s152
      %s154 = sphi 0, %s152
      %s155 = sphi 0, %s154
      %s169 = sphi 0, %s155
      %s175 = sphi 0, %s177
      %s178 = sphi 0, %s175
      %s179 = sphi 0, %s178
      %s195 = sphi 0, %s179
    $region4: #{tpu_custom_call.1} parent=1 // loop_header_branch
      %15 = sbr.rel (%p13) target = $region8
    $region5: #{tpu_custom_call.1} parent=1 // loop_body
      %s17 = ssub.s32 %s12, 1
      %s18 = ssub.s32 %s12, 2
      %s25 = sadd.s32 1, %s20
      %p26 = scmp.ge.s32.totalorder %s25, 4
      %s27 = scalar_select %p26, 0, %s25
      %s28 = sadd.s32 1, %s19
      %s29 = scalar_select %p26, %s28, %s19
      %p30 = scmp.ge.s32.totalorder %s29, 2
      %s31 = scalar_select %p30, 0, %s29
      %s32 = smul.u32 %s19, 3
      %s33 = smul.u32 %s19, 2
      %s34 = ssub.s32 1, %s33
      %s35 = smul.u32 %s34, %s20
      %s36 = sadd.s32 %s32, %s35
      %s37 = smul.u32 %s31, 3
      %s38 = smul.u32 %s31, 2
      %s39 = ssub.s32 1, %s38
      %s40 = smul.u32 %s39, %s27
      %s41 = sadd.s32 %s37, %s40
      %s42 = ssub.s32 %s36, %s41
      %p43 = scmp.eq.s32.totalorder %s42, 0
      %s45 = sadd.s32 %s44, 1
      %s46 = scalar_select %p43, %s44, %s45
      %p49 = pneg %p43
      %p50 = scmp.eq.s32.totalorder %s12, 7
      %p51 = por %p49, %p50
      %p52 = scmp.ne.s32.totalorder %s44, %s47
      %p53 = scmp.eq.s32.totalorder %s12, 0
      %p54 = por %p52, %p53
      %p55 = scmp.ne.s32.totalorder %s44, %s47
      %p56 = scmp.eq.s32.totalorder %s17, 7
      %p57 = por %p55, %p56
      %p58 = scmp.ne.s32.totalorder %s47, %s48
      %p59 = scmp.eq.s32.totalorder %s17, 0
      %p60 = por %p58, %p59
      %p61 = scmp.ne.s32.totalorder %s47, %s48
      %p62 = scmp.eq.s32.totalorder %s18, 7
      %p63 = por %p61, %p62
      %p65 = scmp.ne.s32.totalorder %s48, %s64
      %p66 = scmp.eq.s32.totalorder %s18, 0
      %p67 = por %p65, %p66
      %s69 = sadd.s32 %s68, 1
      %p72 = scmp.eq.s32.totalorder %s12, 7
      %p73 = scmp.ne.s32.totalorder %s68, %s70
      %p74 = scmp.eq.s32.totalorder %s12, 0
      %p75 = por %p73, %p74
      %p76 = scmp.ne.s32.totalorder %s68, %s70
      %p77 = scmp.eq.s32.totalorder %s17, 7
      %p78 = por %p76, %p77
      %p79 = scmp.ne.s32.totalorder %s70, %s71
      %p80 = scmp.eq.s32.totalorder %s17, 0
      %p81 = por %p79, %p80
      %p82 = scmp.ne.s32.totalorder %s70, %s71
      %p83 = scmp.eq.s32.totalorder %s18, 7
      %p84 = por %p82, %p83
      %p86 = scmp.ne.s32.totalorder %s71, %s85
      %p87 = scmp.eq.s32.totalorder %s18, 0
      %p88 = por %p86, %p87
      %s90 = sadd.s32 %s89, 1
      %p93 = scmp.eq.s32.totalorder %s12, 7
      %p94 = scmp.ne.s32.totalorder %s89, %s91
      %p95 = scmp.eq.s32.totalorder %s12, 0
      %p96 = por %p94, %p95
      %p97 = scmp.ne.s32.totalorder %s89, %s91
      %p98 = scmp.eq.s32.totalorder %s17, 7
      %p99 = por %p97, %p98
      %p100 = scmp.ne.s32.totalorder %s91, %s92
      %p101 = scmp.eq.s32.totalorder %s17, 0
      %p102 = por %p100, %p101
      %p103 = scmp.ne.s32.totalorder %s91, %s92
      %p104 = scmp.eq.s32.totalorder %s18, 7
      %p105 = por %p103, %p104
      %p107 = scmp.ne.s32.totalorder %s92, %s106
      %p108 = scmp.eq.s32.totalorder %s18, 0
      %p109 = por %p107, %p108
      %s111 = sadd.s32 %s110, 1
      %p114 = scmp.eq.s32.totalorder %s12, 7
      %p115 = scmp.ne.s32.totalorder %s110, %s112
      %p116 = scmp.eq.s32.totalorder %s12, 0
      %p117 = por %p115, %p116
      %p118 = scmp.ne.s32.totalorder %s110, %s112
      %p119 = scmp.eq.s32.totalorder %s17, 7
      %p120 = por %p118, %p119
      %p121 = scmp.ne.s32.totalorder %s112, %s113
      %p122 = scmp.eq.s32.totalorder %s17, 0
      %p123 = por %p121, %p122
      %p124 = scmp.ne.s32.totalorder %s112, %s113
      %p125 = scmp.eq.s32.totalorder %s18, 7
      %p126 = por %p124, %p125
      %p128 = scmp.ne.s32.totalorder %s113, %s127
      %p129 = scmp.eq.s32.totalorder %s18, 0
      %p130 = por %p128, %p129
      %s132 = sadd.s32 %s131, 1
      %p135 = scmp.eq.s32.totalorder %s12, 7
      %p136 = scmp.ne.s32.totalorder %s131, %s133
      %p137 = scmp.eq.s32.totalorder %s12, 0
      %p138 = por %p136, %p137
      %p139 = scmp.ne.s32.totalorder %s131, %s133
      %p140 = scmp.eq.s32.totalorder %s17, 7
      %p141 = por %p139, %p140
      %p142 = scmp.ne.s32.totalorder %s133, %s134
      %p143 = scmp.eq.s32.totalorder %s17, 0
      %p144 = por %p142, %p143
      %p145 = scmp.ne.s32.totalorder %s133, %s134
      %p146 = scmp.eq.s32.totalorder %s18, 7
      %p147 = por %p145, %p146
      %p149 = scmp.ne.s32.totalorder %s134, %s148
      %p150 = scmp.eq.s32.totalorder %s18, 0
      %p151 = por %p149, %p150
      %s153 = sadd.s32 %s152, 1
      %p156 = scmp.eq.s32.totalorder %s12, 7
      %p157 = scmp.ne.s32.totalorder %s152, %s154
      %p158 = scmp.eq.s32.totalorder %s12, 0
      %p159 = por %p157, %p158
      %p160 = scmp.ne.s32.totalorder %s152, %s154
      %p161 = scmp.eq.s32.totalorder %s17, 7
      %p162 = por %p160, %p161
      %p163 = scmp.ne.s32.totalorder %s154, %s155
      %p164 = scmp.eq.s32.totalorder %s17, 0
      %p165 = por %p163, %p164
      %p166 = scmp.ne.s32.totalorder %s154, %s155
      %p167 = scmp.eq.s32.totalorder %s18, 7
      %p168 = por %p166, %p167
      %p170 = scmp.ne.s32.totalorder %s155, %s169
      %p171 = scmp.eq.s32.totalorder %s18, 0
      %p172 = por %p170, %p171
      %s173 = ssub.s32 %s19, %s31
      %p174 = scmp.eq.s32.totalorder %s173, 0
      %s176 = sadd.s32 %s175, 1
      %s177 = scalar_select %p174, %s175, %s176
      %p180 = pneg %p174
      %p181 = scmp.eq.s32.totalorder %s12, 7
      %p182 = por %p180, %p181
      %p183 = scmp.ne.s32.totalorder %s175, %s178
      %p184 = scmp.eq.s32.totalorder %s12, 0
      %p185 = por %p183, %p184
      %p186 = scmp.ne.s32.totalorder %s175, %s178
      %p187 = scmp.eq.s32.totalorder %s17, 7
      %p188 = por %p186, %p187
      %p189 = scmp.ne.s32.totalorder %s178, %s179
      %p190 = scmp.eq.s32.totalorder %s17, 0
      %p191 = por %p189, %p190
      %p192 = scmp.ne.s32.totalorder %s178, %s179
      %p193 = scmp.eq.s32.totalorder %s18, 7
      %p194 = por %p192, %p193
      %p196 = scmp.ne.s32.totalorder %s179, %s195
      %p197 = scmp.eq.s32.totalorder %s18, 0
      %p198 = por %p196, %p197
      %p199 = scmp.le.s32.totalorder 1, %s12
      %p200 = scmp.lt.s32.totalorder %s12, 9
      %p201 = pnand %p199, %p200
      %p202 = pneg %p201
      // Predicated region
      $region9: #{tpu_custom_call.1} parent=5 // pred_check
        _
      $region10: #{tpu_custom_call.1} parent=5 // pred_check_branch
        %204 = sbr.rel (%p201) target = $region12
      $region11: #{tpu_custom_call.1} parent=5 // pred_region
        %s205 = ssub.s32 %s12, 1
        // Predicated region
        $region13: #{tpu_custom_call.1} parent=11 // pred_check
          %p206 = pneg %p81
        $region14: #{tpu_custom_call.1} parent=11 // pred_check_branch
          %208 = sbr.rel (%p206) target = $region16
        $region15: #{tpu_custom_call.1} parent=11 // pred_region
          _
        $region16: #{tpu_custom_call.1} parent=11 // pred_fallthru
          _
        // Predicated region
        $region17: #{tpu_custom_call.1} parent=11 // pred_check
          %p209 = pneg %p102
        $region18: #{tpu_custom_call.1} parent=11 // pred_check_branch
          %211 = sbr.rel (%p209) target = $region20
        $region19: #{tpu_custom_call.1} parent=11 // pred_region
          _
        $region20: #{tpu_custom_call.1} parent=11 // pred_fallthru
          _
        // Predicated region
        $region21: #{tpu_custom_call.1} parent=11 // pred_check
          %p212 = pneg %p123
        $region22: #{tpu_custom_call.1} parent=11 // pred_check_branch
          %214 = sbr.rel (%p212) target = $region24
        $region23: #{tpu_custom_call.1} parent=11 // pred_region
          _
        $region24: #{tpu_custom_call.1} parent=11 // pred_fallthru
          _
        // Predicated region
        $region25: #{tpu_custom_call.1} parent=11 // pred_check
          %p215 = pneg %p144
        $region26: #{tpu_custom_call.1} parent=11 // pred_check_branch
          %217 = sbr.rel (%p215) target = $region28
        $region27: #{tpu_custom_call.1} parent=11 // pred_region
          _
        $region28: #{tpu_custom_call.1} parent=11 // pred_fallthru
          _
        // Predicated region
        $region29: #{tpu_custom_call.1} parent=11 // pred_check
          %p218 = pneg %p165
        $region30: #{tpu_custom_call.1} parent=11 // pred_check_branch
          %220 = sbr.rel (%p218) target = $region32
        $region31: #{tpu_custom_call.1} parent=11 // pred_region
          _
        $region32: #{tpu_custom_call.1} parent=11 // pred_fallthru
          _
      $region12: #{tpu_custom_call.1} parent=5 // pred_fallthru
        _
      %p221 = scmp.lt.s32.totalorder %s12, 8
      // Predicated region
      $region33: #{tpu_custom_call.1} parent=5 // pred_check
        %p222 = pneg %p221
      $region34: #{tpu_custom_call.1} parent=5 // pred_check_branch
        %224 = sbr.rel (%p222) target = $region36
      $region35: #{tpu_custom_call.1} parent=5 // pred_region
        // Predicated region
        $region37: #{tpu_custom_call.1} parent=35 // pred_check
          %p225 = pneg %p54
        $region38: #{tpu_custom_call.1} parent=35 // pred_check_branch
          %227 = sbr.rel (%p225) target = $region40
        $region39: #{tpu_custom_call.1} parent=35 // pred_region
          %s228 = sand.u32 %s44, 1
          %s229 = sand.u32 %s44, 1
          %s230 = smul.addr %s229, 512
          %s231 = scalar_lea.vmem [#allocation7], %s230
          %s232 = smul.u32 %s19, 3
          %s233 = smul.u32 %s19, 2
          %s234 = ssub.s32 1, %s233
          %s235 = smul.u32 %s234, %s20
          %s236 = sadd.s32 %s232, %s235
          %s237 = smul.addr %s236, 32
          %s238 = smul.addr %s237, 8
          %s239 = scalar_lea.vmem %s0, %s238
          // Predicated region
          $region41: #{tpu_custom_call.1} parent=39 // pred_check
            _
          $region42: #{tpu_custom_call.1} parent=39 // pred_check_branch
            %241 = sbr.rel (0) target = $region44
          $region43: #{tpu_custom_call.1} parent=39 // pred_region
            // Predicated region
            $region45: #{tpu_custom_call.1} parent=43 // pred_check
              _
            $region46: #{tpu_custom_call.1} parent=43 // pred_check_branch
              %243 = sbr.rel (0) target = $region48
            $region47: #{tpu_custom_call.1} parent=43 // pred_region
              // Predicated region
              $region60: #{tpu_custom_call.1} parent=47 // pred_check
                _
              $region61: #{tpu_custom_call.1} parent=47 // pred_check_branch
                %384 = sbr.rel (0) target = $region63
              $region62: #{tpu_custom_call.1} parent=47 // pred_region
                loop: start=0, step=1, limit=1
                $region64: #{tpu_custom_call.1} parent=62 // loop_pre_header
                  _
                $region65: #{tpu_custom_call.1} parent=62 // loop_header
                  %s386 = sphi 0, %s390
                  %p387 = scmp.ge.s32.totalorder %s386, 1
                  %s391 = sphi %s239, %s239
                  %s392 = sphi %s231, %s231
                $region66: #{tpu_custom_call.1} parent=62 // loop_header_branch
                  %389 = sbr.rel (%p387) target = $region70
                $region67: #{tpu_custom_call.1} parent=62 // loop_body
                  %v393 = vld [vmem:[%s391] sm:$0xff]
                  %394 = vst [vmem:[%s392] sm:$0xff] %v393
                  %v395 = vld [vmem:[%s391 + $0x8] sm:$0xff]
                  %396 = vst [vmem:[%s392 + $0x8] sm:$0xff] %v395
                  %v397 = vld [vmem:[%s391 + $0x10] sm:$0xff]
                  %398 = vst [vmem:[%s392 + $0x10] sm:$0xff] %v397
                  %v399 = vld [vmem:[%s391 + $0x18] sm:$0xff]
                  %400 = vst [vmem:[%s392 + $0x18] sm:$0xff] %v399
                  %v401 = vld [vmem:[%s391 + $0x20] sm:$0xff]
                  %402 = vst [vmem:[%s392 + $0x20] sm:$0xff] %v401
                  %v403 = vld [vmem:[%s391 + $0x28] sm:$0xff]
                  %404 = vst [vmem:[%s392 + $0x28] sm:$0xff] %v403
                  %v405 = vld [vmem:[%s391 + $0x30] sm:$0xff]
                  %406 = vst [vmem:[%s392 + $0x30] sm:$0xff] %v405
                  %v407 = vld [vmem:[%s391 + $0x38] sm:$0xff]
                  %408 = vst [vmem:[%s392 + $0x38] sm:$0xff] %v407
                  %v409 = vld [vmem:[%s391 + $0x40] sm:$0xff]
                  %410 = vst [vmem:[%s392 + $0x40] sm:$0xff] %v409
                  %v411 = vld [vmem:[%s391 + $0x48] sm:$0xff]
                  %412 = vst [vmem:[%s392 + $0x48] sm:$0xff] %v411
                  %v413 = vld [vmem:[%s391 + $0x50] sm:$0xff]
                  %414 = vst [vmem:[%s392 + $0x50] sm:$0xff] %v413
                  %v415 = vld [vmem:[%s391 + $0x58] sm:$0xff]
                  %416 = vst [vmem:[%s392 + $0x58] sm:$0xff] %v415
                  %v417 = vld [vmem:[%s391 + $0x60] sm:$0xff]
                  %418 = vst [vmem:[%s392 + $0x60] sm:$0xff] %v417
                  %v419 = vld [vmem:[%s391 + $0x68] sm:$0xff]
                  %420 = vst [vmem:[%s392 + $0x68] sm:$0xff] %v419
                  %v421 = vld [vmem:[%s391 + $0x70] sm:$0xff]
                  %422 = vst [vmem:[%s392 + $0x70] sm:$0xff] %v421
                  %v423 = vld [vmem:[%s391 + $0x78] sm:$0xff]
                  %424 = vst [vmem:[%s392 + $0x78] sm:$0xff] %v423
                  %v425 = vld [vmem:[%s391 + $0x80] sm:$0xff]
                  %426 = vst [vmem:[%s392 + $0x80] sm:$0xff] %v425
                  %v427 = vld [vmem:[%s391 + $0x88] sm:$0xff]
                  %428 = vst [vmem:[%s392 + $0x88] sm:$0xff] %v427
                  %v429 = vld [vmem:[%s391 + $0x90] sm:$0xff]
                  %430 = vst [vmem:[%s392 + $0x90] sm:$0xff] %v429
                  %v431 = vld [vmem:[%s391 + $0x98] sm:$0xff]
                  %432 = vst [vmem:[%s392 + $0x98] sm:$0xff] %v431
                  %v433 = vld [vmem:[%s391 + $0xa0] sm:$0xff]
                  %434 = vst [vmem:[%s392 + $0xa0] sm:$0xff] %v433
                  %v435 = vld [vmem:[%s391 + $0xa8] sm:$0xff]
                  %436 = vst [vmem:[%s392 + $0xa8] sm:$0xff] %v435
                  %v437 = vld [vmem:[%s391 + $0xb0] sm:$0xff]
                  %438 = vst [vmem:[%s392 + $0xb0] sm:$0xff] %v437
                  %v439 = vld [vmem:[%s391 + $0xb8] sm:$0xff]
                  %440 = vst [vmem:[%s392 + $0xb8] sm:$0xff] %v439
                  %v441 = vld [vmem:[%s391 + $0xc0] sm:$0xff]
                  %442 = vst [vmem:[%s392 + $0xc0] sm:$0xff] %v441
                  %v443 = vld [vmem:[%s391 + $0xc8] sm:$0xff]
                  %444 = vst [vmem:[%s392 + $0xc8] sm:$0xff] %v443
                  %v445 = vld [vmem:[%s391 + $0xd0] sm:$0xff]
                  %446 = vst [vmem:[%s392 + $0xd0] sm:$0xff] %v445
                  %v447 = vld [vmem:[%s391 + $0xd8] sm:$0xff]
                  %448 = vst [vmem:[%s392 + $0xd8] sm:$0xff] %v447
                  %v449 = vld [vmem:[%s391 + $0xe0] sm:$0xff]
                  %450 = vst [vmem:[%s392 + $0xe0] sm:$0xff] %v449
                  %v451 = vld [vmem:[%s391 + $0xe8] sm:$0xff]
                  %452 = vst [vmem:[%s392 + $0xe8] sm:$0xff] %v451
                  %v453 = vld [vmem:[%s391 + $0xf0] sm:$0xff]
                  %454 = vst [vmem:[%s392 + $0xf0] sm:$0xff] %v453
                  %v455 = vld [vmem:[%s391 + $0xf8] sm:$0xff]
                  %456 = vst [vmem:[%s392 + $0xf8] sm:$0xff] %v455
                  %v457 = vld [vmem:[%s391 + $0x400] sm:$0xff]
                  %458 = vst [vmem:[%s392 + $0x100] sm:$0xff] %v457
                  %v459 = vld [vmem:[%s391 + $0x408] sm:$0xff]
                  %460 = vst [vmem:[%s392 + $0x108] sm:$0xff] %v459
                  %v461 = vld [vmem:[%s391 + $0x410] sm:$0xff]
                  %462 = vst [vmem:[%s392 + $0x110] sm:$0xff] %v461
                  %v463 = vld [vmem:[%s391 + $0x418] sm:$0xff]
                  %464 = vst [vmem:[%s392 + $0x118] sm:$0xff] %v463
                  %v465 = vld [vmem:[%s391 + $0x420] sm:$0xff]
                  %466 = vst [vmem:[%s392 + $0x120] sm:$0xff] %v465
                  %v467 = vld [vmem:[%s391 + $0x428] sm:$0xff]
                  %468 = vst [vmem:[%s392 + $0x128] sm:$0xff] %v467
                  %v469 = vld [vmem:[%s391 + $0x430] sm:$0xff]
                  %470 = vst [vmem:[%s392 + $0x130] sm:$0xff] %v469
                  %v471 = vld [vmem:[%s391 + $0x438] sm:$0xff]
                  %472 = vst [vmem:[%s392 + $0x138] sm:$0xff] %v471
                  %v473 = vld [vmem:[%s391 + $0x440] sm:$0xff]
                  %474 = vst [vmem:[%s392 + $0x140] sm:$0xff] %v473
                  %v475 = vld [vmem:[%s391 + $0x448] sm:$0xff]
                  %476 = vst [vmem:[%s392 + $0x148] sm:$0xff] %v475
                  %v477 = vld [vmem:[%s391 + $0x450] sm:$0xff]
                  %478 = vst [vmem:[%s392 + $0x150] sm:$0xff] %v477
                  %v479 = vld [vmem:[%s391 + $0x458] sm:$0xff]
                  %480 = vst [vmem:[%s392 + $0x158] sm:$0xff] %v479
                  %v481 = vld [vmem:[%s391 + $0x460] sm:$0xff]
                  %482 = vst [vmem:[%s392 + $0x160] sm:$0xff] %v481
                  %v483 = vld [vmem:[%s391 + $0x468] sm:$0xff]
                  %484 = vst [vmem:[%s392 + $0x168] sm:$0xff] %v483
                  %v485 = vld [vmem:[%s391 + $0x470] sm:$0xff]
                  %486 = vst [vmem:[%s392 + $0x170] sm:$0xff] %v485
                  %v487 = vld [vmem:[%s391 + $0x478] sm:$0xff]
                  %488 = vst [vmem:[%s392 + $0x178] sm:$0xff] %v487
                  %v489 = vld [vmem:[%s391 + $0x480] sm:$0xff]
                  %490 = vst [vmem:[%s392 + $0x180] sm:$0xff] %v489
                  %v491 = vld [vmem:[%s391 + $0x488] sm:$0xff]
                  %492 = vst [vmem:[%s392 + $0x188] sm:$0xff] %v491
                  %v493 = vld [vmem:[%s391 + $0x490] sm:$0xff]
                  %494 = vst [vmem:[%s392 + $0x190] sm:$0xff] %v493
                  %v495 = vld [vmem:[%s391 + $0x498] sm:$0xff]
                  %496 = vst [vmem:[%s392 + $0x198] sm:$0xff] %v495
                  %v497 = vld [vmem:[%s391 + $0x4a0] sm:$0xff]
                  %498 = vst [vmem:[%s392 + $0x1a0] sm:$0xff] %v497
                  %v499 = vld [vmem:[%s391 + $0x4a8] sm:$0xff]
                  %500 = vst [vmem:[%s392 + $0x1a8] sm:$0xff] %v499
                  %v501 = vld [vmem:[%s391 + $0x4b0] sm:$0xff]
                  %502 = vst [vmem:[%s392 + $0x1b0] sm:$0xff] %v501
                  %v503 = vld [vmem:[%s391 + $0x4b8] sm:$0xff]
                  %504 = vst [vmem:[%s392 + $0x1b8] sm:$0xff] %v503
                  %v505 = vld [vmem:[%s391 + $0x4c0] sm:$0xff]
                  %506 = vst [vmem:[%s392 + $0x1c0] sm:$0xff] %v505
                  %v507 = vld [vmem:[%s391 + $0x4c8] sm:$0xff]
                  %508 = vst [vmem:[%s392 + $0x1c8] sm:$0xff] %v507
                  %v509 = vld [vmem:[%s391 + $0x4d0] sm:$0xff]
                  %510 = vst [vmem:[%s392 + $0x1d0] sm:$0xff] %v509
                  %v511 = vld [vmem:[%s391 + $0x4d8] sm:$0xff]
                  %512 = vst [vmem:[%s392 + $0x1d8] sm:$0xff] %v511
                  %v513 = vld [vmem:[%s391 + $0x4e0] sm:$0xff]
                  %514 = vst [vmem:[%s392 + $0x1e0] sm:$0xff] %v513
                  %v515 = vld [vmem:[%s391 + $0x4e8] sm:$0xff]
                  %516 = vst [vmem:[%s392 + $0x1e8] sm:$0xff] %v515
                  %v517 = vld [vmem:[%s391 + $0x4f0] sm:$0xff]
                  %518 = vst [vmem:[%s392 + $0x1f0] sm:$0xff] %v517
                  %v519 = vld [vmem:[%s391 + $0x4f8] sm:$0xff]
                  %520 = vst [vmem:[%s392 + $0x1f8] sm:$0xff] %v519
                $region68: #{tpu_custom_call.1} parent=62 // loop_footer
                  %s390 = sadd.s32 1, %s386
                $region69: #{tpu_custom_call.1} parent=62 // loop_footer_branch
                  %385 = sbr.rel target = $region65
                $region70: #{tpu_custom_call.1} parent=62 // loop_exit
                  _
              $region63: #{tpu_custom_call.1} parent=47 // pred_fallthru
                _
              // Predicated region
              $region71: #{tpu_custom_call.1} parent=47 // pred_check
                _
              $region72: #{tpu_custom_call.1} parent=47 // pred_check_branch
                %522 = sbr.rel target = $region74
              $region73: #{tpu_custom_call.1} parent=47 // pred_region
                _
              $region74: #{tpu_custom_call.1} parent=47 // pred_fallthru
                _
            $region48: #{tpu_custom_call.1} parent=43 // pred_fallthru
              _
            // Predicated region
            $region49: #{tpu_custom_call.1} parent=43 // pred_check
              _
            $region50: #{tpu_custom_call.1} parent=43 // pred_check_branch
              %245 = sbr.rel target = $region52
            $region51: #{tpu_custom_call.1} parent=43 // pred_region
              loop: start=0, step=1, limit=1
              $region53: #{tpu_custom_call.1} parent=51 // loop_pre_header
                _
              $region54: #{tpu_custom_call.1} parent=51 // loop_header
                %s248 = sphi 0, %s252
                %p249 = scmp.ge.s32.totalorder %s248, 1
                %s253 = sphi %s239, %s239
                %s254 = sphi %s231, %s231
              $region55: #{tpu_custom_call.1} parent=51 // loop_header_branch
                %251 = sbr.rel (%p249) target = $region59
              $region56: #{tpu_custom_call.1} parent=51 // loop_body
                %v255 = vld [vmem:[%s253] sm:$0xff]
                %256 = vst [vmem:[%s254] sm:$0xff] %v255
                %v257 = vld [vmem:[%s253 + $0x8] sm:$0xff]
                %258 = vst [vmem:[%s254 + $0x8] sm:$0xff] %v257
                %v259 = vld [vmem:[%s253 + $0x10] sm:$0xff]
                %260 = vst [vmem:[%s254 + $0x10] sm:$0xff] %v259
                %v261 = vld [vmem:[%s253 + $0x18] sm:$0xff]
                %262 = vst [vmem:[%s254 + $0x18] sm:$0xff] %v261
                %v263 = vld [vmem:[%s253 + $0x20] sm:$0xff]
                %264 = vst [vmem:[%s254 + $0x20] sm:$0xff] %v263
                %v265 = vld [vmem:[%s253 + $0x28] sm:$0xff]
                %266 = vst [vmem:[%s254 + $0x28] sm:$0xff] %v265
                %v267 = vld [vmem:[%s253 + $0x30] sm:$0xff]
                %268 = vst [vmem:[%s254 + $0x30] sm:$0xff] %v267
                %v269 = vld [vmem:[%s253 + $0x38] sm:$0xff]
                %270 = vst [vmem:[%s254 + $0x38] sm:$0xff] %v269
                %v271 = vld [vmem:[%s253 + $0x40] sm:$0xff]
                %272 = vst [vmem:[%s254 + $0x40] sm:$0xff] %v271
                %v273 = vld [vmem:[%s253 + $0x48] sm:$0xff]
                %274 = vst [vmem:[%s254 + $0x48] sm:$0xff] %v273
                %v275 = vld [vmem:[%s253 + $0x50] sm:$0xff]
                %276 = vst [vmem:[%s254 + $0x50] sm:$0xff] %v275
                %v277 = vld [vmem:[%s253 + $0x58] sm:$0xff]
                %278 = vst [vmem:[%s254 + $0x58] sm:$0xff] %v277
                %v279 = vld [vmem:[%s253 + $0x60] sm:$0xff]
                %280 = vst [vmem:[%s254 + $0x60] sm:$0xff] %v279
                %v281 = vld [vmem:[%s253 + $0x68] sm:$0xff]
                %282 = vst [vmem:[%s254 + $0x68] sm:$0xff] %v281
                %v283 = vld [vmem:[%s253 + $0x70] sm:$0xff]
                %284 = vst [vmem:[%s254 + $0x70] sm:$0xff] %v283
                %v285 = vld [vmem:[%s253 + $0x78] sm:$0xff]
                %286 = vst [vmem:[%s254 + $0x78] sm:$0xff] %v285
                %v287 = vld [vmem:[%s253 + $0x80] sm:$0xff]
                %288 = vst [vmem:[%s254 + $0x80] sm:$0xff] %v287
                %v289 = vld [vmem:[%s253 + $0x88] sm:$0xff]
                %290 = vst [vmem:[%s254 + $0x88] sm:$0xff] %v289
                %v291 = vld [vmem:[%s253 + $0x90] sm:$0xff]
                %292 = vst [vmem:[%s254 + $0x90] sm:$0xff] %v291
                %v293 = vld [vmem:[%s253 + $0x98] sm:$0xff]
                %294 = vst [vmem:[%s254 + $0x98] sm:$0xff] %v293
                %v295 = vld [vmem:[%s253 + $0xa0] sm:$0xff]
                %296 = vst [vmem:[%s254 + $0xa0] sm:$0xff] %v295
                %v297 = vld [vmem:[%s253 + $0xa8] sm:$0xff]
                %298 = vst [vmem:[%s254 + $0xa8] sm:$0xff] %v297
                %v299 = vld [vmem:[%s253 + $0xb0] sm:$0xff]
                %300 = vst [vmem:[%s254 + $0xb0] sm:$0xff] %v299
                %v301 = vld [vmem:[%s253 + $0xb8] sm:$0xff]
                %302 = vst [vmem:[%s254 + $0xb8] sm:$0xff] %v301
                %v303 = vld [vmem:[%s253 + $0xc0] sm:$0xff]
                %304 = vst [vmem:[%s254 + $0xc0] sm:$0xff] %v303
                %v305 = vld [vmem:[%s253 + $0xc8] sm:$0xff]
                %306 = vst [vmem:[%s254 + $0xc8] sm:$0xff] %v305
                %v307 = vld [vmem:[%s253 + $0xd0] sm:$0xff]
                %308 = vst [vmem:[%s254 + $0xd0] sm:$0xff] %v307
                %v309 = vld [vmem:[%s253 + $0xd8] sm:$0xff]
                %310 = vst [vmem:[%s254 + $0xd8] sm:$0xff] %v309
                %v311 = vld [vmem:[%s253 + $0xe0] sm:$0xff]
                %312 = vst [vmem:[%s254 + $0xe0] sm:$0xff] %v311
                %v313 = vld [vmem:[%s253 + $0xe8] sm:$0xff]
                %314 = vst [vmem:[%s254 + $0xe8] sm:$0xff] %v313
                %v315 = vld [vmem:[%s253 + $0xf0] sm:$0xff]
                %316 = vst [vmem:[%s254 + $0xf0] sm:$0xff] %v315
                %v317 = vld [vmem:[%s253 + $0xf8] sm:$0xff]
                %318 = vst [vmem:[%s254 + $0xf8] sm:$0xff] %v317
                %v319 = vld [vmem:[%s253 + $0x400] sm:$0xff]
                %320 = vst [vmem:[%s254 + $0x100] sm:$0xff] %v319
                %v321 = vld [vmem:[%s253 + $0x408] sm:$0xff]
                %322 = vst [vmem:[%s254 + $0x108] sm:$0xff] %v321
                %v323 = vld [vmem:[%s253 + $0x410] sm:$0xff]
                %324 = vst [vmem:[%s254 + $0x110] sm:$0xff] %v323
                %v325 = vld [vmem:[%s253 + $0x418] sm:$0xff]
                %326 = vst [vmem:[%s254 + $0x118] sm:$0xff] %v325
                %v327 = vld [vmem:[%s253 + $0x420] sm:$0xff]
                %328 = vst [vmem:[%s254 + $0x120] sm:$0xff] %v327
                %v329 = vld [vmem:[%s253 + $0x428] sm:$0xff]
                %330 = vst [vmem:[%s254 + $0x128] sm:$0xff] %v329
                %v331 = vld [vmem:[%s253 + $0x430] sm:$0xff]
                %332 = vst [vmem:[%s254 + $0x130] sm:$0xff] %v331
                %v333 = vld [vmem:[%s253 + $0x438] sm:$0xff]
                %334 = vst [vmem:[%s254 + $0x138] sm:$0xff] %v333
                %v335 = vld [vmem:[%s253 + $0x440] sm:$0xff]
                %336 = vst [vmem:[%s254 + $0x140] sm:$0xff] %v335
                %v337 = vld [vmem:[%s253 + $0x448] sm:$0xff]
                %338 = vst [vmem:[%s254 + $0x148] sm:$0xff] %v337
                %v339 = vld [vmem:[%s253 + $0x450] sm:$0xff]
                %340 = vst [vmem:[%s254 + $0x150] sm:$0xff] %v339
                %v341 = vld [vmem:[%s253 + $0x458] sm:$0xff]
                %342 = vst [vmem:[%s254 + $0x158] sm:$0xff] %v341
                %v343 = vld [vmem:[%s253 + $0x460] sm:$0xff]
                %344 = vst [vmem:[%s254 + $0x160] sm:$0xff] %v343
                %v345 = vld [vmem:[%s253 + $0x468] sm:$0xff]
                %346 = vst [vmem:[%s254 + $0x168] sm:$0xff] %v345
                %v347 = vld [vmem:[%s253 + $0x470] sm:$0xff]
                %348 = vst [vmem:[%s254 + $0x170] sm:$0xff] %v347
                %v349 = vld [vmem:[%s253 + $0x478] sm:$0xff]
                %350 = vst [vmem:[%s254 + $0x178] sm:$0xff] %v349
                %v351 = vld [vmem:[%s253 + $0x480] sm:$0xff]
                %352 = vst [vmem:[%s254 + $0x180] sm:$0xff] %v351
                %v353 = vld [vmem:[%s253 + $0x488] sm:$0xff]
                %354 = vst [vmem:[%s254 + $0x188] sm:$0xff] %v353
                %v355 = vld [vmem:[%s253 + $0x490] sm:$0xff]
                %356 = vst [vmem:[%s254 + $0x190] sm:$0xff] %v355
                %v357 = vld [vmem:[%s253 + $0x498] sm:$0xff]
                %358 = vst [vmem:[%s254 + $0x198] sm:$0xff] %v357
                %v359 = vld [vmem:[%s253 + $0x4a0] sm:$0xff]
                %360 = vst [vmem:[%s254 + $0x1a0] sm:$0xff] %v359
                %v361 = vld [vmem:[%s253 + $0x4a8] sm:$0xff]
                %362 = vst [vmem:[%s254 + $0x1a8] sm:$0xff] %v361
                %v363 = vld [vmem:[%s253 + $0x4b0] sm:$0xff]
                %364 = vst [vmem:[%s254 + $0x1b0] sm:$0xff] %v363
                %v365 = vld [vmem:[%s253 + $0x4b8] sm:$0xff]
                %366 = vst [vmem:[%s254 + $0x1b8] sm:$0xff] %v365
                %v367 = vld [vmem:[%s253 + $0x4c0] sm:$0xff]
                %368 = vst [vmem:[%s254 + $0x1c0] sm:$0xff] %v367
                %v369 = vld [vmem:[%s253 + $0x4c8] sm:$0xff]
                %370 = vst [vmem:[%s254 + $0x1c8] sm:$0xff] %v369
                %v371 = vld [vmem:[%s253 + $0x4d0] sm:$0xff]
                %372 = vst [vmem:[%s254 + $0x1d0] sm:$0xff] %v371
                %v373 = vld [vmem:[%s253 + $0x4d8] sm:$0xff]
                %374 = vst [vmem:[%s254 + $0x1d8] sm:$0xff] %v373
                %v375 = vld [vmem:[%s253 + $0x4e0] sm:$0xff]
                %376 = vst [vmem:[%s254 + $0x1e0] sm:$0xff] %v375
                %v377 = vld [vmem:[%s253 + $0x4e8] sm:$0xff]
                %378 = vst [vmem:[%s254 + $0x1e8] sm:$0xff] %v377
                %v379 = vld [vmem:[%s253 + $0x4f0] sm:$0xff]
                %380 = vst [vmem:[%s254 + $0x1f0] sm:$0xff] %v379
                %v381 = vld [vmem:[%s253 + $0x4f8] sm:$0xff]
                %382 = vst [vmem:[%s254 + $0x1f8] sm:$0xff] %v381
              $region57: #{tpu_custom_call.1} parent=51 // loop_footer
                %s252 = sadd.s32 1, %s248
              $region58: #{tpu_custom_call.1} parent=51 // loop_footer_branch
                %247 = sbr.rel target = $region54
              $region59: #{tpu_custom_call.1} parent=51 // loop_exit
                _
            $region52: #{tpu_custom_call.1} parent=43 // pred_fallthru
              _
          $region44: #{tpu_custom_call.1} parent=39 // pred_fallthru
            _
          %523 = vnop
        $region40: #{tpu_custom_call.1} parent=35 // pred_fallthru
          _
      $region36: #{tpu_custom_call.1} parent=5 // pred_fallthru
        _
      %p524 = scmp.le.s32.totalorder 1, %s12
      %p525 = scmp.lt.s32.totalorder %s12, 9
      %p526 = pnand %p524, %p525
      %p527 = pneg %p526
      // Predicated region
      $region75: #{tpu_custom_call.1} parent=5 // pred_check
        _
      $region76: #{tpu_custom_call.1} parent=5 // pred_check_branch
        %529 = sbr.rel (%p526) target = $region78
      $region77: #{tpu_custom_call.1} parent=5 // pred_region
        %s530 = ssub.s32 %s12, 1
        %s531 = sand.u32 %s47, 1
        %s532 = sand.u32 %s47, 1
        %s533 = smul.addr %s532, 512
        %s534 = scalar_lea.vmem [#allocation7], %s533
        // Predicated region
        $region79: #{tpu_custom_call.1} parent=77 // pred_check
          %p535 = pneg %p60
        $region80: #{tpu_custom_call.1} parent=77 // pred_check_branch
          %537 = sbr.rel (%p535) target = $region82
        $region81: #{tpu_custom_call.1} parent=77 // pred_region
          _
        $region82: #{tpu_custom_call.1} parent=77 // pred_fallthru
          _
        %s538 = sand.u32 %s47, 1
        %s539 = sand.u32 %s47, 1
        %s540 = smul.addr %s539, 512
        %s541 = scalar_lea.vmem [#allocation7], %s540
        %p542 = pneg %p60
        %p543 = pneg %p57
        %p544 = pneg %p81
        %p545 = pneg %p78
        %p546 = pneg %p102
        %p547 = pneg %p99
        %p548 = pneg %p123
        %p549 = pneg %p120
        %p550 = pneg %p144
        %p551 = pneg %p141
        %p552 = pneg %p165
        %p553 = pneg %p162
        %p554 = pneg %p191
        %p555 = pneg %p188
        %p556 = scmp.lt.s32.totalorder %s21, 1
        %s557 = scalar_select %p556, %s21, 1
        %s558 = smul.addr %s557, 64
        %s559 = smul.addr %s558, 8
        %s560 = scalar_lea.vmem %s6, %s559
        %s561 = smul.u32 %s21, 3
        %s562 = smul.u32 %s21, 2
        %s563 = ssub.s32 1, %s562
        %s564 = smul.u32 %s563, %s22
        %s565 = sadd.s32 %s561, %s564
        %p566 = scmp.lt.s32.totalorder %s21, 1
        %s567 = scalar_select %p566, %s21, 1
        %s568 = smul.addr %s567, 64
        %s569 = smul.addr %s568, 8
        %s570 = scalar_lea.vmem %s6, %s569
        %p571 = scmp.eq.s32.totalorder %s22, 0
        // Predicated region
        $region83: #{tpu_custom_call.1} parent=77 // pred_check
          %p572 = pneg %p571
        $region84: #{tpu_custom_call.1} parent=77 // pred_check_branch
          %574 = sbr.rel (%p572) target = $region86
        $region85: #{tpu_custom_call.1} parent=77 // pred_region
          %vm575 = vcmask 64512
          %576 = vst.msk [vmem:[#allocation2] sm:$0xff] %vm575, 0.0
          %577 = vst.msk [vmem:[#allocation2 + $0x8] sm:$0xff] %vm575, 0.0
          %vm578 = vcmask 58368
          %579 = vst.msk [vmem:[#allocation2 + $0x10] sm:$0x3] %vm578, 0.0
          %580 = vst.msk [vmem:[#allocation2 + $0x18] sm:$0xff] %vm575, 0.0
          %581 = vst.msk [vmem:[#allocation2 + $0x20] sm:$0xff] %vm575, 0.0
          %582 = vst.msk [vmem:[#allocation2 + $0x28] sm:$0x3] %vm578, 0.0
          %583 = vst.msk [vmem:[#allocation2 + $0x30] sm:$0xff] %vm575, 0.0
          %584 = vst.msk [vmem:[#allocation2 + $0x38] sm:$0xff] %vm575, 0.0
          %585 = vst.msk [vmem:[#allocation2 + $0x40] sm:$0x3] %vm578, 0.0
          %586 = vst.msk [vmem:[#allocation2 + $0x48] sm:$0xff] %vm575, 0.0
          %587 = vst.msk [vmem:[#allocation2 + $0x50] sm:$0xff] %vm575, 0.0
          %588 = vst.msk [vmem:[#allocation2 + $0x58] sm:$0x3] %vm578, 0.0
          %589 = vst.msk [vmem:[#allocation2 + $0x60] sm:$0xff] %vm575, 0.0
          %590 = vst.msk [vmem:[#allocation2 + $0x68] sm:$0xff] %vm575, 0.0
          %591 = vst.msk [vmem:[#allocation2 + $0x70] sm:$0x3] %vm578, 0.0
          %592 = vst.msk [vmem:[#allocation2 + $0x78] sm:$0xff] %vm575, 0.0
          %593 = vst.msk [vmem:[#allocation2 + $0x80] sm:$0xff] %vm575, 0.0
          %594 = vst.msk [vmem:[#allocation2 + $0x88] sm:$0x3] %vm578, 0.0
          %595 = vst.msk [vmem:[#allocation2 + $0x90] sm:$0xff] %vm575, 0.0
          %596 = vst.msk [vmem:[#allocation2 + $0x98] sm:$0xff] %vm575, 0.0
          %597 = vst.msk [vmem:[#allocation2 + $0xa0] sm:$0x3] %vm578, 0.0
          %598 = vst.msk [vmem:[#allocation2 + $0xa8] sm:$0xff] %vm575, 0.0
          %599 = vst.msk [vmem:[#allocation2 + $0xb0] sm:$0xff] %vm575, 0.0
          %600 = vst.msk [vmem:[#allocation2 + $0xb8] sm:$0x3] %vm578, 0.0
          %601 = vst.msk [vmem:[#allocation2 + $0xc0] sm:$0xff] %vm575, 0.0
          %602 = vst.msk [vmem:[#allocation2 + $0xc8] sm:$0xff] %vm575, 0.0
          %603 = vst.msk [vmem:[#allocation2 + $0xd0] sm:$0x3] %vm578, 0.0
          %604 = vst.msk [vmem:[#allocation2 + $0xd8] sm:$0xff] %vm575, 0.0
          %605 = vst.msk [vmem:[#allocation2 + $0xe0] sm:$0xff] %vm575, 0.0
          %606 = vst.msk [vmem:[#allocation2 + $0xe8] sm:$0x3] %vm578, 0.0
          %607 = vst.msk [vmem:[#allocation2 + $0xf0] sm:$0xff] %vm575, 0.0
          %608 = vst.msk [vmem:[#allocation2 + $0xf8] sm:$0xff] %vm575, 0.0
          %609 = vst.msk [vmem:[#allocation2 + $0x100] sm:$0x3] %vm578, 0.0
          %610 = vst.msk [vmem:[#allocation2 + $0x108] sm:$0xff] %vm575, 0.0
          %611 = vst.msk [vmem:[#allocation2 + $0x110] sm:$0xff] %vm575, 0.0
          %612 = vst.msk [vmem:[#allocation2 + $0x118] sm:$0x3] %vm578, 0.0
          %613 = vst.msk [vmem:[#allocation2 + $0x120] sm:$0xff] %vm575, 0.0
          %614 = vst.msk [vmem:[#allocation2 + $0x128] sm:$0xff] %vm575, 0.0
          %615 = vst.msk [vmem:[#allocation2 + $0x130] sm:$0x3] %vm578, 0.0
          %616 = vst.msk [vmem:[#allocation2 + $0x138] sm:$0xff] %vm575, 0.0
          %617 = vst.msk [vmem:[#allocation2 + $0x140] sm:$0xff] %vm575, 0.0
          %618 = vst.msk [vmem:[#allocation2 + $0x148] sm:$0x3] %vm578, 0.0
          %619 = vst.msk [vmem:[#allocation2 + $0x150] sm:$0xff] %vm575, 0.0
          %620 = vst.msk [vmem:[#allocation2 + $0x158] sm:$0xff] %vm575, 0.0
          %621 = vst.msk [vmem:[#allocation2 + $0x160] sm:$0x3] %vm578, 0.0
          %622 = vst.msk [vmem:[#allocation2 + $0x168] sm:$0xff] %vm575, 0.0
          %623 = vst.msk [vmem:[#allocation2 + $0x170] sm:$0xff] %vm575, 0.0
          %624 = vst.msk [vmem:[#allocation2 + $0x178] sm:$0x3] %vm578, 0.0
          %625 = vst.msk [vmem:[#allocation2 + $0x180] sm:$0xff] %vm575, 0.0
          %626 = vst.msk [vmem:[#allocation2 + $0x188] sm:$0xff] %vm575, 0.0
          %627 = vst.msk [vmem:[#allocation2 + $0x190] sm:$0x3] %vm578, 0.0
          %628 = vst.msk [vmem:[#allocation2 + $0x198] sm:$0xff] %vm575, 0.0
          %629 = vst.msk [vmem:[#allocation2 + $0x1a0] sm:$0xff] %vm575, 0.0
          %630 = vst.msk [vmem:[#allocation2 + $0x1a8] sm:$0x3] %vm578, 0.0
          %631 = vst.msk [vmem:[#allocation2 + $0x1b0] sm:$0xff] %vm575, 0.0
          %632 = vst.msk [vmem:[#allocation2 + $0x1b8] sm:$0xff] %vm575, 0.0
          %633 = vst.msk [vmem:[#allocation2 + $0x1c0] sm:$0x3] %vm578, 0.0
          %634 = vst.msk [vmem:[#allocation2 + $0x1c8] sm:$0xff] %vm575, 0.0
          %635 = vst.msk [vmem:[#allocation2 + $0x1d0] sm:$0xff] %vm575, 0.0
          %636 = vst.msk [vmem:[#allocation2 + $0x1d8] sm:$0x3] %vm578, 0.0
          %637 = vst.msk [vmem:[#allocation2 + $0x1e0] sm:$0xff] %vm575, 0.0
          %638 = vst.msk [vmem:[#allocation2 + $0x1e8] sm:$0xff] %vm575, 0.0
          %639 = vst.msk [vmem:[#allocation2 + $0x1f0] sm:$0x3] %vm578, 0.0
          %640 = vst.msk [vmem:[#allocation2 + $0x1f8] sm:$0xff] %vm575, 0.0
          %641 = vst.msk [vmem:[#allocation2 + $0x200] sm:$0xff] %vm575, 0.0
          %642 = vst.msk [vmem:[#allocation2 + $0x208] sm:$0x3] %vm578, 0.0
          %643 = vst.msk [vmem:[#allocation2 + $0x210] sm:$0xff] %vm575, 0.0
          %644 = vst.msk [vmem:[#allocation2 + $0x218] sm:$0xff] %vm575, 0.0
          %645 = vst.msk [vmem:[#allocation2 + $0x220] sm:$0x3] %vm578, 0.0
          %646 = vst.msk [vmem:[#allocation2 + $0x228] sm:$0xff] %vm575, 0.0
          %647 = vst.msk [vmem:[#allocation2 + $0x230] sm:$0xff] %vm575, 0.0
          %648 = vst.msk [vmem:[#allocation2 + $0x238] sm:$0x3] %vm578, 0.0
          %649 = vst.msk [vmem:[#allocation2 + $0x240] sm:$0xff] %vm575, 0.0
          %650 = vst.msk [vmem:[#allocation2 + $0x248] sm:$0xff] %vm575, 0.0
          %651 = vst.msk [vmem:[#allocation2 + $0x250] sm:$0x3] %vm578, 0.0
          %652 = vst.msk [vmem:[#allocation2 + $0x258] sm:$0xff] %vm575, 0.0
          %653 = vst.msk [vmem:[#allocation2 + $0x260] sm:$0xff] %vm575, 0.0
          %654 = vst.msk [vmem:[#allocation2 + $0x268] sm:$0x3] %vm578, 0.0
          %655 = vst.msk [vmem:[#allocation2 + $0x270] sm:$0xff] %vm575, 0.0
          %656 = vst.msk [vmem:[#allocation2 + $0x278] sm:$0xff] %vm575, 0.0
          %657 = vst.msk [vmem:[#allocation2 + $0x280] sm:$0x3] %vm578, 0.0
          %658 = vst.msk [vmem:[#allocation2 + $0x288] sm:$0xff] %vm575, 0.0
          %659 = vst.msk [vmem:[#allocation2 + $0x290] sm:$0xff] %vm575, 0.0
          %660 = vst.msk [vmem:[#allocation2 + $0x298] sm:$0x3] %vm578, 0.0
          %661 = vst.msk [vmem:[#allocation2 + $0x2a0] sm:$0xff] %vm575, 0.0
          %662 = vst.msk [vmem:[#allocation2 + $0x2a8] sm:$0xff] %vm575, 0.0
          %663 = vst.msk [vmem:[#allocation2 + $0x2b0] sm:$0x3] %vm578, 0.0
          %664 = vst.msk [vmem:[#allocation2 + $0x2b8] sm:$0xff] %vm575, 0.0
          %665 = vst.msk [vmem:[#allocation2 + $0x2c0] sm:$0xff] %vm575, 0.0
          %666 = vst.msk [vmem:[#allocation2 + $0x2c8] sm:$0x3] %vm578, 0.0
          %667 = vst.msk [vmem:[#allocation2 + $0x2d0] sm:$0xff] %vm575, 0.0
          %668 = vst.msk [vmem:[#allocation2 + $0x2d8] sm:$0xff] %vm575, 0.0
          %669 = vst.msk [vmem:[#allocation2 + $0x2e0] sm:$0x3] %vm578, 0.0
          %670 = vst.msk [vmem:[#allocation2 + $0x2e8] sm:$0xff] %vm575, 0.0
          %671 = vst.msk [vmem:[#allocation2 + $0x2f0] sm:$0xff] %vm575, 0.0
          %672 = vst.msk [vmem:[#allocation2 + $0x2f8] sm:$0x3] %vm578, 0.0
          %673 = vst.msk [vmem:[#allocation2 + $0x300] sm:$0xff] %vm575, 0.0
          %674 = vst.msk [vmem:[#allocation2 + $0x308] sm:$0xff] %vm575, 0.0
          %675 = vst.msk [vmem:[#allocation2 + $0x310] sm:$0x3] %vm578, 0.0
          %676 = vst.msk [vmem:[#allocation2 + $0x318] sm:$0xff] %vm575, 0.0
          %677 = vst.msk [vmem:[#allocation2 + $0x320] sm:$0xff] %vm575, 0.0
          %678 = vst.msk [vmem:[#allocation2 + $0x328] sm:$0x3] %vm578, 0.0
          %679 = vst.msk [vmem:[#allocation2 + $0x330] sm:$0xff] %vm575, 0.0
          %680 = vst.msk [vmem:[#allocation2 + $0x338] sm:$0xff] %vm575, 0.0
          %681 = vst.msk [vmem:[#allocation2 + $0x340] sm:$0x3] %vm578, 0.0
          %682 = vst.msk [vmem:[#allocation2 + $0x348] sm:$0xff] %vm575, 0.0
          %683 = vst.msk [vmem:[#allocation2 + $0x350] sm:$0xff] %vm575, 0.0
          %684 = vst.msk [vmem:[#allocation2 + $0x358] sm:$0x3] %vm578, 0.0
          %685 = vst.msk [vmem:[#allocation3] sm:$0xff] %vm575, 0.0
          %686 = vst.msk [vmem:[#allocation3 + $0x8] sm:$0xff] %vm575, 0.0
          %687 = vst.msk [vmem:[#allocation3 + $0x10] sm:$0x3] %vm578, 0.0
          %688 = vst.msk [vmem:[#allocation3 + $0x18] sm:$0xff] %vm575, 0.0
          %689 = vst.msk [vmem:[#allocation3 + $0x20] sm:$0xff] %vm575, 0.0
          %690 = vst.msk [vmem:[#allocation3 + $0x28] sm:$0x3] %vm578, 0.0
          %691 = vst.msk [vmem:[#allocation3 + $0x30] sm:$0xff] %vm575, 0.0
          %692 = vst.msk [vmem:[#allocation3 + $0x38] sm:$0xff] %vm575, 0.0
          %693 = vst.msk [vmem:[#allocation3 + $0x40] sm:$0x3] %vm578, 0.0
          %694 = vst.msk [vmem:[#allocation3 + $0x48] sm:$0xff] %vm575, 0.0
          %695 = vst.msk [vmem:[#allocation3 + $0x50] sm:$0xff] %vm575, 0.0
          %696 = vst.msk [vmem:[#allocation3 + $0x58] sm:$0x3] %vm578, 0.0
          %697 = vst.msk [vmem:[#allocation3 + $0x60] sm:$0xff] %vm575, 0.0
          %698 = vst.msk [vmem:[#allocation3 + $0x68] sm:$0xff] %vm575, 0.0
          %699 = vst.msk [vmem:[#allocation3 + $0x70] sm:$0x3] %vm578, 0.0
          %700 = vst.msk [vmem:[#allocation3 + $0x78] sm:$0xff] %vm575, 0.0
          %701 = vst.msk [vmem:[#allocation3 + $0x80] sm:$0xff] %vm575, 0.0
          %702 = vst.msk [vmem:[#allocation3 + $0x88] sm:$0x3] %vm578, 0.0
          %703 = vst.msk [vmem:[#allocation3 + $0x90] sm:$0xff] %vm575, 0.0
          %704 = vst.msk [vmem:[#allocation3 + $0x98] sm:$0xff] %vm575, 0.0
          %705 = vst.msk [vmem:[#allocation3 + $0xa0] sm:$0x3] %vm578, 0.0
          %706 = vst.msk [vmem:[#allocation3 + $0xa8] sm:$0xff] %vm575, 0.0
          %707 = vst.msk [vmem:[#allocation3 + $0xb0] sm:$0xff] %vm575, 0.0
          %708 = vst.msk [vmem:[#allocation3 + $0xb8] sm:$0x3] %vm578, 0.0
          %709 = vst.msk [vmem:[#allocation3 + $0xc0] sm:$0xff] %vm575, 0.0
          %710 = vst.msk [vmem:[#allocation3 + $0xc8] sm:$0xff] %vm575, 0.0
          %711 = vst.msk [vmem:[#allocation3 + $0xd0] sm:$0x3] %vm578, 0.0
          %712 = vst.msk [vmem:[#allocation3 + $0xd8] sm:$0xff] %vm575, 0.0
          %713 = vst.msk [vmem:[#allocation3 + $0xe0] sm:$0xff] %vm575, 0.0
          %714 = vst.msk [vmem:[#allocation3 + $0xe8] sm:$0x3] %vm578, 0.0
          %715 = vst.msk [vmem:[#allocation3 + $0xf0] sm:$0xff] %vm575, 0.0
          %716 = vst.msk [vmem:[#allocation3 + $0xf8] sm:$0xff] %vm575, 0.0
          %717 = vst.msk [vmem:[#allocation3 + $0x100] sm:$0x3] %vm578, 0.0
          %718 = vst.msk [vmem:[#allocation3 + $0x108] sm:$0xff] %vm575, 0.0
          %719 = vst.msk [vmem:[#allocation3 + $0x110] sm:$0xff] %vm575, 0.0
          %720 = vst.msk [vmem:[#allocation3 + $0x118] sm:$0x3] %vm578, 0.0
          %721 = vst.msk [vmem:[#allocation3 + $0x120] sm:$0xff] %vm575, 0.0
          %722 = vst.msk [vmem:[#allocation3 + $0x128] sm:$0xff] %vm575, 0.0
          %723 = vst.msk [vmem:[#allocation3 + $0x130] sm:$0x3] %vm578, 0.0
          %724 = vst.msk [vmem:[#allocation3 + $0x138] sm:$0xff] %vm575, 0.0
          %725 = vst.msk [vmem:[#allocation3 + $0x140] sm:$0xff] %vm575, 0.0
          %726 = vst.msk [vmem:[#allocation3 + $0x148] sm:$0x3] %vm578, 0.0
          %727 = vst.msk [vmem:[#allocation3 + $0x150] sm:$0xff] %vm575, 0.0
          %728 = vst.msk [vmem:[#allocation3 + $0x158] sm:$0xff] %vm575, 0.0
          %729 = vst.msk [vmem:[#allocation3 + $0x160] sm:$0x3] %vm578, 0.0
          %730 = vst.msk [vmem:[#allocation3 + $0x168] sm:$0xff] %vm575, 0.0
          %731 = vst.msk [vmem:[#allocation3 + $0x170] sm:$0xff] %vm575, 0.0
          %732 = vst.msk [vmem:[#allocation3 + $0x178] sm:$0x3] %vm578, 0.0
          %733 = vst.msk [vmem:[#allocation3 + $0x180] sm:$0xff] %vm575, 0.0
          %734 = vst.msk [vmem:[#allocation3 + $0x188] sm:$0xff] %vm575, 0.0
          %735 = vst.msk [vmem:[#allocation3 + $0x190] sm:$0x3] %vm578, 0.0
          %736 = vst.msk [vmem:[#allocation3 + $0x198] sm:$0xff] %vm575, 0.0
          %737 = vst.msk [vmem:[#allocation3 + $0x1a0] sm:$0xff] %vm575, 0.0
          %738 = vst.msk [vmem:[#allocation3 + $0x1a8] sm:$0x3] %vm578, 0.0
          %739 = vst.msk [vmem:[#allocation3 + $0x1b0] sm:$0xff] %vm575, 0.0
          %740 = vst.msk [vmem:[#allocation3 + $0x1b8] sm:$0xff] %vm575, 0.0
          %741 = vst.msk [vmem:[#allocation3 + $0x1c0] sm:$0x3] %vm578, 0.0
          %742 = vst.msk [vmem:[#allocation3 + $0x1c8] sm:$0xff] %vm575, 0.0
          %743 = vst.msk [vmem:[#allocation3 + $0x1d0] sm:$0xff] %vm575, 0.0
          %744 = vst.msk [vmem:[#allocation3 + $0x1d8] sm:$0x3] %vm578, 0.0
          %745 = vst.msk [vmem:[#allocation3 + $0x1e0] sm:$0xff] %vm575, 0.0
          %746 = vst.msk [vmem:[#allocation3 + $0x1e8] sm:$0xff] %vm575, 0.0
          %747 = vst.msk [vmem:[#allocation3 + $0x1f0] sm:$0x3] %vm578, 0.0
          %748 = vst.msk [vmem:[#allocation3 + $0x1f8] sm:$0xff] %vm575, 0.0
          %749 = vst.msk [vmem:[#allocation3 + $0x200] sm:$0xff] %vm575, 0.0
          %750 = vst.msk [vmem:[#allocation3 + $0x208] sm:$0x3] %vm578, 0.0
          %751 = vst.msk [vmem:[#allocation3 + $0x210] sm:$0xff] %vm575, 0.0
          %752 = vst.msk [vmem:[#allocation3 + $0x218] sm:$0xff] %vm575, 0.0
          %753 = vst.msk [vmem:[#allocation3 + $0x220] sm:$0x3] %vm578, 0.0
          %754 = vst.msk [vmem:[#allocation3 + $0x228] sm:$0xff] %vm575, 0.0
          %755 = vst.msk [vmem:[#allocation3 + $0x230] sm:$0xff] %vm575, 0.0
          %756 = vst.msk [vmem:[#allocation3 + $0x238] sm:$0x3] %vm578, 0.0
          %757 = vst.msk [vmem:[#allocation3 + $0x240] sm:$0xff] %vm575, 0.0
          %758 = vst.msk [vmem:[#allocation3 + $0x248] sm:$0xff] %vm575, 0.0
          %759 = vst.msk [vmem:[#allocation3 + $0x250] sm:$0x3] %vm578, 0.0
          %760 = vst.msk [vmem:[#allocation3 + $0x258] sm:$0xff] %vm575, 0.0
          %761 = vst.msk [vmem:[#allocation3 + $0x260] sm:$0xff] %vm575, 0.0
          %762 = vst.msk [vmem:[#allocation3 + $0x268] sm:$0x3] %vm578, 0.0
          %763 = vst.msk [vmem:[#allocation3 + $0x270] sm:$0xff] %vm575, 0.0
          %764 = vst.msk [vmem:[#allocation3 + $0x278] sm:$0xff] %vm575, 0.0
          %765 = vst.msk [vmem:[#allocation3 + $0x280] sm:$0x3] %vm578, 0.0
          %766 = vst.msk [vmem:[#allocation3 + $0x288] sm:$0xff] %vm575, 0.0
          %767 = vst.msk [vmem:[#allocation3 + $0x290] sm:$0xff] %vm575, 0.0
          %768 = vst.msk [vmem:[#allocation3 + $0x298] sm:$0x3] %vm578, 0.0
          %769 = vst.msk [vmem:[#allocation3 + $0x2a0] sm:$0xff] %vm575, 0.0
          %770 = vst.msk [vmem:[#allocation3 + $0x2a8] sm:$0xff] %vm575, 0.0
          %771 = vst.msk [vmem:[#allocation3 + $0x2b0] sm:$0x3] %vm578, 0.0
          %772 = vst.msk [vmem:[#allocation3 + $0x2b8] sm:$0xff] %vm575, 0.0
          %773 = vst.msk [vmem:[#allocation3 + $0x2c0] sm:$0xff] %vm575, 0.0
          %774 = vst.msk [vmem:[#allocation3 + $0x2c8] sm:$0x3] %vm578, 0.0
          %775 = vst.msk [vmem:[#allocation3 + $0x2d0] sm:$0xff] %vm575, 0.0
          %776 = vst.msk [vmem:[#allocation3 + $0x2d8] sm:$0xff] %vm575, 0.0
          %777 = vst.msk [vmem:[#allocation3 + $0x2e0] sm:$0x3] %vm578, 0.0
          %778 = vst.msk [vmem:[#allocation3 + $0x2e8] sm:$0xff] %vm575, 0.0
          %779 = vst.msk [vmem:[#allocation3 + $0x2f0] sm:$0xff] %vm575, 0.0
          %780 = vst.msk [vmem:[#allocation3 + $0x2f8] sm:$0x3] %vm578, 0.0
          %781 = vst.msk [vmem:[#allocation3 + $0x300] sm:$0xff] %vm575, 0.0
          %782 = vst.msk [vmem:[#allocation3 + $0x308] sm:$0xff] %vm575, 0.0
          %783 = vst.msk [vmem:[#allocation3 + $0x310] sm:$0x3] %vm578, 0.0
          %784 = vst.msk [vmem:[#allocation3 + $0x318] sm:$0xff] %vm575, 0.0
          %785 = vst.msk [vmem:[#allocation3 + $0x320] sm:$0xff] %vm575, 0.0
          %786 = vst.msk [vmem:[#allocation3 + $0x328] sm:$0x3] %vm578, 0.0
          %787 = vst.msk [vmem:[#allocation3 + $0x330] sm:$0xff] %vm575, 0.0
          %788 = vst.msk [vmem:[#allocation3 + $0x338] sm:$0xff] %vm575, 0.0
          %789 = vst.msk [vmem:[#allocation3 + $0x340] sm:$0x3] %vm578, 0.0
          %790 = vst.msk [vmem:[#allocation3 + $0x348] sm:$0xff] %vm575, 0.0
          %791 = vst.msk [vmem:[#allocation3 + $0x350] sm:$0xff] %vm575, 0.0
          %792 = vst.msk [vmem:[#allocation3 + $0x358] sm:$0x3] %vm578, 0.0
          %793 = vst.msk [vmem:[#allocation4] sm:$0xff] %vm575, 0.0
          %794 = vst.msk [vmem:[#allocation4 + $0x8] sm:$0xff] %vm575, 0.0
          %795 = vst.msk [vmem:[#allocation4 + $0x10] sm:$0x3] %vm578, 0.0
          %796 = vst.msk [vmem:[#allocation4 + $0x18] sm:$0xff] %vm575, 0.0
          %797 = vst.msk [vmem:[#allocation4 + $0x20] sm:$0xff] %vm575, 0.0
          %798 = vst.msk [vmem:[#allocation4 + $0x28] sm:$0x3] %vm578, 0.0
          %799 = vst.msk [vmem:[#allocation4 + $0x30] sm:$0xff] %vm575, 0.0
          %800 = vst.msk [vmem:[#allocation4 + $0x38] sm:$0xff] %vm575, 0.0
          %801 = vst.msk [vmem:[#allocation4 + $0x40] sm:$0x3] %vm578, 0.0
          %802 = vst.msk [vmem:[#allocation4 + $0x48] sm:$0xff] %vm575, 0.0
          %803 = vst.msk [vmem:[#allocation4 + $0x50] sm:$0xff] %vm575, 0.0
          %804 = vst.msk [vmem:[#allocation4 + $0x58] sm:$0x3] %vm578, 0.0
          %805 = vst.msk [vmem:[#allocation4 + $0x60] sm:$0xff] %vm575, 0.0
          %806 = vst.msk [vmem:[#allocation4 + $0x68] sm:$0xff] %vm575, 0.0
          %807 = vst.msk [vmem:[#allocation4 + $0x70] sm:$0x3] %vm578, 0.0
          %808 = vst.msk [vmem:[#allocation4 + $0x78] sm:$0xff] %vm575, 0.0
          %809 = vst.msk [vmem:[#allocation4 + $0x80] sm:$0xff] %vm575, 0.0
          %810 = vst.msk [vmem:[#allocation4 + $0x88] sm:$0x3] %vm578, 0.0
          %811 = vst.msk [vmem:[#allocation4 + $0x90] sm:$0xff] %vm575, 0.0
          %812 = vst.msk [vmem:[#allocation4 + $0x98] sm:$0xff] %vm575, 0.0
          %813 = vst.msk [vmem:[#allocation4 + $0xa0] sm:$0x3] %vm578, 0.0
          %814 = vst.msk [vmem:[#allocation4 + $0xa8] sm:$0xff] %vm575, 0.0
          %815 = vst.msk [vmem:[#allocation4 + $0xb0] sm:$0xff] %vm575, 0.0
          %816 = vst.msk [vmem:[#allocation4 + $0xb8] sm:$0x3] %vm578, 0.0
          %817 = vst.msk [vmem:[#allocation4 + $0xc0] sm:$0xff] %vm575, 0.0
          %818 = vst.msk [vmem:[#allocation4 + $0xc8] sm:$0xff] %vm575, 0.0
          %819 = vst.msk [vmem:[#allocation4 + $0xd0] sm:$0x3] %vm578, 0.0
          %820 = vst.msk [vmem:[#allocation4 + $0xd8] sm:$0xff] %vm575, 0.0
          %821 = vst.msk [vmem:[#allocation4 + $0xe0] sm:$0xff] %vm575, 0.0
          %822 = vst.msk [vmem:[#allocation4 + $0xe8] sm:$0x3] %vm578, 0.0
          %823 = vst.msk [vmem:[#allocation4 + $0xf0] sm:$0xff] %vm575, 0.0
          %824 = vst.msk [vmem:[#allocation4 + $0xf8] sm:$0xff] %vm575, 0.0
          %825 = vst.msk [vmem:[#allocation4 + $0x100] sm:$0x3] %vm578, 0.0
          %826 = vst.msk [vmem:[#allocation4 + $0x108] sm:$0xff] %vm575, 0.0
          %827 = vst.msk [vmem:[#allocation4 + $0x110] sm:$0xff] %vm575, 0.0
          %828 = vst.msk [vmem:[#allocation4 + $0x118] sm:$0x3] %vm578, 0.0
          %829 = vst.msk [vmem:[#allocation4 + $0x120] sm:$0xff] %vm575, 0.0
          %830 = vst.msk [vmem:[#allocation4 + $0x128] sm:$0xff] %vm575, 0.0
          %831 = vst.msk [vmem:[#allocation4 + $0x130] sm:$0x3] %vm578, 0.0
          %832 = vst.msk [vmem:[#allocation4 + $0x138] sm:$0xff] %vm575, 0.0
          %833 = vst.msk [vmem:[#allocation4 + $0x140] sm:$0xff] %vm575, 0.0
          %834 = vst.msk [vmem:[#allocation4 + $0x148] sm:$0x3] %vm578, 0.0
          %835 = vst.msk [vmem:[#allocation4 + $0x150] sm:$0xff] %vm575, 0.0
          %836 = vst.msk [vmem:[#allocation4 + $0x158] sm:$0xff] %vm575, 0.0
          %837 = vst.msk [vmem:[#allocation4 + $0x160] sm:$0x3] %vm578, 0.0
          %838 = vst.msk [vmem:[#allocation4 + $0x168] sm:$0xff] %vm575, 0.0
          %839 = vst.msk [vmem:[#allocation4 + $0x170] sm:$0xff] %vm575, 0.0
          %840 = vst.msk [vmem:[#allocation4 + $0x178] sm:$0x3] %vm578, 0.0
          %841 = vst.msk [vmem:[#allocation4 + $0x180] sm:$0xff] %vm575, 0.0
          %842 = vst.msk [vmem:[#allocation4 + $0x188] sm:$0xff] %vm575, 0.0
          %843 = vst.msk [vmem:[#allocation4 + $0x190] sm:$0x3] %vm578, 0.0
          %844 = vst.msk [vmem:[#allocation4 + $0x198] sm:$0xff] %vm575, 0.0
          %845 = vst.msk [vmem:[#allocation4 + $0x1a0] sm:$0xff] %vm575, 0.0
          %846 = vst.msk [vmem:[#allocation4 + $0x1a8] sm:$0x3] %vm578, 0.0
          %847 = vst.msk [vmem:[#allocation4 + $0x1b0] sm:$0xff] %vm575, 0.0
          %848 = vst.msk [vmem:[#allocation4 + $0x1b8] sm:$0xff] %vm575, 0.0
          %849 = vst.msk [vmem:[#allocation4 + $0x1c0] sm:$0x3] %vm578, 0.0
          %850 = vst.msk [vmem:[#allocation4 + $0x1c8] sm:$0xff] %vm575, 0.0
          %851 = vst.msk [vmem:[#allocation4 + $0x1d0] sm:$0xff] %vm575, 0.0
          %852 = vst.msk [vmem:[#allocation4 + $0x1d8] sm:$0x3] %vm578, 0.0
          %853 = vst.msk [vmem:[#allocation4 + $0x1e0] sm:$0xff] %vm575, 0.0
          %854 = vst.msk [vmem:[#allocation4 + $0x1e8] sm:$0xff] %vm575, 0.0
          %855 = vst.msk [vmem:[#allocation4 + $0x1f0] sm:$0x3] %vm578, 0.0
          %856 = vst.msk [vmem:[#allocation4 + $0x1f8] sm:$0xff] %vm575, 0.0
          %857 = vst.msk [vmem:[#allocation4 + $0x200] sm:$0xff] %vm575, 0.0
          %858 = vst.msk [vmem:[#allocation4 + $0x208] sm:$0x3] %vm578, 0.0
          %859 = vst.msk [vmem:[#allocation4 + $0x210] sm:$0xff] %vm575, 0.0
          %860 = vst.msk [vmem:[#allocation4 + $0x218] sm:$0xff] %vm575, 0.0
          %861 = vst.msk [vmem:[#allocation4 + $0x220] sm:$0x3] %vm578, 0.0
          %862 = vst.msk [vmem:[#allocation4 + $0x228] sm:$0xff] %vm575, 0.0
          %863 = vst.msk [vmem:[#allocation4 + $0x230] sm:$0xff] %vm575, 0.0
          %864 = vst.msk [vmem:[#allocation4 + $0x238] sm:$0x3] %vm578, 0.0
          %865 = vst.msk [vmem:[#allocation4 + $0x240] sm:$0xff] %vm575, 0.0
          %866 = vst.msk [vmem:[#allocation4 + $0x248] sm:$0xff] %vm575, 0.0
          %867 = vst.msk [vmem:[#allocation4 + $0x250] sm:$0x3] %vm578, 0.0
          %868 = vst.msk [vmem:[#allocation4 + $0x258] sm:$0xff] %vm575, 0.0
          %869 = vst.msk [vmem:[#allocation4 + $0x260] sm:$0xff] %vm575, 0.0
          %870 = vst.msk [vmem:[#allocation4 + $0x268] sm:$0x3] %vm578, 0.0
          %871 = vst.msk [vmem:[#allocation4 + $0x270] sm:$0xff] %vm575, 0.0
          %872 = vst.msk [vmem:[#allocation4 + $0x278] sm:$0xff] %vm575, 0.0
          %873 = vst.msk [vmem:[#allocation4 + $0x280] sm:$0x3] %vm578, 0.0
          %874 = vst.msk [vmem:[#allocation4 + $0x288] sm:$0xff] %vm575, 0.0
          %875 = vst.msk [vmem:[#allocation4 + $0x290] sm:$0xff] %vm575, 0.0
          %876 = vst.msk [vmem:[#allocation4 + $0x298] sm:$0x3] %vm578, 0.0
          %877 = vst.msk [vmem:[#allocation4 + $0x2a0] sm:$0xff] %vm575, 0.0
          %878 = vst.msk [vmem:[#allocation4 + $0x2a8] sm:$0xff] %vm575, 0.0
          %879 = vst.msk [vmem:[#allocation4 + $0x2b0] sm:$0x3] %vm578, 0.0
          %880 = vst.msk [vmem:[#allocation4 + $0x2b8] sm:$0xff] %vm575, 0.0
          %881 = vst.msk [vmem:[#allocation4 + $0x2c0] sm:$0xff] %vm575, 0.0
          %882 = vst.msk [vmem:[#allocation4 + $0x2c8] sm:$0x3] %vm578, 0.0
          %883 = vst.msk [vmem:[#allocation4 + $0x2d0] sm:$0xff] %vm575, 0.0
          %884 = vst.msk [vmem:[#allocation4 + $0x2d8] sm:$0xff] %vm575, 0.0
          %885 = vst.msk [vmem:[#allocation4 + $0x2e0] sm:$0x3] %vm578, 0.0
          %886 = vst.msk [vmem:[#allocation4 + $0x2e8] sm:$0xff] %vm575, 0.0
          %887 = vst.msk [vmem:[#allocation4 + $0x2f0] sm:$0xff] %vm575, 0.0
          %888 = vst.msk [vmem:[#allocation4 + $0x2f8] sm:$0x3] %vm578, 0.0
          %889 = vst.msk [vmem:[#allocation4 + $0x300] sm:$0xff] %vm575, 0.0
          %890 = vst.msk [vmem:[#allocation4 + $0x308] sm:$0xff] %vm575, 0.0
          %891 = vst.msk [vmem:[#allocation4 + $0x310] sm:$0x3] %vm578, 0.0
          %892 = vst.msk [vmem:[#allocation4 + $0x318] sm:$0xff] %vm575, 0.0
          %893 = vst.msk [vmem:[#allocation4 + $0x320] sm:$0xff] %vm575, 0.0
          %894 = vst.msk [vmem:[#allocation4 + $0x328] sm:$0x3] %vm578, 0.0
          %895 = vst.msk [vmem:[#allocation4 + $0x330] sm:$0xff] %vm575, 0.0
          %896 = vst.msk [vmem:[#allocation4 + $0x338] sm:$0xff] %vm575, 0.0
          %897 = vst.msk [vmem:[#allocation4 + $0x340] sm:$0x3] %vm578, 0.0
          %898 = vst.msk [vmem:[#allocation4 + $0x348] sm:$0xff] %vm575, 0.0
          %899 = vst.msk [vmem:[#allocation4 + $0x350] sm:$0xff] %vm575, 0.0
          %900 = vst.msk [vmem:[#allocation4 + $0x358] sm:$0x3] %vm578, 0.0
        $region86: #{tpu_custom_call.1} parent=77 // pred_fallthru
          _
        %v901 = vld [vmem:[%s534] sm:$0xff]
        %v902 = vld [vmem:[%s534 + $0x8] sm:$0xff]
        %v903 = vld [vmem:[%s534 + $0x10] sm:$0xff]
        %v904 = vld [vmem:[%s534 + $0x18] sm:$0xff]
        %v905 = vld [vmem:[%s534 + $0x20] sm:$0xff]
        %v906 = vld [vmem:[%s534 + $0x28] sm:$0xff]
        %v907 = vld [vmem:[%s534 + $0x30] sm:$0xff]
        %v908 = vld [vmem:[%s534 + $0x38] sm:$0xff]
        %v909 = vld [vmem:[%s534 + $0x40] sm:$0xff]
        %v910 = vld [vmem:[%s534 + $0x48] sm:$0xff]
        %v911 = vld [vmem:[%s534 + $0x50] sm:$0xff]
        %v912 = vld [vmem:[%s534 + $0x58] sm:$0xff]
        %v913 = vld [vmem:[%s534 + $0x60] sm:$0xff]
        %v914 = vld [vmem:[%s534 + $0x68] sm:$0xff]
        %v915 = vld [vmem:[%s534 + $0x70] sm:$0xff]
        %v916 = vld [vmem:[%s534 + $0x78] sm:$0xff]
        %v917 = vld [vmem:[%s534 + $0x80] sm:$0xff]
        %v918 = vld [vmem:[%s534 + $0x88] sm:$0xff]
        %v919 = vld [vmem:[%s534 + $0x90] sm:$0xff]
        %v920 = vld [vmem:[%s534 + $0x98] sm:$0xff]
        %v921 = vld [vmem:[%s534 + $0xa0] sm:$0xff]
        %v922 = vld [vmem:[%s534 + $0xa8] sm:$0xff]
        %v923 = vld [vmem:[%s534 + $0xb0] sm:$0xff]
        %v924 = vld [vmem:[%s534 + $0xb8] sm:$0xff]
        %v925 = vld [vmem:[%s534 + $0xc0] sm:$0xff]
        %v926 = vld [vmem:[%s534 + $0xc8] sm:$0xff]
        %v927 = vld [vmem:[%s534 + $0xd0] sm:$0xff]
        %v928 = vld [vmem:[%s534 + $0xd8] sm:$0xff]
        %v929 = vld [vmem:[%s534 + $0xe0] sm:$0xff]
        %v930 = vld [vmem:[%s534 + $0xe8] sm:$0xff]
        %v931 = vld [vmem:[%s534 + $0xf0] sm:$0xff]
        %v932 = vld [vmem:[%s534 + $0xf8] sm:$0xff]
        %v933 = vld [vmem:[%s534 + $0x100] sm:$0xff]
        %v934 = vld [vmem:[%s534 + $0x108] sm:$0xff]
        %v935 = vld [vmem:[%s534 + $0x110] sm:$0xff]
        %v936 = vld [vmem:[%s534 + $0x118] sm:$0xff]
        %v937 = vld [vmem:[%s534 + $0x120] sm:$0xff]
        %v938 = vld [vmem:[%s534 + $0x128] sm:$0xff]
        %v939 = vld [vmem:[%s534 + $0x130] sm:$0xff]
        %v940 = vld [vmem:[%s534 + $0x138] sm:$0xff]
        %v941 = vld [vmem:[%s534 + $0x140] sm:$0xff]
        %v942 = vld [vmem:[%s534 + $0x148] sm:$0xff]
        %v943 = vld [vmem:[%s534 + $0x150] sm:$0xff]
        %v944 = vld [vmem:[%s534 + $0x158] sm:$0xff]
        %v945 = vld [vmem:[%s534 + $0x160] sm:$0xff]
        %v946 = vld [vmem:[%s534 + $0x168] sm:$0xff]
        %v947 = vld [vmem:[%s534 + $0x170] sm:$0xff]
        %v948 = vld [vmem:[%s534 + $0x178] sm:$0xff]
        %v949 = vld [vmem:[%s534 + $0x180] sm:$0xff]
        %v950 = vld [vmem:[%s534 + $0x188] sm:$0xff]
        %v951 = vld [vmem:[%s534 + $0x190] sm:$0xff]
        %v952 = vld [vmem:[%s534 + $0x198] sm:$0xff]
        %v953 = vld [vmem:[%s534 + $0x1a0] sm:$0xff]
        %v954 = vld [vmem:[%s534 + $0x1a8] sm:$0xff]
        %v955 = vld [vmem:[%s534 + $0x1b0] sm:$0xff]
        %v956 = vld [vmem:[%s534 + $0x1b8] sm:$0xff]
        %v957 = vld [vmem:[%s534 + $0x1c0] sm:$0xff]
        %v958 = vld [vmem:[%s534 + $0x1c8] sm:$0xff]
        %v959 = vld [vmem:[%s534 + $0x1d0] sm:$0xff]
        %v960 = vld [vmem:[%s534 + $0x1d8] sm:$0xff]
        %v961 = vld [vmem:[%s534 + $0x1e0] sm:$0xff]
        %v962 = vld [vmem:[%s534 + $0x1e8] sm:$0xff]
        %v963 = vld [vmem:[%s534 + $0x1f0] sm:$0xff]
        %v964 = vld [vmem:[%s534 + $0x1f8] sm:$0xff]
        %s965 = scalar_lea.vmem [#allocation4], 24
        %vm966 = vcmask 64512
        %967 = vst.msk [vmem:[%s965 + $0x1] sm:$0xff] %vm966, %v901
        %968 = vst.msk [vmem:[%s965 + $0x9] sm:$0xff] %vm966, %v902
        %969 = vst.msk [vmem:[%s965 + $0x19] sm:$0xff] %vm966, %v903
        %970 = vst.msk [vmem:[%s965 + $0x21] sm:$0xff] %vm966, %v904
        %971 = vst.msk [vmem:[%s965 + $0x31] sm:$0xff] %vm966, %v905
        %972 = vst.msk [vmem:[%s965 + $0x39] sm:$0xff] %vm966, %v906
        %973 = vst.msk [vmem:[%s965 + $0x49] sm:$0xff] %vm966, %v907
        %974 = vst.msk [vmem:[%s965 + $0x51] sm:$0xff] %vm966, %v908
        %975 = vst.msk [vmem:[%s965 + $0x61] sm:$0xff] %vm966, %v909
        %976 = vst.msk [vmem:[%s965 + $0x69] sm:$0xff] %vm966, %v910
        %977 = vst.msk [vmem:[%s965 + $0x79] sm:$0xff] %vm966, %v911
        %978 = vst.msk [vmem:[%s965 + $0x81] sm:$0xff] %vm966, %v912
        %979 = vst.msk [vmem:[%s965 + $0x91] sm:$0xff] %vm966, %v913
        %980 = vst.msk [vmem:[%s965 + $0x99] sm:$0xff] %vm966, %v914
        %981 = vst.msk [vmem:[%s965 + $0xa9] sm:$0xff] %vm966, %v915
        %982 = vst.msk [vmem:[%s965 + $0xb1] sm:$0xff] %vm966, %v916
        %983 = vst.msk [vmem:[%s965 + $0xc1] sm:$0xff] %vm966, %v917
        %984 = vst.msk [vmem:[%s965 + $0xc9] sm:$0xff] %vm966, %v918
        %985 = vst.msk [vmem:[%s965 + $0xd9] sm:$0xff] %vm966, %v919
        %986 = vst.msk [vmem:[%s965 + $0xe1] sm:$0xff] %vm966, %v920
        %987 = vst.msk [vmem:[%s965 + $0xf1] sm:$0xff] %vm966, %v921
        %988 = vst.msk [vmem:[%s965 + $0xf9] sm:$0xff] %vm966, %v922
        %989 = vst.msk [vmem:[%s965 + $0x109] sm:$0xff] %vm966, %v923
        %990 = vst.msk [vmem:[%s965 + $0x111] sm:$0xff] %vm966, %v924
        %991 = vst.msk [vmem:[%s965 + $0x121] sm:$0xff] %vm966, %v925
        %992 = vst.msk [vmem:[%s965 + $0x129] sm:$0xff] %vm966, %v926
        %993 = vst.msk [vmem:[%s965 + $0x139] sm:$0xff] %vm966, %v927
        %994 = vst.msk [vmem:[%s965 + $0x141] sm:$0xff] %vm966, %v928
        %995 = vst.msk [vmem:[%s965 + $0x151] sm:$0xff] %vm966, %v929
        %996 = vst.msk [vmem:[%s965 + $0x159] sm:$0xff] %vm966, %v930
        %997 = vst.msk [vmem:[%s965 + $0x169] sm:$0xff] %vm966, %v931
        %998 = vst.msk [vmem:[%s965 + $0x171] sm:$0xff] %vm966, %v932
        %999 = vst.msk [vmem:[%s965 + $0x1b1] sm:$0xff] %vm966, %v933
        %1000 = vst.msk [vmem:[%s965 + $0x1b9] sm:$0xff] %vm966, %v934
        %1001 = vst.msk [vmem:[%s965 + $0x1c9] sm:$0xff] %vm966, %v935
        %1002 = vst.msk [vmem:[%s965 + $0x1d1] sm:$0xff] %vm966, %v936
        %1003 = vst.msk [vmem:[%s965 + $0x1e1] sm:$0xff] %vm966, %v937
        %1004 = vst.msk [vmem:[%s965 + $0x1e9] sm:$0xff] %vm966, %v938
        %1005 = vst.msk [vmem:[%s965 + $0x1f9] sm:$0xff] %vm966, %v939
        %1006 = vst.msk [vmem:[%s965 + $0x201] sm:$0xff] %vm966, %v940
        %1007 = vst.msk [vmem:[%s965 + $0x211] sm:$0xff] %vm966, %v941
        %1008 = vst.msk [vmem:[%s965 + $0x219] sm:$0xff] %vm966, %v942
        %1009 = vst.msk [vmem:[%s965 + $0x229] sm:$0xff] %vm966, %v943
        %1010 = vst.msk [vmem:[%s965 + $0x231] sm:$0xff] %vm966, %v944
        %1011 = vst.msk [vmem:[%s965 + $0x241] sm:$0xff] %vm966, %v945
        %1012 = vst.msk [vmem:[%s965 + $0x249] sm:$0xff] %vm966, %v946
        %1013 = vst.msk [vmem:[%s965 + $0x259] sm:$0xff] %vm966, %v947
        %1014 = vst.msk [vmem:[%s965 + $0x261] sm:$0xff] %vm966, %v948
        %1015 = vst.msk [vmem:[%s965 + $0x271] sm:$0xff] %vm966, %v949
        %1016 = vst.msk [vmem:[%s965 + $0x279] sm:$0xff] %vm966, %v950
        %1017 = vst.msk [vmem:[%s965 + $0x289] sm:$0xff] %vm966, %v951
        %1018 = vst.msk [vmem:[%s965 + $0x291] sm:$0xff] %vm966, %v952
        %1019 = vst.msk [vmem:[%s965 + $0x2a1] sm:$0xff] %vm966, %v953
        %1020 = vst.msk [vmem:[%s965 + $0x2a9] sm:$0xff] %vm966, %v954
        %1021 = vst.msk [vmem:[%s965 + $0x2b9] sm:$0xff] %vm966, %v955
        %1022 = vst.msk [vmem:[%s965 + $0x2c1] sm:$0xff] %vm966, %v956
        %1023 = vst.msk [vmem:[%s965 + $0x2d1] sm:$0xff] %vm966, %v957
        %1024 = vst.msk [vmem:[%s965 + $0x2d9] sm:$0xff] %vm966, %v958
        %1025 = vst.msk [vmem:[%s965 + $0x2e9] sm:$0xff] %vm966, %v959
        %1026 = vst.msk [vmem:[%s965 + $0x2f1] sm:$0xff] %vm966, %v960
        %1027 = vst.msk [vmem:[%s965 + $0x301] sm:$0xff] %vm966, %v961
        %1028 = vst.msk [vmem:[%s965 + $0x309] sm:$0xff] %vm966, %v962
        %1029 = vst.msk [vmem:[%s965 + $0x319] sm:$0xff] %vm966, %v963
        %1030 = vst.msk [vmem:[%s965 + $0x321] sm:$0xff] %vm966, %v964
        %p1031 = scmp.eq.s32.totalorder %s21, 0
        %s1032 = scalar_select %p1031, 2, 1
        loop: start=0, step=1, limit=2
        $region87: #{tpu_custom_call.1} parent=77 // loop_pre_header
          _
        $region88: #{tpu_custom_call.1} parent=77 // loop_header
          %s1034 = sphi 0, %s1038
          %p1035 = scmp.ge.s32.totalorder %s1034, 2
        $region89: #{tpu_custom_call.1} parent=77 // loop_header_branch
          %1037 = sbr.rel (%p1035) target = $region93
        $region90: #{tpu_custom_call.1} parent=77 // loop_body
          %s1039 = smul.u32 %s1034, 8
          %s1040 = smul.u32 %s1039, 24
          %s1041 = scalar_lea.vmem [#allocation2], %s1040
          %v1042 = vld [vmem:[%s1041] sm:$0xff]
          %v1043 = vld [vmem:[%s1041 + $0x8] sm:$0xff]
          %v1044 = vld [vmem:[%s1041 + $0x10] sm:$0x3]
          %v1045 = vld [vmem:[%s1041 + $0x18] sm:$0xff]
          %v1046 = vld [vmem:[%s1041 + $0x20] sm:$0xff]
          %v1047 = vld [vmem:[%s1041 + $0x28] sm:$0x3]
          %v1048 = vld [vmem:[%s1041 + $0x30] sm:$0xff]
          %v1049 = vld [vmem:[%s1041 + $0x38] sm:$0xff]
          %v1050 = vld [vmem:[%s1041 + $0x40] sm:$0x3]
          %v1051 = vld [vmem:[%s1041 + $0x48] sm:$0xff]
          %v1052 = vld [vmem:[%s1041 + $0x50] sm:$0xff]
          %v1053 = vld [vmem:[%s1041 + $0x58] sm:$0x3]
          %v1054 = vld [vmem:[%s1041 + $0x60] sm:$0xff]
          %v1055 = vld [vmem:[%s1041 + $0x68] sm:$0xff]
          %v1056 = vld [vmem:[%s1041 + $0x70] sm:$0x3]
          %v1057 = vld [vmem:[%s1041 + $0x78] sm:$0xff]
          %v1058 = vld [vmem:[%s1041 + $0x80] sm:$0xff]
          %v1059 = vld [vmem:[%s1041 + $0x88] sm:$0x3]
          %v1060 = vld [vmem:[%s1041 + $0x90] sm:$0xff]
          %v1061 = vld [vmem:[%s1041 + $0x98] sm:$0xff]
          %v1062 = vld [vmem:[%s1041 + $0xa0] sm:$0x3]
          %v1063 = vld [vmem:[%s1041 + $0xa8] sm:$0xff]
          %v1064 = vld [vmem:[%s1041 + $0xb0] sm:$0xff]
          %v1065 = vld [vmem:[%s1041 + $0xb8] sm:$0x3]
          %v1066 = vld [vmem:[%s1041 + $0xc0] sm:$0xff]
          %v1067 = vld [vmem:[%s1041 + $0xc8] sm:$0xff]
          %v1068 = vld [vmem:[%s1041 + $0xd0] sm:$0x3]
          %v1069 = vld [vmem:[%s1041 + $0xd8] sm:$0xff]
          %v1070 = vld [vmem:[%s1041 + $0xe0] sm:$0xff]
          %v1071 = vld [vmem:[%s1041 + $0xe8] sm:$0x3]
          %v1072 = vld [vmem:[%s1041 + $0x1b0] sm:$0xff]
          %v1073 = vld [vmem:[%s1041 + $0x1b8] sm:$0xff]
          %v1074 = vld [vmem:[%s1041 + $0x1c0] sm:$0x3]
          %v1075 = vld [vmem:[%s1041 + $0x1c8] sm:$0xff]
          %v1076 = vld [vmem:[%s1041 + $0x1d0] sm:$0xff]
          %v1077 = vld [vmem:[%s1041 + $0x1d8] sm:$0x3]
          %v1078 = vld [vmem:[%s1041 + $0x1e0] sm:$0xff]
          %v1079 = vld [vmem:[%s1041 + $0x1e8] sm:$0xff]
          %v1080 = vld [vmem:[%s1041 + $0x1f0] sm:$0x3]
          %v1081 = vld [vmem:[%s1041 + $0x1f8] sm:$0xff]
          %v1082 = vld [vmem:[%s1041 + $0x200] sm:$0xff]
          %v1083 = vld [vmem:[%s1041 + $0x208] sm:$0x3]
          %v1084 = vld [vmem:[%s1041 + $0x210] sm:$0xff]
          %v1085 = vld [vmem:[%s1041 + $0x218] sm:$0xff]
          %v1086 = vld [vmem:[%s1041 + $0x220] sm:$0x3]
          %v1087 = vld [vmem:[%s1041 + $0x228] sm:$0xff]
          %v1088 = vld [vmem:[%s1041 + $0x230] sm:$0xff]
          %v1089 = vld [vmem:[%s1041 + $0x238] sm:$0x3]
          %v1090 = vld [vmem:[%s1041 + $0x240] sm:$0xff]
          %v1091 = vld [vmem:[%s1041 + $0x248] sm:$0xff]
          %v1092 = vld [vmem:[%s1041 + $0x250] sm:$0x3]
          %v1093 = vld [vmem:[%s1041 + $0x258] sm:$0xff]
          %v1094 = vld [vmem:[%s1041 + $0x260] sm:$0xff]
          %v1095 = vld [vmem:[%s1041 + $0x268] sm:$0x3]
          %v1096 = vld [vmem:[%s1041 + $0x270] sm:$0xff]
          %v1097 = vld [vmem:[%s1041 + $0x278] sm:$0xff]
          %v1098 = vld [vmem:[%s1041 + $0x280] sm:$0x3]
          %v1099 = vld [vmem:[%s1041 + $0x288] sm:$0xff]
          %v1100 = vld [vmem:[%s1041 + $0x290] sm:$0xff]
          %v1101 = vld [vmem:[%s1041 + $0x298] sm:$0x3]
          %vm1150 = vcmask 1046528
          %v1151 = vrot.slane %v1042, 1
          %v1152 = vrot.slane %v1043, 1
          %v1153 = vsel %vm1150, %v1151, %v1152
          %v1154 = vrot.slane %v1044, 1
          %v1155 = vsel %vm1150, %v1152, %v1154
          %v1156 = vrot.slane %v1045, 1
          %v1157 = vrot.slane %v1046, 1
          %v1158 = vsel %vm1150, %v1156, %v1157
          %v1159 = vrot.slane %v1047, 1
          %v1160 = vsel %vm1150, %v1157, %v1159
          %v1161 = vrot.slane %v1048, 1
          %v1162 = vrot.slane %v1049, 1
          %v1163 = vsel %vm1150, %v1161, %v1162
          %v1164 = vrot.slane %v1050, 1
          %v1165 = vsel %vm1150, %v1162, %v1164
          %v1166 = vrot.slane %v1051, 1
          %v1167 = vrot.slane %v1052, 1
          %v1168 = vsel %vm1150, %v1166, %v1167
          %v1169 = vrot.slane %v1053, 1
          %v1170 = vsel %vm1150, %v1167, %v1169
          %v1171 = vrot.slane %v1054, 1
          %v1172 = vrot.slane %v1055, 1
          %v1173 = vsel %vm1150, %v1171, %v1172
          %v1174 = vrot.slane %v1056, 1
          %v1175 = vsel %vm1150, %v1172, %v1174
          %v1176 = vrot.slane %v1057, 1
          %v1177 = vrot.slane %v1058, 1
          %v1178 = vsel %vm1150, %v1176, %v1177
          %v1179 = vrot.slane %v1059, 1
          %v1180 = vsel %vm1150, %v1177, %v1179
          %v1181 = vrot.slane %v1060, 1
          %v1182 = vrot.slane %v1061, 1
          %v1183 = vsel %vm1150, %v1181, %v1182
          %v1184 = vrot.slane %v1062, 1
          %v1185 = vsel %vm1150, %v1182, %v1184
          %v1186 = vrot.slane %v1063, 1
          %v1187 = vrot.slane %v1064, 1
          %v1188 = vsel %vm1150, %v1186, %v1187
          %v1189 = vrot.slane %v1065, 1
          %v1190 = vsel %vm1150, %v1187, %v1189
          %v1191 = vrot.slane %v1072, 1
          %v1192 = vrot.slane %v1073, 1
          %v1193 = vsel %vm1150, %v1191, %v1192
          %v1194 = vrot.slane %v1074, 1
          %v1195 = vsel %vm1150, %v1192, %v1194
          %v1196 = vrot.slane %v1075, 1
          %v1197 = vrot.slane %v1076, 1
          %v1198 = vsel %vm1150, %v1196, %v1197
          %v1199 = vrot.slane %v1077, 1
          %v1200 = vsel %vm1150, %v1197, %v1199
          %v1201 = vrot.slane %v1078, 1
          %v1202 = vrot.slane %v1079, 1
          %v1203 = vsel %vm1150, %v1201, %v1202
          %v1204 = vrot.slane %v1080, 1
          %v1205 = vsel %vm1150, %v1202, %v1204
          %v1206 = vrot.slane %v1081, 1
          %v1207 = vrot.slane %v1082, 1
          %v1208 = vsel %vm1150, %v1206, %v1207
          %v1209 = vrot.slane %v1083, 1
          %v1210 = vsel %vm1150, %v1207, %v1209
          %v1211 = vrot.slane %v1084, 1
          %v1212 = vrot.slane %v1085, 1
          %v1213 = vsel %vm1150, %v1211, %v1212
          %v1214 = vrot.slane %v1086, 1
          %v1215 = vsel %vm1150, %v1212, %v1214
          %v1216 = vrot.slane %v1087, 1
          %v1217 = vrot.slane %v1088, 1
          %v1218 = vsel %vm1150, %v1216, %v1217
          %v1219 = vrot.slane %v1089, 1
          %v1220 = vsel %vm1150, %v1217, %v1219
          %v1221 = vrot.slane %v1090, 1
          %v1222 = vrot.slane %v1091, 1
          %v1223 = vsel %vm1150, %v1221, %v1222
          %v1224 = vrot.slane %v1092, 1
          %v1225 = vsel %vm1150, %v1222, %v1224
          %v1226 = vrot.slane %v1093, 1
          %v1227 = vrot.slane %v1094, 1
          %v1228 = vsel %vm1150, %v1226, %v1227
          %v1229 = vrot.slane %v1095, 1
          %v1230 = vsel %vm1150, %v1227, %v1229
          %1231 = vrot.lane.b32.xlu0 %v1153, 8
          %v1232 = vpop.permute.xlu0 %1231
          %1233 = vrot.lane.b32.xlu0 %v1155, 8
          %v1234 = vpop.permute.xlu0 %1233
          %1235 = vrot.lane.b32.xlu0 %v1158, 8
          %v1236 = vpop.permute.xlu0 %1235
          %1237 = vrot.lane.b32.xlu0 %v1160, 8
          %v1238 = vpop.permute.xlu0 %1237
          %1239 = vrot.lane.b32.xlu0 %v1163, 8
          %v1240 = vpop.permute.xlu0 %1239
          %1241 = vrot.lane.b32.xlu0 %v1165, 8
          %v1242 = vpop.permute.xlu0 %1241
          %1243 = vrot.lane.b32.xlu0 %v1168, 8
          %v1244 = vpop.permute.xlu0 %1243
          %1245 = vrot.lane.b32.xlu0 %v1170, 8
          %v1246 = vpop.permute.xlu0 %1245
          %1247 = vrot.lane.b32.xlu0 %v1173, 8
          %v1248 = vpop.permute.xlu0 %1247
          %1249 = vrot.lane.b32.xlu0 %v1175, 8
          %v1250 = vpop.permute.xlu0 %1249
          %1251 = vrot.lane.b32.xlu0 %v1178, 8
          %v1252 = vpop.permute.xlu0 %1251
          %1253 = vrot.lane.b32.xlu0 %v1180, 8
          %v1254 = vpop.permute.xlu0 %1253
          %1255 = vrot.lane.b32.xlu0 %v1183, 8
          %v1256 = vpop.permute.xlu0 %1255
          %1257 = vrot.lane.b32.xlu0 %v1185, 8
          %v1258 = vpop.permute.xlu0 %1257
          %1259 = vrot.lane.b32.xlu0 %v1188, 8
          %v1260 = vpop.permute.xlu0 %1259
          %1261 = vrot.lane.b32.xlu0 %v1190, 8
          %v1262 = vpop.permute.xlu0 %1261
          %1263 = vrot.lane.b32.xlu0 %v1193, 8
          %v1264 = vpop.permute.xlu0 %1263
          %1265 = vrot.lane.b32.xlu0 %v1195, 8
          %v1266 = vpop.permute.xlu0 %1265
          %1267 = vrot.lane.b32.xlu0 %v1198, 8
          %v1268 = vpop.permute.xlu0 %1267
          %1269 = vrot.lane.b32.xlu0 %v1200, 8
          %v1270 = vpop.permute.xlu0 %1269
          %1271 = vrot.lane.b32.xlu0 %v1203, 8
          %v1272 = vpop.permute.xlu0 %1271
          %1273 = vrot.lane.b32.xlu0 %v1205, 8
          %v1274 = vpop.permute.xlu0 %1273
          %1275 = vrot.lane.b32.xlu0 %v1208, 8
          %v1276 = vpop.permute.xlu0 %1275
          %1277 = vrot.lane.b32.xlu0 %v1210, 8
          %v1278 = vpop.permute.xlu0 %1277
          %1279 = vrot.lane.b32.xlu0 %v1213, 8
          %v1280 = vpop.permute.xlu0 %1279
          %1281 = vrot.lane.b32.xlu0 %v1215, 8
          %v1282 = vpop.permute.xlu0 %1281
          %1283 = vrot.lane.b32.xlu0 %v1218, 8
          %v1284 = vpop.permute.xlu0 %1283
          %1285 = vrot.lane.b32.xlu0 %v1220, 8
          %v1286 = vpop.permute.xlu0 %1285
          %1287 = vrot.lane.b32.xlu0 %v1223, 8
          %v1288 = vpop.permute.xlu0 %1287
          %1289 = vrot.lane.b32.xlu0 %v1225, 8
          %v1290 = vpop.permute.xlu0 %1289
          %1291 = vrot.lane.b32.xlu0 %v1228, 8
          %v1292 = vpop.permute.xlu0 %1291
          %1293 = vrot.lane.b32.xlu0 %v1230, 8
          %v1294 = vpop.permute.xlu0 %1293
          %vm1327 = vcmask 1045504
          %v1328 = vrot.slane %v1042, 2
          %v1329 = vrot.slane %v1043, 2
          %v1330 = vsel %vm1327, %v1328, %v1329
          %v1331 = vrot.slane %v1044, 2
          %v1332 = vsel %vm1327, %v1329, %v1331
          %v1333 = vrot.slane %v1045, 2
          %v1334 = vrot.slane %v1046, 2
          %v1335 = vsel %vm1327, %v1333, %v1334
          %v1336 = vrot.slane %v1047, 2
          %v1337 = vsel %vm1327, %v1334, %v1336
          %v1338 = vrot.slane %v1048, 2
          %v1339 = vrot.slane %v1049, 2
          %v1340 = vsel %vm1327, %v1338, %v1339
          %v1341 = vrot.slane %v1050, 2
          %v1342 = vsel %vm1327, %v1339, %v1341
          %v1343 = vrot.slane %v1051, 2
          %v1344 = vrot.slane %v1052, 2
          %v1345 = vsel %vm1327, %v1343, %v1344
          %v1346 = vrot.slane %v1053, 2
          %v1347 = vsel %vm1327, %v1344, %v1346
          %v1348 = vrot.slane %v1054, 2
          %v1349 = vrot.slane %v1055, 2
          %v1350 = vsel %vm1327, %v1348, %v1349
          %v1351 = vrot.slane %v1056, 2
          %v1352 = vsel %vm1327, %v1349, %v1351
          %v1353 = vrot.slane %v1057, 2
          %v1354 = vrot.slane %v1058, 2
          %v1355 = vsel %vm1327, %v1353, %v1354
          %v1356 = vrot.slane %v1059, 2
          %v1357 = vsel %vm1327, %v1354, %v1356
          %v1358 = vrot.slane %v1060, 2
          %v1359 = vrot.slane %v1061, 2
          %v1360 = vsel %vm1327, %v1358, %v1359
          %v1361 = vrot.slane %v1062, 2
          %v1362 = vsel %vm1327, %v1359, %v1361
          %v1363 = vrot.slane %v1063, 2
          %v1364 = vrot.slane %v1064, 2
          %v1365 = vsel %vm1327, %v1363, %v1364
          %v1366 = vrot.slane %v1065, 2
          %v1367 = vsel %vm1327, %v1364, %v1366
          %v1368 = vrot.slane %v1072, 2
          %v1369 = vrot.slane %v1073, 2
          %v1370 = vsel %vm1327, %v1368, %v1369
          %v1371 = vrot.slane %v1074, 2
          %v1372 = vsel %vm1327, %v1369, %v1371
          %v1373 = vrot.slane %v1075, 2
          %v1374 = vrot.slane %v1076, 2
          %v1375 = vsel %vm1327, %v1373, %v1374
          %v1376 = vrot.slane %v1077, 2
          %v1377 = vsel %vm1327, %v1374, %v1376
          %v1378 = vrot.slane %v1078, 2
          %v1379 = vrot.slane %v1079, 2
          %v1380 = vsel %vm1327, %v1378, %v1379
          %v1381 = vrot.slane %v1080, 2
          %v1382 = vsel %vm1327, %v1379, %v1381
          %v1383 = vrot.slane %v1081, 2
          %v1384 = vrot.slane %v1082, 2
          %v1385 = vsel %vm1327, %v1383, %v1384
          %v1386 = vrot.slane %v1083, 2
          %v1387 = vsel %vm1327, %v1384, %v1386
          %v1388 = vrot.slane %v1084, 2
          %v1389 = vrot.slane %v1085, 2
          %v1390 = vsel %vm1327, %v1388, %v1389
          %v1391 = vrot.slane %v1086, 2
          %v1392 = vsel %vm1327, %v1389, %v1391
          %v1393 = vrot.slane %v1087, 2
          %v1394 = vrot.slane %v1088, 2
          %v1395 = vsel %vm1327, %v1393, %v1394
          %v1396 = vrot.slane %v1089, 2
          %v1397 = vsel %vm1327, %v1394, %v1396
          %v1398 = vrot.slane %v1090, 2
          %v1399 = vrot.slane %v1091, 2
          %v1400 = vsel %vm1327, %v1398, %v1399
          %v1401 = vrot.slane %v1092, 2
          %v1402 = vsel %vm1327, %v1399, %v1401
          %v1403 = vrot.slane %v1093, 2
          %v1404 = vrot.slane %v1094, 2
          %v1405 = vsel %vm1327, %v1403, %v1404
          %v1406 = vrot.slane %v1095, 2
          %v1407 = vsel %vm1327, %v1404, %v1406
          %1408 = vrot.lane.b32.xlu0 %v1330, 16
          %v1409 = vpop.permute.xlu0 %1408
          %1410 = vrot.lane.b32.xlu0 %v1332, 16
          %v1411 = vpop.permute.xlu0 %1410
          %1412 = vrot.lane.b32.xlu0 %v1335, 16
          %v1413 = vpop.permute.xlu0 %1412
          %1414 = vrot.lane.b32.xlu0 %v1337, 16
          %v1415 = vpop.permute.xlu0 %1414
          %1416 = vrot.lane.b32.xlu0 %v1340, 16
          %v1417 = vpop.permute.xlu0 %1416
          %1418 = vrot.lane.b32.xlu0 %v1342, 16
          %v1419 = vpop.permute.xlu0 %1418
          %1420 = vrot.lane.b32.xlu0 %v1345, 16
          %v1421 = vpop.permute.xlu0 %1420
          %1422 = vrot.lane.b32.xlu0 %v1347, 16
          %v1423 = vpop.permute.xlu0 %1422
          %1424 = vrot.lane.b32.xlu0 %v1350, 16
          %v1425 = vpop.permute.xlu0 %1424
          %1426 = vrot.lane.b32.xlu0 %v1352, 16
          %v1427 = vpop.permute.xlu0 %1426
          %1428 = vrot.lane.b32.xlu0 %v1355, 16
          %v1429 = vpop.permute.xlu0 %1428
          %1430 = vrot.lane.b32.xlu0 %v1357, 16
          %v1431 = vpop.permute.xlu0 %1430
          %1432 = vrot.lane.b32.xlu0 %v1360, 16
          %v1433 = vpop.permute.xlu0 %1432
          %1434 = vrot.lane.b32.xlu0 %v1362, 16
          %v1435 = vpop.permute.xlu0 %1434
          %1436 = vrot.lane.b32.xlu0 %v1365, 16
          %v1437 = vpop.permute.xlu0 %1436
          %1438 = vrot.lane.b32.xlu0 %v1367, 16
          %v1439 = vpop.permute.xlu0 %1438
          %1440 = vrot.lane.b32.xlu0 %v1370, 16
          %v1441 = vpop.permute.xlu0 %1440
          %1442 = vrot.lane.b32.xlu0 %v1372, 16
          %v1443 = vpop.permute.xlu0 %1442
          %1444 = vrot.lane.b32.xlu0 %v1375, 16
          %v1445 = vpop.permute.xlu0 %1444
          %1446 = vrot.lane.b32.xlu0 %v1377, 16
          %v1447 = vpop.permute.xlu0 %1446
          %1448 = vrot.lane.b32.xlu0 %v1380, 16
          %v1449 = vpop.permute.xlu0 %1448
          %1450 = vrot.lane.b32.xlu0 %v1382, 16
          %v1451 = vpop.permute.xlu0 %1450
          %1452 = vrot.lane.b32.xlu0 %v1385, 16
          %v1453 = vpop.permute.xlu0 %1452
          %1454 = vrot.lane.b32.xlu0 %v1387, 16
          %v1455 = vpop.permute.xlu0 %1454
          %1456 = vrot.lane.b32.xlu0 %v1390, 16
          %v1457 = vpop.permute.xlu0 %1456
          %1458 = vrot.lane.b32.xlu0 %v1392, 16
          %v1459 = vpop.permute.xlu0 %1458
          %1460 = vrot.lane.b32.xlu0 %v1395, 16
          %v1461 = vpop.permute.xlu0 %1460
          %1462 = vrot.lane.b32.xlu0 %v1397, 16
          %v1463 = vpop.permute.xlu0 %1462
          %1464 = vrot.lane.b32.xlu0 %v1400, 16
          %v1465 = vpop.permute.xlu0 %1464
          %1466 = vrot.lane.b32.xlu0 %v1402, 16
          %v1467 = vpop.permute.xlu0 %1466
          %1468 = vrot.lane.b32.xlu0 %v1405, 16
          %v1469 = vpop.permute.xlu0 %1468
          %1470 = vrot.lane.b32.xlu0 %v1407, 16
          %v1471 = vpop.permute.xlu0 %1470
          %1508 = vrot.lane.b32.xlu0 %v1045, 24
          %v1509 = vpop.permute.xlu0 %1508
          %1510 = vrot.lane.b32.xlu0 %v1046, 24
          %v1511 = vpop.permute.xlu0 %1510
          %1512 = vrot.lane.b32.xlu0 %v1048, 24
          %v1513 = vpop.permute.xlu0 %1512
          %1514 = vrot.lane.b32.xlu0 %v1049, 24
          %v1515 = vpop.permute.xlu0 %1514
          %1516 = vrot.lane.b32.xlu0 %v1051, 24
          %v1517 = vpop.permute.xlu0 %1516
          %1518 = vrot.lane.b32.xlu0 %v1052, 24
          %v1519 = vpop.permute.xlu0 %1518
          %1520 = vrot.lane.b32.xlu0 %v1054, 24
          %v1521 = vpop.permute.xlu0 %1520
          %1522 = vrot.lane.b32.xlu0 %v1055, 24
          %v1523 = vpop.permute.xlu0 %1522
          %1524 = vrot.lane.b32.xlu0 %v1057, 24
          %v1525 = vpop.permute.xlu0 %1524
          %1526 = vrot.lane.b32.xlu0 %v1058, 24
          %v1527 = vpop.permute.xlu0 %1526
          %1528 = vrot.lane.b32.xlu0 %v1060, 24
          %v1529 = vpop.permute.xlu0 %1528
          %1530 = vrot.lane.b32.xlu0 %v1061, 24
          %v1531 = vpop.permute.xlu0 %1530
          %1532 = vrot.lane.b32.xlu0 %v1063, 24
          %v1533 = vpop.permute.xlu0 %1532
          %1534 = vrot.lane.b32.xlu0 %v1064, 24
          %v1535 = vpop.permute.xlu0 %1534
          %1536 = vrot.lane.b32.xlu0 %v1066, 24
          %v1537 = vpop.permute.xlu0 %1536
          %1538 = vrot.lane.b32.xlu0 %v1067, 24
          %v1539 = vpop.permute.xlu0 %1538
          %1540 = vrot.lane.b32.xlu0 %v1075, 24
          %v1541 = vpop.permute.xlu0 %1540
          %1542 = vrot.lane.b32.xlu0 %v1076, 24
          %v1543 = vpop.permute.xlu0 %1542
          %1544 = vrot.lane.b32.xlu0 %v1078, 24
          %v1545 = vpop.permute.xlu0 %1544
          %1546 = vrot.lane.b32.xlu0 %v1079, 24
          %v1547 = vpop.permute.xlu0 %1546
          %1548 = vrot.lane.b32.xlu0 %v1081, 24
          %v1549 = vpop.permute.xlu0 %1548
          %1550 = vrot.lane.b32.xlu0 %v1082, 24
          %v1551 = vpop.permute.xlu0 %1550
          %1552 = vrot.lane.b32.xlu0 %v1084, 24
          %v1553 = vpop.permute.xlu0 %1552
          %1554 = vrot.lane.b32.xlu0 %v1085, 24
          %v1555 = vpop.permute.xlu0 %1554
          %1556 = vrot.lane.b32.xlu0 %v1087, 24
          %v1557 = vpop.permute.xlu0 %1556
          %1558 = vrot.lane.b32.xlu0 %v1088, 24
          %v1559 = vpop.permute.xlu0 %1558
          %1560 = vrot.lane.b32.xlu0 %v1090, 24
          %v1561 = vpop.permute.xlu0 %1560
          %1562 = vrot.lane.b32.xlu0 %v1091, 24
          %v1563 = vpop.permute.xlu0 %1562
          %1564 = vrot.lane.b32.xlu0 %v1093, 24
          %v1565 = vpop.permute.xlu0 %1564
          %1566 = vrot.lane.b32.xlu0 %v1094, 24
          %v1567 = vpop.permute.xlu0 %1566
          %1568 = vrot.lane.b32.xlu0 %v1096, 24
          %v1569 = vpop.permute.xlu0 %1568
          %1570 = vrot.lane.b32.xlu0 %v1097, 24
          %v1571 = vpop.permute.xlu0 %1570
          %v1606 = vrot.slane %v1066, 1
          %v1607 = vrot.slane %v1067, 1
          %v1608 = vsel %vm1150, %v1606, %v1607
          %v1609 = vrot.slane %v1068, 1
          %v1610 = vsel %vm1150, %v1607, %v1609
          %v1611 = vrot.slane %v1096, 1
          %v1612 = vrot.slane %v1097, 1
          %v1613 = vsel %vm1150, %v1611, %v1612
          %v1614 = vrot.slane %v1098, 1
          %v1615 = vsel %vm1150, %v1612, %v1614
          %1616 = vrot.lane.b32.xlu0 %v1158, 32
          %v1617 = vpop.permute.xlu0 %1616
          %1618 = vrot.lane.b32.xlu0 %v1160, 32
          %v1619 = vpop.permute.xlu0 %1618
          %1620 = vrot.lane.b32.xlu0 %v1163, 32
          %v1621 = vpop.permute.xlu0 %1620
          %1622 = vrot.lane.b32.xlu0 %v1165, 32
          %v1623 = vpop.permute.xlu0 %1622
          %1624 = vrot.lane.b32.xlu0 %v1168, 32
          %v1625 = vpop.permute.xlu0 %1624
          %1626 = vrot.lane.b32.xlu0 %v1170, 32
          %v1627 = vpop.permute.xlu0 %1626
          %1628 = vrot.lane.b32.xlu0 %v1173, 32
          %v1629 = vpop.permute.xlu0 %1628
          %1630 = vrot.lane.b32.xlu0 %v1175, 32
          %v1631 = vpop.permute.xlu0 %1630
          %1632 = vrot.lane.b32.xlu0 %v1178, 32
          %v1633 = vpop.permute.xlu0 %1632
          %1634 = vrot.lane.b32.xlu0 %v1180, 32
          %v1635 = vpop.permute.xlu0 %1634
          %1636 = vrot.lane.b32.xlu0 %v1183, 32
          %v1637 = vpop.permute.xlu0 %1636
          %1638 = vrot.lane.b32.xlu0 %v1185, 32
          %v1639 = vpop.permute.xlu0 %1638
          %1640 = vrot.lane.b32.xlu0 %v1188, 32
          %v1641 = vpop.permute.xlu0 %1640
          %1642 = vrot.lane.b32.xlu0 %v1190, 32
          %v1643 = vpop.permute.xlu0 %1642
          %1644 = vrot.lane.b32.xlu0 %v1608, 32
          %v1645 = vpop.permute.xlu0 %1644
          %1646 = vrot.lane.b32.xlu0 %v1610, 32
          %v1647 = vpop.permute.xlu0 %1646
          %1648 = vrot.lane.b32.xlu0 %v1198, 32
          %v1649 = vpop.permute.xlu0 %1648
          %1650 = vrot.lane.b32.xlu0 %v1200, 32
          %v1651 = vpop.permute.xlu0 %1650
          %1652 = vrot.lane.b32.xlu0 %v1203, 32
          %v1653 = vpop.permute.xlu0 %1652
          %1654 = vrot.lane.b32.xlu0 %v1205, 32
          %v1655 = vpop.permute.xlu0 %1654
          %1656 = vrot.lane.b32.xlu0 %v1208, 32
          %v1657 = vpop.permute.xlu0 %1656
          %1658 = vrot.lane.b32.xlu0 %v1210, 32
          %v1659 = vpop.permute.xlu0 %1658
          %1660 = vrot.lane.b32.xlu0 %v1213, 32
          %v1661 = vpop.permute.xlu0 %1660
          %1662 = vrot.lane.b32.xlu0 %v1215, 32
          %v1663 = vpop.permute.xlu0 %1662
          %1664 = vrot.lane.b32.xlu0 %v1218, 32
          %v1665 = vpop.permute.xlu0 %1664
          %1666 = vrot.lane.b32.xlu0 %v1220, 32
          %v1667 = vpop.permute.xlu0 %1666
          %1668 = vrot.lane.b32.xlu0 %v1223, 32
          %v1669 = vpop.permute.xlu0 %1668
          %1670 = vrot.lane.b32.xlu0 %v1225, 32
          %v1671 = vpop.permute.xlu0 %1670
          %1672 = vrot.lane.b32.xlu0 %v1228, 32
          %v1673 = vpop.permute.xlu0 %1672
          %1674 = vrot.lane.b32.xlu0 %v1230, 32
          %v1675 = vpop.permute.xlu0 %1674
          %1676 = vrot.lane.b32.xlu0 %v1613, 32
          %v1677 = vpop.permute.xlu0 %1676
          %1678 = vrot.lane.b32.xlu0 %v1615, 32
          %v1679 = vpop.permute.xlu0 %1678
          %v1712 = vrot.slane %v1066, 2
          %v1713 = vrot.slane %v1067, 2
          %v1714 = vsel %vm1327, %v1712, %v1713
          %v1715 = vrot.slane %v1068, 2
          %v1716 = vsel %vm1327, %v1713, %v1715
          %v1717 = vrot.slane %v1096, 2
          %v1718 = vrot.slane %v1097, 2
          %v1719 = vsel %vm1327, %v1717, %v1718
          %v1720 = vrot.slane %v1098, 2
          %v1721 = vsel %vm1327, %v1718, %v1720
          %1722 = vrot.lane.b32.xlu0 %v1335, 40
          %v1723 = vpop.permute.xlu0 %1722
          %1724 = vrot.lane.b32.xlu0 %v1337, 40
          %v1725 = vpop.permute.xlu0 %1724
          %1726 = vrot.lane.b32.xlu0 %v1340, 40
          %v1727 = vpop.permute.xlu0 %1726
          %1728 = vrot.lane.b32.xlu0 %v1342, 40
          %v1729 = vpop.permute.xlu0 %1728
          %1730 = vrot.lane.b32.xlu0 %v1345, 40
          %v1731 = vpop.permute.xlu0 %1730
          %1732 = vrot.lane.b32.xlu0 %v1347, 40
          %v1733 = vpop.permute.xlu0 %1732
          %1734 = vrot.lane.b32.xlu0 %v1350, 40
          %v1735 = vpop.permute.xlu0 %1734
          %1736 = vrot.lane.b32.xlu0 %v1352, 40
          %v1737 = vpop.permute.xlu0 %1736
          %1738 = vrot.lane.b32.xlu0 %v1355, 40
          %v1739 = vpop.permute.xlu0 %1738
          %1740 = vrot.lane.b32.xlu0 %v1357, 40
          %v1741 = vpop.permute.xlu0 %1740
          %1742 = vrot.lane.b32.xlu0 %v1360, 40
          %v1743 = vpop.permute.xlu0 %1742
          %1744 = vrot.lane.b32.xlu0 %v1362, 40
          %v1745 = vpop.permute.xlu0 %1744
          %1746 = vrot.lane.b32.xlu0 %v1365, 40
          %v1747 = vpop.permute.xlu0 %1746
          %1748 = vrot.lane.b32.xlu0 %v1367, 40
          %v1749 = vpop.permute.xlu0 %1748
          %1750 = vrot.lane.b32.xlu0 %v1714, 40
          %v1751 = vpop.permute.xlu0 %1750
          %1752 = vrot.lane.b32.xlu0 %v1716, 40
          %v1753 = vpop.permute.xlu0 %1752
          %1754 = vrot.lane.b32.xlu0 %v1375, 40
          %v1755 = vpop.permute.xlu0 %1754
          %1756 = vrot.lane.b32.xlu0 %v1377, 40
          %v1757 = vpop.permute.xlu0 %1756
          %1758 = vrot.lane.b32.xlu0 %v1380, 40
          %v1759 = vpop.permute.xlu0 %1758
          %1760 = vrot.lane.b32.xlu0 %v1382, 40
          %v1761 = vpop.permute.xlu0 %1760
          %1762 = vrot.lane.b32.xlu0 %v1385, 40
          %v1763 = vpop.permute.xlu0 %1762
          %1764 = vrot.lane.b32.xlu0 %v1387, 40
          %v1765 = vpop.permute.xlu0 %1764
          %1766 = vrot.lane.b32.xlu0 %v1390, 40
          %v1767 = vpop.permute.xlu0 %1766
          %1768 = vrot.lane.b32.xlu0 %v1392, 40
          %v1769 = vpop.permute.xlu0 %1768
          %1770 = vrot.lane.b32.xlu0 %v1395, 40
          %v1771 = vpop.permute.xlu0 %1770
          %1772 = vrot.lane.b32.xlu0 %v1397, 40
          %v1773 = vpop.permute.xlu0 %1772
          %1774 = vrot.lane.b32.xlu0 %v1400, 40
          %v1775 = vpop.permute.xlu0 %1774
          %1776 = vrot.lane.b32.xlu0 %v1402, 40
          %v1777 = vpop.permute.xlu0 %1776
          %1778 = vrot.lane.b32.xlu0 %v1405, 40
          %v1779 = vpop.permute.xlu0 %1778
          %1780 = vrot.lane.b32.xlu0 %v1407, 40
          %v1781 = vpop.permute.xlu0 %1780
          %1782 = vrot.lane.b32.xlu0 %v1719, 40
          %v1783 = vpop.permute.xlu0 %1782
          %1784 = vrot.lane.b32.xlu0 %v1721, 40
          %v1785 = vpop.permute.xlu0 %1784
          %1822 = vrot.lane.b32.xlu0 %v1048, 48
          %v1823 = vpop.permute.xlu0 %1822
          %1824 = vrot.lane.b32.xlu0 %v1049, 48
          %v1825 = vpop.permute.xlu0 %1824
          %1826 = vrot.lane.b32.xlu0 %v1051, 48
          %v1827 = vpop.permute.xlu0 %1826
          %1828 = vrot.lane.b32.xlu0 %v1052, 48
          %v1829 = vpop.permute.xlu0 %1828
          %1830 = vrot.lane.b32.xlu0 %v1054, 48
          %v1831 = vpop.permute.xlu0 %1830
          %1832 = vrot.lane.b32.xlu0 %v1055, 48
          %v1833 = vpop.permute.xlu0 %1832
          %1834 = vrot.lane.b32.xlu0 %v1057, 48
          %v1835 = vpop.permute.xlu0 %1834
          %1836 = vrot.lane.b32.xlu0 %v1058, 48
          %v1837 = vpop.permute.xlu0 %1836
          %1838 = vrot.lane.b32.xlu0 %v1060, 48
          %v1839 = vpop.permute.xlu0 %1838
          %1840 = vrot.lane.b32.xlu0 %v1061, 48
          %v1841 = vpop.permute.xlu0 %1840
          %1842 = vrot.lane.b32.xlu0 %v1063, 48
          %v1843 = vpop.permute.xlu0 %1842
          %1844 = vrot.lane.b32.xlu0 %v1064, 48
          %v1845 = vpop.permute.xlu0 %1844
          %1846 = vrot.lane.b32.xlu0 %v1066, 48
          %v1847 = vpop.permute.xlu0 %1846
          %1848 = vrot.lane.b32.xlu0 %v1067, 48
          %v1849 = vpop.permute.xlu0 %1848
          %1850 = vrot.lane.b32.xlu0 %v1069, 48
          %v1851 = vpop.permute.xlu0 %1850
          %1852 = vrot.lane.b32.xlu0 %v1070, 48
          %v1853 = vpop.permute.xlu0 %1852
          %1854 = vrot.lane.b32.xlu0 %v1078, 48
          %v1855 = vpop.permute.xlu0 %1854
          %1856 = vrot.lane.b32.xlu0 %v1079, 48
          %v1857 = vpop.permute.xlu0 %1856
          %1858 = vrot.lane.b32.xlu0 %v1081, 48
          %v1859 = vpop.permute.xlu0 %1858
          %1860 = vrot.lane.b32.xlu0 %v1082, 48
          %v1861 = vpop.permute.xlu0 %1860
          %1862 = vrot.lane.b32.xlu0 %v1084, 48
          %v1863 = vpop.permute.xlu0 %1862
          %1864 = vrot.lane.b32.xlu0 %v1085, 48
          %v1865 = vpop.permute.xlu0 %1864
          %1866 = vrot.lane.b32.xlu0 %v1087, 48
          %v1867 = vpop.permute.xlu0 %1866
          %1868 = vrot.lane.b32.xlu0 %v1088, 48
          %v1869 = vpop.permute.xlu0 %1868
          %1870 = vrot.lane.b32.xlu0 %v1090, 48
          %v1871 = vpop.permute.xlu0 %1870
          %1872 = vrot.lane.b32.xlu0 %v1091, 48
          %v1873 = vpop.permute.xlu0 %1872
          %1874 = vrot.lane.b32.xlu0 %v1093, 48
          %v1875 = vpop.permute.xlu0 %1874
          %1876 = vrot.lane.b32.xlu0 %v1094, 48
          %v1877 = vpop.permute.xlu0 %1876
          %1878 = vrot.lane.b32.xlu0 %v1096, 48
          %v1879 = vpop.permute.xlu0 %1878
          %1880 = vrot.lane.b32.xlu0 %v1097, 48
          %v1881 = vpop.permute.xlu0 %1880
          %1882 = vrot.lane.b32.xlu0 %v1099, 48
          %v1883 = vpop.permute.xlu0 %1882
          %1884 = vrot.lane.b32.xlu0 %v1100, 48
          %v1885 = vpop.permute.xlu0 %1884
          %v1920 = vrot.slane %v1069, 1
          %v1921 = vrot.slane %v1070, 1
          %v1922 = vsel %vm1150, %v1920, %v1921
          %v1923 = vrot.slane %v1071, 1
          %v1924 = vsel %vm1150, %v1921, %v1923
          %v1925 = vrot.slane %v1099, 1
          %v1926 = vrot.slane %v1100, 1
          %v1927 = vsel %vm1150, %v1925, %v1926
          %v1928 = vrot.slane %v1101, 1
          %v1929 = vsel %vm1150, %v1926, %v1928
          %1930 = vrot.lane.b32.xlu0 %v1163, 56
          %v1931 = vpop.permute.xlu0 %1930
          %1932 = vrot.lane.b32.xlu0 %v1165, 56
          %v1933 = vpop.permute.xlu0 %1932
          %1934 = vrot.lane.b32.xlu0 %v1168, 56
          %v1935 = vpop.permute.xlu0 %1934
          %1936 = vrot.lane.b32.xlu0 %v1170, 56
          %v1937 = vpop.permute.xlu0 %1936
          %1938 = vrot.lane.b32.xlu0 %v1173, 56
          %v1939 = vpop.permute.xlu0 %1938
          %1940 = vrot.lane.b32.xlu0 %v1175, 56
          %v1941 = vpop.permute.xlu0 %1940
          %1942 = vrot.lane.b32.xlu0 %v1178, 56
          %v1943 = vpop.permute.xlu0 %1942
          %1944 = vrot.lane.b32.xlu0 %v1180, 56
          %v1945 = vpop.permute.xlu0 %1944
          %1946 = vrot.lane.b32.xlu0 %v1183, 56
          %v1947 = vpop.permute.xlu0 %1946
          %1948 = vrot.lane.b32.xlu0 %v1185, 56
          %v1949 = vpop.permute.xlu0 %1948
          %1950 = vrot.lane.b32.xlu0 %v1188, 56
          %v1951 = vpop.permute.xlu0 %1950
          %1952 = vrot.lane.b32.xlu0 %v1190, 56
          %v1953 = vpop.permute.xlu0 %1952
          %1954 = vrot.lane.b32.xlu0 %v1608, 56
          %v1955 = vpop.permute.xlu0 %1954
          %1956 = vrot.lane.b32.xlu0 %v1610, 56
          %v1957 = vpop.permute.xlu0 %1956
          %1958 = vrot.lane.b32.xlu0 %v1922, 56
          %v1959 = vpop.permute.xlu0 %1958
          %1960 = vrot.lane.b32.xlu0 %v1924, 56
          %v1961 = vpop.permute.xlu0 %1960
          %1962 = vrot.lane.b32.xlu0 %v1203, 56
          %v1963 = vpop.permute.xlu0 %1962
          %1964 = vrot.lane.b32.xlu0 %v1205, 56
          %v1965 = vpop.permute.xlu0 %1964
          %1966 = vrot.lane.b32.xlu0 %v1208, 56
          %v1967 = vpop.permute.xlu0 %1966
          %1968 = vrot.lane.b32.xlu0 %v1210, 56
          %v1969 = vpop.permute.xlu0 %1968
          %1970 = vrot.lane.b32.xlu0 %v1213, 56
          %v1971 = vpop.permute.xlu0 %1970
          %1972 = vrot.lane.b32.xlu0 %v1215, 56
          %v1973 = vpop.permute.xlu0 %1972
          %1974 = vrot.lane.b32.xlu0 %v1218, 56
          %v1975 = vpop.permute.xlu0 %1974
          %1976 = vrot.lane.b32.xlu0 %v1220, 56
          %v1977 = vpop.permute.xlu0 %1976
          %1978 = vrot.lane.b32.xlu0 %v1223, 56
          %v1979 = vpop.permute.xlu0 %1978
          %1980 = vrot.lane.b32.xlu0 %v1225, 56
          %v1981 = vpop.permute.xlu0 %1980
          %1982 = vrot.lane.b32.xlu0 %v1228, 56
          %v1983 = vpop.permute.xlu0 %1982
          %1984 = vrot.lane.b32.xlu0 %v1230, 56
          %v1985 = vpop.permute.xlu0 %1984
          %1986 = vrot.lane.b32.xlu0 %v1613, 56
          %v1987 = vpop.permute.xlu0 %1986
          %1988 = vrot.lane.b32.xlu0 %v1615, 56
          %v1989 = vpop.permute.xlu0 %1988
          %1990 = vrot.lane.b32.xlu0 %v1927, 56
          %v1991 = vpop.permute.xlu0 %1990
          %1992 = vrot.lane.b32.xlu0 %v1929, 56
          %v1993 = vpop.permute.xlu0 %1992
          %v2026 = vrot.slane %v1069, 2
          %v2027 = vrot.slane %v1070, 2
          %v2028 = vsel %vm1327, %v2026, %v2027
          %v2029 = vrot.slane %v1071, 2
          %v2030 = vsel %vm1327, %v2027, %v2029
          %v2031 = vrot.slane %v1099, 2
          %v2032 = vrot.slane %v1100, 2
          %v2033 = vsel %vm1327, %v2031, %v2032
          %v2034 = vrot.slane %v1101, 2
          %v2035 = vsel %vm1327, %v2032, %v2034
          %2036 = vrot.lane.b32.xlu0 %v1340, 64
          %v2037 = vpop.permute.xlu0 %2036
          %2038 = vrot.lane.b32.xlu0 %v1342, 64
          %v2039 = vpop.permute.xlu0 %2038
          %2040 = vrot.lane.b32.xlu0 %v1345, 64
          %v2041 = vpop.permute.xlu0 %2040
          %2042 = vrot.lane.b32.xlu0 %v1347, 64
          %v2043 = vpop.permute.xlu0 %2042
          %2044 = vrot.lane.b32.xlu0 %v1350, 64
          %v2045 = vpop.permute.xlu0 %2044
          %2046 = vrot.lane.b32.xlu0 %v1352, 64
          %v2047 = vpop.permute.xlu0 %2046
          %2048 = vrot.lane.b32.xlu0 %v1355, 64
          %v2049 = vpop.permute.xlu0 %2048
          %2050 = vrot.lane.b32.xlu0 %v1357, 64
          %v2051 = vpop.permute.xlu0 %2050
          %2052 = vrot.lane.b32.xlu0 %v1360, 64
          %v2053 = vpop.permute.xlu0 %2052
          %2054 = vrot.lane.b32.xlu0 %v1362, 64
          %v2055 = vpop.permute.xlu0 %2054
          %2056 = vrot.lane.b32.xlu0 %v1365, 64
          %v2057 = vpop.permute.xlu0 %2056
          %2058 = vrot.lane.b32.xlu0 %v1367, 64
          %v2059 = vpop.permute.xlu0 %2058
          %2060 = vrot.lane.b32.xlu0 %v1714, 64
          %v2061 = vpop.permute.xlu0 %2060
          %2062 = vrot.lane.b32.xlu0 %v1716, 64
          %v2063 = vpop.permute.xlu0 %2062
          %2064 = vrot.lane.b32.xlu0 %v2028, 64
          %v2065 = vpop.permute.xlu0 %2064
          %2066 = vrot.lane.b32.xlu0 %v2030, 64
          %v2067 = vpop.permute.xlu0 %2066
          %2068 = vrot.lane.b32.xlu0 %v1380, 64
          %v2069 = vpop.permute.xlu0 %2068
          %2070 = vrot.lane.b32.xlu0 %v1382, 64
          %v2071 = vpop.permute.xlu0 %2070
          %2072 = vrot.lane.b32.xlu0 %v1385, 64
          %v2073 = vpop.permute.xlu0 %2072
          %2074 = vrot.lane.b32.xlu0 %v1387, 64
          %v2075 = vpop.permute.xlu0 %2074
          %2076 = vrot.lane.b32.xlu0 %v1390, 64
          %v2077 = vpop.permute.xlu0 %2076
          %2078 = vrot.lane.b32.xlu0 %v1392, 64
          %v2079 = vpop.permute.xlu0 %2078
          %2080 = vrot.lane.b32.xlu0 %v1395, 64
          %v2081 = vpop.permute.xlu0 %2080
          %2082 = vrot.lane.b32.xlu0 %v1397, 64
          %v2083 = vpop.permute.xlu0 %2082
          %2084 = vrot.lane.b32.xlu0 %v1400, 64
          %v2085 = vpop.permute.xlu0 %2084
          %2086 = vrot.lane.b32.xlu0 %v1402, 64
          %v2087 = vpop.permute.xlu0 %2086
          %2088 = vrot.lane.b32.xlu0 %v1405, 64
          %v2089 = vpop.permute.xlu0 %2088
          %2090 = vrot.lane.b32.xlu0 %v1407, 64
          %v2091 = vpop.permute.xlu0 %2090
          %2092 = vrot.lane.b32.xlu0 %v1719, 64
          %v2093 = vpop.permute.xlu0 %2092
          %2094 = vrot.lane.b32.xlu0 %v1721, 64
          %v2095 = vpop.permute.xlu0 %2094
          %2096 = vrot.lane.b32.xlu0 %v2033, 64
          %v2097 = vpop.permute.xlu0 %2096
          %2098 = vrot.lane.b32.xlu0 %v2035, 64
          %v2099 = vpop.permute.xlu0 %2098
          %v2132 = vsel %vm966, %v1042, %v1232
          %v2133 = vsel %vm966, %v1043, %v1234
          %v2134 = vsel %vm966, %v1045, %v1236
          %v2135 = vsel %vm966, %v1046, %v1238
          %v2136 = vsel %vm966, %v1048, %v1240
          %v2137 = vsel %vm966, %v1049, %v1242
          %v2138 = vsel %vm966, %v1051, %v1244
          %v2139 = vsel %vm966, %v1052, %v1246
          %v2140 = vsel %vm966, %v1054, %v1248
          %v2141 = vsel %vm966, %v1055, %v1250
          %v2142 = vsel %vm966, %v1057, %v1252
          %v2143 = vsel %vm966, %v1058, %v1254
          %v2144 = vsel %vm966, %v1060, %v1256
          %v2145 = vsel %vm966, %v1061, %v1258
          %v2146 = vsel %vm966, %v1063, %v1260
          %v2147 = vsel %vm966, %v1064, %v1262
          %v2148 = vsel %vm966, %v1072, %v1264
          %v2149 = vsel %vm966, %v1073, %v1266
          %v2150 = vsel %vm966, %v1075, %v1268
          %v2151 = vsel %vm966, %v1076, %v1270
          %v2152 = vsel %vm966, %v1078, %v1272
          %v2153 = vsel %vm966, %v1079, %v1274
          %v2154 = vsel %vm966, %v1081, %v1276
          %v2155 = vsel %vm966, %v1082, %v1278
          %v2156 = vsel %vm966, %v1084, %v1280
          %v2157 = vsel %vm966, %v1085, %v1282
          %v2158 = vsel %vm966, %v1087, %v1284
          %v2159 = vsel %vm966, %v1088, %v1286
          %v2160 = vsel %vm966, %v1090, %v1288
          %v2161 = vsel %vm966, %v1091, %v1290
          %v2162 = vsel %vm966, %v1093, %v1292
          %v2163 = vsel %vm966, %v1094, %v1294
          %vm2164 = vcmask 130048
          %v2165 = vsel %vm2164, %v2132, %v1409
          %v2166 = vsel %vm2164, %v2133, %v1411
          %v2167 = vsel %vm2164, %v2134, %v1413
          %v2168 = vsel %vm2164, %v2135, %v1415
          %v2169 = vsel %vm2164, %v2136, %v1417
          %v2170 = vsel %vm2164, %v2137, %v1419
          %v2171 = vsel %vm2164, %v2138, %v1421
          %v2172 = vsel %vm2164, %v2139, %v1423
          %v2173 = vsel %vm2164, %v2140, %v1425
          %v2174 = vsel %vm2164, %v2141, %v1427
          %v2175 = vsel %vm2164, %v2142, %v1429
          %v2176 = vsel %vm2164, %v2143, %v1431
          %v2177 = vsel %vm2164, %v2144, %v1433
          %v2178 = vsel %vm2164, %v2145, %v1435
          %v2179 = vsel %vm2164, %v2146, %v1437
          %v2180 = vsel %vm2164, %v2147, %v1439
          %v2181 = vsel %vm2164, %v2148, %v1441
          %v2182 = vsel %vm2164, %v2149, %v1443
          %v2183 = vsel %vm2164, %v2150, %v1445
          %v2184 = vsel %vm2164, %v2151, %v1447
          %v2185 = vsel %vm2164, %v2152, %v1449
          %v2186 = vsel %vm2164, %v2153, %v1451
          %v2187 = vsel %vm2164, %v2154, %v1453
          %v2188 = vsel %vm2164, %v2155, %v1455
          %v2189 = vsel %vm2164, %v2156, %v1457
          %v2190 = vsel %vm2164, %v2157, %v1459
          %v2191 = vsel %vm2164, %v2158, %v1461
          %v2192 = vsel %vm2164, %v2159, %v1463
          %v2193 = vsel %vm2164, %v2160, %v1465
          %v2194 = vsel %vm2164, %v2161, %v1467
          %v2195 = vsel %vm2164, %v2162, %v1469
          %v2196 = vsel %vm2164, %v2163, %v1471
          %vm2197 = vcmask 195584
          %v2198 = vsel %vm2197, %v2165, %v1509
          %v2199 = vsel %vm2197, %v2166, %v1511
          %v2200 = vsel %vm2197, %v2167, %v1513
          %v2201 = vsel %vm2197, %v2168, %v1515
          %v2202 = vsel %vm2197, %v2169, %v1517
          %v2203 = vsel %vm2197, %v2170, %v1519
          %v2204 = vsel %vm2197, %v2171, %v1521
          %v2205 = vsel %vm2197, %v2172, %v1523
          %v2206 = vsel %vm2197, %v2173, %v1525
          %v2207 = vsel %vm2197, %v2174, %v1527
          %v2208 = vsel %vm2197, %v2175, %v1529
          %v2209 = vsel %vm2197, %v2176, %v1531
          %v2210 = vsel %vm2197, %v2177, %v1533
          %v2211 = vsel %vm2197, %v2178, %v1535
          %v2212 = vsel %vm2197, %v2179, %v1537
          %v2213 = vsel %vm2197, %v2180, %v1539
          %v2214 = vsel %vm2197, %v2181, %v1541
          %v2215 = vsel %vm2197, %v2182, %v1543
          %v2216 = vsel %vm2197, %v2183, %v1545
          %v2217 = vsel %vm2197, %v2184, %v1547
          %v2218 = vsel %vm2197, %v2185, %v1549
          %v2219 = vsel %vm2197, %v2186, %v1551
          %v2220 = vsel %vm2197, %v2187, %v1553
          %v2221 = vsel %vm2197, %v2188, %v1555
          %v2222 = vsel %vm2197, %v2189, %v1557
          %v2223 = vsel %vm2197, %v2190, %v1559
          %v2224 = vsel %vm2197, %v2191, %v1561
          %v2225 = vsel %vm2197, %v2192, %v1563
          %v2226 = vsel %vm2197, %v2193, %v1565
          %v2227 = vsel %vm2197, %v2194, %v1567
          %v2228 = vsel %vm2197, %v2195, %v1569
          %v2229 = vsel %vm2197, %v2196, %v1571
          %vm2230 = vcmask 261120
          %v2231 = vsel %vm2230, %v2198, %v1617
          %v2232 = vsel %vm2230, %v2199, %v1619
          %v2233 = vsel %vm2230, %v2200, %v1621
          %v2234 = vsel %vm2230, %v2201, %v1623
          %v2235 = vsel %vm2230, %v2202, %v1625
          %v2236 = vsel %vm2230, %v2203, %v1627
          %v2237 = vsel %vm2230, %v2204, %v1629
          %v2238 = vsel %vm2230, %v2205, %v1631
          %v2239 = vsel %vm2230, %v2206, %v1633
          %v2240 = vsel %vm2230, %v2207, %v1635
          %v2241 = vsel %vm2230, %v2208, %v1637
          %v2242 = vsel %vm2230, %v2209, %v1639
          %v2243 = vsel %vm2230, %v2210, %v1641
          %v2244 = vsel %vm2230, %v2211, %v1643
          %v2245 = vsel %vm2230, %v2212, %v1645
          %v2246 = vsel %vm2230, %v2213, %v1647
          %v2247 = vsel %vm2230, %v2214, %v1649
          %v2248 = vsel %vm2230, %v2215, %v1651
          %v2249 = vsel %vm2230, %v2216, %v1653
          %v2250 = vsel %vm2230, %v2217, %v1655
          %v2251 = vsel %vm2230, %v2218, %v1657
          %v2252 = vsel %vm2230, %v2219, %v1659
          %v2253 = vsel %vm2230, %v2220, %v1661
          %v2254 = vsel %vm2230, %v2221, %v1663
          %v2255 = vsel %vm2230, %v2222, %v1665
          %v2256 = vsel %vm2230, %v2223, %v1667
          %v2257 = vsel %vm2230, %v2224, %v1669
          %v2258 = vsel %vm2230, %v2225, %v1671
          %v2259 = vsel %vm2230, %v2226, %v1673
          %v2260 = vsel %vm2230, %v2227, %v1675
          %v2261 = vsel %vm2230, %v2228, %v1677
          %v2262 = vsel %vm2230, %v2229, %v1679
          %vm2263 = vcmask 326656
          %v2264 = vsel %vm2263, %v2231, %v1723
          %v2265 = vsel %vm2263, %v2232, %v1725
          %v2266 = vsel %vm2263, %v2233, %v1727
          %v2267 = vsel %vm2263, %v2234, %v1729
          %v2268 = vsel %vm2263, %v2235, %v1731
          %v2269 = vsel %vm2263, %v2236, %v1733
          %v2270 = vsel %vm2263, %v2237, %v1735
          %v2271 = vsel %vm2263, %v2238, %v1737
          %v2272 = vsel %vm2263, %v2239, %v1739
          %v2273 = vsel %vm2263, %v2240, %v1741
          %v2274 = vsel %vm2263, %v2241, %v1743
          %v2275 = vsel %vm2263, %v2242, %v1745
          %v2276 = vsel %vm2263, %v2243, %v1747
          %v2277 = vsel %vm2263, %v2244, %v1749
          %v2278 = vsel %vm2263, %v2245, %v1751
          %v2279 = vsel %vm2263, %v2246, %v1753
          %v2280 = vsel %vm2263, %v2247, %v1755
          %v2281 = vsel %vm2263, %v2248, %v1757
          %v2282 = vsel %vm2263, %v2249, %v1759
          %v2283 = vsel %vm2263, %v2250, %v1761
          %v2284 = vsel %vm2263, %v2251, %v1763
          %v2285 = vsel %vm2263, %v2252, %v1765
          %v2286 = vsel %vm2263, %v2253, %v1767
          %v2287 = vsel %vm2263, %v2254, %v1769
          %v2288 = vsel %vm2263, %v2255, %v1771
          %v2289 = vsel %vm2263, %v2256, %v1773
          %v2290 = vsel %vm2263, %v2257, %v1775
          %v2291 = vsel %vm2263, %v2258, %v1777
          %v2292 = vsel %vm2263, %v2259, %v1779
          %v2293 = vsel %vm2263, %v2260, %v1781
          %v2294 = vsel %vm2263, %v2261, %v1783
          %v2295 = vsel %vm2263, %v2262, %v1785
          %vm2296 = vcmask 392192
          %v2297 = vsel %vm2296, %v2264, %v1823
          %v2298 = vsel %vm2296, %v2265, %v1825
          %v2299 = vsel %vm2296, %v2266, %v1827
          %v2300 = vsel %vm2296, %v2267, %v1829
          %v2301 = vsel %vm2296, %v2268, %v1831
          %v2302 = vsel %vm2296, %v2269, %v1833
          %v2303 = vsel %vm2296, %v2270, %v1835
          %v2304 = vsel %vm2296, %v2271, %v1837
          %v2305 = vsel %vm2296, %v2272, %v1839
          %v2306 = vsel %vm2296, %v2273, %v1841
          %v2307 = vsel %vm2296, %v2274, %v1843
          %v2308 = vsel %vm2296, %v2275, %v1845
          %v2309 = vsel %vm2296, %v2276, %v1847
          %v2310 = vsel %vm2296, %v2277, %v1849
          %v2311 = vsel %vm2296, %v2278, %v1851
          %v2312 = vsel %vm2296, %v2279, %v1853
          %v2313 = vsel %vm2296, %v2280, %v1855
          %v2314 = vsel %vm2296, %v2281, %v1857
          %v2315 = vsel %vm2296, %v2282, %v1859
          %v2316 = vsel %vm2296, %v2283, %v1861
          %v2317 = vsel %vm2296, %v2284, %v1863
          %v2318 = vsel %vm2296, %v2285, %v1865
          %v2319 = vsel %vm2296, %v2286, %v1867
          %v2320 = vsel %vm2296, %v2287, %v1869
          %v2321 = vsel %vm2296, %v2288, %v1871
          %v2322 = vsel %vm2296, %v2289, %v1873
          %v2323 = vsel %vm2296, %v2290, %v1875
          %v2324 = vsel %vm2296, %v2291, %v1877
          %v2325 = vsel %vm2296, %v2292, %v1879
          %v2326 = vsel %vm2296, %v2293, %v1881
          %v2327 = vsel %vm2296, %v2294, %v1883
          %v2328 = vsel %vm2296, %v2295, %v1885
          %vm2329 = vcmask 457728
          %v2330 = vsel %vm2329, %v2297, %v1931
          %v2331 = vsel %vm2329, %v2298, %v1933
          %v2332 = vsel %vm2329, %v2299, %v1935
          %v2333 = vsel %vm2329, %v2300, %v1937
          %v2334 = vsel %vm2329, %v2301, %v1939
          %v2335 = vsel %vm2329, %v2302, %v1941
          %v2336 = vsel %vm2329, %v2303, %v1943
          %v2337 = vsel %vm2329, %v2304, %v1945
          %v2338 = vsel %vm2329, %v2305, %v1947
          %v2339 = vsel %vm2329, %v2306, %v1949
          %v2340 = vsel %vm2329, %v2307, %v1951
          %v2341 = vsel %vm2329, %v2308, %v1953
          %v2342 = vsel %vm2329, %v2309, %v1955
          %v2343 = vsel %vm2329, %v2310, %v1957
          %v2344 = vsel %vm2329, %v2311, %v1959
          %v2345 = vsel %vm2329, %v2312, %v1961
          %v2346 = vsel %vm2329, %v2313, %v1963
          %v2347 = vsel %vm2329, %v2314, %v1965
          %v2348 = vsel %vm2329, %v2315, %v1967
          %v2349 = vsel %vm2329, %v2316, %v1969
          %v2350 = vsel %vm2329, %v2317, %v1971
          %v2351 = vsel %vm2329, %v2318, %v1973
          %v2352 = vsel %vm2329, %v2319, %v1975
          %v2353 = vsel %vm2329, %v2320, %v1977
          %v2354 = vsel %vm2329, %v2321, %v1979
          %v2355 = vsel %vm2329, %v2322, %v1981
          %v2356 = vsel %vm2329, %v2323, %v1983
          %v2357 = vsel %vm2329, %v2324, %v1985
          %v2358 = vsel %vm2329, %v2325, %v1987
          %v2359 = vsel %vm2329, %v2326, %v1989
          %v2360 = vsel %vm2329, %v2327, %v1991
          %v2361 = vsel %vm2329, %v2328, %v1993
          %vm2362 = vcmask 523264
          %v2363 = vsel %vm2362, %v2330, %v2037
          %v2364 = vsel %vm2362, %v2331, %v2039
          %v2365 = vsel %vm2362, %v2332, %v2041
          %v2366 = vsel %vm2362, %v2333, %v2043
          %v2367 = vsel %vm2362, %v2334, %v2045
          %v2368 = vsel %vm2362, %v2335, %v2047
          %v2369 = vsel %vm2362, %v2336, %v2049
          %v2370 = vsel %vm2362, %v2337, %v2051
          %v2371 = vsel %vm2362, %v2338, %v2053
          %v2372 = vsel %vm2362, %v2339, %v2055
          %v2373 = vsel %vm2362, %v2340, %v2057
          %v2374 = vsel %vm2362, %v2341, %v2059
          %v2375 = vsel %vm2362, %v2342, %v2061
          %v2376 = vsel %vm2362, %v2343, %v2063
          %v2377 = vsel %vm2362, %v2344, %v2065
          %v2378 = vsel %vm2362, %v2345, %v2067
          %v2379 = vsel %vm2362, %v2346, %v2069
          %v2380 = vsel %vm2362, %v2347, %v2071
          %v2381 = vsel %vm2362, %v2348, %v2073
          %v2382 = vsel %vm2362, %v2349, %v2075
          %v2383 = vsel %vm2362, %v2350, %v2077
          %v2384 = vsel %vm2362, %v2351, %v2079
          %v2385 = vsel %vm2362, %v2352, %v2081
          %v2386 = vsel %vm2362, %v2353, %v2083
          %v2387 = vsel %vm2362, %v2354, %v2085
          %v2388 = vsel %vm2362, %v2355, %v2087
          %v2389 = vsel %vm2362, %v2356, %v2089
          %v2390 = vsel %vm2362, %v2357, %v2091
          %v2391 = vsel %vm2362, %v2358, %v2093
          %v2392 = vsel %vm2362, %v2359, %v2095
          %v2393 = vsel %vm2362, %v2360, %v2097
          %v2394 = vsel %vm2362, %v2361, %v2099
          %s2395 = scalar_lea.vmem [#allocation4], %s1040
          %v2396 = vld [vmem:[%s2395] sm:$0xff]
          %v2397 = vld [vmem:[%s2395 + $0x8] sm:$0xff]
          %v2398 = vld [vmem:[%s2395 + $0x10] sm:$0x3]
          %v2399 = vld [vmem:[%s2395 + $0x18] sm:$0xff]
          %v2400 = vld [vmem:[%s2395 + $0x20] sm:$0xff]
          %v2401 = vld [vmem:[%s2395 + $0x28] sm:$0x3]
          %v2402 = vld [vmem:[%s2395 + $0x30] sm:$0xff]
          %v2403 = vld [vmem:[%s2395 + $0x38] sm:$0xff]
          %v2404 = vld [vmem:[%s2395 + $0x40] sm:$0x3]
          %v2405 = vld [vmem:[%s2395 + $0x48] sm:$0xff]
          %v2406 = vld [vmem:[%s2395 + $0x50] sm:$0xff]
          %v2407 = vld [vmem:[%s2395 + $0x58] sm:$0x3]
          %v2408 = vld [vmem:[%s2395 + $0x60] sm:$0xff]
          %v2409 = vld [vmem:[%s2395 + $0x68] sm:$0xff]
          %v2410 = vld [vmem:[%s2395 + $0x70] sm:$0x3]
          %v2411 = vld [vmem:[%s2395 + $0x78] sm:$0xff]
          %v2412 = vld [vmem:[%s2395 + $0x80] sm:$0xff]
          %v2413 = vld [vmem:[%s2395 + $0x88] sm:$0x3]
          %v2414 = vld [vmem:[%s2395 + $0x90] sm:$0xff]
          %v2415 = vld [vmem:[%s2395 + $0x98] sm:$0xff]
          %v2416 = vld [vmem:[%s2395 + $0xa0] sm:$0x3]
          %v2417 = vld [vmem:[%s2395 + $0xa8] sm:$0xff]
          %v2418 = vld [vmem:[%s2395 + $0xb0] sm:$0xff]
          %v2419 = vld [vmem:[%s2395 + $0xb8] sm:$0x3]
          %v2420 = vld [vmem:[%s2395 + $0xc0] sm:$0xff]
          %v2421 = vld [vmem:[%s2395 + $0xc8] sm:$0xff]
          %v2422 = vld [vmem:[%s2395 + $0xd0] sm:$0x3]
          %v2423 = vld [vmem:[%s2395 + $0xd8] sm:$0xff]
          %v2424 = vld [vmem:[%s2395 + $0xe0] sm:$0xff]
          %v2425 = vld [vmem:[%s2395 + $0xe8] sm:$0x3]
          %v2426 = vld [vmem:[%s2395 + $0x1b0] sm:$0xff]
          %v2427 = vld [vmem:[%s2395 + $0x1b8] sm:$0xff]
          %v2428 = vld [vmem:[%s2395 + $0x1c0] sm:$0x3]
          %v2429 = vld [vmem:[%s2395 + $0x1c8] sm:$0xff]
          %v2430 = vld [vmem:[%s2395 + $0x1d0] sm:$0xff]
          %v2431 = vld [vmem:[%s2395 + $0x1d8] sm:$0x3]
          %v2432 = vld [vmem:[%s2395 + $0x1e0] sm:$0xff]
          %v2433 = vld [vmem:[%s2395 + $0x1e8] sm:$0xff]
          %v2434 = vld [vmem:[%s2395 + $0x1f0] sm:$0x3]
          %v2435 = vld [vmem:[%s2395 + $0x1f8] sm:$0xff]
          %v2436 = vld [vmem:[%s2395 + $0x200] sm:$0xff]
          %v2437 = vld [vmem:[%s2395 + $0x208] sm:$0x3]
          %v2438 = vld [vmem:[%s2395 + $0x210] sm:$0xff]
          %v2439 = vld [vmem:[%s2395 + $0x218] sm:$0xff]
          %v2440 = vld [vmem:[%s2395 + $0x220] sm:$0x3]
          %v2441 = vld [vmem:[%s2395 + $0x228] sm:$0xff]
          %v2442 = vld [vmem:[%s2395 + $0x230] sm:$0xff]
          %v2443 = vld [vmem:[%s2395 + $0x238] sm:$0x3]
          %v2444 = vld [vmem:[%s2395 + $0x240] sm:$0xff]
          %v2445 = vld [vmem:[%s2395 + $0x248] sm:$0xff]
          %v2446 = vld [vmem:[%s2395 + $0x250] sm:$0x3]
          %v2447 = vld [vmem:[%s2395 + $0x258] sm:$0xff]
          %v2448 = vld [vmem:[%s2395 + $0x260] sm:$0xff]
          %v2449 = vld [vmem:[%s2395 + $0x268] sm:$0x3]
          %v2450 = vld [vmem:[%s2395 + $0x270] sm:$0xff]
          %v2451 = vld [vmem:[%s2395 + $0x278] sm:$0xff]
          %v2452 = vld [vmem:[%s2395 + $0x280] sm:$0x3]
          %v2453 = vld [vmem:[%s2395 + $0x288] sm:$0xff]
          %v2454 = vld [vmem:[%s2395 + $0x290] sm:$0xff]
          %v2455 = vld [vmem:[%s2395 + $0x298] sm:$0x3]
          %v2504 = vrot.slane %v2396, 1
          %v2505 = vrot.slane %v2397, 1
          %v2506 = vsel %vm1150, %v2504, %v2505
          %v2507 = vrot.slane %v2398, 1
          %v2508 = vsel %vm1150, %v2505, %v2507
          %v2509 = vrot.slane %v2399, 1
          %v2510 = vrot.slane %v2400, 1
          %v2511 = vsel %vm1150, %v2509, %v2510
          %v2512 = vrot.slane %v2401, 1
          %v2513 = vsel %vm1150, %v2510, %v2512
          %v2514 = vrot.slane %v2402, 1
          %v2515 = vrot.slane %v2403, 1
          %v2516 = vsel %vm1150, %v2514, %v2515
          %v2517 = vrot.slane %v2404, 1
          %v2518 = vsel %vm1150, %v2515, %v2517
          %v2519 = vrot.slane %v2405, 1
          %v2520 = vrot.slane %v2406, 1
          %v2521 = vsel %vm1150, %v2519, %v2520
          %v2522 = vrot.slane %v2407, 1
          %v2523 = vsel %vm1150, %v2520, %v2522
          %v2524 = vrot.slane %v2408, 1
          %v2525 = vrot.slane %v2409, 1
          %v2526 = vsel %vm1150, %v2524, %v2525
          %v2527 = vrot.slane %v2410, 1
          %v2528 = vsel %vm1150, %v2525, %v2527
          %v2529 = vrot.slane %v2411, 1
          %v2530 = vrot.slane %v2412, 1
          %v2531 = vsel %vm1150, %v2529, %v2530
          %v2532 = vrot.slane %v2413, 1
          %v2533 = vsel %vm1150, %v2530, %v2532
          %v2534 = vrot.slane %v2414, 1
          %v2535 = vrot.slane %v2415, 1
          %v2536 = vsel %vm1150, %v2534, %v2535
          %v2537 = vrot.slane %v2416, 1
          %v2538 = vsel %vm1150, %v2535, %v2537
          %v2539 = vrot.slane %v2417, 1
          %v2540 = vrot.slane %v2418, 1
          %v2541 = vsel %vm1150, %v2539, %v2540
          %v2542 = vrot.slane %v2419, 1
          %v2543 = vsel %vm1150, %v2540, %v2542
          %v2544 = vrot.slane %v2426, 1
          %v2545 = vrot.slane %v2427, 1
          %v2546 = vsel %vm1150, %v2544, %v2545
          %v2547 = vrot.slane %v2428, 1
          %v2548 = vsel %vm1150, %v2545, %v2547
          %v2549 = vrot.slane %v2429, 1
          %v2550 = vrot.slane %v2430, 1
          %v2551 = vsel %vm1150, %v2549, %v2550
          %v2552 = vrot.slane %v2431, 1
          %v2553 = vsel %vm1150, %v2550, %v2552
          %v2554 = vrot.slane %v2432, 1
          %v2555 = vrot.slane %v2433, 1
          %v2556 = vsel %vm1150, %v2554, %v2555
          %v2557 = vrot.slane %v2434, 1
          %v2558 = vsel %vm1150, %v2555, %v2557
          %v2559 = vrot.slane %v2435, 1
          %v2560 = vrot.slane %v2436, 1
          %v2561 = vsel %vm1150, %v2559, %v2560
          %v2562 = vrot.slane %v2437, 1
          %v2563 = vsel %vm1150, %v2560, %v2562
          %v2564 = vrot.slane %v2438, 1
          %v2565 = vrot.slane %v2439, 1
          %v2566 = vsel %vm1150, %v2564, %v2565
          %v2567 = vrot.slane %v2440, 1
          %v2568 = vsel %vm1150, %v2565, %v2567
          %v2569 = vrot.slane %v2441, 1
          %v2570 = vrot.slane %v2442, 1
          %v2571 = vsel %vm1150, %v2569, %v2570
          %v2572 = vrot.slane %v2443, 1
          %v2573 = vsel %vm1150, %v2570, %v2572
          %v2574 = vrot.slane %v2444, 1
          %v2575 = vrot.slane %v2445, 1
          %v2576 = vsel %vm1150, %v2574, %v2575
          %v2577 = vrot.slane %v2446, 1
          %v2578 = vsel %vm1150, %v2575, %v2577
          %v2579 = vrot.slane %v2447, 1
          %v2580 = vrot.slane %v2448, 1
          %v2581 = vsel %vm1150, %v2579, %v2580
          %v2582 = vrot.slane %v2449, 1
          %v2583 = vsel %vm1150, %v2580, %v2582
          %2584 = vrot.lane.b32.xlu0 %v2506, 8
          %v2585 = vpop.permute.xlu0 %2584
          %2586 = vrot.lane.b32.xlu0 %v2508, 8
          %v2587 = vpop.permute.xlu0 %2586
          %2588 = vrot.lane.b32.xlu0 %v2511, 8
          %v2589 = vpop.permute.xlu0 %2588
          %2590 = vrot.lane.b32.xlu0 %v2513, 8
          %v2591 = vpop.permute.xlu0 %2590
          %2592 = vrot.lane.b32.xlu0 %v2516, 8
          %v2593 = vpop.permute.xlu0 %2592
          %2594 = vrot.lane.b32.xlu0 %v2518, 8
          %v2595 = vpop.permute.xlu0 %2594
          %2596 = vrot.lane.b32.xlu0 %v2521, 8
          %v2597 = vpop.permute.xlu0 %2596
          %2598 = vrot.lane.b32.xlu0 %v2523, 8
          %v2599 = vpop.permute.xlu0 %2598
          %2600 = vrot.lane.b32.xlu0 %v2526, 8
          %v2601 = vpop.permute.xlu0 %2600
          %2602 = vrot.lane.b32.xlu0 %v2528, 8
          %v2603 = vpop.permute.xlu0 %2602
          %2604 = vrot.lane.b32.xlu0 %v2531, 8
          %v2605 = vpop.permute.xlu0 %2604
          %2606 = vrot.lane.b32.xlu0 %v2533, 8
          %v2607 = vpop.permute.xlu0 %2606
          %2608 = vrot.lane.b32.xlu0 %v2536, 8
          %v2609 = vpop.permute.xlu0 %2608
          %2610 = vrot.lane.b32.xlu0 %v2538, 8
          %v2611 = vpop.permute.xlu0 %2610
          %2612 = vrot.lane.b32.xlu0 %v2541, 8
          %v2613 = vpop.permute.xlu0 %2612
          %2614 = vrot.lane.b32.xlu0 %v2543, 8
          %v2615 = vpop.permute.xlu0 %2614
          %2616 = vrot.lane.b32.xlu0 %v2546, 8
          %v2617 = vpop.permute.xlu0 %2616
          %2618 = vrot.lane.b32.xlu0 %v2548, 8
          %v2619 = vpop.permute.xlu0 %2618
          %2620 = vrot.lane.b32.xlu0 %v2551, 8
          %v2621 = vpop.permute.xlu0 %2620
          %2622 = vrot.lane.b32.xlu0 %v2553, 8
          %v2623 = vpop.permute.xlu0 %2622
          %2624 = vrot.lane.b32.xlu0 %v2556, 8
          %v2625 = vpop.permute.xlu0 %2624
          %2626 = vrot.lane.b32.xlu0 %v2558, 8
          %v2627 = vpop.permute.xlu0 %2626
          %2628 = vrot.lane.b32.xlu0 %v2561, 8
          %v2629 = vpop.permute.xlu0 %2628
          %2630 = vrot.lane.b32.xlu0 %v2563, 8
          %v2631 = vpop.permute.xlu0 %2630
          %2632 = vrot.lane.b32.xlu0 %v2566, 8
          %v2633 = vpop.permute.xlu0 %2632
          %2634 = vrot.lane.b32.xlu0 %v2568, 8
          %v2635 = vpop.permute.xlu0 %2634
          %2636 = vrot.lane.b32.xlu0 %v2571, 8
          %v2637 = vpop.permute.xlu0 %2636
          %2638 = vrot.lane.b32.xlu0 %v2573, 8
          %v2639 = vpop.permute.xlu0 %2638
          %2640 = vrot.lane.b32.xlu0 %v2576, 8
          %v2641 = vpop.permute.xlu0 %2640
          %2642 = vrot.lane.b32.xlu0 %v2578, 8
          %v2643 = vpop.permute.xlu0 %2642
          %2644 = vrot.lane.b32.xlu0 %v2581, 8
          %v2645 = vpop.permute.xlu0 %2644
          %2646 = vrot.lane.b32.xlu0 %v2583, 8
          %v2647 = vpop.permute.xlu0 %2646
          %v2680 = vrot.slane %v2396, 2
          %v2681 = vrot.slane %v2397, 2
          %v2682 = vsel %vm1327, %v2680, %v2681
          %v2683 = vrot.slane %v2398, 2
          %v2684 = vsel %vm1327, %v2681, %v2683
          %v2685 = vrot.slane %v2399, 2
          %v2686 = vrot.slane %v2400, 2
          %v2687 = vsel %vm1327, %v2685, %v2686
          %v2688 = vrot.slane %v2401, 2
          %v2689 = vsel %vm1327, %v2686, %v2688
          %v2690 = vrot.slane %v2402, 2
          %v2691 = vrot.slane %v2403, 2
          %v2692 = vsel %vm1327, %v2690, %v2691
          %v2693 = vrot.slane %v2404, 2
          %v2694 = vsel %vm1327, %v2691, %v2693
          %v2695 = vrot.slane %v2405, 2
          %v2696 = vrot.slane %v2406, 2
          %v2697 = vsel %vm1327, %v2695, %v2696
          %v2698 = vrot.slane %v2407, 2
          %v2699 = vsel %vm1327, %v2696, %v2698
          %v2700 = vrot.slane %v2408, 2
          %v2701 = vrot.slane %v2409, 2
          %v2702 = vsel %vm1327, %v2700, %v2701
          %v2703 = vrot.slane %v2410, 2
          %v2704 = vsel %vm1327, %v2701, %v2703
          %v2705 = vrot.slane %v2411, 2
          %v2706 = vrot.slane %v2412, 2
          %v2707 = vsel %vm1327, %v2705, %v2706
          %v2708 = vrot.slane %v2413, 2
          %v2709 = vsel %vm1327, %v2706, %v2708
          %v2710 = vrot.slane %v2414, 2
          %v2711 = vrot.slane %v2415, 2
          %v2712 = vsel %vm1327, %v2710, %v2711
          %v2713 = vrot.slane %v2416, 2
          %v2714 = vsel %vm1327, %v2711, %v2713
          %v2715 = vrot.slane %v2417, 2
          %v2716 = vrot.slane %v2418, 2
          %v2717 = vsel %vm1327, %v2715, %v2716
          %v2718 = vrot.slane %v2419, 2
          %v2719 = vsel %vm1327, %v2716, %v2718
          %v2720 = vrot.slane %v2426, 2
          %v2721 = vrot.slane %v2427, 2
          %v2722 = vsel %vm1327, %v2720, %v2721
          %v2723 = vrot.slane %v2428, 2
          %v2724 = vsel %vm1327, %v2721, %v2723
          %v2725 = vrot.slane %v2429, 2
          %v2726 = vrot.slane %v2430, 2
          %v2727 = vsel %vm1327, %v2725, %v2726
          %v2728 = vrot.slane %v2431, 2
          %v2729 = vsel %vm1327, %v2726, %v2728
          %v2730 = vrot.slane %v2432, 2
          %v2731 = vrot.slane %v2433, 2
          %v2732 = vsel %vm1327, %v2730, %v2731
          %v2733 = vrot.slane %v2434, 2
          %v2734 = vsel %vm1327, %v2731, %v2733
          %v2735 = vrot.slane %v2435, 2
          %v2736 = vrot.slane %v2436, 2
          %v2737 = vsel %vm1327, %v2735, %v2736
          %v2738 = vrot.slane %v2437, 2
          %v2739 = vsel %vm1327, %v2736, %v2738
          %v2740 = vrot.slane %v2438, 2
          %v2741 = vrot.slane %v2439, 2
          %v2742 = vsel %vm1327, %v2740, %v2741
          %v2743 = vrot.slane %v2440, 2
          %v2744 = vsel %vm1327, %v2741, %v2743
          %v2745 = vrot.slane %v2441, 2
          %v2746 = vrot.slane %v2442, 2
          %v2747 = vsel %vm1327, %v2745, %v2746
          %v2748 = vrot.slane %v2443, 2
          %v2749 = vsel %vm1327, %v2746, %v2748
          %v2750 = vrot.slane %v2444, 2
          %v2751 = vrot.slane %v2445, 2
          %v2752 = vsel %vm1327, %v2750, %v2751
          %v2753 = vrot.slane %v2446, 2
          %v2754 = vsel %vm1327, %v2751, %v2753
          %v2755 = vrot.slane %v2447, 2
          %v2756 = vrot.slane %v2448, 2
          %v2757 = vsel %vm1327, %v2755, %v2756
          %v2758 = vrot.slane %v2449, 2
          %v2759 = vsel %vm1327, %v2756, %v2758
          %2760 = vrot.lane.b32.xlu0 %v2682, 16
          %v2761 = vpop.permute.xlu0 %2760
          %2762 = vrot.lane.b32.xlu0 %v2684, 16
          %v2763 = vpop.permute.xlu0 %2762
          %2764 = vrot.lane.b32.xlu0 %v2687, 16
          %v2765 = vpop.permute.xlu0 %2764
          %2766 = vrot.lane.b32.xlu0 %v2689, 16
          %v2767 = vpop.permute.xlu0 %2766
          %2768 = vrot.lane.b32.xlu0 %v2692, 16
          %v2769 = vpop.permute.xlu0 %2768
          %2770 = vrot.lane.b32.xlu0 %v2694, 16
          %v2771 = vpop.permute.xlu0 %2770
          %2772 = vrot.lane.b32.xlu0 %v2697, 16
          %v2773 = vpop.permute.xlu0 %2772
          %2774 = vrot.lane.b32.xlu0 %v2699, 16
          %v2775 = vpop.permute.xlu0 %2774
          %2776 = vrot.lane.b32.xlu0 %v2702, 16
          %v2777 = vpop.permute.xlu0 %2776
          %2778 = vrot.lane.b32.xlu0 %v2704, 16
          %v2779 = vpop.permute.xlu0 %2778
          %2780 = vrot.lane.b32.xlu0 %v2707, 16
          %v2781 = vpop.permute.xlu0 %2780
          %2782 = vrot.lane.b32.xlu0 %v2709, 16
          %v2783 = vpop.permute.xlu0 %2782
          %2784 = vrot.lane.b32.xlu0 %v2712, 16
          %v2785 = vpop.permute.xlu0 %2784
          %2786 = vrot.lane.b32.xlu0 %v2714, 16
          %v2787 = vpop.permute.xlu0 %2786
          %2788 = vrot.lane.b32.xlu0 %v2717, 16
          %v2789 = vpop.permute.xlu0 %2788
          %2790 = vrot.lane.b32.xlu0 %v2719, 16
          %v2791 = vpop.permute.xlu0 %2790
          %2792 = vrot.lane.b32.xlu0 %v2722, 16
          %v2793 = vpop.permute.xlu0 %2792
          %2794 = vrot.lane.b32.xlu0 %v2724, 16
          %v2795 = vpop.permute.xlu0 %2794
          %2796 = vrot.lane.b32.xlu0 %v2727, 16
          %v2797 = vpop.permute.xlu0 %2796
          %2798 = vrot.lane.b32.xlu0 %v2729, 16
          %v2799 = vpop.permute.xlu0 %2798
          %2800 = vrot.lane.b32.xlu0 %v2732, 16
          %v2801 = vpop.permute.xlu0 %2800
          %2802 = vrot.lane.b32.xlu0 %v2734, 16
          %v2803 = vpop.permute.xlu0 %2802
          %2804 = vrot.lane.b32.xlu0 %v2737, 16
          %v2805 = vpop.permute.xlu0 %2804
          %2806 = vrot.lane.b32.xlu0 %v2739, 16
          %v2807 = vpop.permute.xlu0 %2806
          %2808 = vrot.lane.b32.xlu0 %v2742, 16
          %v2809 = vpop.permute.xlu0 %2808
          %2810 = vrot.lane.b32.xlu0 %v2744, 16
          %v2811 = vpop.permute.xlu0 %2810
          %2812 = vrot.lane.b32.xlu0 %v2747, 16
          %v2813 = vpop.permute.xlu0 %2812
          %2814 = vrot.lane.b32.xlu0 %v2749, 16
          %v2815 = vpop.permute.xlu0 %2814
          %2816 = vrot.lane.b32.xlu0 %v2752, 16
          %v2817 = vpop.permute.xlu0 %2816
          %2818 = vrot.lane.b32.xlu0 %v2754, 16
          %v2819 = vpop.permute.xlu0 %2818
          %2820 = vrot.lane.b32.xlu0 %v2757, 16
          %v2821 = vpop.permute.xlu0 %2820
          %2822 = vrot.lane.b32.xlu0 %v2759, 16
          %v2823 = vpop.permute.xlu0 %2822
          %2860 = vrot.lane.b32.xlu0 %v2399, 24
          %v2861 = vpop.permute.xlu0 %2860
          %2862 = vrot.lane.b32.xlu0 %v2400, 24
          %v2863 = vpop.permute.xlu0 %2862
          %2864 = vrot.lane.b32.xlu0 %v2402, 24
          %v2865 = vpop.permute.xlu0 %2864
          %2866 = vrot.lane.b32.xlu0 %v2403, 24
          %v2867 = vpop.permute.xlu0 %2866
          %2868 = vrot.lane.b32.xlu0 %v2405, 24
          %v2869 = vpop.permute.xlu0 %2868
          %2870 = vrot.lane.b32.xlu0 %v2406, 24
          %v2871 = vpop.permute.xlu0 %2870
          %2872 = vrot.lane.b32.xlu0 %v2408, 24
          %v2873 = vpop.permute.xlu0 %2872
          %2874 = vrot.lane.b32.xlu0 %v2409, 24
          %v2875 = vpop.permute.xlu0 %2874
          %2876 = vrot.lane.b32.xlu0 %v2411, 24
          %v2877 = vpop.permute.xlu0 %2876
          %2878 = vrot.lane.b32.xlu0 %v2412, 24
          %v2879 = vpop.permute.xlu0 %2878
          %2880 = vrot.lane.b32.xlu0 %v2414, 24
          %v2881 = vpop.permute.xlu0 %2880
          %2882 = vrot.lane.b32.xlu0 %v2415, 24
          %v2883 = vpop.permute.xlu0 %2882
          %2884 = vrot.lane.b32.xlu0 %v2417, 24
          %v2885 = vpop.permute.xlu0 %2884
          %2886 = vrot.lane.b32.xlu0 %v2418, 24
          %v2887 = vpop.permute.xlu0 %2886
          %2888 = vrot.lane.b32.xlu0 %v2420, 24
          %v2889 = vpop.permute.xlu0 %2888
          %2890 = vrot.lane.b32.xlu0 %v2421, 24
          %v2891 = vpop.permute.xlu0 %2890
          %2892 = vrot.lane.b32.xlu0 %v2429, 24
          %v2893 = vpop.permute.xlu0 %2892
          %2894 = vrot.lane.b32.xlu0 %v2430, 24
          %v2895 = vpop.permute.xlu0 %2894
          %2896 = vrot.lane.b32.xlu0 %v2432, 24
          %v2897 = vpop.permute.xlu0 %2896
          %2898 = vrot.lane.b32.xlu0 %v2433, 24
          %v2899 = vpop.permute.xlu0 %2898
          %2900 = vrot.lane.b32.xlu0 %v2435, 24
          %v2901 = vpop.permute.xlu0 %2900
          %2902 = vrot.lane.b32.xlu0 %v2436, 24
          %v2903 = vpop.permute.xlu0 %2902
          %2904 = vrot.lane.b32.xlu0 %v2438, 24
          %v2905 = vpop.permute.xlu0 %2904
          %2906 = vrot.lane.b32.xlu0 %v2439, 24
          %v2907 = vpop.permute.xlu0 %2906
          %2908 = vrot.lane.b32.xlu0 %v2441, 24
          %v2909 = vpop.permute.xlu0 %2908
          %2910 = vrot.lane.b32.xlu0 %v2442, 24
          %v2911 = vpop.permute.xlu0 %2910
          %2912 = vrot.lane.b32.xlu0 %v2444, 24
          %v2913 = vpop.permute.xlu0 %2912
          %2914 = vrot.lane.b32.xlu0 %v2445, 24
          %v2915 = vpop.permute.xlu0 %2914
          %2916 = vrot.lane.b32.xlu0 %v2447, 24
          %v2917 = vpop.permute.xlu0 %2916
          %2918 = vrot.lane.b32.xlu0 %v2448, 24
          %v2919 = vpop.permute.xlu0 %2918
          %2920 = vrot.lane.b32.xlu0 %v2450, 24
          %v2921 = vpop.permute.xlu0 %2920
          %2922 = vrot.lane.b32.xlu0 %v2451, 24
          %v2923 = vpop.permute.xlu0 %2922
          %v2958 = vrot.slane %v2420, 1
          %v2959 = vrot.slane %v2421, 1
          %v2960 = vsel %vm1150, %v2958, %v2959
          %v2961 = vrot.slane %v2422, 1
          %v2962 = vsel %vm1150, %v2959, %v2961
          %v2963 = vrot.slane %v2450, 1
          %v2964 = vrot.slane %v2451, 1
          %v2965 = vsel %vm1150, %v2963, %v2964
          %v2966 = vrot.slane %v2452, 1
          %v2967 = vsel %vm1150, %v2964, %v2966
          %2968 = vrot.lane.b32.xlu0 %v2511, 32
          %v2969 = vpop.permute.xlu0 %2968
          %2970 = vrot.lane.b32.xlu0 %v2513, 32
          %v2971 = vpop.permute.xlu0 %2970
          %2972 = vrot.lane.b32.xlu0 %v2516, 32
          %v2973 = vpop.permute.xlu0 %2972
          %2974 = vrot.lane.b32.xlu0 %v2518, 32
          %v2975 = vpop.permute.xlu0 %2974
          %2976 = vrot.lane.b32.xlu0 %v2521, 32
          %v2977 = vpop.permute.xlu0 %2976
          %2978 = vrot.lane.b32.xlu0 %v2523, 32
          %v2979 = vpop.permute.xlu0 %2978
          %2980 = vrot.lane.b32.xlu0 %v2526, 32
          %v2981 = vpop.permute.xlu0 %2980
          %2982 = vrot.lane.b32.xlu0 %v2528, 32
          %v2983 = vpop.permute.xlu0 %2982
          %2984 = vrot.lane.b32.xlu0 %v2531, 32
          %v2985 = vpop.permute.xlu0 %2984
          %2986 = vrot.lane.b32.xlu0 %v2533, 32
          %v2987 = vpop.permute.xlu0 %2986
          %2988 = vrot.lane.b32.xlu0 %v2536, 32
          %v2989 = vpop.permute.xlu0 %2988
          %2990 = vrot.lane.b32.xlu0 %v2538, 32
          %v2991 = vpop.permute.xlu0 %2990
          %2992 = vrot.lane.b32.xlu0 %v2541, 32
          %v2993 = vpop.permute.xlu0 %2992
          %2994 = vrot.lane.b32.xlu0 %v2543, 32
          %v2995 = vpop.permute.xlu0 %2994
          %2996 = vrot.lane.b32.xlu0 %v2960, 32
          %v2997 = vpop.permute.xlu0 %2996
          %2998 = vrot.lane.b32.xlu0 %v2962, 32
          %v2999 = vpop.permute.xlu0 %2998
          %3000 = vrot.lane.b32.xlu0 %v2551, 32
          %v3001 = vpop.permute.xlu0 %3000
          %3002 = vrot.lane.b32.xlu0 %v2553, 32
          %v3003 = vpop.permute.xlu0 %3002
          %3004 = vrot.lane.b32.xlu0 %v2556, 32
          %v3005 = vpop.permute.xlu0 %3004
          %3006 = vrot.lane.b32.xlu0 %v2558, 32
          %v3007 = vpop.permute.xlu0 %3006
          %3008 = vrot.lane.b32.xlu0 %v2561, 32
          %v3009 = vpop.permute.xlu0 %3008
          %3010 = vrot.lane.b32.xlu0 %v2563, 32
          %v3011 = vpop.permute.xlu0 %3010
          %3012 = vrot.lane.b32.xlu0 %v2566, 32
          %v3013 = vpop.permute.xlu0 %3012
          %3014 = vrot.lane.b32.xlu0 %v2568, 32
          %v3015 = vpop.permute.xlu0 %3014
          %3016 = vrot.lane.b32.xlu0 %v2571, 32
          %v3017 = vpop.permute.xlu0 %3016
          %3018 = vrot.lane.b32.xlu0 %v2573, 32
          %v3019 = vpop.permute.xlu0 %3018
          %3020 = vrot.lane.b32.xlu0 %v2576, 32
          %v3021 = vpop.permute.xlu0 %3020
          %3022 = vrot.lane.b32.xlu0 %v2578, 32
          %v3023 = vpop.permute.xlu0 %3022
          %3024 = vrot.lane.b32.xlu0 %v2581, 32
          %v3025 = vpop.permute.xlu0 %3024
          %3026 = vrot.lane.b32.xlu0 %v2583, 32
          %v3027 = vpop.permute.xlu0 %3026
          %3028 = vrot.lane.b32.xlu0 %v2965, 32
          %v3029 = vpop.permute.xlu0 %3028
          %3030 = vrot.lane.b32.xlu0 %v2967, 32
          %v3031 = vpop.permute.xlu0 %3030
          %v3064 = vrot.slane %v2420, 2
          %v3065 = vrot.slane %v2421, 2
          %v3066 = vsel %vm1327, %v3064, %v3065
          %v3067 = vrot.slane %v2422, 2
          %v3068 = vsel %vm1327, %v3065, %v3067
          %v3069 = vrot.slane %v2450, 2
          %v3070 = vrot.slane %v2451, 2
          %v3071 = vsel %vm1327, %v3069, %v3070
          %v3072 = vrot.slane %v2452, 2
          %v3073 = vsel %vm1327, %v3070, %v3072
          %3074 = vrot.lane.b32.xlu0 %v2687, 40
          %v3075 = vpop.permute.xlu0 %3074
          %3076 = vrot.lane.b32.xlu0 %v2689, 40
          %v3077 = vpop.permute.xlu0 %3076
          %3078 = vrot.lane.b32.xlu0 %v2692, 40
          %v3079 = vpop.permute.xlu0 %3078
          %3080 = vrot.lane.b32.xlu0 %v2694, 40
          %v3081 = vpop.permute.xlu0 %3080
          %3082 = vrot.lane.b32.xlu0 %v2697, 40
          %v3083 = vpop.permute.xlu0 %3082
          %3084 = vrot.lane.b32.xlu0 %v2699, 40
          %v3085 = vpop.permute.xlu0 %3084
          %3086 = vrot.lane.b32.xlu0 %v2702, 40
          %v3087 = vpop.permute.xlu0 %3086
          %3088 = vrot.lane.b32.xlu0 %v2704, 40
          %v3089 = vpop.permute.xlu0 %3088
          %3090 = vrot.lane.b32.xlu0 %v2707, 40
          %v3091 = vpop.permute.xlu0 %3090
          %3092 = vrot.lane.b32.xlu0 %v2709, 40
          %v3093 = vpop.permute.xlu0 %3092
          %3094 = vrot.lane.b32.xlu0 %v2712, 40
          %v3095 = vpop.permute.xlu0 %3094
          %3096 = vrot.lane.b32.xlu0 %v2714, 40
          %v3097 = vpop.permute.xlu0 %3096
          %3098 = vrot.lane.b32.xlu0 %v2717, 40
          %v3099 = vpop.permute.xlu0 %3098
          %3100 = vrot.lane.b32.xlu0 %v2719, 40
          %v3101 = vpop.permute.xlu0 %3100
          %3102 = vrot.lane.b32.xlu0 %v3066, 40
          %v3103 = vpop.permute.xlu0 %3102
          %3104 = vrot.lane.b32.xlu0 %v3068, 40
          %v3105 = vpop.permute.xlu0 %3104
          %3106 = vrot.lane.b32.xlu0 %v2727, 40
          %v3107 = vpop.permute.xlu0 %3106
          %3108 = vrot.lane.b32.xlu0 %v2729, 40
          %v3109 = vpop.permute.xlu0 %3108
          %3110 = vrot.lane.b32.xlu0 %v2732, 40
          %v3111 = vpop.permute.xlu0 %3110
          %3112 = vrot.lane.b32.xlu0 %v2734, 40
          %v3113 = vpop.permute.xlu0 %3112
          %3114 = vrot.lane.b32.xlu0 %v2737, 40
          %v3115 = vpop.permute.xlu0 %3114
          %3116 = vrot.lane.b32.xlu0 %v2739, 40
          %v3117 = vpop.permute.xlu0 %3116
          %3118 = vrot.lane.b32.xlu0 %v2742, 40
          %v3119 = vpop.permute.xlu0 %3118
          %3120 = vrot.lane.b32.xlu0 %v2744, 40
          %v3121 = vpop.permute.xlu0 %3120
          %3122 = vrot.lane.b32.xlu0 %v2747, 40
          %v3123 = vpop.permute.xlu0 %3122
          %3124 = vrot.lane.b32.xlu0 %v2749, 40
          %v3125 = vpop.permute.xlu0 %3124
          %3126 = vrot.lane.b32.xlu0 %v2752, 40
          %v3127 = vpop.permute.xlu0 %3126
          %3128 = vrot.lane.b32.xlu0 %v2754, 40
          %v3129 = vpop.permute.xlu0 %3128
          %3130 = vrot.lane.b32.xlu0 %v2757, 40
          %v3131 = vpop.permute.xlu0 %3130
          %3132 = vrot.lane.b32.xlu0 %v2759, 40
          %v3133 = vpop.permute.xlu0 %3132
          %3134 = vrot.lane.b32.xlu0 %v3071, 40
          %v3135 = vpop.permute.xlu0 %3134
          %3136 = vrot.lane.b32.xlu0 %v3073, 40
          %v3137 = vpop.permute.xlu0 %3136
          %3174 = vrot.lane.b32.xlu0 %v2402, 48
          %v3175 = vpop.permute.xlu0 %3174
          %3176 = vrot.lane.b32.xlu0 %v2403, 48
          %v3177 = vpop.permute.xlu0 %3176
          %3178 = vrot.lane.b32.xlu0 %v2405, 48
          %v3179 = vpop.permute.xlu0 %3178
          %3180 = vrot.lane.b32.xlu0 %v2406, 48
          %v3181 = vpop.permute.xlu0 %3180
          %3182 = vrot.lane.b32.xlu0 %v2408, 48
          %v3183 = vpop.permute.xlu0 %3182
          %3184 = vrot.lane.b32.xlu0 %v2409, 48
          %v3185 = vpop.permute.xlu0 %3184
          %3186 = vrot.lane.b32.xlu0 %v2411, 48
          %v3187 = vpop.permute.xlu0 %3186
          %3188 = vrot.lane.b32.xlu0 %v2412, 48
          %v3189 = vpop.permute.xlu0 %3188
          %3190 = vrot.lane.b32.xlu0 %v2414, 48
          %v3191 = vpop.permute.xlu0 %3190
          %3192 = vrot.lane.b32.xlu0 %v2415, 48
          %v3193 = vpop.permute.xlu0 %3192
          %3194 = vrot.lane.b32.xlu0 %v2417, 48
          %v3195 = vpop.permute.xlu0 %3194
          %3196 = vrot.lane.b32.xlu0 %v2418, 48
          %v3197 = vpop.permute.xlu0 %3196
          %3198 = vrot.lane.b32.xlu0 %v2420, 48
          %v3199 = vpop.permute.xlu0 %3198
          %3200 = vrot.lane.b32.xlu0 %v2421, 48
          %v3201 = vpop.permute.xlu0 %3200
          %3202 = vrot.lane.b32.xlu0 %v2423, 48
          %v3203 = vpop.permute.xlu0 %3202
          %3204 = vrot.lane.b32.xlu0 %v2424, 48
          %v3205 = vpop.permute.xlu0 %3204
          %3206 = vrot.lane.b32.xlu0 %v2432, 48
          %v3207 = vpop.permute.xlu0 %3206
          %3208 = vrot.lane.b32.xlu0 %v2433, 48
          %v3209 = vpop.permute.xlu0 %3208
          %3210 = vrot.lane.b32.xlu0 %v2435, 48
          %v3211 = vpop.permute.xlu0 %3210
          %3212 = vrot.lane.b32.xlu0 %v2436, 48
          %v3213 = vpop.permute.xlu0 %3212
          %3214 = vrot.lane.b32.xlu0 %v2438, 48
          %v3215 = vpop.permute.xlu0 %3214
          %3216 = vrot.lane.b32.xlu0 %v2439, 48
          %v3217 = vpop.permute.xlu0 %3216
          %3218 = vrot.lane.b32.xlu0 %v2441, 48
          %v3219 = vpop.permute.xlu0 %3218
          %3220 = vrot.lane.b32.xlu0 %v2442, 48
          %v3221 = vpop.permute.xlu0 %3220
          %3222 = vrot.lane.b32.xlu0 %v2444, 48
          %v3223 = vpop.permute.xlu0 %3222
          %3224 = vrot.lane.b32.xlu0 %v2445, 48
          %v3225 = vpop.permute.xlu0 %3224
          %3226 = vrot.lane.b32.xlu0 %v2447, 48
          %v3227 = vpop.permute.xlu0 %3226
          %3228 = vrot.lane.b32.xlu0 %v2448, 48
          %v3229 = vpop.permute.xlu0 %3228
          %3230 = vrot.lane.b32.xlu0 %v2450, 48
          %v3231 = vpop.permute.xlu0 %3230
          %3232 = vrot.lane.b32.xlu0 %v2451, 48
          %v3233 = vpop.permute.xlu0 %3232
          %3234 = vrot.lane.b32.xlu0 %v2453, 48
          %v3235 = vpop.permute.xlu0 %3234
          %3236 = vrot.lane.b32.xlu0 %v2454, 48
          %v3237 = vpop.permute.xlu0 %3236
          %v3272 = vrot.slane %v2423, 1
          %v3273 = vrot.slane %v2424, 1
          %v3274 = vsel %vm1150, %v3272, %v3273
          %v3275 = vrot.slane %v2425, 1
          %v3276 = vsel %vm1150, %v3273, %v3275
          %v3277 = vrot.slane %v2453, 1
          %v3278 = vrot.slane %v2454, 1
          %v3279 = vsel %vm1150, %v3277, %v3278
          %v3280 = vrot.slane %v2455, 1
          %v3281 = vsel %vm1150, %v3278, %v3280
          %3282 = vrot.lane.b32.xlu0 %v2516, 56
          %v3283 = vpop.permute.xlu0 %3282
          %3284 = vrot.lane.b32.xlu0 %v2518, 56
          %v3285 = vpop.permute.xlu0 %3284
          %3286 = vrot.lane.b32.xlu0 %v2521, 56
          %v3287 = vpop.permute.xlu0 %3286
          %3288 = vrot.lane.b32.xlu0 %v2523, 56
          %v3289 = vpop.permute.xlu0 %3288
          %3290 = vrot.lane.b32.xlu0 %v2526, 56
          %v3291 = vpop.permute.xlu0 %3290
          %3292 = vrot.lane.b32.xlu0 %v2528, 56
          %v3293 = vpop.permute.xlu0 %3292
          %3294 = vrot.lane.b32.xlu0 %v2531, 56
          %v3295 = vpop.permute.xlu0 %3294
          %3296 = vrot.lane.b32.xlu0 %v2533, 56
          %v3297 = vpop.permute.xlu0 %3296
          %3298 = vrot.lane.b32.xlu0 %v2536, 56
          %v3299 = vpop.permute.xlu0 %3298
          %3300 = vrot.lane.b32.xlu0 %v2538, 56
          %v3301 = vpop.permute.xlu0 %3300
          %3302 = vrot.lane.b32.xlu0 %v2541, 56
          %v3303 = vpop.permute.xlu0 %3302
          %3304 = vrot.lane.b32.xlu0 %v2543, 56
          %v3305 = vpop.permute.xlu0 %3304
          %3306 = vrot.lane.b32.xlu0 %v2960, 56
          %v3307 = vpop.permute.xlu0 %3306
          %3308 = vrot.lane.b32.xlu0 %v2962, 56
          %v3309 = vpop.permute.xlu0 %3308
          %3310 = vrot.lane.b32.xlu0 %v3274, 56
          %v3311 = vpop.permute.xlu0 %3310
          %3312 = vrot.lane.b32.xlu0 %v3276, 56
          %v3313 = vpop.permute.xlu0 %3312
          %3314 = vrot.lane.b32.xlu0 %v2556, 56
          %v3315 = vpop.permute.xlu0 %3314
          %3316 = vrot.lane.b32.xlu0 %v2558, 56
          %v3317 = vpop.permute.xlu0 %3316
          %3318 = vrot.lane.b32.xlu0 %v2561, 56
          %v3319 = vpop.permute.xlu0 %3318
          %3320 = vrot.lane.b32.xlu0 %v2563, 56
          %v3321 = vpop.permute.xlu0 %3320
          %3322 = vrot.lane.b32.xlu0 %v2566, 56
          %v3323 = vpop.permute.xlu0 %3322
          %3324 = vrot.lane.b32.xlu0 %v2568, 56
          %v3325 = vpop.permute.xlu0 %3324
          %3326 = vrot.lane.b32.xlu0 %v2571, 56
          %v3327 = vpop.permute.xlu0 %3326
          %3328 = vrot.lane.b32.xlu0 %v2573, 56
          %v3329 = vpop.permute.xlu0 %3328
          %3330 = vrot.lane.b32.xlu0 %v2576, 56
          %v3331 = vpop.permute.xlu0 %3330
          %3332 = vrot.lane.b32.xlu0 %v2578, 56
          %v3333 = vpop.permute.xlu0 %3332
          %3334 = vrot.lane.b32.xlu0 %v2581, 56
          %v3335 = vpop.permute.xlu0 %3334
          %3336 = vrot.lane.b32.xlu0 %v2583, 56
          %v3337 = vpop.permute.xlu0 %3336
          %3338 = vrot.lane.b32.xlu0 %v2965, 56
          %v3339 = vpop.permute.xlu0 %3338
          %3340 = vrot.lane.b32.xlu0 %v2967, 56
          %v3341 = vpop.permute.xlu0 %3340
          %3342 = vrot.lane.b32.xlu0 %v3279, 56
          %v3343 = vpop.permute.xlu0 %3342
          %3344 = vrot.lane.b32.xlu0 %v3281, 56
          %v3345 = vpop.permute.xlu0 %3344
          %v3378 = vrot.slane %v2423, 2
          %v3379 = vrot.slane %v2424, 2
          %v3380 = vsel %vm1327, %v3378, %v3379
          %v3381 = vrot.slane %v2425, 2
          %v3382 = vsel %vm1327, %v3379, %v3381
          %v3383 = vrot.slane %v2453, 2
          %v3384 = vrot.slane %v2454, 2
          %v3385 = vsel %vm1327, %v3383, %v3384
          %v3386 = vrot.slane %v2455, 2
          %v3387 = vsel %vm1327, %v3384, %v3386
          %3388 = vrot.lane.b32.xlu0 %v2692, 64
          %v3389 = vpop.permute.xlu0 %3388
          %3390 = vrot.lane.b32.xlu0 %v2694, 64
          %v3391 = vpop.permute.xlu0 %3390
          %3392 = vrot.lane.b32.xlu0 %v2697, 64
          %v3393 = vpop.permute.xlu0 %3392
          %3394 = vrot.lane.b32.xlu0 %v2699, 64
          %v3395 = vpop.permute.xlu0 %3394
          %3396 = vrot.lane.b32.xlu0 %v2702, 64
          %v3397 = vpop.permute.xlu0 %3396
          %3398 = vrot.lane.b32.xlu0 %v2704, 64
          %v3399 = vpop.permute.xlu0 %3398
          %3400 = vrot.lane.b32.xlu0 %v2707, 64
          %v3401 = vpop.permute.xlu0 %3400
          %3402 = vrot.lane.b32.xlu0 %v2709, 64
          %v3403 = vpop.permute.xlu0 %3402
          %3404 = vrot.lane.b32.xlu0 %v2712, 64
          %v3405 = vpop.permute.xlu0 %3404
          %3406 = vrot.lane.b32.xlu0 %v2714, 64
          %v3407 = vpop.permute.xlu0 %3406
          %3408 = vrot.lane.b32.xlu0 %v2717, 64
          %v3409 = vpop.permute.xlu0 %3408
          %3410 = vrot.lane.b32.xlu0 %v2719, 64
          %v3411 = vpop.permute.xlu0 %3410
          %3412 = vrot.lane.b32.xlu0 %v3066, 64
          %v3413 = vpop.permute.xlu0 %3412
          %3414 = vrot.lane.b32.xlu0 %v3068, 64
          %v3415 = vpop.permute.xlu0 %3414
          %3416 = vrot.lane.b32.xlu0 %v3380, 64
          %v3417 = vpop.permute.xlu0 %3416
          %3418 = vrot.lane.b32.xlu0 %v3382, 64
          %v3419 = vpop.permute.xlu0 %3418
          %3420 = vrot.lane.b32.xlu0 %v2732, 64
          %v3421 = vpop.permute.xlu0 %3420
          %3422 = vrot.lane.b32.xlu0 %v2734, 64
          %v3423 = vpop.permute.xlu0 %3422
          %3424 = vrot.lane.b32.xlu0 %v2737, 64
          %v3425 = vpop.permute.xlu0 %3424
          %3426 = vrot.lane.b32.xlu0 %v2739, 64
          %v3427 = vpop.permute.xlu0 %3426
          %3428 = vrot.lane.b32.xlu0 %v2742, 64
          %v3429 = vpop.permute.xlu0 %3428
          %3430 = vrot.lane.b32.xlu0 %v2744, 64
          %v3431 = vpop.permute.xlu0 %3430
          %3432 = vrot.lane.b32.xlu0 %v2747, 64
          %v3433 = vpop.permute.xlu0 %3432
          %3434 = vrot.lane.b32.xlu0 %v2749, 64
          %v3435 = vpop.permute.xlu0 %3434
          %3436 = vrot.lane.b32.xlu0 %v2752, 64
          %v3437 = vpop.permute.xlu0 %3436
          %3438 = vrot.lane.b32.xlu0 %v2754, 64
          %v3439 = vpop.permute.xlu0 %3438
          %3440 = vrot.lane.b32.xlu0 %v2757, 64
          %v3441 = vpop.permute.xlu0 %3440
          %3442 = vrot.lane.b32.xlu0 %v2759, 64
          %v3443 = vpop.permute.xlu0 %3442
          %3444 = vrot.lane.b32.xlu0 %v3071, 64
          %v3445 = vpop.permute.xlu0 %3444
          %3446 = vrot.lane.b32.xlu0 %v3073, 64
          %v3447 = vpop.permute.xlu0 %3446
          %3448 = vrot.lane.b32.xlu0 %v3385, 64
          %v3449 = vpop.permute.xlu0 %3448
          %3450 = vrot.lane.b32.xlu0 %v3387, 64
          %v3451 = vpop.permute.xlu0 %3450
          %v3484 = vsel %vm966, %v2396, %v2585
          %v3485 = vsel %vm966, %v2397, %v2587
          %v3486 = vsel %vm966, %v2399, %v2589
          %v3487 = vsel %vm966, %v2400, %v2591
          %v3488 = vsel %vm966, %v2402, %v2593
          %v3489 = vsel %vm966, %v2403, %v2595
          %v3490 = vsel %vm966, %v2405, %v2597
          %v3491 = vsel %vm966, %v2406, %v2599
          %v3492 = vsel %vm966, %v2408, %v2601
          %v3493 = vsel %vm966, %v2409, %v2603
          %v3494 = vsel %vm966, %v2411, %v2605
          %v3495 = vsel %vm966, %v2412, %v2607
          %v3496 = vsel %vm966, %v2414, %v2609
          %v3497 = vsel %vm966, %v2415, %v2611
          %v3498 = vsel %vm966, %v2417, %v2613
          %v3499 = vsel %vm966, %v2418, %v2615
          %v3500 = vsel %vm966, %v2426, %v2617
          %v3501 = vsel %vm966, %v2427, %v2619
          %v3502 = vsel %vm966, %v2429, %v2621
          %v3503 = vsel %vm966, %v2430, %v2623
          %v3504 = vsel %vm966, %v2432, %v2625
          %v3505 = vsel %vm966, %v2433, %v2627
          %v3506 = vsel %vm966, %v2435, %v2629
          %v3507 = vsel %vm966, %v2436, %v2631
          %v3508 = vsel %vm966, %v2438, %v2633
          %v3509 = vsel %vm966, %v2439, %v2635
          %v3510 = vsel %vm966, %v2441, %v2637
          %v3511 = vsel %vm966, %v2442, %v2639
          %v3512 = vsel %vm966, %v2444, %v2641
          %v3513 = vsel %vm966, %v2445, %v2643
          %v3514 = vsel %vm966, %v2447, %v2645
          %v3515 = vsel %vm966, %v2448, %v2647
          %v3516 = vsel %vm2164, %v3484, %v2761
          %v3517 = vsel %vm2164, %v3485, %v2763
          %v3518 = vsel %vm2164, %v3486, %v2765
          %v3519 = vsel %vm2164, %v3487, %v2767
          %v3520 = vsel %vm2164, %v3488, %v2769
          %v3521 = vsel %vm2164, %v3489, %v2771
          %v3522 = vsel %vm2164, %v3490, %v2773
          %v3523 = vsel %vm2164, %v3491, %v2775
          %v3524 = vsel %vm2164, %v3492, %v2777
          %v3525 = vsel %vm2164, %v3493, %v2779
          %v3526 = vsel %vm2164, %v3494, %v2781
          %v3527 = vsel %vm2164, %v3495, %v2783
          %v3528 = vsel %vm2164, %v3496, %v2785
          %v3529 = vsel %vm2164, %v3497, %v2787
          %v3530 = vsel %vm2164, %v3498, %v2789
          %v3531 = vsel %vm2164, %v3499, %v2791
          %v3532 = vsel %vm2164, %v3500, %v2793
          %v3533 = vsel %vm2164, %v3501, %v2795
          %v3534 = vsel %vm2164, %v3502, %v2797
          %v3535 = vsel %vm2164, %v3503, %v2799
          %v3536 = vsel %vm2164, %v3504, %v2801
          %v3537 = vsel %vm2164, %v3505, %v2803
          %v3538 = vsel %vm2164, %v3506, %v2805
          %v3539 = vsel %vm2164, %v3507, %v2807
          %v3540 = vsel %vm2164, %v3508, %v2809
          %v3541 = vsel %vm2164, %v3509, %v2811
          %v3542 = vsel %vm2164, %v3510, %v2813
          %v3543 = vsel %vm2164, %v3511, %v2815
          %v3544 = vsel %vm2164, %v3512, %v2817
          %v3545 = vsel %vm2164, %v3513, %v2819
          %v3546 = vsel %vm2164, %v3514, %v2821
          %v3547 = vsel %vm2164, %v3515, %v2823
          %v3548 = vsel %vm2197, %v3516, %v2861
          %v3549 = vsel %vm2197, %v3517, %v2863
          %v3550 = vsel %vm2197, %v3518, %v2865
          %v3551 = vsel %vm2197, %v3519, %v2867
          %v3552 = vsel %vm2197, %v3520, %v2869
          %v3553 = vsel %vm2197, %v3521, %v2871
          %v3554 = vsel %vm2197, %v3522, %v2873
          %v3555 = vsel %vm2197, %v3523, %v2875
          %v3556 = vsel %vm2197, %v3524, %v2877
          %v3557 = vsel %vm2197, %v3525, %v2879
          %v3558 = vsel %vm2197, %v3526, %v2881
          %v3559 = vsel %vm2197, %v3527, %v2883
          %v3560 = vsel %vm2197, %v3528, %v2885
          %v3561 = vsel %vm2197, %v3529, %v2887
          %v3562 = vsel %vm2197, %v3530, %v2889
          %v3563 = vsel %vm2197, %v3531, %v2891
          %v3564 = vsel %vm2197, %v3532, %v2893
          %v3565 = vsel %vm2197, %v3533, %v2895
          %v3566 = vsel %vm2197, %v3534, %v2897
          %v3567 = vsel %vm2197, %v3535, %v2899
          %v3568 = vsel %vm2197, %v3536, %v2901
          %v3569 = vsel %vm2197, %v3537, %v2903
          %v3570 = vsel %vm2197, %v3538, %v2905
          %v3571 = vsel %vm2197, %v3539, %v2907
          %v3572 = vsel %vm2197, %v3540, %v2909
          %v3573 = vsel %vm2197, %v3541, %v2911
          %v3574 = vsel %vm2197, %v3542, %v2913
          %v3575 = vsel %vm2197, %v3543, %v2915
          %v3576 = vsel %vm2197, %v3544, %v2917
          %v3577 = vsel %vm2197, %v3545, %v2919
          %v3578 = vsel %vm2197, %v3546, %v2921
          %v3579 = vsel %vm2197, %v3547, %v2923
          %v3580 = vsel %vm2230, %v3548, %v2969
          %v3581 = vsel %vm2230, %v3549, %v2971
          %v3582 = vsel %vm2230, %v3550, %v2973
          %v3583 = vsel %vm2230, %v3551, %v2975
          %v3584 = vsel %vm2230, %v3552, %v2977
          %v3585 = vsel %vm2230, %v3553, %v2979
          %v3586 = vsel %vm2230, %v3554, %v2981
          %v3587 = vsel %vm2230, %v3555, %v2983
          %v3588 = vsel %vm2230, %v3556, %v2985
          %v3589 = vsel %vm2230, %v3557, %v2987
          %v3590 = vsel %vm2230, %v3558, %v2989
          %v3591 = vsel %vm2230, %v3559, %v2991
          %v3592 = vsel %vm2230, %v3560, %v2993
          %v3593 = vsel %vm2230, %v3561, %v2995
          %v3594 = vsel %vm2230, %v3562, %v2997
          %v3595 = vsel %vm2230, %v3563, %v2999
          %v3596 = vsel %vm2230, %v3564, %v3001
          %v3597 = vsel %vm2230, %v3565, %v3003
          %v3598 = vsel %vm2230, %v3566, %v3005
          %v3599 = vsel %vm2230, %v3567, %v3007
          %v3600 = vsel %vm2230, %v3568, %v3009
          %v3601 = vsel %vm2230, %v3569, %v3011
          %v3602 = vsel %vm2230, %v3570, %v3013
          %v3603 = vsel %vm2230, %v3571, %v3015
          %v3604 = vsel %vm2230, %v3572, %v3017
          %v3605 = vsel %vm2230, %v3573, %v3019
          %v3606 = vsel %vm2230, %v3574, %v3021
          %v3607 = vsel %vm2230, %v3575, %v3023
          %v3608 = vsel %vm2230, %v3576, %v3025
          %v3609 = vsel %vm2230, %v3577, %v3027
          %v3610 = vsel %vm2230, %v3578, %v3029
          %v3611 = vsel %vm2230, %v3579, %v3031
          %v3612 = vsel %vm2263, %v3580, %v3075
          %v3613 = vsel %vm2263, %v3581, %v3077
          %v3614 = vsel %vm2263, %v3582, %v3079
          %v3615 = vsel %vm2263, %v3583, %v3081
          %v3616 = vsel %vm2263, %v3584, %v3083
          %v3617 = vsel %vm2263, %v3585, %v3085
          %v3618 = vsel %vm2263, %v3586, %v3087
          %v3619 = vsel %vm2263, %v3587, %v3089
          %v3620 = vsel %vm2263, %v3588, %v3091
          %v3621 = vsel %vm2263, %v3589, %v3093
          %v3622 = vsel %vm2263, %v3590, %v3095
          %v3623 = vsel %vm2263, %v3591, %v3097
          %v3624 = vsel %vm2263, %v3592, %v3099
          %v3625 = vsel %vm2263, %v3593, %v3101
          %v3626 = vsel %vm2263, %v3594, %v3103
          %v3627 = vsel %vm2263, %v3595, %v3105
          %v3628 = vsel %vm2263, %v3596, %v3107
          %v3629 = vsel %vm2263, %v3597, %v3109
          %v3630 = vsel %vm2263, %v3598, %v3111
          %v3631 = vsel %vm2263, %v3599, %v3113
          %v3632 = vsel %vm2263, %v3600, %v3115
          %v3633 = vsel %vm2263, %v3601, %v3117
          %v3634 = vsel %vm2263, %v3602, %v3119
          %v3635 = vsel %vm2263, %v3603, %v3121
          %v3636 = vsel %vm2263, %v3604, %v3123
          %v3637 = vsel %vm2263, %v3605, %v3125
          %v3638 = vsel %vm2263, %v3606, %v3127
          %v3639 = vsel %vm2263, %v3607, %v3129
          %v3640 = vsel %vm2263, %v3608, %v3131
          %v3641 = vsel %vm2263, %v3609, %v3133
          %v3642 = vsel %vm2263, %v3610, %v3135
          %v3643 = vsel %vm2263, %v3611, %v3137
          %v3644 = vsel %vm2296, %v3612, %v3175
          %v3645 = vsel %vm2296, %v3613, %v3177
          %v3646 = vsel %vm2296, %v3614, %v3179
          %v3647 = vsel %vm2296, %v3615, %v3181
          %v3648 = vsel %vm2296, %v3616, %v3183
          %v3649 = vsel %vm2296, %v3617, %v3185
          %v3650 = vsel %vm2296, %v3618, %v3187
          %v3651 = vsel %vm2296, %v3619, %v3189
          %v3652 = vsel %vm2296, %v3620, %v3191
          %v3653 = vsel %vm2296, %v3621, %v3193
          %v3654 = vsel %vm2296, %v3622, %v3195
          %v3655 = vsel %vm2296, %v3623, %v3197
          %v3656 = vsel %vm2296, %v3624, %v3199
          %v3657 = vsel %vm2296, %v3625, %v3201
          %v3658 = vsel %vm2296, %v3626, %v3203
          %v3659 = vsel %vm2296, %v3627, %v3205
          %v3660 = vsel %vm2296, %v3628, %v3207
          %v3661 = vsel %vm2296, %v3629, %v3209
          %v3662 = vsel %vm2296, %v3630, %v3211
          %v3663 = vsel %vm2296, %v3631, %v3213
          %v3664 = vsel %vm2296, %v3632, %v3215
          %v3665 = vsel %vm2296, %v3633, %v3217
          %v3666 = vsel %vm2296, %v3634, %v3219
          %v3667 = vsel %vm2296, %v3635, %v3221
          %v3668 = vsel %vm2296, %v3636, %v3223
          %v3669 = vsel %vm2296, %v3637, %v3225
          %v3670 = vsel %vm2296, %v3638, %v3227
          %v3671 = vsel %vm2296, %v3639, %v3229
          %v3672 = vsel %vm2296, %v3640, %v3231
          %v3673 = vsel %vm2296, %v3641, %v3233
          %v3674 = vsel %vm2296, %v3642, %v3235
          %v3675 = vsel %vm2296, %v3643, %v3237
          %v3676 = vsel %vm2329, %v3644, %v3283
          %v3677 = vsel %vm2329, %v3645, %v3285
          %v3678 = vsel %vm2329, %v3646, %v3287
          %v3679 = vsel %vm2329, %v3647, %v3289
          %v3680 = vsel %vm2329, %v3648, %v3291
          %v3681 = vsel %vm2329, %v3649, %v3293
          %v3682 = vsel %vm2329, %v3650, %v3295
          %v3683 = vsel %vm2329, %v3651, %v3297
          %v3684 = vsel %vm2329, %v3652, %v3299
          %v3685 = vsel %vm2329, %v3653, %v3301
          %v3686 = vsel %vm2329, %v3654, %v3303
          %v3687 = vsel %vm2329, %v3655, %v3305
          %v3688 = vsel %vm2329, %v3656, %v3307
          %v3689 = vsel %vm2329, %v3657, %v3309
          %v3690 = vsel %vm2329, %v3658, %v3311
          %v3691 = vsel %vm2329, %v3659, %v3313
          %v3692 = vsel %vm2329, %v3660, %v3315
          %v3693 = vsel %vm2329, %v3661, %v3317
          %v3694 = vsel %vm2329, %v3662, %v3319
          %v3695 = vsel %vm2329, %v3663, %v3321
          %v3696 = vsel %vm2329, %v3664, %v3323
          %v3697 = vsel %vm2329, %v3665, %v3325
          %v3698 = vsel %vm2329, %v3666, %v3327
          %v3699 = vsel %vm2329, %v3667, %v3329
          %v3700 = vsel %vm2329, %v3668, %v3331
          %v3701 = vsel %vm2329, %v3669, %v3333
          %v3702 = vsel %vm2329, %v3670, %v3335
          %v3703 = vsel %vm2329, %v3671, %v3337
          %v3704 = vsel %vm2329, %v3672, %v3339
          %v3705 = vsel %vm2329, %v3673, %v3341
          %v3706 = vsel %vm2329, %v3674, %v3343
          %v3707 = vsel %vm2329, %v3675, %v3345
          %v3708 = vsel %vm2362, %v3676, %v3389
          %v3709 = vsel %vm2362, %v3677, %v3391
          %v3710 = vsel %vm2362, %v3678, %v3393
          %v3711 = vsel %vm2362, %v3679, %v3395
          %v3712 = vsel %vm2362, %v3680, %v3397
          %v3713 = vsel %vm2362, %v3681, %v3399
          %v3714 = vsel %vm2362, %v3682, %v3401
          %v3715 = vsel %vm2362, %v3683, %v3403
          %v3716 = vsel %vm2362, %v3684, %v3405
          %v3717 = vsel %vm2362, %v3685, %v3407
          %v3718 = vsel %vm2362, %v3686, %v3409
          %v3719 = vsel %vm2362, %v3687, %v3411
          %v3720 = vsel %vm2362, %v3688, %v3413
          %v3721 = vsel %vm2362, %v3689, %v3415
          %v3722 = vsel %vm2362, %v3690, %v3417
          %v3723 = vsel %vm2362, %v3691, %v3419
          %v3724 = vsel %vm2362, %v3692, %v3421
          %v3725 = vsel %vm2362, %v3693, %v3423
          %v3726 = vsel %vm2362, %v3694, %v3425
          %v3727 = vsel %vm2362, %v3695, %v3427
          %v3728 = vsel %vm2362, %v3696, %v3429
          %v3729 = vsel %vm2362, %v3697, %v3431
          %v3730 = vsel %vm2362, %v3698, %v3433
          %v3731 = vsel %vm2362, %v3699, %v3435
          %v3732 = vsel %vm2362, %v3700, %v3437
          %v3733 = vsel %vm2362, %v3701, %v3439
          %v3734 = vsel %vm2362, %v3702, %v3441
          %v3735 = vsel %vm2362, %v3703, %v3443
          %v3736 = vsel %vm2362, %v3704, %v3445
          %v3737 = vsel %vm2362, %v3705, %v3447
          %v3738 = vsel %vm2362, %v3706, %v3449
          %v3739 = vsel %vm2362, %v3707, %v3451
          %v3740 = vld [vmem:[%s2] sm:$0xff]
          %v3741 = vld [vmem:[%s2 + $0x8] sm:$0xff]
          %v3742 = vld [vmem:[%s2 + $0x10] sm:$0xff]
          %v3743 = vld [vmem:[%s2 + $0x18] sm:$0xff]
          %v3744 = vld [vmem:[%s2 + $0x20] sm:$0xff]
          %v3745 = vld [vmem:[%s2 + $0x28] sm:$0xff]
          %v3746 = vld [vmem:[%s2 + $0x30] sm:$0xff]
          %v3747 = vld [vmem:[%s2 + $0x38] sm:$0xff]
          %v3748 = vld [vmem:[%s2 + $0x40] sm:$0xff]
          %vm3749 = vcmask 588800
          %v3751 = vsel %vm3749, %v3708, 0
          %v3754 = vsel %vm3749, %v3709, 0
          %v3757 = vsel %vm3749, %v3710, 0
          %v3760 = vsel %vm3749, %v3711, 0
          %v3763 = vsel %vm3749, %v3712, 0
          %v3766 = vsel %vm3749, %v3713, 0
          %v3769 = vsel %vm3749, %v3714, 0
          %v3772 = vsel %vm3749, %v3715, 0
          %v3775 = vsel %vm3749, %v3716, 0
          %v3778 = vsel %vm3749, %v3717, 0
          %v3781 = vsel %vm3749, %v3718, 0
          %v3784 = vsel %vm3749, %v3719, 0
          %v3787 = vsel %vm3749, %v3720, 0
          %v3790 = vsel %vm3749, %v3721, 0
          %v3793 = vsel %vm3749, %v3722, 0
          %v3796 = vsel %vm3749, %v3723, 0
          %v3799 = vsel %vm3749, %v3724, 0
          %v3802 = vsel %vm3749, %v3725, 0
          %v3805 = vsel %vm3749, %v3726, 0
          %v3808 = vsel %vm3749, %v3727, 0
          %v3811 = vsel %vm3749, %v3728, 0
          %v3814 = vsel %vm3749, %v3729, 0
          %v3817 = vsel %vm3749, %v3730, 0
          %v3820 = vsel %vm3749, %v3731, 0
          %v3823 = vsel %vm3749, %v3732, 0
          %v3826 = vsel %vm3749, %v3733, 0
          %v3829 = vsel %vm3749, %v3734, 0
          %v3832 = vsel %vm3749, %v3735, 0
          %v3835 = vsel %vm3749, %v3736, 0
          %v3838 = vsel %vm3749, %v3737, 0
          %v3841 = vsel %vm3749, %v3738, 0
          %v3844 = vsel %vm3749, %v3739, 0
          %3846 = vmatprep.subr.mxu0 0.0
          %3847 = vmatpush1.msra.mxu0 %v3740
          %3848 = vmatprep.subr.mxu0 0.0
          %3849 = vmatpush1.msra.mxu0 %v3741
          %3850 = vmatprep.subr.mxu0 0.0
          %3851 = vmatpush1.msra.mxu0 %v3742
          %3852 = vmatprep.subr.mxu0 0.0
          %3853 = vmatpush1.msra.mxu0 %v3743
          %3854 = vmatprep.subr.mxu0 0.0
          %3855 = vmatpush1.msra.mxu0 %v3744
          %3856 = vmatprep.subr.mxu0 0.0
          %3857 = vmatpush1.msra.mxu0 %v3745
          %3858 = vmatprep.subr.mxu0 0.0
          %3859 = vmatpush1.msra.mxu0 %v3746
          %3860 = vmatprep.subr.mxu0 0.0
          %3861 = vmatpush1.msra.mxu0 %v3747
          %3862 = vmatprep.subr.mxu0 0.0
          %3863 = vmatpush1.msra.mxu0 %v3748
          %3864 = vmatprep.subr.mxu0 0.0
          %3865 = vmatpush1.msra.mxu0 0.0
          %3866 = vmatprep.subr.mxu0 0.0
          %3867 = vmatpush1.msra.mxu0 0.0
          %3868 = vmatprep.subr.mxu0 0.0
          %3869 = vmatpush1.msra.mxu0 0.0
          %3870 = vmatprep.subr.mxu0 0.0
          %3871 = vmatpush1.msra.mxu0 0.0
          %3872 = vmatprep.subr.mxu0 0.0
          %3873 = vmatpush1.msra.mxu0 0.0
          %3874 = vmatprep.subr.mxu0 0.0
          %3875 = vmatpush1.msra.mxu0 0.0
          %3876 = vmatprep.subr.mxu0 0.0
          %3877 = vmatpush1.msra.mxu0 0.0
          %3878 = vmatprep.subr.mxu0 0.0
          %3879 = vmatpush1.msra.mxu0 0.0
          %3880 = vmatprep.subr.mxu0 0.0
          %3881 = vmatpush1.msra.mxu0 0.0
          %3882 = vmatprep.subr.mxu0 0.0
          %3883 = vmatpush1.msra.mxu0 0.0
          %3884 = vmatprep.subr.mxu0 0.0
          %3885 = vmatpush1.msra.mxu0 0.0
          %3886 = vmatprep.subr.mxu0 0.0
          %3887 = vmatpush1.msra.mxu0 0.0
          %3888 = vmatprep.subr.mxu0 0.0
          %3889 = vmatpush1.msra.mxu0 0.0
          %3890 = vmatprep.subr.mxu0 0.0
          %3891 = vmatpush1.msra.mxu0 0.0
          %3892 = vmatprep.subr.mxu0 0.0
          %3893 = vmatpush1.msra.mxu0 0.0
          %3894 = vmatprep.subr.mxu0 0.0
          %3895 = vmatpush1.msra.mxu0 0.0
          %3896 = vmatprep.subr.mxu0 0.0
          %3897 = vmatpush1.msra.mxu0 0.0
          %3898 = vmatprep.subr.mxu0 0.0
          %3899 = vmatpush1.msra.mxu0 0.0
          %3900 = vmatprep.subr.mxu0 0.0
          %3901 = vmatpush1.msra.mxu0 0.0
          %3902 = vmatprep.subr.mxu0 0.0
          %3903 = vmatpush1.msra.mxu0 0.0
          %3904 = vmatprep.subr.mxu0 0.0
          %3905 = vmatpush1.msra.mxu0 0.0
          %3906 = vmatprep.subr.mxu0 0.0
          %3907 = vmatpush1.msra.mxu0 0.0
          %3908 = vmatprep.subr.mxu0 0.0
          %3909 = vmatpush1.msra.mxu0 0.0
          %3910 = vmatprep.mubr.f32.mxu0 0.0
          %3911 = vmatmul.mubr.f32.gmra.mrb[0].mxu0 %v3751
          %v3912 = vpop.f32.mrb[0].mxu0
          %v3913 = vadd.f32 0.0, %v3912
          %v3914 = vpop.f32.mrb[0].mxu0
          %3915 = vmatprep.mubr.f32.mxu0 0.0
          %3916 = vmatmul.mubr.f32.gmra.mrb[0].mxu0 %v3754
          %v3917 = vpop.f32.mrb[0].mxu0
          %v3918 = vadd.f32 0.0, %v3917
          %v3919 = vpop.f32.mrb[0].mxu0
          %3920 = vmatprep.mubr.f32.mxu0 0.0
          %3921 = vmatmul.mubr.f32.gmra.mrb[0].mxu0 %v3757
          %v3922 = vpop.f32.mrb[0].mxu0
          %v3923 = vadd.f32 0.0, %v3922
          %v3924 = vpop.f32.mrb[0].mxu0
          %3925 = vmatprep.mubr.f32.mxu0 0.0
          %3926 = vmatmul.mubr.f32.gmra.mrb[0].mxu0 %v3760
          %v3927 = vpop.f32.mrb[0].mxu0
          %v3928 = vadd.f32 0.0, %v3927
          %v3929 = vpop.f32.mrb[0].mxu0
          %3930 = vmatprep.mubr.f32.mxu0 0.0
          %3931 = vmatmul.mubr.f32.gmra.mrb[0].mxu0 %v3763
          %v3932 = vpop.f32.mrb[0].mxu0
          %v3933 = vadd.f32 0.0, %v3932
          %v3934 = vpop.f32.mrb[0].mxu0
          %3935 = vmatprep.mubr.f32.mxu0 0.0
          %3936 = vmatmul.mubr.f32.gmra.mrb[0].mxu0 %v3766
          %v3937 = vpop.f32.mrb[0].mxu0
          %v3938 = vadd.f32 0.0, %v3937
          %v3939 = vpop.f32.mrb[0].mxu0
          %3940 = vmatprep.mubr.f32.mxu0 0.0
          %3941 = vmatmul.mubr.f32.gmra.mrb[0].mxu0 %v3769
          %v3942 = vpop.f32.mrb[0].mxu0
          %v3943 = vadd.f32 0.0, %v3942
          %v3944 = vpop.f32.mrb[0].mxu0
          %3945 = vmatprep.mubr.f32.mxu0 0.0
          %3946 = vmatmul.mubr.f32.gmra.mrb[0].mxu0 %v3772
          %v3947 = vpop.f32.mrb[0].mxu0
          %v3948 = vadd.f32 0.0, %v3947
          %v3949 = vpop.f32.mrb[0].mxu0
          %3950 = vmatprep.mubr.f32.mxu0 0.0
          %3951 = vmatmul.mubr.f32.gmra.mrb[0].mxu0 %v3775
          %v3952 = vpop.f32.mrb[0].mxu0
          %v3953 = vadd.f32 0.0, %v3952
          %v3954 = vpop.f32.mrb[0].mxu0
          %3955 = vmatprep.mubr.f32.mxu0 0.0
          %3956 = vmatmul.mubr.f32.gmra.mrb[0].mxu0 %v3778
          %v3957 = vpop.f32.mrb[0].mxu0
          %v3958 = vadd.f32 0.0, %v3957
          %v3959 = vpop.f32.mrb[0].mxu0
          %3960 = vmatprep.mubr.f32.mxu0 0.0
          %3961 = vmatmul.mubr.f32.gmra.mrb[0].mxu0 %v3781
          %v3962 = vpop.f32.mrb[0].mxu0
          %v3963 = vadd.f32 0.0, %v3962
          %v3964 = vpop.f32.mrb[0].mxu0
          %3965 = vmatprep.mubr.f32.mxu0 0.0
          %3966 = vmatmul.mubr.f32.gmra.mrb[0].mxu0 %v3784
          %v3967 = vpop.f32.mrb[0].mxu0
          %v3968 = vadd.f32 0.0, %v3967
          %v3969 = vpop.f32.mrb[0].mxu0
          %3970 = vmatprep.mubr.f32.mxu0 0.0
          %3971 = vmatmul.mubr.f32.gmra.mrb[0].mxu0 %v3787
          %v3972 = vpop.f32.mrb[0].mxu0
          %v3973 = vadd.f32 0.0, %v3972
          %v3974 = vpop.f32.mrb[0].mxu0
          %3975 = vmatprep.mubr.f32.mxu0 0.0
          %3976 = vmatmul.mubr.f32.gmra.mrb[0].mxu0 %v3790
          %v3977 = vpop.f32.mrb[0].mxu0
          %v3978 = vadd.f32 0.0, %v3977
          %v3979 = vpop.f32.mrb[0].mxu0
          %3980 = vmatprep.mubr.f32.mxu0 0.0
          %3981 = vmatmul.mubr.f32.gmra.mrb[0].mxu0 %v3793
          %v3982 = vpop.f32.mrb[0].mxu0
          %v3983 = vadd.f32 0.0, %v3982
          %v3984 = vpop.f32.mrb[0].mxu0
          %3985 = vmatprep.mubr.f32.mxu0 0.0
          %3986 = vmatmul.mubr.f32.gmra.mrb[0].mxu0 %v3796
          %v3987 = vpop.f32.mrb[0].mxu0
          %v3988 = vadd.f32 0.0, %v3987
          %v3989 = vpop.f32.mrb[0].mxu0
          %3990 = vmatprep.mubr.f32.mxu0 0.0
          %3991 = vmatmul.mubr.f32.gmra.mrb[0].mxu0 %v3799
          %v3992 = vpop.f32.mrb[0].mxu0
          %v3993 = vadd.f32 0.0, %v3992
          %v3994 = vpop.f32.mrb[0].mxu0
          %3995 = vmatprep.mubr.f32.mxu0 0.0
          %3996 = vmatmul.mubr.f32.gmra.mrb[0].mxu0 %v3802
          %v3997 = vpop.f32.mrb[0].mxu0
          %v3998 = vadd.f32 0.0, %v3997
          %v3999 = vpop.f32.mrb[0].mxu0
          %4000 = vmatprep.mubr.f32.mxu0 0.0
          %4001 = vmatmul.mubr.f32.gmra.mrb[0].mxu0 %v3805
          %v4002 = vpop.f32.mrb[0].mxu0
          %v4003 = vadd.f32 0.0, %v4002
          %v4004 = vpop.f32.mrb[0].mxu0
          %4005 = vmatprep.mubr.f32.mxu0 0.0
          %4006 = vmatmul.mubr.f32.gmra.mrb[0].mxu0 %v3808
          %v4007 = vpop.f32.mrb[0].mxu0
          %v4008 = vadd.f32 0.0, %v4007
          %v4009 = vpop.f32.mrb[0].mxu0
          %4010 = vmatprep.mubr.f32.mxu0 0.0
          %4011 = vmatmul.mubr.f32.gmra.mrb[0].mxu0 %v3811
          %v4012 = vpop.f32.mrb[0].mxu0
          %v4013 = vadd.f32 0.0, %v4012
          %v4014 = vpop.f32.mrb[0].mxu0
          %4015 = vmatprep.mubr.f32.mxu0 0.0
          %4016 = vmatmul.mubr.f32.gmra.mrb[0].mxu0 %v3814
          %v4017 = vpop.f32.mrb[0].mxu0
          %v4018 = vadd.f32 0.0, %v4017
          %v4019 = vpop.f32.mrb[0].mxu0
          %4020 = vmatprep.mubr.f32.mxu0 0.0
          %4021 = vmatmul.mubr.f32.gmra.mrb[0].mxu0 %v3817
          %v4022 = vpop.f32.mrb[0].mxu0
          %v4023 = vadd.f32 0.0, %v4022
          %v4024 = vpop.f32.mrb[0].mxu0
          %4025 = vmatprep.mubr.f32.mxu0 0.0
          %4026 = vmatmul.mubr.f32.gmra.mrb[0].mxu0 %v3820
          %v4027 = vpop.f32.mrb[0].mxu0
          %v4028 = vadd.f32 0.0, %v4027
          %v4029 = vpop.f32.mrb[0].mxu0
          %4030 = vmatprep.mubr.f32.mxu0 0.0
          %4031 = vmatmul.mubr.f32.gmra.mrb[0].mxu0 %v3823
          %v4032 = vpop.f32.mrb[0].mxu0
          %v4033 = vadd.f32 0.0, %v4032
          %v4034 = vpop.f32.mrb[0].mxu0
          %4035 = vmatprep.mubr.f32.mxu0 0.0
          %4036 = vmatmul.mubr.f32.gmra.mrb[0].mxu0 %v3826
          %v4037 = vpop.f32.mrb[0].mxu0
          %v4038 = vadd.f32 0.0, %v4037
          %v4039 = vpop.f32.mrb[0].mxu0
          %4040 = vmatprep.mubr.f32.mxu0 0.0
          %4041 = vmatmul.mubr.f32.gmra.mrb[0].mxu0 %v3829
          %v4042 = vpop.f32.mrb[0].mxu0
          %v4043 = vadd.f32 0.0, %v4042
          %v4044 = vpop.f32.mrb[0].mxu0
          %4045 = vmatprep.mubr.f32.mxu0 0.0
          %4046 = vmatmul.mubr.f32.gmra.mrb[0].mxu0 %v3832
          %v4047 = vpop.f32.mrb[0].mxu0
          %v4048 = vadd.f32 0.0, %v4047
          %v4049 = vpop.f32.mrb[0].mxu0
          %4050 = vmatprep.mubr.f32.mxu0 0.0
          %4051 = vmatmul.mubr.f32.gmra.mrb[0].mxu0 %v3835
          %v4052 = vpop.f32.mrb[0].mxu0
          %v4053 = vadd.f32 0.0, %v4052
          %v4054 = vpop.f32.mrb[0].mxu0
          %4055 = vmatprep.mubr.f32.mxu0 0.0
          %4056 = vmatmul.mubr.f32.gmra.mrb[0].mxu0 %v3838
          %v4057 = vpop.f32.mrb[0].mxu0
          %v4058 = vadd.f32 0.0, %v4057
          %v4059 = vpop.f32.mrb[0].mxu0
          %4060 = vmatprep.mubr.f32.mxu0 0.0
          %4061 = vmatmul.mubr.f32.gmra.mrb[0].mxu0 %v3841
          %v4062 = vpop.f32.mrb[0].mxu0
          %v4063 = vadd.f32 0.0, %v4062
          %v4064 = vpop.f32.mrb[0].mxu0
          %4065 = vmatprep.mubr.f32.mxu0 0.0
          %4066 = vmatmul.mubr.f32.gmra.mrb[0].mxu0 %v3844
          %v4067 = vpop.f32.mrb[0].mxu0
          %v4068 = vadd.f32 0.0, %v4067
          %v4069 = vpop.f32.mrb[0].mxu0
          %4070 = vdwg.mxu0
          %v4071 = vld [vmem:[%s1] sm:$0xff]
          %v4072 = vld [vmem:[%s1 + $0x8] sm:$0xff]
          %v4073 = vld [vmem:[%s1 + $0x10] sm:$0xff]
          %v4074 = vld [vmem:[%s1 + $0x18] sm:$0xff]
          %v4075 = vld [vmem:[%s1 + $0x20] sm:$0xff]
          %v4076 = vld [vmem:[%s1 + $0x28] sm:$0xff]
          %v4077 = vld [vmem:[%s1 + $0x30] sm:$0xff]
          %v4078 = vld [vmem:[%s1 + $0x38] sm:$0xff]
          %v4079 = vld [vmem:[%s1 + $0x40] sm:$0xff]
          %v4081 = vsel %vm3749, %v2363, 0
          %v4084 = vsel %vm3749, %v2364, 0
          %v4087 = vsel %vm3749, %v2365, 0
          %v4090 = vsel %vm3749, %v2366, 0
          %v4093 = vsel %vm3749, %v2367, 0
          %v4096 = vsel %vm3749, %v2368, 0
          %v4099 = vsel %vm3749, %v2369, 0
          %v4102 = vsel %vm3749, %v2370, 0
          %v4105 = vsel %vm3749, %v2371, 0
          %v4108 = vsel %vm3749, %v2372, 0
          %v4111 = vsel %vm3749, %v2373, 0
          %v4114 = vsel %vm3749, %v2374, 0
          %v4117 = vsel %vm3749, %v2375, 0
          %v4120 = vsel %vm3749, %v2376, 0
          %v4123 = vsel %vm3749, %v2377, 0
          %v4126 = vsel %vm3749, %v2378, 0
          %v4129 = vsel %vm3749, %v2379, 0
          %v4132 = vsel %vm3749, %v2380, 0
          %v4135 = vsel %vm3749, %v2381, 0
          %v4138 = vsel %vm3749, %v2382, 0
          %v4141 = vsel %vm3749, %v2383, 0
          %v4144 = vsel %vm3749, %v2384, 0
          %v4147 = vsel %vm3749, %v2385, 0
          %v4150 = vsel %vm3749, %v2386, 0
          %v4153 = vsel %vm3749, %v2387, 0
          %v4156 = vsel %vm3749, %v2388, 0
          %v4159 = vsel %vm3749, %v2389, 0
          %v4162 = vsel %vm3749, %v2390, 0
          %v4165 = vsel %vm3749, %v2391, 0
          %v4168 = vsel %vm3749, %v2392, 0
          %v4171 = vsel %vm3749, %v2393, 0
          %v4174 = vsel %vm3749, %v2394, 0
          %4176 = vmatprep.subr.mxu0 0.0
          %4177 = vmatpush1.msra.mxu0 %v4071
          %4178 = vmatprep.subr.mxu0 0.0
          %4179 = vmatpush1.msra.mxu0 %v4072
          %4180 = vmatprep.subr.mxu0 0.0
          %4181 = vmatpush1.msra.mxu0 %v4073
          %4182 = vmatprep.subr.mxu0 0.0
          %4183 = vmatpush1.msra.mxu0 %v4074
          %4184 = vmatprep.subr.mxu0 0.0
          %4185 = vmatpush1.msra.mxu0 %v4075
          %4186 = vmatprep.subr.mxu0 0.0
          %4187 = vmatpush1.msra.mxu0 %v4076
          %4188 = vmatprep.subr.mxu0 0.0
          %4189 = vmatpush1.msra.mxu0 %v4077
          %4190 = vmatprep.subr.mxu0 0.0
          %4191 = vmatpush1.msra.mxu0 %v4078
          %4192 = vmatprep.subr.mxu0 0.0
          %4193 = vmatpush1.msra.mxu0 %v4079
          %4194 = vmatprep.subr.mxu0 0.0
          %4195 = vmatpush1.msra.mxu0 0.0
          %4196 = vmatprep.subr.mxu0 0.0
          %4197 = vmatpush1.msra.mxu0 0.0
          %4198 = vmatprep.subr.mxu0 0.0
          %4199 = vmatpush1.msra.mxu0 0.0
          %4200 = vmatprep.subr.mxu0 0.0
          %4201 = vmatpush1.msra.mxu0 0.0
          %4202 = vmatprep.subr.mxu0 0.0
          %4203 = vmatpush1.msra.mxu0 0.0
          %4204 = vmatprep.subr.mxu0 0.0
          %4205 = vmatpush1.msra.mxu0 0.0
          %4206 = vmatprep.subr.mxu0 0.0
          %4207 = vmatpush1.msra.mxu0 0.0
          %4208 = vmatprep.subr.mxu0 0.0
          %4209 = vmatpush1.msra.mxu0 0.0
          %4210 = vmatprep.subr.mxu0 0.0
          %4211 = vmatpush1.msra.mxu0 0.0
          %4212 = vmatprep.subr.mxu0 0.0
          %4213 = vmatpush1.msra.mxu0 0.0
          %4214 = vmatprep.subr.mxu0 0.0
          %4215 = vmatpush1.msra.mxu0 0.0
          %4216 = vmatprep.subr.mxu0 0.0
          %4217 = vmatpush1.msra.mxu0 0.0
          %4218 = vmatprep.subr.mxu0 0.0
          %4219 = vmatpush1.msra.mxu0 0.0
          %4220 = vmatprep.subr.mxu0 0.0
          %4221 = vmatpush1.msra.mxu0 0.0
          %4222 = vmatprep.subr.mxu0 0.0
          %4223 = vmatpush1.msra.mxu0 0.0
          %4224 = vmatprep.subr.mxu0 0.0
          %4225 = vmatpush1.msra.mxu0 0.0
          %4226 = vmatprep.subr.mxu0 0.0
          %4227 = vmatpush1.msra.mxu0 0.0
          %4228 = vmatprep.subr.mxu0 0.0
          %4229 = vmatpush1.msra.mxu0 0.0
          %4230 = vmatprep.subr.mxu0 0.0
          %4231 = vmatpush1.msra.mxu0 0.0
          %4232 = vmatprep.subr.mxu0 0.0
          %4233 = vmatpush1.msra.mxu0 0.0
          %4234 = vmatprep.subr.mxu0 0.0
          %4235 = vmatpush1.msra.mxu0 0.0
          %4236 = vmatprep.subr.mxu0 0.0
          %4237 = vmatpush1.msra.mxu0 0.0
          %4238 = vmatprep.subr.mxu0 0.0
          %4239 = vmatpush1.msra.mxu0 0.0
          %4240 = vmatprep.mubr.f32.mxu0 0.0
          %4241 = vmatmul.mubr.f32.gmra.mrb[0].mxu0 %v4081
          %v4242 = vpop.f32.mrb[0].mxu0
          %v4243 = vadd.f32 %v3913, %v4242
          %v4244 = vpop.f32.mrb[0].mxu0
          %4245 = vmatprep.mubr.f32.mxu0 0.0
          %4246 = vmatmul.mubr.f32.gmra.mrb[0].mxu0 %v4084
          %v4247 = vpop.f32.mrb[0].mxu0
          %v4248 = vadd.f32 %v3918, %v4247
          %v4249 = vpop.f32.mrb[0].mxu0
          %4250 = vmatprep.mubr.f32.mxu0 0.0
          %4251 = vmatmul.mubr.f32.gmra.mrb[0].mxu0 %v4087
          %v4252 = vpop.f32.mrb[0].mxu0
          %v4253 = vadd.f32 %v3923, %v4252
          %v4254 = vpop.f32.mrb[0].mxu0
          %4255 = vmatprep.mubr.f32.mxu0 0.0
          %4256 = vmatmul.mubr.f32.gmra.mrb[0].mxu0 %v4090
          %v4257 = vpop.f32.mrb[0].mxu0
          %v4258 = vadd.f32 %v3928, %v4257
          %v4259 = vpop.f32.mrb[0].mxu0
          %4260 = vmatprep.mubr.f32.mxu0 0.0
          %4261 = vmatmul.mubr.f32.gmra.mrb[0].mxu0 %v4093
          %v4262 = vpop.f32.mrb[0].mxu0
          %v4263 = vadd.f32 %v3933, %v4262
          %v4264 = vpop.f32.mrb[0].mxu0
          %4265 = vmatprep.mubr.f32.mxu0 0.0
          %4266 = vmatmul.mubr.f32.gmra.mrb[0].mxu0 %v4096
          %v4267 = vpop.f32.mrb[0].mxu0
          %v4268 = vadd.f32 %v3938, %v4267
          %v4269 = vpop.f32.mrb[0].mxu0
          %4270 = vmatprep.mubr.f32.mxu0 0.0
          %4271 = vmatmul.mubr.f32.gmra.mrb[0].mxu0 %v4099
          %v4272 = vpop.f32.mrb[0].mxu0
          %v4273 = vadd.f32 %v3943, %v4272
          %v4274 = vpop.f32.mrb[0].mxu0
          %4275 = vmatprep.mubr.f32.mxu0 0.0
          %4276 = vmatmul.mubr.f32.gmra.mrb[0].mxu0 %v4102
          %v4277 = vpop.f32.mrb[0].mxu0
          %v4278 = vadd.f32 %v3948, %v4277
          %v4279 = vpop.f32.mrb[0].mxu0
          %4280 = vmatprep.mubr.f32.mxu0 0.0
          %4281 = vmatmul.mubr.f32.gmra.mrb[0].mxu0 %v4105
          %v4282 = vpop.f32.mrb[0].mxu0
          %v4283 = vadd.f32 %v3953, %v4282
          %v4284 = vpop.f32.mrb[0].mxu0
          %4285 = vmatprep.mubr.f32.mxu0 0.0
          %4286 = vmatmul.mubr.f32.gmra.mrb[0].mxu0 %v4108
          %v4287 = vpop.f32.mrb[0].mxu0
          %v4288 = vadd.f32 %v3958, %v4287
          %v4289 = vpop.f32.mrb[0].mxu0
          %4290 = vmatprep.mubr.f32.mxu0 0.0
          %4291 = vmatmul.mubr.f32.gmra.mrb[0].mxu0 %v4111
          %v4292 = vpop.f32.mrb[0].mxu0
          %v4293 = vadd.f32 %v3963, %v4292
          %v4294 = vpop.f32.mrb[0].mxu0
          %4295 = vmatprep.mubr.f32.mxu0 0.0
          %4296 = vmatmul.mubr.f32.gmra.mrb[0].mxu0 %v4114
          %v4297 = vpop.f32.mrb[0].mxu0
          %v4298 = vadd.f32 %v3968, %v4297
          %v4299 = vpop.f32.mrb[0].mxu0
          %4300 = vmatprep.mubr.f32.mxu0 0.0
          %4301 = vmatmul.mubr.f32.gmra.mrb[0].mxu0 %v4117
          %v4302 = vpop.f32.mrb[0].mxu0
          %v4303 = vadd.f32 %v3973, %v4302
          %v4304 = vpop.f32.mrb[0].mxu0
          %4305 = vmatprep.mubr.f32.mxu0 0.0
          %4306 = vmatmul.mubr.f32.gmra.mrb[0].mxu0 %v4120
          %v4307 = vpop.f32.mrb[0].mxu0
          %v4308 = vadd.f32 %v3978, %v4307
          %v4309 = vpop.f32.mrb[0].mxu0
          %4310 = vmatprep.mubr.f32.mxu0 0.0
          %4311 = vmatmul.mubr.f32.gmra.mrb[0].mxu0 %v4123
          %v4312 = vpop.f32.mrb[0].mxu0
          %v4313 = vadd.f32 %v3983, %v4312
          %v4314 = vpop.f32.mrb[0].mxu0
          %4315 = vmatprep.mubr.f32.mxu0 0.0
          %4316 = vmatmul.mubr.f32.gmra.mrb[0].mxu0 %v4126
          %v4317 = vpop.f32.mrb[0].mxu0
          %v4318 = vadd.f32 %v3988, %v4317
          %v4319 = vpop.f32.mrb[0].mxu0
          %4320 = vmatprep.mubr.f32.mxu0 0.0
          %4321 = vmatmul.mubr.f32.gmra.mrb[0].mxu0 %v4129
          %v4322 = vpop.f32.mrb[0].mxu0
          %v4323 = vadd.f32 %v3993, %v4322
          %v4324 = vpop.f32.mrb[0].mxu0
          %4325 = vmatprep.mubr.f32.mxu0 0.0
          %4326 = vmatmul.mubr.f32.gmra.mrb[0].mxu0 %v4132
          %v4327 = vpop.f32.mrb[0].mxu0
          %v4328 = vadd.f32 %v3998, %v4327
          %v4329 = vpop.f32.mrb[0].mxu0
          %4330 = vmatprep.mubr.f32.mxu0 0.0
          %4331 = vmatmul.mubr.f32.gmra.mrb[0].mxu0 %v4135
          %v4332 = vpop.f32.mrb[0].mxu0
          %v4333 = vadd.f32 %v4003, %v4332
          %v4334 = vpop.f32.mrb[0].mxu0
          %4335 = vmatprep.mubr.f32.mxu0 0.0
          %4336 = vmatmul.mubr.f32.gmra.mrb[0].mxu0 %v4138
          %v4337 = vpop.f32.mrb[0].mxu0
          %v4338 = vadd.f32 %v4008, %v4337
          %v4339 = vpop.f32.mrb[0].mxu0
          %4340 = vmatprep.mubr.f32.mxu0 0.0
          %4341 = vmatmul.mubr.f32.gmra.mrb[0].mxu0 %v4141
          %v4342 = vpop.f32.mrb[0].mxu0
          %v4343 = vadd.f32 %v4013, %v4342
          %v4344 = vpop.f32.mrb[0].mxu0
          %4345 = vmatprep.mubr.f32.mxu0 0.0
          %4346 = vmatmul.mubr.f32.gmra.mrb[0].mxu0 %v4144
          %v4347 = vpop.f32.mrb[0].mxu0
          %v4348 = vadd.f32 %v4018, %v4347
          %v4349 = vpop.f32.mrb[0].mxu0
          %4350 = vmatprep.mubr.f32.mxu0 0.0
          %4351 = vmatmul.mubr.f32.gmra.mrb[0].mxu0 %v4147
          %v4352 = vpop.f32.mrb[0].mxu0
          %v4353 = vadd.f32 %v4023, %v4352
          %v4354 = vpop.f32.mrb[0].mxu0
          %4355 = vmatprep.mubr.f32.mxu0 0.0
          %4356 = vmatmul.mubr.f32.gmra.mrb[0].mxu0 %v4150
          %v4357 = vpop.f32.mrb[0].mxu0
          %v4358 = vadd.f32 %v4028, %v4357
          %v4359 = vpop.f32.mrb[0].mxu0
          %4360 = vmatprep.mubr.f32.mxu0 0.0
          %4361 = vmatmul.mubr.f32.gmra.mrb[0].mxu0 %v4153
          %v4362 = vpop.f32.mrb[0].mxu0
          %v4363 = vadd.f32 %v4033, %v4362
          %v4364 = vpop.f32.mrb[0].mxu0
          %4365 = vmatprep.mubr.f32.mxu0 0.0
          %4366 = vmatmul.mubr.f32.gmra.mrb[0].mxu0 %v4156
          %v4367 = vpop.f32.mrb[0].mxu0
          %v4368 = vadd.f32 %v4038, %v4367
          %v4369 = vpop.f32.mrb[0].mxu0
          %4370 = vmatprep.mubr.f32.mxu0 0.0
          %4371 = vmatmul.mubr.f32.gmra.mrb[0].mxu0 %v4159
          %v4372 = vpop.f32.mrb[0].mxu0
          %v4373 = vadd.f32 %v4043, %v4372
          %v4374 = vpop.f32.mrb[0].mxu0
          %4375 = vmatprep.mubr.f32.mxu0 0.0
          %4376 = vmatmul.mubr.f32.gmra.mrb[0].mxu0 %v4162
          %v4377 = vpop.f32.mrb[0].mxu0
          %v4378 = vadd.f32 %v4048, %v4377
          %v4379 = vpop.f32.mrb[0].mxu0
          %4380 = vmatprep.mubr.f32.mxu0 0.0
          %4381 = vmatmul.mubr.f32.gmra.mrb[0].mxu0 %v4165
          %v4382 = vpop.f32.mrb[0].mxu0
          %v4383 = vadd.f32 %v4053, %v4382
          %v4384 = vpop.f32.mrb[0].mxu0
          %4385 = vmatprep.mubr.f32.mxu0 0.0
          %4386 = vmatmul.mubr.f32.gmra.mrb[0].mxu0 %v4168
          %v4387 = vpop.f32.mrb[0].mxu0
          %v4388 = vadd.f32 %v4058, %v4387
          %v4389 = vpop.f32.mrb[0].mxu0
          %4390 = vmatprep.mubr.f32.mxu0 0.0
          %4391 = vmatmul.mubr.f32.gmra.mrb[0].mxu0 %v4171
          %v4392 = vpop.f32.mrb[0].mxu0
          %v4393 = vadd.f32 %v4063, %v4392
          %v4394 = vpop.f32.mrb[0].mxu0
          %4395 = vmatprep.mubr.f32.mxu0 0.0
          %4396 = vmatmul.mubr.f32.gmra.mrb[0].mxu0 %v4174
          %v4397 = vpop.f32.mrb[0].mxu0
          %v4398 = vadd.f32 %v4068, %v4397
          %v4399 = vpop.f32.mrb[0].mxu0
          %4400 = vdwg.mxu0
          %v4401 = vld [vmem:[%s3] sm:$0x1]
          %v4403 = vlaneseq
          %v4404 = vshrl.u32 %v4403, 7
          %v4405 = vsub.s32 0, %v4404
          %v4406 = vrot.slane %v4401, %v4405
          %v4408 = vadd.f32 %v4243, %v4406
          %v4409 = vadd.f32 %v4248, %v4406
          %v4410 = vadd.f32 %v4253, %v4406
          %v4411 = vadd.f32 %v4258, %v4406
          %v4412 = vadd.f32 %v4263, %v4406
          %v4413 = vadd.f32 %v4268, %v4406
          %v4414 = vadd.f32 %v4273, %v4406
          %v4415 = vadd.f32 %v4278, %v4406
          %v4416 = vadd.f32 %v4283, %v4406
          %v4417 = vadd.f32 %v4288, %v4406
          %v4418 = vadd.f32 %v4293, %v4406
          %v4419 = vadd.f32 %v4298, %v4406
          %v4420 = vadd.f32 %v4303, %v4406
          %v4421 = vadd.f32 %v4308, %v4406
          %v4422 = vadd.f32 %v4313, %v4406
          %v4423 = vadd.f32 %v4318, %v4406
          %v4424 = vadd.f32 %v4323, %v4406
          %v4425 = vadd.f32 %v4328, %v4406
          %v4426 = vadd.f32 %v4333, %v4406
          %v4427 = vadd.f32 %v4338, %v4406
          %v4428 = vadd.f32 %v4343, %v4406
          %v4429 = vadd.f32 %v4348, %v4406
          %v4430 = vadd.f32 %v4353, %v4406
          %v4431 = vadd.f32 %v4358, %v4406
          %v4432 = vadd.f32 %v4363, %v4406
          %v4433 = vadd.f32 %v4368, %v4406
          %v4434 = vadd.f32 %v4373, %v4406
          %v4435 = vadd.f32 %v4378, %v4406
          %v4436 = vadd.f32 %v4383, %v4406
          %v4437 = vadd.f32 %v4388, %v4406
          %v4438 = vadd.f32 %v4393, %v4406
          %v4439 = vadd.f32 %v4398, %v4406
          %v4440 = vxor.u32 %v4408, 2147483648
          %v4441 = vxor.u32 %v4409, 2147483648
          %v4442 = vxor.u32 %v4410, 2147483648
          %v4443 = vxor.u32 %v4411, 2147483648
          %v4444 = vxor.u32 %v4412, 2147483648
          %v4445 = vxor.u32 %v4413, 2147483648
          %v4446 = vxor.u32 %v4414, 2147483648
          %v4447 = vxor.u32 %v4415, 2147483648
          %v4448 = vxor.u32 %v4416, 2147483648
          %v4449 = vxor.u32 %v4417, 2147483648
          %v4450 = vxor.u32 %v4418, 2147483648
          %v4451 = vxor.u32 %v4419, 2147483648
          %v4452 = vxor.u32 %v4420, 2147483648
          %v4453 = vxor.u32 %v4421, 2147483648
          %v4454 = vxor.u32 %v4422, 2147483648
          %v4455 = vxor.u32 %v4423, 2147483648
          %v4456 = vxor.u32 %v4424, 2147483648
          %v4457 = vxor.u32 %v4425, 2147483648
          %v4458 = vxor.u32 %v4426, 2147483648
          %v4459 = vxor.u32 %v4427, 2147483648
          %v4460 = vxor.u32 %v4428, 2147483648
          %v4461 = vxor.u32 %v4429, 2147483648
          %v4462 = vxor.u32 %v4430, 2147483648
          %v4463 = vxor.u32 %v4431, 2147483648
          %v4464 = vxor.u32 %v4432, 2147483648
          %v4465 = vxor.u32 %v4433, 2147483648
          %v4466 = vxor.u32 %v4434, 2147483648
          %v4467 = vxor.u32 %v4435, 2147483648
          %v4468 = vxor.u32 %v4436, 2147483648
          %v4469 = vxor.u32 %v4437, 2147483648
          %v4470 = vxor.u32 %v4438, 2147483648
          %v4471 = vxor.u32 %v4439, 2147483648
          %v4472 = vmul.f32 %v4440, 1.442695
          %v4473 = vpow.pop %v4472
          %v4474 = vmul.f32 %v4441, 1.442695
          %v4475 = vpow.pop %v4474
          %v4476 = vmul.f32 %v4442, 1.442695
          %v4477 = vpow.pop %v4476
          %v4478 = vmul.f32 %v4443, 1.442695
          %v4479 = vpow.pop %v4478
          %v4480 = vmul.f32 %v4444, 1.442695
          %v4481 = vpow.pop %v4480
          %v4482 = vmul.f32 %v4445, 1.442695
          %v4483 = vpow.pop %v4482
          %v4484 = vmul.f32 %v4446, 1.442695
          %v4485 = vpow.pop %v4484
          %v4486 = vmul.f32 %v4447, 1.442695
          %v4487 = vpow.pop %v4486
          %v4488 = vmul.f32 %v4448, 1.442695
          %v4489 = vpow.pop %v4488
          %v4490 = vmul.f32 %v4449, 1.442695
          %v4491 = vpow.pop %v4490
          %v4492 = vmul.f32 %v4450, 1.442695
          %v4493 = vpow.pop %v4492
          %v4494 = vmul.f32 %v4451, 1.442695
          %v4495 = vpow.pop %v4494
          %v4496 = vmul.f32 %v4452, 1.442695
          %v4497 = vpow.pop %v4496
          %v4498 = vmul.f32 %v4453, 1.442695
          %v4499 = vpow.pop %v4498
          %v4500 = vmul.f32 %v4454, 1.442695
          %v4501 = vpow.pop %v4500
          %v4502 = vmul.f32 %v4455, 1.442695
          %v4503 = vpow.pop %v4502
          %v4504 = vmul.f32 %v4456, 1.442695
          %v4505 = vpow.pop %v4504
          %v4506 = vmul.f32 %v4457, 1.442695
          %v4507 = vpow.pop %v4506
          %v4508 = vmul.f32 %v4458, 1.442695
          %v4509 = vpow.pop %v4508
          %v4510 = vmul.f32 %v4459, 1.442695
          %v4511 = vpow.pop %v4510
          %v4512 = vmul.f32 %v4460, 1.442695
          %v4513 = vpow.pop %v4512
          %v4514 = vmul.f32 %v4461, 1.442695
          %v4515 = vpow.pop %v4514
          %v4516 = vmul.f32 %v4462, 1.442695
          %v4517 = vpow.pop %v4516
          %v4518 = vmul.f32 %v4463, 1.442695
          %v4519 = vpow.pop %v4518
          %v4520 = vmul.f32 %v4464, 1.442695
          %v4521 = vpow.pop %v4520
          %v4522 = vmul.f32 %v4465, 1.442695
          %v4523 = vpow.pop %v4522
          %v4524 = vmul.f32 %v4466, 1.442695
          %v4525 = vpow.pop %v4524
          %v4526 = vmul.f32 %v4467, 1.442695
          %v4527 = vpow.pop %v4526
          %v4528 = vmul.f32 %v4468, 1.442695
          %v4529 = vpow.pop %v4528
          %v4530 = vmul.f32 %v4469, 1.442695
          %v4531 = vpow.pop %v4530
          %v4532 = vmul.f32 %v4470, 1.442695
          %v4533 = vpow.pop %v4532
          %v4534 = vmul.f32 %v4471, 1.442695
          %v4535 = vpow.pop %v4534
          %v4536 = vadd.f32 %v4473, 1.0
          %v4537 = vadd.f32 %v4475, 1.0
          %v4538 = vadd.f32 %v4477, 1.0
          %v4539 = vadd.f32 %v4479, 1.0
          %v4540 = vadd.f32 %v4481, 1.0
          %v4541 = vadd.f32 %v4483, 1.0
          %v4542 = vadd.f32 %v4485, 1.0
          %v4543 = vadd.f32 %v4487, 1.0
          %v4544 = vadd.f32 %v4489, 1.0
          %v4545 = vadd.f32 %v4491, 1.0
          %v4546 = vadd.f32 %v4493, 1.0
          %v4547 = vadd.f32 %v4495, 1.0
          %v4548 = vadd.f32 %v4497, 1.0
          %v4549 = vadd.f32 %v4499, 1.0
          %v4550 = vadd.f32 %v4501, 1.0
          %v4551 = vadd.f32 %v4503, 1.0
          %v4552 = vadd.f32 %v4505, 1.0
          %v4553 = vadd.f32 %v4507, 1.0
          %v4554 = vadd.f32 %v4509, 1.0
          %v4555 = vadd.f32 %v4511, 1.0
          %v4556 = vadd.f32 %v4513, 1.0
          %v4557 = vadd.f32 %v4515, 1.0
          %v4558 = vadd.f32 %v4517, 1.0
          %v4559 = vadd.f32 %v4519, 1.0
          %v4560 = vadd.f32 %v4521, 1.0
          %v4561 = vadd.f32 %v4523, 1.0
          %v4562 = vadd.f32 %v4525, 1.0
          %v4563 = vadd.f32 %v4527, 1.0
          %v4564 = vadd.f32 %v4529, 1.0
          %v4565 = vadd.f32 %v4531, 1.0
          %v4566 = vadd.f32 %v4533, 1.0
          %v4567 = vadd.f32 %v4535, 1.0
          %v4568 = vrcp.pop %v4536
          %v4569 = vmul.f32 1.0, %v4568
          %v4570 = vrcp.pop %v4537
          %v4571 = vmul.f32 1.0, %v4570
          %v4572 = vrcp.pop %v4538
          %v4573 = vmul.f32 1.0, %v4572
          %v4574 = vrcp.pop %v4539
          %v4575 = vmul.f32 1.0, %v4574
          %v4576 = vrcp.pop %v4540
          %v4577 = vmul.f32 1.0, %v4576
          %v4578 = vrcp.pop %v4541
          %v4579 = vmul.f32 1.0, %v4578
          %v4580 = vrcp.pop %v4542
          %v4581 = vmul.f32 1.0, %v4580
          %v4582 = vrcp.pop %v4543
          %v4583 = vmul.f32 1.0, %v4582
          %v4584 = vrcp.pop %v4544
          %v4585 = vmul.f32 1.0, %v4584
          %v4586 = vrcp.pop %v4545
          %v4587 = vmul.f32 1.0, %v4586
          %v4588 = vrcp.pop %v4546
          %v4589 = vmul.f32 1.0, %v4588
          %v4590 = vrcp.pop %v4547
          %v4591 = vmul.f32 1.0, %v4590
          %v4592 = vrcp.pop %v4548
          %v4593 = vmul.f32 1.0, %v4592
          %v4594 = vrcp.pop %v4549
          %v4595 = vmul.f32 1.0, %v4594
          %v4596 = vrcp.pop %v4550
          %v4597 = vmul.f32 1.0, %v4596
          %v4598 = vrcp.pop %v4551
          %v4599 = vmul.f32 1.0, %v4598
          %v4600 = vrcp.pop %v4552
          %v4601 = vmul.f32 1.0, %v4600
          %v4602 = vrcp.pop %v4553
          %v4603 = vmul.f32 1.0, %v4602
          %v4604 = vrcp.pop %v4554
          %v4605 = vmul.f32 1.0, %v4604
          %v4606 = vrcp.pop %v4555
          %v4607 = vmul.f32 1.0, %v4606
          %v4608 = vrcp.pop %v4556
          %v4609 = vmul.f32 1.0, %v4608
          %v4610 = vrcp.pop %v4557
          %v4611 = vmul.f32 1.0, %v4610
          %v4612 = vrcp.pop %v4558
          %v4613 = vmul.f32 1.0, %v4612
          %v4614 = vrcp.pop %v4559
          %v4615 = vmul.f32 1.0, %v4614
          %v4616 = vrcp.pop %v4560
          %v4617 = vmul.f32 1.0, %v4616
          %v4618 = vrcp.pop %v4561
          %v4619 = vmul.f32 1.0, %v4618
          %v4620 = vrcp.pop %v4562
          %v4621 = vmul.f32 1.0, %v4620
          %v4622 = vrcp.pop %v4563
          %v4623 = vmul.f32 1.0, %v4622
          %v4624 = vrcp.pop %v4564
          %v4625 = vmul.f32 1.0, %v4624
          %v4626 = vrcp.pop %v4565
          %v4627 = vmul.f32 1.0, %v4626
          %v4628 = vrcp.pop %v4566
          %v4629 = vmul.f32 1.0, %v4628
          %v4630 = vrcp.pop %v4567
          %v4631 = vmul.f32 1.0, %v4630
          %s4632 = sadd.s32 %s1039, 1
          %s4633 = smul.u32 %s4632, 24
          %s4634 = scalar_lea.vmem [#allocation2], %s4633
          %v4635 = vld [vmem:[%s4634 + $0x1] sm:$0xff]
          %v4636 = vld [vmem:[%s4634 + $0x9] sm:$0xff]
          %v4637 = vld [vmem:[%s4634 + $0x19] sm:$0xff]
          %v4638 = vld [vmem:[%s4634 + $0x21] sm:$0xff]
          %v4639 = vld [vmem:[%s4634 + $0x31] sm:$0xff]
          %v4640 = vld [vmem:[%s4634 + $0x39] sm:$0xff]
          %v4641 = vld [vmem:[%s4634 + $0x49] sm:$0xff]
          %v4642 = vld [vmem:[%s4634 + $0x51] sm:$0xff]
          %v4643 = vld [vmem:[%s4634 + $0x61] sm:$0xff]
          %v4644 = vld [vmem:[%s4634 + $0x69] sm:$0xff]
          %v4645 = vld [vmem:[%s4634 + $0x79] sm:$0xff]
          %v4646 = vld [vmem:[%s4634 + $0x81] sm:$0xff]
          %v4647 = vld [vmem:[%s4634 + $0x91] sm:$0xff]
          %v4648 = vld [vmem:[%s4634 + $0x99] sm:$0xff]
          %v4649 = vld [vmem:[%s4634 + $0xa9] sm:$0xff]
          %v4650 = vld [vmem:[%s4634 + $0xb1] sm:$0xff]
          %v4651 = vld [vmem:[%s4634 + $0x1b1] sm:$0xff]
          %v4652 = vld [vmem:[%s4634 + $0x1b9] sm:$0xff]
          %v4653 = vld [vmem:[%s4634 + $0x1c9] sm:$0xff]
          %v4654 = vld [vmem:[%s4634 + $0x1d1] sm:$0xff]
          %v4655 = vld [vmem:[%s4634 + $0x1e1] sm:$0xff]
          %v4656 = vld [vmem:[%s4634 + $0x1e9] sm:$0xff]
          %v4657 = vld [vmem:[%s4634 + $0x1f9] sm:$0xff]
          %v4658 = vld [vmem:[%s4634 + $0x201] sm:$0xff]
          %v4659 = vld [vmem:[%s4634 + $0x211] sm:$0xff]
          %v4660 = vld [vmem:[%s4634 + $0x219] sm:$0xff]
          %v4661 = vld [vmem:[%s4634 + $0x229] sm:$0xff]
          %v4662 = vld [vmem:[%s4634 + $0x231] sm:$0xff]
          %v4663 = vld [vmem:[%s4634 + $0x241] sm:$0xff]
          %v4664 = vld [vmem:[%s4634 + $0x249] sm:$0xff]
          %v4665 = vld [vmem:[%s4634 + $0x259] sm:$0xff]
          %v4666 = vld [vmem:[%s4634 + $0x261] sm:$0xff]
          %s4667 = smul.u32 %s1039, 16
          %s4668 = scalar_lea.vmem [#allocation5], %s4667
          %4669 = vst.msk [vmem:[%s4668] sm:$0xff] %vm966, %v4569
          %4670 = vst.msk [vmem:[%s4668 + $0x8] sm:$0xff] %vm966, %v4571
          %4671 = vst.msk [vmem:[%s4668 + $0x10] sm:$0xff] %vm966, %v4573
          %4672 = vst.msk [vmem:[%s4668 + $0x18] sm:$0xff] %vm966, %v4575
          %4673 = vst.msk [vmem:[%s4668 + $0x20] sm:$0xff] %vm966, %v4577
          %4674 = vst.msk [vmem:[%s4668 + $0x28] sm:$0xff] %vm966, %v4579
          %4675 = vst.msk [vmem:[%s4668 + $0x30] sm:$0xff] %vm966, %v4581
          %4676 = vst.msk [vmem:[%s4668 + $0x38] sm:$0xff] %vm966, %v4583
          %4677 = vst.msk [vmem:[%s4668 + $0x40] sm:$0xff] %vm966, %v4585
          %4678 = vst.msk [vmem:[%s4668 + $0x48] sm:$0xff] %vm966, %v4587
          %4679 = vst.msk [vmem:[%s4668 + $0x50] sm:$0xff] %vm966, %v4589
          %4680 = vst.msk [vmem:[%s4668 + $0x58] sm:$0xff] %vm966, %v4591
          %4681 = vst.msk [vmem:[%s4668 + $0x60] sm:$0xff] %vm966, %v4593
          %4682 = vst.msk [vmem:[%s4668 + $0x68] sm:$0xff] %vm966, %v4595
          %4683 = vst.msk [vmem:[%s4668 + $0x70] sm:$0xff] %vm966, %v4597
          %4684 = vst.msk [vmem:[%s4668 + $0x78] sm:$0xff] %vm966, %v4599
          %4685 = vst.msk [vmem:[%s4668 + $0x100] sm:$0xff] %vm966, %v4601
          %4686 = vst.msk [vmem:[%s4668 + $0x108] sm:$0xff] %vm966, %v4603
          %4687 = vst.msk [vmem:[%s4668 + $0x110] sm:$0xff] %vm966, %v4605
          %4688 = vst.msk [vmem:[%s4668 + $0x118] sm:$0xff] %vm966, %v4607
          %4689 = vst.msk [vmem:[%s4668 + $0x120] sm:$0xff] %vm966, %v4609
          %4690 = vst.msk [vmem:[%s4668 + $0x128] sm:$0xff] %vm966, %v4611
          %4691 = vst.msk [vmem:[%s4668 + $0x130] sm:$0xff] %vm966, %v4613
          %4692 = vst.msk [vmem:[%s4668 + $0x138] sm:$0xff] %vm966, %v4615
          %4693 = vst.msk [vmem:[%s4668 + $0x140] sm:$0xff] %vm966, %v4617
          %4694 = vst.msk [vmem:[%s4668 + $0x148] sm:$0xff] %vm966, %v4619
          %4695 = vst.msk [vmem:[%s4668 + $0x150] sm:$0xff] %vm966, %v4621
          %4696 = vst.msk [vmem:[%s4668 + $0x158] sm:$0xff] %vm966, %v4623
          %4697 = vst.msk [vmem:[%s4668 + $0x160] sm:$0xff] %vm966, %v4625
          %4698 = vst.msk [vmem:[%s4668 + $0x168] sm:$0xff] %vm966, %v4627
          %4699 = vst.msk [vmem:[%s4668 + $0x170] sm:$0xff] %vm966, %v4629
          %4700 = vst.msk [vmem:[%s4668 + $0x178] sm:$0xff] %vm966, %v4631
          %4733 = vrot.lane.b32.xlu0 %v4635, 8
          %v4734 = vpop.permute.xlu0 %4733
          %4735 = vrot.lane.b32.xlu0 %v4636, 8
          %v4736 = vpop.permute.xlu0 %4735
          %4737 = vrot.lane.b32.xlu0 %v4637, 8
          %v4738 = vpop.permute.xlu0 %4737
          %4739 = vrot.lane.b32.xlu0 %v4638, 8
          %v4740 = vpop.permute.xlu0 %4739
          %4741 = vrot.lane.b32.xlu0 %v4639, 8
          %v4742 = vpop.permute.xlu0 %4741
          %4743 = vrot.lane.b32.xlu0 %v4640, 8
          %v4744 = vpop.permute.xlu0 %4743
          %4745 = vrot.lane.b32.xlu0 %v4641, 8
          %v4746 = vpop.permute.xlu0 %4745
          %4747 = vrot.lane.b32.xlu0 %v4642, 8
          %v4748 = vpop.permute.xlu0 %4747
          %4749 = vrot.lane.b32.xlu0 %v4643, 8
          %v4750 = vpop.permute.xlu0 %4749
          %4751 = vrot.lane.b32.xlu0 %v4644, 8
          %v4752 = vpop.permute.xlu0 %4751
          %4753 = vrot.lane.b32.xlu0 %v4645, 8
          %v4754 = vpop.permute.xlu0 %4753
          %4755 = vrot.lane.b32.xlu0 %v4646, 8
          %v4756 = vpop.permute.xlu0 %4755
          %4757 = vrot.lane.b32.xlu0 %v4647, 8
          %v4758 = vpop.permute.xlu0 %4757
          %4759 = vrot.lane.b32.xlu0 %v4648, 8
          %v4760 = vpop.permute.xlu0 %4759
          %4761 = vrot.lane.b32.xlu0 %v4649, 8
          %v4762 = vpop.permute.xlu0 %4761
          %4763 = vrot.lane.b32.xlu0 %v4650, 8
          %v4764 = vpop.permute.xlu0 %4763
          %4765 = vrot.lane.b32.xlu0 %v4651, 8
          %v4766 = vpop.permute.xlu0 %4765
          %4767 = vrot.lane.b32.xlu0 %v4652, 8
          %v4768 = vpop.permute.xlu0 %4767
          %4769 = vrot.lane.b32.xlu0 %v4653, 8
          %v4770 = vpop.permute.xlu0 %4769
          %4771 = vrot.lane.b32.xlu0 %v4654, 8
          %v4772 = vpop.permute.xlu0 %4771
          %4773 = vrot.lane.b32.xlu0 %v4655, 8
          %v4774 = vpop.permute.xlu0 %4773
          %4775 = vrot.lane.b32.xlu0 %v4656, 8
          %v4776 = vpop.permute.xlu0 %4775
          %4777 = vrot.lane.b32.xlu0 %v4657, 8
          %v4778 = vpop.permute.xlu0 %4777
          %4779 = vrot.lane.b32.xlu0 %v4658, 8
          %v4780 = vpop.permute.xlu0 %4779
          %4781 = vrot.lane.b32.xlu0 %v4659, 8
          %v4782 = vpop.permute.xlu0 %4781
          %4783 = vrot.lane.b32.xlu0 %v4660, 8
          %v4784 = vpop.permute.xlu0 %4783
          %4785 = vrot.lane.b32.xlu0 %v4661, 8
          %v4786 = vpop.permute.xlu0 %4785
          %4787 = vrot.lane.b32.xlu0 %v4662, 8
          %v4788 = vpop.permute.xlu0 %4787
          %4789 = vrot.lane.b32.xlu0 %v4663, 8
          %v4790 = vpop.permute.xlu0 %4789
          %4791 = vrot.lane.b32.xlu0 %v4664, 8
          %v4792 = vpop.permute.xlu0 %4791
          %4793 = vrot.lane.b32.xlu0 %v4665, 8
          %v4794 = vpop.permute.xlu0 %4793
          %4795 = vrot.lane.b32.xlu0 %v4666, 8
          %v4796 = vpop.permute.xlu0 %4795
          %v4829 = vmul.f32 %v4569, %v4734
          %v4830 = vmul.f32 %v4571, %v4736
          %v4831 = vmul.f32 %v4573, %v4738
          %v4832 = vmul.f32 %v4575, %v4740
          %v4833 = vmul.f32 %v4577, %v4742
          %v4834 = vmul.f32 %v4579, %v4744
          %v4835 = vmul.f32 %v4581, %v4746
          %v4836 = vmul.f32 %v4583, %v4748
          %v4837 = vmul.f32 %v4585, %v4750
          %v4838 = vmul.f32 %v4587, %v4752
          %v4839 = vmul.f32 %v4589, %v4754
          %v4840 = vmul.f32 %v4591, %v4756
          %v4841 = vmul.f32 %v4593, %v4758
          %v4842 = vmul.f32 %v4595, %v4760
          %v4843 = vmul.f32 %v4597, %v4762
          %v4844 = vmul.f32 %v4599, %v4764
          %v4845 = vmul.f32 %v4601, %v4766
          %v4846 = vmul.f32 %v4603, %v4768
          %v4847 = vmul.f32 %v4605, %v4770
          %v4848 = vmul.f32 %v4607, %v4772
          %v4849 = vmul.f32 %v4609, %v4774
          %v4850 = vmul.f32 %v4611, %v4776
          %v4851 = vmul.f32 %v4613, %v4778
          %v4852 = vmul.f32 %v4615, %v4780
          %v4853 = vmul.f32 %v4617, %v4782
          %v4854 = vmul.f32 %v4619, %v4784
          %v4855 = vmul.f32 %v4621, %v4786
          %v4856 = vmul.f32 %v4623, %v4788
          %v4857 = vmul.f32 %v4625, %v4790
          %v4858 = vmul.f32 %v4627, %v4792
          %v4859 = vmul.f32 %v4629, %v4794
          %v4860 = vmul.f32 %v4631, %v4796
          %4893 = vrot.lane.b32.xlu0 %v4829, 120
          %v4894 = vpop.permute.xlu0 %4893
          %4895 = vrot.lane.b32.xlu0 %v4830, 120
          %v4896 = vpop.permute.xlu0 %4895
          %4897 = vrot.lane.b32.xlu0 %v4831, 120
          %v4898 = vpop.permute.xlu0 %4897
          %4899 = vrot.lane.b32.xlu0 %v4832, 120
          %v4900 = vpop.permute.xlu0 %4899
          %4901 = vrot.lane.b32.xlu0 %v4833, 120
          %v4902 = vpop.permute.xlu0 %4901
          %4903 = vrot.lane.b32.xlu0 %v4834, 120
          %v4904 = vpop.permute.xlu0 %4903
          %4905 = vrot.lane.b32.xlu0 %v4835, 120
          %v4906 = vpop.permute.xlu0 %4905
          %4907 = vrot.lane.b32.xlu0 %v4836, 120
          %v4908 = vpop.permute.xlu0 %4907
          %4909 = vrot.lane.b32.xlu0 %v4837, 120
          %v4910 = vpop.permute.xlu0 %4909
          %4911 = vrot.lane.b32.xlu0 %v4838, 120
          %v4912 = vpop.permute.xlu0 %4911
          %4913 = vrot.lane.b32.xlu0 %v4839, 120
          %v4914 = vpop.permute.xlu0 %4913
          %4915 = vrot.lane.b32.xlu0 %v4840, 120
          %v4916 = vpop.permute.xlu0 %4915
          %4917 = vrot.lane.b32.xlu0 %v4841, 120
          %v4918 = vpop.permute.xlu0 %4917
          %4919 = vrot.lane.b32.xlu0 %v4842, 120
          %v4920 = vpop.permute.xlu0 %4919
          %4921 = vrot.lane.b32.xlu0 %v4843, 120
          %v4922 = vpop.permute.xlu0 %4921
          %4923 = vrot.lane.b32.xlu0 %v4844, 120
          %v4924 = vpop.permute.xlu0 %4923
          %4925 = vrot.lane.b32.xlu0 %v4845, 120
          %v4926 = vpop.permute.xlu0 %4925
          %4927 = vrot.lane.b32.xlu0 %v4846, 120
          %v4928 = vpop.permute.xlu0 %4927
          %4929 = vrot.lane.b32.xlu0 %v4847, 120
          %v4930 = vpop.permute.xlu0 %4929
          %4931 = vrot.lane.b32.xlu0 %v4848, 120
          %v4932 = vpop.permute.xlu0 %4931
          %4933 = vrot.lane.b32.xlu0 %v4849, 120
          %v4934 = vpop.permute.xlu0 %4933
          %4935 = vrot.lane.b32.xlu0 %v4850, 120
          %v4936 = vpop.permute.xlu0 %4935
          %4937 = vrot.lane.b32.xlu0 %v4851, 120
          %v4938 = vpop.permute.xlu0 %4937
          %4939 = vrot.lane.b32.xlu0 %v4852, 120
          %v4940 = vpop.permute.xlu0 %4939
          %4941 = vrot.lane.b32.xlu0 %v4853, 120
          %v4942 = vpop.permute.xlu0 %4941
          %4943 = vrot.lane.b32.xlu0 %v4854, 120
          %v4944 = vpop.permute.xlu0 %4943
          %4945 = vrot.lane.b32.xlu0 %v4855, 120
          %v4946 = vpop.permute.xlu0 %4945
          %4947 = vrot.lane.b32.xlu0 %v4856, 120
          %v4948 = vpop.permute.xlu0 %4947
          %4949 = vrot.lane.b32.xlu0 %v4857, 120
          %v4950 = vpop.permute.xlu0 %4949
          %4951 = vrot.lane.b32.xlu0 %v4858, 120
          %v4952 = vpop.permute.xlu0 %4951
          %4953 = vrot.lane.b32.xlu0 %v4859, 120
          %v4954 = vpop.permute.xlu0 %4953
          %4955 = vrot.lane.b32.xlu0 %v4860, 120
          %v4956 = vpop.permute.xlu0 %4955
          %s4989 = scalar_lea.vmem [#allocation3], %s4633
          %4990 = vst.msk [vmem:[%s4989 + $0x1] sm:$0xff] %vm966, %v4894
          %4991 = vst.msk [vmem:[%s4989 + $0x9] sm:$0xff] %vm966, %v4896
          %4992 = vst.msk [vmem:[%s4989 + $0x19] sm:$0xff] %vm966, %v4898
          %4993 = vst.msk [vmem:[%s4989 + $0x21] sm:$0xff] %vm966, %v4900
          %4994 = vst.msk [vmem:[%s4989 + $0x31] sm:$0xff] %vm966, %v4902
          %4995 = vst.msk [vmem:[%s4989 + $0x39] sm:$0xff] %vm966, %v4904
          %4996 = vst.msk [vmem:[%s4989 + $0x49] sm:$0xff] %vm966, %v4906
          %4997 = vst.msk [vmem:[%s4989 + $0x51] sm:$0xff] %vm966, %v4908
          %4998 = vst.msk [vmem:[%s4989 + $0x61] sm:$0xff] %vm966, %v4910
          %4999 = vst.msk [vmem:[%s4989 + $0x69] sm:$0xff] %vm966, %v4912
          %5000 = vst.msk [vmem:[%s4989 + $0x79] sm:$0xff] %vm966, %v4914
          %5001 = vst.msk [vmem:[%s4989 + $0x81] sm:$0xff] %vm966, %v4916
          %5002 = vst.msk [vmem:[%s4989 + $0x91] sm:$0xff] %vm966, %v4918
          %5003 = vst.msk [vmem:[%s4989 + $0x99] sm:$0xff] %vm966, %v4920
          %5004 = vst.msk [vmem:[%s4989 + $0xa9] sm:$0xff] %vm966, %v4922
          %5005 = vst.msk [vmem:[%s4989 + $0xb1] sm:$0xff] %vm966, %v4924
          %5006 = vst.msk [vmem:[%s4989 + $0x1b1] sm:$0xff] %vm966, %v4926
          %5007 = vst.msk [vmem:[%s4989 + $0x1b9] sm:$0xff] %vm966, %v4928
          %5008 = vst.msk [vmem:[%s4989 + $0x1c9] sm:$0xff] %vm966, %v4930
          %5009 = vst.msk [vmem:[%s4989 + $0x1d1] sm:$0xff] %vm966, %v4932
          %5010 = vst.msk [vmem:[%s4989 + $0x1e1] sm:$0xff] %vm966, %v4934
          %5011 = vst.msk [vmem:[%s4989 + $0x1e9] sm:$0xff] %vm966, %v4936
          %5012 = vst.msk [vmem:[%s4989 + $0x1f9] sm:$0xff] %vm966, %v4938
          %5013 = vst.msk [vmem:[%s4989 + $0x201] sm:$0xff] %vm966, %v4940
          %5014 = vst.msk [vmem:[%s4989 + $0x211] sm:$0xff] %vm966, %v4942
          %5015 = vst.msk [vmem:[%s4989 + $0x219] sm:$0xff] %vm966, %v4944
          %5016 = vst.msk [vmem:[%s4989 + $0x229] sm:$0xff] %vm966, %v4946
          %5017 = vst.msk [vmem:[%s4989 + $0x231] sm:$0xff] %vm966, %v4948
          %5018 = vst.msk [vmem:[%s4989 + $0x241] sm:$0xff] %vm966, %v4950
          %5019 = vst.msk [vmem:[%s4989 + $0x249] sm:$0xff] %vm966, %v4952
          %5020 = vst.msk [vmem:[%s4989 + $0x259] sm:$0xff] %vm966, %v4954
          %5021 = vst.msk [vmem:[%s4989 + $0x261] sm:$0xff] %vm966, %v4956
          %5054 = vrot.lane.b32.xlu0 %v3913, 112
          %v5055 = vpop.permute.xlu0 %5054
          %5056 = vrot.lane.b32.xlu0 %v3918, 112
          %v5057 = vpop.permute.xlu0 %5056
          %5058 = vrot.lane.b32.xlu0 %v3923, 112
          %v5059 = vpop.permute.xlu0 %5058
          %5060 = vrot.lane.b32.xlu0 %v3928, 112
          %v5061 = vpop.permute.xlu0 %5060
          %5062 = vrot.lane.b32.xlu0 %v3933, 112
          %v5063 = vpop.permute.xlu0 %5062
          %5064 = vrot.lane.b32.xlu0 %v3938, 112
          %v5065 = vpop.permute.xlu0 %5064
          %5066 = vrot.lane.b32.xlu0 %v3943, 112
          %v5067 = vpop.permute.xlu0 %5066
          %5068 = vrot.lane.b32.xlu0 %v3948, 112
          %v5069 = vpop.permute.xlu0 %5068
          %5070 = vrot.lane.b32.xlu0 %v3953, 112
          %v5071 = vpop.permute.xlu0 %5070
          %5072 = vrot.lane.b32.xlu0 %v3958, 112
          %v5073 = vpop.permute.xlu0 %5072
          %5074 = vrot.lane.b32.xlu0 %v3963, 112
          %v5075 = vpop.permute.xlu0 %5074
          %5076 = vrot.lane.b32.xlu0 %v3968, 112
          %v5077 = vpop.permute.xlu0 %5076
          %5078 = vrot.lane.b32.xlu0 %v3973, 112
          %v5079 = vpop.permute.xlu0 %5078
          %5080 = vrot.lane.b32.xlu0 %v3978, 112
          %v5081 = vpop.permute.xlu0 %5080
          %5082 = vrot.lane.b32.xlu0 %v3983, 112
          %v5083 = vpop.permute.xlu0 %5082
          %5084 = vrot.lane.b32.xlu0 %v3988, 112
          %v5085 = vpop.permute.xlu0 %5084
          %5086 = vrot.lane.b32.xlu0 %v3993, 112
          %v5087 = vpop.permute.xlu0 %5086
          %5088 = vrot.lane.b32.xlu0 %v3998, 112
          %v5089 = vpop.permute.xlu0 %5088
          %5090 = vrot.lane.b32.xlu0 %v4003, 112
          %v5091 = vpop.permute.xlu0 %5090
          %5092 = vrot.lane.b32.xlu0 %v4008, 112
          %v5093 = vpop.permute.xlu0 %5092
          %5094 = vrot.lane.b32.xlu0 %v4013, 112
          %v5095 = vpop.permute.xlu0 %5094
          %5096 = vrot.lane.b32.xlu0 %v4018, 112
          %v5097 = vpop.permute.xlu0 %5096
          %5098 = vrot.lane.b32.xlu0 %v4023, 112
          %v5099 = vpop.permute.xlu0 %5098
          %5100 = vrot.lane.b32.xlu0 %v4028, 112
          %v5101 = vpop.permute.xlu0 %5100
          %5102 = vrot.lane.b32.xlu0 %v4033, 112
          %v5103 = vpop.permute.xlu0 %5102
          %5104 = vrot.lane.b32.xlu0 %v4038, 112
          %v5105 = vpop.permute.xlu0 %5104
          %5106 = vrot.lane.b32.xlu0 %v4043, 112
          %v5107 = vpop.permute.xlu0 %5106
          %5108 = vrot.lane.b32.xlu0 %v4048, 112
          %v5109 = vpop.permute.xlu0 %5108
          %5110 = vrot.lane.b32.xlu0 %v4053, 112
          %v5111 = vpop.permute.xlu0 %5110
          %5112 = vrot.lane.b32.xlu0 %v4058, 112
          %v5113 = vpop.permute.xlu0 %5112
          %5114 = vrot.lane.b32.xlu0 %v4063, 112
          %v5115 = vpop.permute.xlu0 %5114
          %5116 = vrot.lane.b32.xlu0 %v4068, 112
          %v5117 = vpop.permute.xlu0 %5116
          %s5150 = scalar_lea.vmem [#allocation6], %s4667
          %5151 = vst.msk [vmem:[%s5150] sm:$0xff] %vm966, %v5055
          %5152 = vst.msk [vmem:[%s5150 + $0x8] sm:$0xff] %vm966, %v5057
          %5153 = vst.msk [vmem:[%s5150 + $0x10] sm:$0xff] %vm966, %v5059
          %5154 = vst.msk [vmem:[%s5150 + $0x18] sm:$0xff] %vm966, %v5061
          %5155 = vst.msk [vmem:[%s5150 + $0x20] sm:$0xff] %vm966, %v5063
          %5156 = vst.msk [vmem:[%s5150 + $0x28] sm:$0xff] %vm966, %v5065
          %5157 = vst.msk [vmem:[%s5150 + $0x30] sm:$0xff] %vm966, %v5067
          %5158 = vst.msk [vmem:[%s5150 + $0x38] sm:$0xff] %vm966, %v5069
          %5159 = vst.msk [vmem:[%s5150 + $0x40] sm:$0xff] %vm966, %v5071
          %5160 = vst.msk [vmem:[%s5150 + $0x48] sm:$0xff] %vm966, %v5073
          %5161 = vst.msk [vmem:[%s5150 + $0x50] sm:$0xff] %vm966, %v5075
          %5162 = vst.msk [vmem:[%s5150 + $0x58] sm:$0xff] %vm966, %v5077
          %5163 = vst.msk [vmem:[%s5150 + $0x60] sm:$0xff] %vm966, %v5079
          %5164 = vst.msk [vmem:[%s5150 + $0x68] sm:$0xff] %vm966, %v5081
          %5165 = vst.msk [vmem:[%s5150 + $0x70] sm:$0xff] %vm966, %v5083
          %5166 = vst.msk [vmem:[%s5150 + $0x78] sm:$0xff] %vm966, %v5085
          %5167 = vst.msk [vmem:[%s5150 + $0x100] sm:$0xff] %vm966, %v5087
          %5168 = vst.msk [vmem:[%s5150 + $0x108] sm:$0xff] %vm966, %v5089
          %5169 = vst.msk [vmem:[%s5150 + $0x110] sm:$0xff] %vm966, %v5091
          %5170 = vst.msk [vmem:[%s5150 + $0x118] sm:$0xff] %vm966, %v5093
          %5171 = vst.msk [vmem:[%s5150 + $0x120] sm:$0xff] %vm966, %v5095
          %5172 = vst.msk [vmem:[%s5150 + $0x128] sm:$0xff] %vm966, %v5097
          %5173 = vst.msk [vmem:[%s5150 + $0x130] sm:$0xff] %vm966, %v5099
          %5174 = vst.msk [vmem:[%s5150 + $0x138] sm:$0xff] %vm966, %v5101
          %5175 = vst.msk [vmem:[%s5150 + $0x140] sm:$0xff] %vm966, %v5103
          %5176 = vst.msk [vmem:[%s5150 + $0x148] sm:$0xff] %vm966, %v5105
          %5177 = vst.msk [vmem:[%s5150 + $0x150] sm:$0xff] %vm966, %v5107
          %5178 = vst.msk [vmem:[%s5150 + $0x158] sm:$0xff] %vm966, %v5109
          %5179 = vst.msk [vmem:[%s5150 + $0x160] sm:$0xff] %vm966, %v5111
          %5180 = vst.msk [vmem:[%s5150 + $0x168] sm:$0xff] %vm966, %v5113
          %5181 = vst.msk [vmem:[%s5150 + $0x170] sm:$0xff] %vm966, %v5115
          %5182 = vst.msk [vmem:[%s5150 + $0x178] sm:$0xff] %vm966, %v5117
        $region91: #{tpu_custom_call.1} parent=77 // loop_footer
          %s1038 = sadd.s32 1, %s1034
        $region92: #{tpu_custom_call.1} parent=77 // loop_footer_branch
          %1033 = sbr.rel target = $region88
        $region93: #{tpu_custom_call.1} parent=77 // loop_exit
          _
        loop: start=0, step=1, limit=2
        $region94: #{tpu_custom_call.1} parent=77 // loop_pre_header
          _
        $region95: #{tpu_custom_call.1} parent=77 // loop_header
          %s5184 = sphi 0, %s5188
          %p5185 = scmp.ge.s32.totalorder %s5184, 2
        $region96: #{tpu_custom_call.1} parent=77 // loop_header_branch
          %5187 = sbr.rel (%p5185) target = $region100
        $region97: #{tpu_custom_call.1} parent=77 // loop_body
          %s5189 = smul.u32 %s5184, 8
          %s5190 = smul.u32 %s5189, 24
          %s5191 = scalar_lea.vmem [#allocation3], %s5190
          %v5192 = vld [vmem:[%s5191] sm:$0xff]
          %v5193 = vld [vmem:[%s5191 + $0x8] sm:$0xff]
          %v5194 = vld [vmem:[%s5191 + $0x10] sm:$0x3]
          %v5195 = vld [vmem:[%s5191 + $0x18] sm:$0xff]
          %v5196 = vld [vmem:[%s5191 + $0x20] sm:$0xff]
          %v5197 = vld [vmem:[%s5191 + $0x28] sm:$0x3]
          %v5198 = vld [vmem:[%s5191 + $0x30] sm:$0xff]
          %v5199 = vld [vmem:[%s5191 + $0x38] sm:$0xff]
          %v5200 = vld [vmem:[%s5191 + $0x40] sm:$0x3]
          %v5201 = vld [vmem:[%s5191 + $0x48] sm:$0xff]
          %v5202 = vld [vmem:[%s5191 + $0x50] sm:$0xff]
          %v5203 = vld [vmem:[%s5191 + $0x58] sm:$0x3]
          %v5204 = vld [vmem:[%s5191 + $0x60] sm:$0xff]
          %v5205 = vld [vmem:[%s5191 + $0x68] sm:$0xff]
          %v5206 = vld [vmem:[%s5191 + $0x70] sm:$0x3]
          %v5207 = vld [vmem:[%s5191 + $0x78] sm:$0xff]
          %v5208 = vld [vmem:[%s5191 + $0x80] sm:$0xff]
          %v5209 = vld [vmem:[%s5191 + $0x88] sm:$0x3]
          %v5210 = vld [vmem:[%s5191 + $0x90] sm:$0xff]
          %v5211 = vld [vmem:[%s5191 + $0x98] sm:$0xff]
          %v5212 = vld [vmem:[%s5191 + $0xa0] sm:$0x3]
          %v5213 = vld [vmem:[%s5191 + $0xa8] sm:$0xff]
          %v5214 = vld [vmem:[%s5191 + $0xb0] sm:$0xff]
          %v5215 = vld [vmem:[%s5191 + $0xb8] sm:$0x3]
          %v5216 = vld [vmem:[%s5191 + $0xc0] sm:$0xff]
          %v5217 = vld [vmem:[%s5191 + $0xc8] sm:$0xff]
          %v5218 = vld [vmem:[%s5191 + $0xd0] sm:$0x3]
          %v5219 = vld [vmem:[%s5191 + $0xd8] sm:$0xff]
          %v5220 = vld [vmem:[%s5191 + $0xe0] sm:$0xff]
          %v5221 = vld [vmem:[%s5191 + $0xe8] sm:$0x3]
          %v5222 = vld [vmem:[%s5191 + $0x1b0] sm:$0xff]
          %v5223 = vld [vmem:[%s5191 + $0x1b8] sm:$0xff]
          %v5224 = vld [vmem:[%s5191 + $0x1c0] sm:$0x3]
          %v5225 = vld [vmem:[%s5191 + $0x1c8] sm:$0xff]
          %v5226 = vld [vmem:[%s5191 + $0x1d0] sm:$0xff]
          %v5227 = vld [vmem:[%s5191 + $0x1d8] sm:$0x3]
          %v5228 = vld [vmem:[%s5191 + $0x1e0] sm:$0xff]
          %v5229 = vld [vmem:[%s5191 + $0x1e8] sm:$0xff]
          %v5230 = vld [vmem:[%s5191 + $0x1f0] sm:$0x3]
          %v5231 = vld [vmem:[%s5191 + $0x1f8] sm:$0xff]
          %v5232 = vld [vmem:[%s5191 + $0x200] sm:$0xff]
          %v5233 = vld [vmem:[%s5191 + $0x208] sm:$0x3]
          %v5234 = vld [vmem:[%s5191 + $0x210] sm:$0xff]
          %v5235 = vld [vmem:[%s5191 + $0x218] sm:$0xff]
          %v5236 = vld [vmem:[%s5191 + $0x220] sm:$0x3]
          %v5237 = vld [vmem:[%s5191 + $0x228] sm:$0xff]
          %v5238 = vld [vmem:[%s5191 + $0x230] sm:$0xff]
          %v5239 = vld [vmem:[%s5191 + $0x238] sm:$0x3]
          %v5240 = vld [vmem:[%s5191 + $0x240] sm:$0xff]
          %v5241 = vld [vmem:[%s5191 + $0x248] sm:$0xff]
          %v5242 = vld [vmem:[%s5191 + $0x250] sm:$0x3]
          %v5243 = vld [vmem:[%s5191 + $0x258] sm:$0xff]
          %v5244 = vld [vmem:[%s5191 + $0x260] sm:$0xff]
          %v5245 = vld [vmem:[%s5191 + $0x268] sm:$0x3]
          %v5246 = vld [vmem:[%s5191 + $0x270] sm:$0xff]
          %v5247 = vld [vmem:[%s5191 + $0x278] sm:$0xff]
          %v5248 = vld [vmem:[%s5191 + $0x280] sm:$0x3]
          %v5249 = vld [vmem:[%s5191 + $0x288] sm:$0xff]
          %v5250 = vld [vmem:[%s5191 + $0x290] sm:$0xff]
          %v5251 = vld [vmem:[%s5191 + $0x298] sm:$0x3]
          %vm5300 = vcmask 1046528
          %v5301 = vrot.slane %v5192, 1
          %v5302 = vrot.slane %v5193, 1
          %v5303 = vsel %vm5300, %v5301, %v5302
          %v5304 = vrot.slane %v5194, 1
          %v5305 = vsel %vm5300, %v5302, %v5304
          %v5306 = vrot.slane %v5195, 1
          %v5307 = vrot.slane %v5196, 1
          %v5308 = vsel %vm5300, %v5306, %v5307
          %v5309 = vrot.slane %v5197, 1
          %v5310 = vsel %vm5300, %v5307, %v5309
          %v5311 = vrot.slane %v5198, 1
          %v5312 = vrot.slane %v5199, 1
          %v5313 = vsel %vm5300, %v5311, %v5312
          %v5314 = vrot.slane %v5200, 1
          %v5315 = vsel %vm5300, %v5312, %v5314
          %v5316 = vrot.slane %v5201, 1
          %v5317 = vrot.slane %v5202, 1
          %v5318 = vsel %vm5300, %v5316, %v5317
          %v5319 = vrot.slane %v5203, 1
          %v5320 = vsel %vm5300, %v5317, %v5319
          %v5321 = vrot.slane %v5204, 1
          %v5322 = vrot.slane %v5205, 1
          %v5323 = vsel %vm5300, %v5321, %v5322
          %v5324 = vrot.slane %v5206, 1
          %v5325 = vsel %vm5300, %v5322, %v5324
          %v5326 = vrot.slane %v5207, 1
          %v5327 = vrot.slane %v5208, 1
          %v5328 = vsel %vm5300, %v5326, %v5327
          %v5329 = vrot.slane %v5209, 1
          %v5330 = vsel %vm5300, %v5327, %v5329
          %v5331 = vrot.slane %v5210, 1
          %v5332 = vrot.slane %v5211, 1
          %v5333 = vsel %vm5300, %v5331, %v5332
          %v5334 = vrot.slane %v5212, 1
          %v5335 = vsel %vm5300, %v5332, %v5334
          %v5336 = vrot.slane %v5213, 1
          %v5337 = vrot.slane %v5214, 1
          %v5338 = vsel %vm5300, %v5336, %v5337
          %v5339 = vrot.slane %v5215, 1
          %v5340 = vsel %vm5300, %v5337, %v5339
          %v5341 = vrot.slane %v5222, 1
          %v5342 = vrot.slane %v5223, 1
          %v5343 = vsel %vm5300, %v5341, %v5342
          %v5344 = vrot.slane %v5224, 1
          %v5345 = vsel %vm5300, %v5342, %v5344
          %v5346 = vrot.slane %v5225, 1
          %v5347 = vrot.slane %v5226, 1
          %v5348 = vsel %vm5300, %v5346, %v5347
          %v5349 = vrot.slane %v5227, 1
          %v5350 = vsel %vm5300, %v5347, %v5349
          %v5351 = vrot.slane %v5228, 1
          %v5352 = vrot.slane %v5229, 1
          %v5353 = vsel %vm5300, %v5351, %v5352
          %v5354 = vrot.slane %v5230, 1
          %v5355 = vsel %vm5300, %v5352, %v5354
          %v5356 = vrot.slane %v5231, 1
          %v5357 = vrot.slane %v5232, 1
          %v5358 = vsel %vm5300, %v5356, %v5357
          %v5359 = vrot.slane %v5233, 1
          %v5360 = vsel %vm5300, %v5357, %v5359
          %v5361 = vrot.slane %v5234, 1
          %v5362 = vrot.slane %v5235, 1
          %v5363 = vsel %vm5300, %v5361, %v5362
          %v5364 = vrot.slane %v5236, 1
          %v5365 = vsel %vm5300, %v5362, %v5364
          %v5366 = vrot.slane %v5237, 1
          %v5367 = vrot.slane %v5238, 1
          %v5368 = vsel %vm5300, %v5366, %v5367
          %v5369 = vrot.slane %v5239, 1
          %v5370 = vsel %vm5300, %v5367, %v5369
          %v5371 = vrot.slane %v5240, 1
          %v5372 = vrot.slane %v5241, 1
          %v5373 = vsel %vm5300, %v5371, %v5372
          %v5374 = vrot.slane %v5242, 1
          %v5375 = vsel %vm5300, %v5372, %v5374
          %v5376 = vrot.slane %v5243, 1
          %v5377 = vrot.slane %v5244, 1
          %v5378 = vsel %vm5300, %v5376, %v5377
          %v5379 = vrot.slane %v5245, 1
          %v5380 = vsel %vm5300, %v5377, %v5379
          %5381 = vrot.lane.b32.xlu0 %v5303, 8
          %v5382 = vpop.permute.xlu0 %5381
          %5383 = vrot.lane.b32.xlu0 %v5305, 8
          %v5384 = vpop.permute.xlu0 %5383
          %5385 = vrot.lane.b32.xlu0 %v5308, 8
          %v5386 = vpop.permute.xlu0 %5385
          %5387 = vrot.lane.b32.xlu0 %v5310, 8
          %v5388 = vpop.permute.xlu0 %5387
          %5389 = vrot.lane.b32.xlu0 %v5313, 8
          %v5390 = vpop.permute.xlu0 %5389
          %5391 = vrot.lane.b32.xlu0 %v5315, 8
          %v5392 = vpop.permute.xlu0 %5391
          %5393 = vrot.lane.b32.xlu0 %v5318, 8
          %v5394 = vpop.permute.xlu0 %5393
          %5395 = vrot.lane.b32.xlu0 %v5320, 8
          %v5396 = vpop.permute.xlu0 %5395
          %5397 = vrot.lane.b32.xlu0 %v5323, 8
          %v5398 = vpop.permute.xlu0 %5397
          %5399 = vrot.lane.b32.xlu0 %v5325, 8
          %v5400 = vpop.permute.xlu0 %5399
          %5401 = vrot.lane.b32.xlu0 %v5328, 8
          %v5402 = vpop.permute.xlu0 %5401
          %5403 = vrot.lane.b32.xlu0 %v5330, 8
          %v5404 = vpop.permute.xlu0 %5403
          %5405 = vrot.lane.b32.xlu0 %v5333, 8
          %v5406 = vpop.permute.xlu0 %5405
          %5407 = vrot.lane.b32.xlu0 %v5335, 8
          %v5408 = vpop.permute.xlu0 %5407
          %5409 = vrot.lane.b32.xlu0 %v5338, 8
          %v5410 = vpop.permute.xlu0 %5409
          %5411 = vrot.lane.b32.xlu0 %v5340, 8
          %v5412 = vpop.permute.xlu0 %5411
          %5413 = vrot.lane.b32.xlu0 %v5343, 8
          %v5414 = vpop.permute.xlu0 %5413
          %5415 = vrot.lane.b32.xlu0 %v5345, 8
          %v5416 = vpop.permute.xlu0 %5415
          %5417 = vrot.lane.b32.xlu0 %v5348, 8
          %v5418 = vpop.permute.xlu0 %5417
          %5419 = vrot.lane.b32.xlu0 %v5350, 8
          %v5420 = vpop.permute.xlu0 %5419
          %5421 = vrot.lane.b32.xlu0 %v5353, 8
          %v5422 = vpop.permute.xlu0 %5421
          %5423 = vrot.lane.b32.xlu0 %v5355, 8
          %v5424 = vpop.permute.xlu0 %5423
          %5425 = vrot.lane.b32.xlu0 %v5358, 8
          %v5426 = vpop.permute.xlu0 %5425
          %5427 = vrot.lane.b32.xlu0 %v5360, 8
          %v5428 = vpop.permute.xlu0 %5427
          %5429 = vrot.lane.b32.xlu0 %v5363, 8
          %v5430 = vpop.permute.xlu0 %5429
          %5431 = vrot.lane.b32.xlu0 %v5365, 8
          %v5432 = vpop.permute.xlu0 %5431
          %5433 = vrot.lane.b32.xlu0 %v5368, 8
          %v5434 = vpop.permute.xlu0 %5433
          %5435 = vrot.lane.b32.xlu0 %v5370, 8
          %v5436 = vpop.permute.xlu0 %5435
          %5437 = vrot.lane.b32.xlu0 %v5373, 8
          %v5438 = vpop.permute.xlu0 %5437
          %5439 = vrot.lane.b32.xlu0 %v5375, 8
          %v5440 = vpop.permute.xlu0 %5439
          %5441 = vrot.lane.b32.xlu0 %v5378, 8
          %v5442 = vpop.permute.xlu0 %5441
          %5443 = vrot.lane.b32.xlu0 %v5380, 8
          %v5444 = vpop.permute.xlu0 %5443
          %vm5477 = vcmask 1045504
          %v5478 = vrot.slane %v5192, 2
          %v5479 = vrot.slane %v5193, 2
          %v5480 = vsel %vm5477, %v5478, %v5479
          %v5481 = vrot.slane %v5194, 2
          %v5482 = vsel %vm5477, %v5479, %v5481
          %v5483 = vrot.slane %v5195, 2
          %v5484 = vrot.slane %v5196, 2
          %v5485 = vsel %vm5477, %v5483, %v5484
          %v5486 = vrot.slane %v5197, 2
          %v5487 = vsel %vm5477, %v5484, %v5486
          %v5488 = vrot.slane %v5198, 2
          %v5489 = vrot.slane %v5199, 2
          %v5490 = vsel %vm5477, %v5488, %v5489
          %v5491 = vrot.slane %v5200, 2
          %v5492 = vsel %vm5477, %v5489, %v5491
          %v5493 = vrot.slane %v5201, 2
          %v5494 = vrot.slane %v5202, 2
          %v5495 = vsel %vm5477, %v5493, %v5494
          %v5496 = vrot.slane %v5203, 2
          %v5497 = vsel %vm5477, %v5494, %v5496
          %v5498 = vrot.slane %v5204, 2
          %v5499 = vrot.slane %v5205, 2
          %v5500 = vsel %vm5477, %v5498, %v5499
          %v5501 = vrot.slane %v5206, 2
          %v5502 = vsel %vm5477, %v5499, %v5501
          %v5503 = vrot.slane %v5207, 2
          %v5504 = vrot.slane %v5208, 2
          %v5505 = vsel %vm5477, %v5503, %v5504
          %v5506 = vrot.slane %v5209, 2
          %v5507 = vsel %vm5477, %v5504, %v5506
          %v5508 = vrot.slane %v5210, 2
          %v5509 = vrot.slane %v5211, 2
          %v5510 = vsel %vm5477, %v5508, %v5509
          %v5511 = vrot.slane %v5212, 2
          %v5512 = vsel %vm5477, %v5509, %v5511
          %v5513 = vrot.slane %v5213, 2
          %v5514 = vrot.slane %v5214, 2
          %v5515 = vsel %vm5477, %v5513, %v5514
          %v5516 = vrot.slane %v5215, 2
          %v5517 = vsel %vm5477, %v5514, %v5516
          %v5518 = vrot.slane %v5222, 2
          %v5519 = vrot.slane %v5223, 2
          %v5520 = vsel %vm5477, %v5518, %v5519
          %v5521 = vrot.slane %v5224, 2
          %v5522 = vsel %vm5477, %v5519, %v5521
          %v5523 = vrot.slane %v5225, 2
          %v5524 = vrot.slane %v5226, 2
          %v5525 = vsel %vm5477, %v5523, %v5524
          %v5526 = vrot.slane %v5227, 2
          %v5527 = vsel %vm5477, %v5524, %v5526
          %v5528 = vrot.slane %v5228, 2
          %v5529 = vrot.slane %v5229, 2
          %v5530 = vsel %vm5477, %v5528, %v5529
          %v5531 = vrot.slane %v5230, 2
          %v5532 = vsel %vm5477, %v5529, %v5531
          %v5533 = vrot.slane %v5231, 2
          %v5534 = vrot.slane %v5232, 2
          %v5535 = vsel %vm5477, %v5533, %v5534
          %v5536 = vrot.slane %v5233, 2
          %v5537 = vsel %vm5477, %v5534, %v5536
          %v5538 = vrot.slane %v5234, 2
          %v5539 = vrot.slane %v5235, 2
          %v5540 = vsel %vm5477, %v5538, %v5539
          %v5541 = vrot.slane %v5236, 2
          %v5542 = vsel %vm5477, %v5539, %v5541
          %v5543 = vrot.slane %v5237, 2
          %v5544 = vrot.slane %v5238, 2
          %v5545 = vsel %vm5477, %v5543, %v5544
          %v5546 = vrot.slane %v5239, 2
          %v5547 = vsel %vm5477, %v5544, %v5546
          %v5548 = vrot.slane %v5240, 2
          %v5549 = vrot.slane %v5241, 2
          %v5550 = vsel %vm5477, %v5548, %v5549
          %v5551 = vrot.slane %v5242, 2
          %v5552 = vsel %vm5477, %v5549, %v5551
          %v5553 = vrot.slane %v5243, 2
          %v5554 = vrot.slane %v5244, 2
          %v5555 = vsel %vm5477, %v5553, %v5554
          %v5556 = vrot.slane %v5245, 2
          %v5557 = vsel %vm5477, %v5554, %v5556
          %5558 = vrot.lane.b32.xlu0 %v5480, 16
          %v5559 = vpop.permute.xlu0 %5558
          %5560 = vrot.lane.b32.xlu0 %v5482, 16
          %v5561 = vpop.permute.xlu0 %5560
          %5562 = vrot.lane.b32.xlu0 %v5485, 16
          %v5563 = vpop.permute.xlu0 %5562
          %5564 = vrot.lane.b32.xlu0 %v5487, 16
          %v5565 = vpop.permute.xlu0 %5564
          %5566 = vrot.lane.b32.xlu0 %v5490, 16
          %v5567 = vpop.permute.xlu0 %5566
          %5568 = vrot.lane.b32.xlu0 %v5492, 16
          %v5569 = vpop.permute.xlu0 %5568
          %5570 = vrot.lane.b32.xlu0 %v5495, 16
          %v5571 = vpop.permute.xlu0 %5570
          %5572 = vrot.lane.b32.xlu0 %v5497, 16
          %v5573 = vpop.permute.xlu0 %5572
          %5574 = vrot.lane.b32.xlu0 %v5500, 16
          %v5575 = vpop.permute.xlu0 %5574
          %5576 = vrot.lane.b32.xlu0 %v5502, 16
          %v5577 = vpop.permute.xlu0 %5576
          %5578 = vrot.lane.b32.xlu0 %v5505, 16
          %v5579 = vpop.permute.xlu0 %5578
          %5580 = vrot.lane.b32.xlu0 %v5507, 16
          %v5581 = vpop.permute.xlu0 %5580
          %5582 = vrot.lane.b32.xlu0 %v5510, 16
          %v5583 = vpop.permute.xlu0 %5582
          %5584 = vrot.lane.b32.xlu0 %v5512, 16
          %v5585 = vpop.permute.xlu0 %5584
          %5586 = vrot.lane.b32.xlu0 %v5515, 16
          %v5587 = vpop.permute.xlu0 %5586
          %5588 = vrot.lane.b32.xlu0 %v5517, 16
          %v5589 = vpop.permute.xlu0 %5588
          %5590 = vrot.lane.b32.xlu0 %v5520, 16
          %v5591 = vpop.permute.xlu0 %5590
          %5592 = vrot.lane.b32.xlu0 %v5522, 16
          %v5593 = vpop.permute.xlu0 %5592
          %5594 = vrot.lane.b32.xlu0 %v5525, 16
          %v5595 = vpop.permute.xlu0 %5594
          %5596 = vrot.lane.b32.xlu0 %v5527, 16
          %v5597 = vpop.permute.xlu0 %5596
          %5598 = vrot.lane.b32.xlu0 %v5530, 16
          %v5599 = vpop.permute.xlu0 %5598
          %5600 = vrot.lane.b32.xlu0 %v5532, 16
          %v5601 = vpop.permute.xlu0 %5600
          %5602 = vrot.lane.b32.xlu0 %v5535, 16
          %v5603 = vpop.permute.xlu0 %5602
          %5604 = vrot.lane.b32.xlu0 %v5537, 16
          %v5605 = vpop.permute.xlu0 %5604
          %5606 = vrot.lane.b32.xlu0 %v5540, 16
          %v5607 = vpop.permute.xlu0 %5606
          %5608 = vrot.lane.b32.xlu0 %v5542, 16
          %v5609 = vpop.permute.xlu0 %5608
          %5610 = vrot.lane.b32.xlu0 %v5545, 16
          %v5611 = vpop.permute.xlu0 %5610
          %5612 = vrot.lane.b32.xlu0 %v5547, 16
          %v5613 = vpop.permute.xlu0 %5612
          %5614 = vrot.lane.b32.xlu0 %v5550, 16
          %v5615 = vpop.permute.xlu0 %5614
          %5616 = vrot.lane.b32.xlu0 %v5552, 16
          %v5617 = vpop.permute.xlu0 %5616
          %5618 = vrot.lane.b32.xlu0 %v5555, 16
          %v5619 = vpop.permute.xlu0 %5618
          %5620 = vrot.lane.b32.xlu0 %v5557, 16
          %v5621 = vpop.permute.xlu0 %5620
          %5658 = vrot.lane.b32.xlu0 %v5195, 24
          %v5659 = vpop.permute.xlu0 %5658
          %5660 = vrot.lane.b32.xlu0 %v5196, 24
          %v5661 = vpop.permute.xlu0 %5660
          %5662 = vrot.lane.b32.xlu0 %v5198, 24
          %v5663 = vpop.permute.xlu0 %5662
          %5664 = vrot.lane.b32.xlu0 %v5199, 24
          %v5665 = vpop.permute.xlu0 %5664
          %5666 = vrot.lane.b32.xlu0 %v5201, 24
          %v5667 = vpop.permute.xlu0 %5666
          %5668 = vrot.lane.b32.xlu0 %v5202, 24
          %v5669 = vpop.permute.xlu0 %5668
          %5670 = vrot.lane.b32.xlu0 %v5204, 24
          %v5671 = vpop.permute.xlu0 %5670
          %5672 = vrot.lane.b32.xlu0 %v5205, 24
          %v5673 = vpop.permute.xlu0 %5672
          %5674 = vrot.lane.b32.xlu0 %v5207, 24
          %v5675 = vpop.permute.xlu0 %5674
          %5676 = vrot.lane.b32.xlu0 %v5208, 24
          %v5677 = vpop.permute.xlu0 %5676
          %5678 = vrot.lane.b32.xlu0 %v5210, 24
          %v5679 = vpop.permute.xlu0 %5678
          %5680 = vrot.lane.b32.xlu0 %v5211, 24
          %v5681 = vpop.permute.xlu0 %5680
          %5682 = vrot.lane.b32.xlu0 %v5213, 24
          %v5683 = vpop.permute.xlu0 %5682
          %5684 = vrot.lane.b32.xlu0 %v5214, 24
          %v5685 = vpop.permute.xlu0 %5684
          %5686 = vrot.lane.b32.xlu0 %v5216, 24
          %v5687 = vpop.permute.xlu0 %5686
          %5688 = vrot.lane.b32.xlu0 %v5217, 24
          %v5689 = vpop.permute.xlu0 %5688
          %5690 = vrot.lane.b32.xlu0 %v5225, 24
          %v5691 = vpop.permute.xlu0 %5690
          %5692 = vrot.lane.b32.xlu0 %v5226, 24
          %v5693 = vpop.permute.xlu0 %5692
          %5694 = vrot.lane.b32.xlu0 %v5228, 24
          %v5695 = vpop.permute.xlu0 %5694
          %5696 = vrot.lane.b32.xlu0 %v5229, 24
          %v5697 = vpop.permute.xlu0 %5696
          %5698 = vrot.lane.b32.xlu0 %v5231, 24
          %v5699 = vpop.permute.xlu0 %5698
          %5700 = vrot.lane.b32.xlu0 %v5232, 24
          %v5701 = vpop.permute.xlu0 %5700
          %5702 = vrot.lane.b32.xlu0 %v5234, 24
          %v5703 = vpop.permute.xlu0 %5702
          %5704 = vrot.lane.b32.xlu0 %v5235, 24
          %v5705 = vpop.permute.xlu0 %5704
          %5706 = vrot.lane.b32.xlu0 %v5237, 24
          %v5707 = vpop.permute.xlu0 %5706
          %5708 = vrot.lane.b32.xlu0 %v5238, 24
          %v5709 = vpop.permute.xlu0 %5708
          %5710 = vrot.lane.b32.xlu0 %v5240, 24
          %v5711 = vpop.permute.xlu0 %5710
          %5712 = vrot.lane.b32.xlu0 %v5241, 24
          %v5713 = vpop.permute.xlu0 %5712
          %5714 = vrot.lane.b32.xlu0 %v5243, 24
          %v5715 = vpop.permute.xlu0 %5714
          %5716 = vrot.lane.b32.xlu0 %v5244, 24
          %v5717 = vpop.permute.xlu0 %5716
          %5718 = vrot.lane.b32.xlu0 %v5246, 24
          %v5719 = vpop.permute.xlu0 %5718
          %5720 = vrot.lane.b32.xlu0 %v5247, 24
          %v5721 = vpop.permute.xlu0 %5720
          %v5756 = vrot.slane %v5216, 1
          %v5757 = vrot.slane %v5217, 1
          %v5758 = vsel %vm5300, %v5756, %v5757
          %v5759 = vrot.slane %v5218, 1
          %v5760 = vsel %vm5300, %v5757, %v5759
          %v5761 = vrot.slane %v5246, 1
          %v5762 = vrot.slane %v5247, 1
          %v5763 = vsel %vm5300, %v5761, %v5762
          %v5764 = vrot.slane %v5248, 1
          %v5765 = vsel %vm5300, %v5762, %v5764
          %5766 = vrot.lane.b32.xlu0 %v5308, 32
          %v5767 = vpop.permute.xlu0 %5766
          %5768 = vrot.lane.b32.xlu0 %v5310, 32
          %v5769 = vpop.permute.xlu0 %5768
          %5770 = vrot.lane.b32.xlu0 %v5313, 32
          %v5771 = vpop.permute.xlu0 %5770
          %5772 = vrot.lane.b32.xlu0 %v5315, 32
          %v5773 = vpop.permute.xlu0 %5772
          %5774 = vrot.lane.b32.xlu0 %v5318, 32
          %v5775 = vpop.permute.xlu0 %5774
          %5776 = vrot.lane.b32.xlu0 %v5320, 32
          %v5777 = vpop.permute.xlu0 %5776
          %5778 = vrot.lane.b32.xlu0 %v5323, 32
          %v5779 = vpop.permute.xlu0 %5778
          %5780 = vrot.lane.b32.xlu0 %v5325, 32
          %v5781 = vpop.permute.xlu0 %5780
          %5782 = vrot.lane.b32.xlu0 %v5328, 32
          %v5783 = vpop.permute.xlu0 %5782
          %5784 = vrot.lane.b32.xlu0 %v5330, 32
          %v5785 = vpop.permute.xlu0 %5784
          %5786 = vrot.lane.b32.xlu0 %v5333, 32
          %v5787 = vpop.permute.xlu0 %5786
          %5788 = vrot.lane.b32.xlu0 %v5335, 32
          %v5789 = vpop.permute.xlu0 %5788
          %5790 = vrot.lane.b32.xlu0 %v5338, 32
          %v5791 = vpop.permute.xlu0 %5790
          %5792 = vrot.lane.b32.xlu0 %v5340, 32
          %v5793 = vpop.permute.xlu0 %5792
          %5794 = vrot.lane.b32.xlu0 %v5758, 32
          %v5795 = vpop.permute.xlu0 %5794
          %5796 = vrot.lane.b32.xlu0 %v5760, 32
          %v5797 = vpop.permute.xlu0 %5796
          %5798 = vrot.lane.b32.xlu0 %v5348, 32
          %v5799 = vpop.permute.xlu0 %5798
          %5800 = vrot.lane.b32.xlu0 %v5350, 32
          %v5801 = vpop.permute.xlu0 %5800
          %5802 = vrot.lane.b32.xlu0 %v5353, 32
          %v5803 = vpop.permute.xlu0 %5802
          %5804 = vrot.lane.b32.xlu0 %v5355, 32
          %v5805 = vpop.permute.xlu0 %5804
          %5806 = vrot.lane.b32.xlu0 %v5358, 32
          %v5807 = vpop.permute.xlu0 %5806
          %5808 = vrot.lane.b32.xlu0 %v5360, 32
          %v5809 = vpop.permute.xlu0 %5808
          %5810 = vrot.lane.b32.xlu0 %v5363, 32
          %v5811 = vpop.permute.xlu0 %5810
          %5812 = vrot.lane.b32.xlu0 %v5365, 32
          %v5813 = vpop.permute.xlu0 %5812
          %5814 = vrot.lane.b32.xlu0 %v5368, 32
          %v5815 = vpop.permute.xlu0 %5814
          %5816 = vrot.lane.b32.xlu0 %v5370, 32
          %v5817 = vpop.permute.xlu0 %5816
          %5818 = vrot.lane.b32.xlu0 %v5373, 32
          %v5819 = vpop.permute.xlu0 %5818
          %5820 = vrot.lane.b32.xlu0 %v5375, 32
          %v5821 = vpop.permute.xlu0 %5820
          %5822 = vrot.lane.b32.xlu0 %v5378, 32
          %v5823 = vpop.permute.xlu0 %5822
          %5824 = vrot.lane.b32.xlu0 %v5380, 32
          %v5825 = vpop.permute.xlu0 %5824
          %5826 = vrot.lane.b32.xlu0 %v5763, 32
          %v5827 = vpop.permute.xlu0 %5826
          %5828 = vrot.lane.b32.xlu0 %v5765, 32
          %v5829 = vpop.permute.xlu0 %5828
          %v5862 = vrot.slane %v5216, 2
          %v5863 = vrot.slane %v5217, 2
          %v5864 = vsel %vm5477, %v5862, %v5863
          %v5865 = vrot.slane %v5218, 2
          %v5866 = vsel %vm5477, %v5863, %v5865
          %v5867 = vrot.slane %v5246, 2
          %v5868 = vrot.slane %v5247, 2
          %v5869 = vsel %vm5477, %v5867, %v5868
          %v5870 = vrot.slane %v5248, 2
          %v5871 = vsel %vm5477, %v5868, %v5870
          %5872 = vrot.lane.b32.xlu0 %v5485, 40
          %v5873 = vpop.permute.xlu0 %5872
          %5874 = vrot.lane.b32.xlu0 %v5487, 40
          %v5875 = vpop.permute.xlu0 %5874
          %5876 = vrot.lane.b32.xlu0 %v5490, 40
          %v5877 = vpop.permute.xlu0 %5876
          %5878 = vrot.lane.b32.xlu0 %v5492, 40
          %v5879 = vpop.permute.xlu0 %5878
          %5880 = vrot.lane.b32.xlu0 %v5495, 40
          %v5881 = vpop.permute.xlu0 %5880
          %5882 = vrot.lane.b32.xlu0 %v5497, 40
          %v5883 = vpop.permute.xlu0 %5882
          %5884 = vrot.lane.b32.xlu0 %v5500, 40
          %v5885 = vpop.permute.xlu0 %5884
          %5886 = vrot.lane.b32.xlu0 %v5502, 40
          %v5887 = vpop.permute.xlu0 %5886
          %5888 = vrot.lane.b32.xlu0 %v5505, 40
          %v5889 = vpop.permute.xlu0 %5888
          %5890 = vrot.lane.b32.xlu0 %v5507, 40
          %v5891 = vpop.permute.xlu0 %5890
          %5892 = vrot.lane.b32.xlu0 %v5510, 40
          %v5893 = vpop.permute.xlu0 %5892
          %5894 = vrot.lane.b32.xlu0 %v5512, 40
          %v5895 = vpop.permute.xlu0 %5894
          %5896 = vrot.lane.b32.xlu0 %v5515, 40
          %v5897 = vpop.permute.xlu0 %5896
          %5898 = vrot.lane.b32.xlu0 %v5517, 40
          %v5899 = vpop.permute.xlu0 %5898
          %5900 = vrot.lane.b32.xlu0 %v5864, 40
          %v5901 = vpop.permute.xlu0 %5900
          %5902 = vrot.lane.b32.xlu0 %v5866, 40
          %v5903 = vpop.permute.xlu0 %5902
          %5904 = vrot.lane.b32.xlu0 %v5525, 40
          %v5905 = vpop.permute.xlu0 %5904
          %5906 = vrot.lane.b32.xlu0 %v5527, 40
          %v5907 = vpop.permute.xlu0 %5906
          %5908 = vrot.lane.b32.xlu0 %v5530, 40
          %v5909 = vpop.permute.xlu0 %5908
          %5910 = vrot.lane.b32.xlu0 %v5532, 40
          %v5911 = vpop.permute.xlu0 %5910
          %5912 = vrot.lane.b32.xlu0 %v5535, 40
          %v5913 = vpop.permute.xlu0 %5912
          %5914 = vrot.lane.b32.xlu0 %v5537, 40
          %v5915 = vpop.permute.xlu0 %5914
          %5916 = vrot.lane.b32.xlu0 %v5540, 40
          %v5917 = vpop.permute.xlu0 %5916
          %5918 = vrot.lane.b32.xlu0 %v5542, 40
          %v5919 = vpop.permute.xlu0 %5918
          %5920 = vrot.lane.b32.xlu0 %v5545, 40
          %v5921 = vpop.permute.xlu0 %5920
          %5922 = vrot.lane.b32.xlu0 %v5547, 40
          %v5923 = vpop.permute.xlu0 %5922
          %5924 = vrot.lane.b32.xlu0 %v5550, 40
          %v5925 = vpop.permute.xlu0 %5924
          %5926 = vrot.lane.b32.xlu0 %v5552, 40
          %v5927 = vpop.permute.xlu0 %5926
          %5928 = vrot.lane.b32.xlu0 %v5555, 40
          %v5929 = vpop.permute.xlu0 %5928
          %5930 = vrot.lane.b32.xlu0 %v5557, 40
          %v5931 = vpop.permute.xlu0 %5930
          %5932 = vrot.lane.b32.xlu0 %v5869, 40
          %v5933 = vpop.permute.xlu0 %5932
          %5934 = vrot.lane.b32.xlu0 %v5871, 40
          %v5935 = vpop.permute.xlu0 %5934
          %5972 = vrot.lane.b32.xlu0 %v5198, 48
          %v5973 = vpop.permute.xlu0 %5972
          %5974 = vrot.lane.b32.xlu0 %v5199, 48
          %v5975 = vpop.permute.xlu0 %5974
          %5976 = vrot.lane.b32.xlu0 %v5201, 48
          %v5977 = vpop.permute.xlu0 %5976
          %5978 = vrot.lane.b32.xlu0 %v5202, 48
          %v5979 = vpop.permute.xlu0 %5978
          %5980 = vrot.lane.b32.xlu0 %v5204, 48
          %v5981 = vpop.permute.xlu0 %5980
          %5982 = vrot.lane.b32.xlu0 %v5205, 48
          %v5983 = vpop.permute.xlu0 %5982
          %5984 = vrot.lane.b32.xlu0 %v5207, 48
          %v5985 = vpop.permute.xlu0 %5984
          %5986 = vrot.lane.b32.xlu0 %v5208, 48
          %v5987 = vpop.permute.xlu0 %5986
          %5988 = vrot.lane.b32.xlu0 %v5210, 48
          %v5989 = vpop.permute.xlu0 %5988
          %5990 = vrot.lane.b32.xlu0 %v5211, 48
          %v5991 = vpop.permute.xlu0 %5990
          %5992 = vrot.lane.b32.xlu0 %v5213, 48
          %v5993 = vpop.permute.xlu0 %5992
          %5994 = vrot.lane.b32.xlu0 %v5214, 48
          %v5995 = vpop.permute.xlu0 %5994
          %5996 = vrot.lane.b32.xlu0 %v5216, 48
          %v5997 = vpop.permute.xlu0 %5996
          %5998 = vrot.lane.b32.xlu0 %v5217, 48
          %v5999 = vpop.permute.xlu0 %5998
          %6000 = vrot.lane.b32.xlu0 %v5219, 48
          %v6001 = vpop.permute.xlu0 %6000
          %6002 = vrot.lane.b32.xlu0 %v5220, 48
          %v6003 = vpop.permute.xlu0 %6002
          %6004 = vrot.lane.b32.xlu0 %v5228, 48
          %v6005 = vpop.permute.xlu0 %6004
          %6006 = vrot.lane.b32.xlu0 %v5229, 48
          %v6007 = vpop.permute.xlu0 %6006
          %6008 = vrot.lane.b32.xlu0 %v5231, 48
          %v6009 = vpop.permute.xlu0 %6008
          %6010 = vrot.lane.b32.xlu0 %v5232, 48
          %v6011 = vpop.permute.xlu0 %6010
          %6012 = vrot.lane.b32.xlu0 %v5234, 48
          %v6013 = vpop.permute.xlu0 %6012
          %6014 = vrot.lane.b32.xlu0 %v5235, 48
          %v6015 = vpop.permute.xlu0 %6014
          %6016 = vrot.lane.b32.xlu0 %v5237, 48
          %v6017 = vpop.permute.xlu0 %6016
          %6018 = vrot.lane.b32.xlu0 %v5238, 48
          %v6019 = vpop.permute.xlu0 %6018
          %6020 = vrot.lane.b32.xlu0 %v5240, 48
          %v6021 = vpop.permute.xlu0 %6020
          %6022 = vrot.lane.b32.xlu0 %v5241, 48
          %v6023 = vpop.permute.xlu0 %6022
          %6024 = vrot.lane.b32.xlu0 %v5243, 48
          %v6025 = vpop.permute.xlu0 %6024
          %6026 = vrot.lane.b32.xlu0 %v5244, 48
          %v6027 = vpop.permute.xlu0 %6026
          %6028 = vrot.lane.b32.xlu0 %v5246, 48
          %v6029 = vpop.permute.xlu0 %6028
          %6030 = vrot.lane.b32.xlu0 %v5247, 48
          %v6031 = vpop.permute.xlu0 %6030
          %6032 = vrot.lane.b32.xlu0 %v5249, 48
          %v6033 = vpop.permute.xlu0 %6032
          %6034 = vrot.lane.b32.xlu0 %v5250, 48
          %v6035 = vpop.permute.xlu0 %6034
          %v6070 = vrot.slane %v5219, 1
          %v6071 = vrot.slane %v5220, 1
          %v6072 = vsel %vm5300, %v6070, %v6071
          %v6073 = vrot.slane %v5221, 1
          %v6074 = vsel %vm5300, %v6071, %v6073
          %v6075 = vrot.slane %v5249, 1
          %v6076 = vrot.slane %v5250, 1
          %v6077 = vsel %vm5300, %v6075, %v6076
          %v6078 = vrot.slane %v5251, 1
          %v6079 = vsel %vm5300, %v6076, %v6078
          %6080 = vrot.lane.b32.xlu0 %v5313, 56
          %v6081 = vpop.permute.xlu0 %6080
          %6082 = vrot.lane.b32.xlu0 %v5315, 56
          %v6083 = vpop.permute.xlu0 %6082
          %6084 = vrot.lane.b32.xlu0 %v5318, 56
          %v6085 = vpop.permute.xlu0 %6084
          %6086 = vrot.lane.b32.xlu0 %v5320, 56
          %v6087 = vpop.permute.xlu0 %6086
          %6088 = vrot.lane.b32.xlu0 %v5323, 56
          %v6089 = vpop.permute.xlu0 %6088
          %6090 = vrot.lane.b32.xlu0 %v5325, 56
          %v6091 = vpop.permute.xlu0 %6090
          %6092 = vrot.lane.b32.xlu0 %v5328, 56
          %v6093 = vpop.permute.xlu0 %6092
          %6094 = vrot.lane.b32.xlu0 %v5330, 56
          %v6095 = vpop.permute.xlu0 %6094
          %6096 = vrot.lane.b32.xlu0 %v5333, 56
          %v6097 = vpop.permute.xlu0 %6096
          %6098 = vrot.lane.b32.xlu0 %v5335, 56
          %v6099 = vpop.permute.xlu0 %6098
          %6100 = vrot.lane.b32.xlu0 %v5338, 56
          %v6101 = vpop.permute.xlu0 %6100
          %6102 = vrot.lane.b32.xlu0 %v5340, 56
          %v6103 = vpop.permute.xlu0 %6102
          %6104 = vrot.lane.b32.xlu0 %v5758, 56
          %v6105 = vpop.permute.xlu0 %6104
          %6106 = vrot.lane.b32.xlu0 %v5760, 56
          %v6107 = vpop.permute.xlu0 %6106
          %6108 = vrot.lane.b32.xlu0 %v6072, 56
          %v6109 = vpop.permute.xlu0 %6108
          %6110 = vrot.lane.b32.xlu0 %v6074, 56
          %v6111 = vpop.permute.xlu0 %6110
          %6112 = vrot.lane.b32.xlu0 %v5353, 56
          %v6113 = vpop.permute.xlu0 %6112
          %6114 = vrot.lane.b32.xlu0 %v5355, 56
          %v6115 = vpop.permute.xlu0 %6114
          %6116 = vrot.lane.b32.xlu0 %v5358, 56
          %v6117 = vpop.permute.xlu0 %6116
          %6118 = vrot.lane.b32.xlu0 %v5360, 56
          %v6119 = vpop.permute.xlu0 %6118
          %6120 = vrot.lane.b32.xlu0 %v5363, 56
          %v6121 = vpop.permute.xlu0 %6120
          %6122 = vrot.lane.b32.xlu0 %v5365, 56
          %v6123 = vpop.permute.xlu0 %6122
          %6124 = vrot.lane.b32.xlu0 %v5368, 56
          %v6125 = vpop.permute.xlu0 %6124
          %6126 = vrot.lane.b32.xlu0 %v5370, 56
          %v6127 = vpop.permute.xlu0 %6126
          %6128 = vrot.lane.b32.xlu0 %v5373, 56
          %v6129 = vpop.permute.xlu0 %6128
          %6130 = vrot.lane.b32.xlu0 %v5375, 56
          %v6131 = vpop.permute.xlu0 %6130
          %6132 = vrot.lane.b32.xlu0 %v5378, 56
          %v6133 = vpop.permute.xlu0 %6132
          %6134 = vrot.lane.b32.xlu0 %v5380, 56
          %v6135 = vpop.permute.xlu0 %6134
          %6136 = vrot.lane.b32.xlu0 %v5763, 56
          %v6137 = vpop.permute.xlu0 %6136
          %6138 = vrot.lane.b32.xlu0 %v5765, 56
          %v6139 = vpop.permute.xlu0 %6138
          %6140 = vrot.lane.b32.xlu0 %v6077, 56
          %v6141 = vpop.permute.xlu0 %6140
          %6142 = vrot.lane.b32.xlu0 %v6079, 56
          %v6143 = vpop.permute.xlu0 %6142
          %v6176 = vrot.slane %v5219, 2
          %v6177 = vrot.slane %v5220, 2
          %v6178 = vsel %vm5477, %v6176, %v6177
          %v6179 = vrot.slane %v5221, 2
          %v6180 = vsel %vm5477, %v6177, %v6179
          %v6181 = vrot.slane %v5249, 2
          %v6182 = vrot.slane %v5250, 2
          %v6183 = vsel %vm5477, %v6181, %v6182
          %v6184 = vrot.slane %v5251, 2
          %v6185 = vsel %vm5477, %v6182, %v6184
          %6186 = vrot.lane.b32.xlu0 %v5490, 64
          %v6187 = vpop.permute.xlu0 %6186
          %6188 = vrot.lane.b32.xlu0 %v5492, 64
          %v6189 = vpop.permute.xlu0 %6188
          %6190 = vrot.lane.b32.xlu0 %v5495, 64
          %v6191 = vpop.permute.xlu0 %6190
          %6192 = vrot.lane.b32.xlu0 %v5497, 64
          %v6193 = vpop.permute.xlu0 %6192
          %6194 = vrot.lane.b32.xlu0 %v5500, 64
          %v6195 = vpop.permute.xlu0 %6194
          %6196 = vrot.lane.b32.xlu0 %v5502, 64
          %v6197 = vpop.permute.xlu0 %6196
          %6198 = vrot.lane.b32.xlu0 %v5505, 64
          %v6199 = vpop.permute.xlu0 %6198
          %6200 = vrot.lane.b32.xlu0 %v5507, 64
          %v6201 = vpop.permute.xlu0 %6200
          %6202 = vrot.lane.b32.xlu0 %v5510, 64
          %v6203 = vpop.permute.xlu0 %6202
          %6204 = vrot.lane.b32.xlu0 %v5512, 64
          %v6205 = vpop.permute.xlu0 %6204
          %6206 = vrot.lane.b32.xlu0 %v5515, 64
          %v6207 = vpop.permute.xlu0 %6206
          %6208 = vrot.lane.b32.xlu0 %v5517, 64
          %v6209 = vpop.permute.xlu0 %6208
          %6210 = vrot.lane.b32.xlu0 %v5864, 64
          %v6211 = vpop.permute.xlu0 %6210
          %6212 = vrot.lane.b32.xlu0 %v5866, 64
          %v6213 = vpop.permute.xlu0 %6212
          %6214 = vrot.lane.b32.xlu0 %v6178, 64
          %v6215 = vpop.permute.xlu0 %6214
          %6216 = vrot.lane.b32.xlu0 %v6180, 64
          %v6217 = vpop.permute.xlu0 %6216
          %6218 = vrot.lane.b32.xlu0 %v5530, 64
          %v6219 = vpop.permute.xlu0 %6218
          %6220 = vrot.lane.b32.xlu0 %v5532, 64
          %v6221 = vpop.permute.xlu0 %6220
          %6222 = vrot.lane.b32.xlu0 %v5535, 64
          %v6223 = vpop.permute.xlu0 %6222
          %6224 = vrot.lane.b32.xlu0 %v5537, 64
          %v6225 = vpop.permute.xlu0 %6224
          %6226 = vrot.lane.b32.xlu0 %v5540, 64
          %v6227 = vpop.permute.xlu0 %6226
          %6228 = vrot.lane.b32.xlu0 %v5542, 64
          %v6229 = vpop.permute.xlu0 %6228
          %6230 = vrot.lane.b32.xlu0 %v5545, 64
          %v6231 = vpop.permute.xlu0 %6230
          %6232 = vrot.lane.b32.xlu0 %v5547, 64
          %v6233 = vpop.permute.xlu0 %6232
          %6234 = vrot.lane.b32.xlu0 %v5550, 64
          %v6235 = vpop.permute.xlu0 %6234
          %6236 = vrot.lane.b32.xlu0 %v5552, 64
          %v6237 = vpop.permute.xlu0 %6236
          %6238 = vrot.lane.b32.xlu0 %v5555, 64
          %v6239 = vpop.permute.xlu0 %6238
          %6240 = vrot.lane.b32.xlu0 %v5557, 64
          %v6241 = vpop.permute.xlu0 %6240
          %6242 = vrot.lane.b32.xlu0 %v5869, 64
          %v6243 = vpop.permute.xlu0 %6242
          %6244 = vrot.lane.b32.xlu0 %v5871, 64
          %v6245 = vpop.permute.xlu0 %6244
          %6246 = vrot.lane.b32.xlu0 %v6183, 64
          %v6247 = vpop.permute.xlu0 %6246
          %6248 = vrot.lane.b32.xlu0 %v6185, 64
          %v6249 = vpop.permute.xlu0 %6248
          %v6282 = vsel %vm966, %v5192, %v5382
          %v6283 = vsel %vm966, %v5193, %v5384
          %v6284 = vsel %vm966, %v5195, %v5386
          %v6285 = vsel %vm966, %v5196, %v5388
          %v6286 = vsel %vm966, %v5198, %v5390
          %v6287 = vsel %vm966, %v5199, %v5392
          %v6288 = vsel %vm966, %v5201, %v5394
          %v6289 = vsel %vm966, %v5202, %v5396
          %v6290 = vsel %vm966, %v5204, %v5398
          %v6291 = vsel %vm966, %v5205, %v5400
          %v6292 = vsel %vm966, %v5207, %v5402
          %v6293 = vsel %vm966, %v5208, %v5404
          %v6294 = vsel %vm966, %v5210, %v5406
          %v6295 = vsel %vm966, %v5211, %v5408
          %v6296 = vsel %vm966, %v5213, %v5410
          %v6297 = vsel %vm966, %v5214, %v5412
          %v6298 = vsel %vm966, %v5222, %v5414
          %v6299 = vsel %vm966, %v5223, %v5416
          %v6300 = vsel %vm966, %v5225, %v5418
          %v6301 = vsel %vm966, %v5226, %v5420
          %v6302 = vsel %vm966, %v5228, %v5422
          %v6303 = vsel %vm966, %v5229, %v5424
          %v6304 = vsel %vm966, %v5231, %v5426
          %v6305 = vsel %vm966, %v5232, %v5428
          %v6306 = vsel %vm966, %v5234, %v5430
          %v6307 = vsel %vm966, %v5235, %v5432
          %v6308 = vsel %vm966, %v5237, %v5434
          %v6309 = vsel %vm966, %v5238, %v5436
          %v6310 = vsel %vm966, %v5240, %v5438
          %v6311 = vsel %vm966, %v5241, %v5440
          %v6312 = vsel %vm966, %v5243, %v5442
          %v6313 = vsel %vm966, %v5244, %v5444
          %vm6314 = vcmask 130048
          %v6315 = vsel %vm6314, %v6282, %v5559
          %v6316 = vsel %vm6314, %v6283, %v5561
          %v6317 = vsel %vm6314, %v6284, %v5563
          %v6318 = vsel %vm6314, %v6285, %v5565
          %v6319 = vsel %vm6314, %v6286, %v5567
          %v6320 = vsel %vm6314, %v6287, %v5569
          %v6321 = vsel %vm6314, %v6288, %v5571
          %v6322 = vsel %vm6314, %v6289, %v5573
          %v6323 = vsel %vm6314, %v6290, %v5575
          %v6324 = vsel %vm6314, %v6291, %v5577
          %v6325 = vsel %vm6314, %v6292, %v5579
          %v6326 = vsel %vm6314, %v6293, %v5581
          %v6327 = vsel %vm6314, %v6294, %v5583
          %v6328 = vsel %vm6314, %v6295, %v5585
          %v6329 = vsel %vm6314, %v6296, %v5587
          %v6330 = vsel %vm6314, %v6297, %v5589
          %v6331 = vsel %vm6314, %v6298, %v5591
          %v6332 = vsel %vm6314, %v6299, %v5593
          %v6333 = vsel %vm6314, %v6300, %v5595
          %v6334 = vsel %vm6314, %v6301, %v5597
          %v6335 = vsel %vm6314, %v6302, %v5599
          %v6336 = vsel %vm6314, %v6303, %v5601
          %v6337 = vsel %vm6314, %v6304, %v5603
          %v6338 = vsel %vm6314, %v6305, %v5605
          %v6339 = vsel %vm6314, %v6306, %v5607
          %v6340 = vsel %vm6314, %v6307, %v5609
          %v6341 = vsel %vm6314, %v6308, %v5611
          %v6342 = vsel %vm6314, %v6309, %v5613
          %v6343 = vsel %vm6314, %v6310, %v5615
          %v6344 = vsel %vm6314, %v6311, %v5617
          %v6345 = vsel %vm6314, %v6312, %v5619
          %v6346 = vsel %vm6314, %v6313, %v5621
          %vm6347 = vcmask 195584
          %v6348 = vsel %vm6347, %v6315, %v5659
          %v6349 = vsel %vm6347, %v6316, %v5661
          %v6350 = vsel %vm6347, %v6317, %v5663
          %v6351 = vsel %vm6347, %v6318, %v5665
          %v6352 = vsel %vm6347, %v6319, %v5667
          %v6353 = vsel %vm6347, %v6320, %v5669
          %v6354 = vsel %vm6347, %v6321, %v5671
          %v6355 = vsel %vm6347, %v6322, %v5673
          %v6356 = vsel %vm6347, %v6323, %v5675
          %v6357 = vsel %vm6347, %v6324, %v5677
          %v6358 = vsel %vm6347, %v6325, %v5679
          %v6359 = vsel %vm6347, %v6326, %v5681
          %v6360 = vsel %vm6347, %v6327, %v5683
          %v6361 = vsel %vm6347, %v6328, %v5685
          %v6362 = vsel %vm6347, %v6329, %v5687
          %v6363 = vsel %vm6347, %v6330, %v5689
          %v6364 = vsel %vm6347, %v6331, %v5691
          %v6365 = vsel %vm6347, %v6332, %v5693
          %v6366 = vsel %vm6347, %v6333, %v5695
          %v6367 = vsel %vm6347, %v6334, %v5697
          %v6368 = vsel %vm6347, %v6335, %v5699
          %v6369 = vsel %vm6347, %v6336, %v5701
          %v6370 = vsel %vm6347, %v6337, %v5703
          %v6371 = vsel %vm6347, %v6338, %v5705
          %v6372 = vsel %vm6347, %v6339, %v5707
          %v6373 = vsel %vm6347, %v6340, %v5709
          %v6374 = vsel %vm6347, %v6341, %v5711
          %v6375 = vsel %vm6347, %v6342, %v5713
          %v6376 = vsel %vm6347, %v6343, %v5715
          %v6377 = vsel %vm6347, %v6344, %v5717
          %v6378 = vsel %vm6347, %v6345, %v5719
          %v6379 = vsel %vm6347, %v6346, %v5721
          %vm6380 = vcmask 261120
          %v6381 = vsel %vm6380, %v6348, %v5767
          %v6382 = vsel %vm6380, %v6349, %v5769
          %v6383 = vsel %vm6380, %v6350, %v5771
          %v6384 = vsel %vm6380, %v6351, %v5773
          %v6385 = vsel %vm6380, %v6352, %v5775
          %v6386 = vsel %vm6380, %v6353, %v5777
          %v6387 = vsel %vm6380, %v6354, %v5779
          %v6388 = vsel %vm6380, %v6355, %v5781
          %v6389 = vsel %vm6380, %v6356, %v5783
          %v6390 = vsel %vm6380, %v6357, %v5785
          %v6391 = vsel %vm6380, %v6358, %v5787
          %v6392 = vsel %vm6380, %v6359, %v5789
          %v6393 = vsel %vm6380, %v6360, %v5791
          %v6394 = vsel %vm6380, %v6361, %v5793
          %v6395 = vsel %vm6380, %v6362, %v5795
          %v6396 = vsel %vm6380, %v6363, %v5797
          %v6397 = vsel %vm6380, %v6364, %v5799
          %v6398 = vsel %vm6380, %v6365, %v5801
          %v6399 = vsel %vm6380, %v6366, %v5803
          %v6400 = vsel %vm6380, %v6367, %v5805
          %v6401 = vsel %vm6380, %v6368, %v5807
          %v6402 = vsel %vm6380, %v6369, %v5809
          %v6403 = vsel %vm6380, %v6370, %v5811
          %v6404 = vsel %vm6380, %v6371, %v5813
          %v6405 = vsel %vm6380, %v6372, %v5815
          %v6406 = vsel %vm6380, %v6373, %v5817
          %v6407 = vsel %vm6380, %v6374, %v5819
          %v6408 = vsel %vm6380, %v6375, %v5821
          %v6409 = vsel %vm6380, %v6376, %v5823
          %v6410 = vsel %vm6380, %v6377, %v5825
          %v6411 = vsel %vm6380, %v6378, %v5827
          %v6412 = vsel %vm6380, %v6379, %v5829
          %vm6413 = vcmask 326656
          %v6414 = vsel %vm6413, %v6381, %v5873
          %v6415 = vsel %vm6413, %v6382, %v5875
          %v6416 = vsel %vm6413, %v6383, %v5877
          %v6417 = vsel %vm6413, %v6384, %v5879
          %v6418 = vsel %vm6413, %v6385, %v5881
          %v6419 = vsel %vm6413, %v6386, %v5883
          %v6420 = vsel %vm6413, %v6387, %v5885
          %v6421 = vsel %vm6413, %v6388, %v5887
          %v6422 = vsel %vm6413, %v6389, %v5889
          %v6423 = vsel %vm6413, %v6390, %v5891
          %v6424 = vsel %vm6413, %v6391, %v5893
          %v6425 = vsel %vm6413, %v6392, %v5895
          %v6426 = vsel %vm6413, %v6393, %v5897
          %v6427 = vsel %vm6413, %v6394, %v5899
          %v6428 = vsel %vm6413, %v6395, %v5901
          %v6429 = vsel %vm6413, %v6396, %v5903
          %v6430 = vsel %vm6413, %v6397, %v5905
          %v6431 = vsel %vm6413, %v6398, %v5907
          %v6432 = vsel %vm6413, %v6399, %v5909
          %v6433 = vsel %vm6413, %v6400, %v5911
          %v6434 = vsel %vm6413, %v6401, %v5913
          %v6435 = vsel %vm6413, %v6402, %v5915
          %v6436 = vsel %vm6413, %v6403, %v5917
          %v6437 = vsel %vm6413, %v6404, %v5919
          %v6438 = vsel %vm6413, %v6405, %v5921
          %v6439 = vsel %vm6413, %v6406, %v5923
          %v6440 = vsel %vm6413, %v6407, %v5925
          %v6441 = vsel %vm6413, %v6408, %v5927
          %v6442 = vsel %vm6413, %v6409, %v5929
          %v6443 = vsel %vm6413, %v6410, %v5931
          %v6444 = vsel %vm6413, %v6411, %v5933
          %v6445 = vsel %vm6413, %v6412, %v5935
          %vm6446 = vcmask 392192
          %v6447 = vsel %vm6446, %v6414, %v5973
          %v6448 = vsel %vm6446, %v6415, %v5975
          %v6449 = vsel %vm6446, %v6416, %v5977
          %v6450 = vsel %vm6446, %v6417, %v5979
          %v6451 = vsel %vm6446, %v6418, %v5981
          %v6452 = vsel %vm6446, %v6419, %v5983
          %v6453 = vsel %vm6446, %v6420, %v5985
          %v6454 = vsel %vm6446, %v6421, %v5987
          %v6455 = vsel %vm6446, %v6422, %v5989
          %v6456 = vsel %vm6446, %v6423, %v5991
          %v6457 = vsel %vm6446, %v6424, %v5993
          %v6458 = vsel %vm6446, %v6425, %v5995
          %v6459 = vsel %vm6446, %v6426, %v5997
          %v6460 = vsel %vm6446, %v6427, %v5999
          %v6461 = vsel %vm6446, %v6428, %v6001
          %v6462 = vsel %vm6446, %v6429, %v6003
          %v6463 = vsel %vm6446, %v6430, %v6005
          %v6464 = vsel %vm6446, %v6431, %v6007
          %v6465 = vsel %vm6446, %v6432, %v6009
          %v6466 = vsel %vm6446, %v6433, %v6011
          %v6467 = vsel %vm6446, %v6434, %v6013
          %v6468 = vsel %vm6446, %v6435, %v6015
          %v6469 = vsel %vm6446, %v6436, %v6017
          %v6470 = vsel %vm6446, %v6437, %v6019
          %v6471 = vsel %vm6446, %v6438, %v6021
          %v6472 = vsel %vm6446, %v6439, %v6023
          %v6473 = vsel %vm6446, %v6440, %v6025
          %v6474 = vsel %vm6446, %v6441, %v6027
          %v6475 = vsel %vm6446, %v6442, %v6029
          %v6476 = vsel %vm6446, %v6443, %v6031
          %v6477 = vsel %vm6446, %v6444, %v6033
          %v6478 = vsel %vm6446, %v6445, %v6035
          %vm6479 = vcmask 457728
          %v6480 = vsel %vm6479, %v6447, %v6081
          %v6481 = vsel %vm6479, %v6448, %v6083
          %v6482 = vsel %vm6479, %v6449, %v6085
          %v6483 = vsel %vm6479, %v6450, %v6087
          %v6484 = vsel %vm6479, %v6451, %v6089
          %v6485 = vsel %vm6479, %v6452, %v6091
          %v6486 = vsel %vm6479, %v6453, %v6093
          %v6487 = vsel %vm6479, %v6454, %v6095
          %v6488 = vsel %vm6479, %v6455, %v6097
          %v6489 = vsel %vm6479, %v6456, %v6099
          %v6490 = vsel %vm6479, %v6457, %v6101
          %v6491 = vsel %vm6479, %v6458, %v6103
          %v6492 = vsel %vm6479, %v6459, %v6105
          %v6493 = vsel %vm6479, %v6460, %v6107
          %v6494 = vsel %vm6479, %v6461, %v6109
          %v6495 = vsel %vm6479, %v6462, %v6111
          %v6496 = vsel %vm6479, %v6463, %v6113
          %v6497 = vsel %vm6479, %v6464, %v6115
          %v6498 = vsel %vm6479, %v6465, %v6117
          %v6499 = vsel %vm6479, %v6466, %v6119
          %v6500 = vsel %vm6479, %v6467, %v6121
          %v6501 = vsel %vm6479, %v6468, %v6123
          %v6502 = vsel %vm6479, %v6469, %v6125
          %v6503 = vsel %vm6479, %v6470, %v6127
          %v6504 = vsel %vm6479, %v6471, %v6129
          %v6505 = vsel %vm6479, %v6472, %v6131
          %v6506 = vsel %vm6479, %v6473, %v6133
          %v6507 = vsel %vm6479, %v6474, %v6135
          %v6508 = vsel %vm6479, %v6475, %v6137
          %v6509 = vsel %vm6479, %v6476, %v6139
          %v6510 = vsel %vm6479, %v6477, %v6141
          %v6511 = vsel %vm6479, %v6478, %v6143
          %vm6512 = vcmask 523264
          %v6513 = vsel %vm6512, %v6480, %v6187
          %v6514 = vsel %vm6512, %v6481, %v6189
          %v6515 = vsel %vm6512, %v6482, %v6191
          %v6516 = vsel %vm6512, %v6483, %v6193
          %v6517 = vsel %vm6512, %v6484, %v6195
          %v6518 = vsel %vm6512, %v6485, %v6197
          %v6519 = vsel %vm6512, %v6486, %v6199
          %v6520 = vsel %vm6512, %v6487, %v6201
          %v6521 = vsel %vm6512, %v6488, %v6203
          %v6522 = vsel %vm6512, %v6489, %v6205
          %v6523 = vsel %vm6512, %v6490, %v6207
          %v6524 = vsel %vm6512, %v6491, %v6209
          %v6525 = vsel %vm6512, %v6492, %v6211
          %v6526 = vsel %vm6512, %v6493, %v6213
          %v6527 = vsel %vm6512, %v6494, %v6215
          %v6528 = vsel %vm6512, %v6495, %v6217
          %v6529 = vsel %vm6512, %v6496, %v6219
          %v6530 = vsel %vm6512, %v6497, %v6221
          %v6531 = vsel %vm6512, %v6498, %v6223
          %v6532 = vsel %vm6512, %v6499, %v6225
          %v6533 = vsel %vm6512, %v6500, %v6227
          %v6534 = vsel %vm6512, %v6501, %v6229
          %v6535 = vsel %vm6512, %v6502, %v6231
          %v6536 = vsel %vm6512, %v6503, %v6233
          %v6537 = vsel %vm6512, %v6504, %v6235
          %v6538 = vsel %vm6512, %v6505, %v6237
          %v6539 = vsel %vm6512, %v6506, %v6239
          %v6540 = vsel %vm6512, %v6507, %v6241
          %v6541 = vsel %vm6512, %v6508, %v6243
          %v6542 = vsel %vm6512, %v6509, %v6245
          %v6543 = vsel %vm6512, %v6510, %v6247
          %v6544 = vsel %vm6512, %v6511, %v6249
          %s6545 = smul.u32 %s5189, 16
          %s6546 = scalar_lea.vmem [#allocation6], %s6545
          %v6547 = vld [vmem:[%s6546] sm:$0xff]
          %v6548 = vld [vmem:[%s6546 + $0x8] sm:$0xff]
          %v6549 = vld [vmem:[%s6546 + $0x10] sm:$0xff]
          %v6550 = vld [vmem:[%s6546 + $0x18] sm:$0xff]
          %v6551 = vld [vmem:[%s6546 + $0x20] sm:$0xff]
          %v6552 = vld [vmem:[%s6546 + $0x28] sm:$0xff]
          %v6553 = vld [vmem:[%s6546 + $0x30] sm:$0xff]
          %v6554 = vld [vmem:[%s6546 + $0x38] sm:$0xff]
          %v6555 = vld [vmem:[%s6546 + $0x40] sm:$0xff]
          %v6556 = vld [vmem:[%s6546 + $0x48] sm:$0xff]
          %v6557 = vld [vmem:[%s6546 + $0x50] sm:$0xff]
          %v6558 = vld [vmem:[%s6546 + $0x58] sm:$0xff]
          %v6559 = vld [vmem:[%s6546 + $0x60] sm:$0xff]
          %v6560 = vld [vmem:[%s6546 + $0x68] sm:$0xff]
          %v6561 = vld [vmem:[%s6546 + $0x70] sm:$0xff]
          %v6562 = vld [vmem:[%s6546 + $0x78] sm:$0xff]
          %v6563 = vld [vmem:[%s6546 + $0x100] sm:$0xff]
          %v6564 = vld [vmem:[%s6546 + $0x108] sm:$0xff]
          %v6565 = vld [vmem:[%s6546 + $0x110] sm:$0xff]
          %v6566 = vld [vmem:[%s6546 + $0x118] sm:$0xff]
          %v6567 = vld [vmem:[%s6546 + $0x120] sm:$0xff]
          %v6568 = vld [vmem:[%s6546 + $0x128] sm:$0xff]
          %v6569 = vld [vmem:[%s6546 + $0x130] sm:$0xff]
          %v6570 = vld [vmem:[%s6546 + $0x138] sm:$0xff]
          %v6571 = vld [vmem:[%s6546 + $0x140] sm:$0xff]
          %v6572 = vld [vmem:[%s6546 + $0x148] sm:$0xff]
          %v6573 = vld [vmem:[%s6546 + $0x150] sm:$0xff]
          %v6574 = vld [vmem:[%s6546 + $0x158] sm:$0xff]
          %v6575 = vld [vmem:[%s6546 + $0x160] sm:$0xff]
          %v6576 = vld [vmem:[%s6546 + $0x168] sm:$0xff]
          %v6577 = vld [vmem:[%s6546 + $0x170] sm:$0xff]
          %v6578 = vld [vmem:[%s6546 + $0x178] sm:$0xff]
          %v6579 = vld [vmem:[%s4] sm:$0xff]
          %v6580 = vld [vmem:[%s4 + $0x8] sm:$0xff]
          %v6581 = vld [vmem:[%s4 + $0x10] sm:$0xff]
          %v6582 = vld [vmem:[%s4 + $0x18] sm:$0xff]
          %v6583 = vld [vmem:[%s4 + $0x20] sm:$0xff]
          %v6584 = vld [vmem:[%s4 + $0x28] sm:$0xff]
          %v6585 = vld [vmem:[%s4 + $0x30] sm:$0xff]
          %v6586 = vld [vmem:[%s4 + $0x38] sm:$0xff]
          %v6587 = vld [vmem:[%s4 + $0x40] sm:$0xff]
          %vm6588 = vcmask 588800
          %v6590 = vsel %vm6588, %v6513, 0
          %v6593 = vsel %vm6588, %v6514, 0
          %v6596 = vsel %vm6588, %v6515, 0
          %v6599 = vsel %vm6588, %v6516, 0
          %v6602 = vsel %vm6588, %v6517, 0
          %v6605 = vsel %vm6588, %v6518, 0
          %v6608 = vsel %vm6588, %v6519, 0
          %v6611 = vsel %vm6588, %v6520, 0
          %v6614 = vsel %vm6588, %v6521, 0
          %v6617 = vsel %vm6588, %v6522, 0
          %v6620 = vsel %vm6588, %v6523, 0
          %v6623 = vsel %vm6588, %v6524, 0
          %v6626 = vsel %vm6588, %v6525, 0
          %v6629 = vsel %vm6588, %v6526, 0
          %v6632 = vsel %vm6588, %v6527, 0
          %v6635 = vsel %vm6588, %v6528, 0
          %v6638 = vsel %vm6588, %v6529, 0
          %v6641 = vsel %vm6588, %v6530, 0
          %v6644 = vsel %vm6588, %v6531, 0
          %v6647 = vsel %vm6588, %v6532, 0
          %v6650 = vsel %vm6588, %v6533, 0
          %v6653 = vsel %vm6588, %v6534, 0
          %v6656 = vsel %vm6588, %v6535, 0
          %v6659 = vsel %vm6588, %v6536, 0
          %v6662 = vsel %vm6588, %v6537, 0
          %v6665 = vsel %vm6588, %v6538, 0
          %v6668 = vsel %vm6588, %v6539, 0
          %v6671 = vsel %vm6588, %v6540, 0
          %v6674 = vsel %vm6588, %v6541, 0
          %v6677 = vsel %vm6588, %v6542, 0
          %v6680 = vsel %vm6588, %v6543, 0
          %v6683 = vsel %vm6588, %v6544, 0
          %6685 = vmatprep.subr.mxu0 0.0
          %6686 = vmatpush1.msra.mxu0 %v6579
          %6687 = vmatprep.subr.mxu0 0.0
          %6688 = vmatpush1.msra.mxu0 %v6580
          %6689 = vmatprep.subr.mxu0 0.0
          %6690 = vmatpush1.msra.mxu0 %v6581
          %6691 = vmatprep.subr.mxu0 0.0
          %6692 = vmatpush1.msra.mxu0 %v6582
          %6693 = vmatprep.subr.mxu0 0.0
          %6694 = vmatpush1.msra.mxu0 %v6583
          %6695 = vmatprep.subr.mxu0 0.0
          %6696 = vmatpush1.msra.mxu0 %v6584
          %6697 = vmatprep.subr.mxu0 0.0
          %6698 = vmatpush1.msra.mxu0 %v6585
          %6699 = vmatprep.subr.mxu0 0.0
          %6700 = vmatpush1.msra.mxu0 %v6586
          %6701 = vmatprep.subr.mxu0 0.0
          %6702 = vmatpush1.msra.mxu0 %v6587
          %6703 = vmatprep.subr.mxu0 0.0
          %6704 = vmatpush1.msra.mxu0 0.0
          %6705 = vmatprep.subr.mxu0 0.0
          %6706 = vmatpush1.msra.mxu0 0.0
          %6707 = vmatprep.subr.mxu0 0.0
          %6708 = vmatpush1.msra.mxu0 0.0
          %6709 = vmatprep.subr.mxu0 0.0
          %6710 = vmatpush1.msra.mxu0 0.0
          %6711 = vmatprep.subr.mxu0 0.0
          %6712 = vmatpush1.msra.mxu0 0.0
          %6713 = vmatprep.subr.mxu0 0.0
          %6714 = vmatpush1.msra.mxu0 0.0
          %6715 = vmatprep.subr.mxu0 0.0
          %6716 = vmatpush1.msra.mxu0 0.0
          %6717 = vmatprep.subr.mxu0 0.0
          %6718 = vmatpush1.msra.mxu0 0.0
          %6719 = vmatprep.subr.mxu0 0.0
          %6720 = vmatpush1.msra.mxu0 0.0
          %6721 = vmatprep.subr.mxu0 0.0
          %6722 = vmatpush1.msra.mxu0 0.0
          %6723 = vmatprep.subr.mxu0 0.0
          %6724 = vmatpush1.msra.mxu0 0.0
          %6725 = vmatprep.subr.mxu0 0.0
          %6726 = vmatpush1.msra.mxu0 0.0
          %6727 = vmatprep.subr.mxu0 0.0
          %6728 = vmatpush1.msra.mxu0 0.0
          %6729 = vmatprep.subr.mxu0 0.0
          %6730 = vmatpush1.msra.mxu0 0.0
          %6731 = vmatprep.subr.mxu0 0.0
          %6732 = vmatpush1.msra.mxu0 0.0
          %6733 = vmatprep.subr.mxu0 0.0
          %6734 = vmatpush1.msra.mxu0 0.0
          %6735 = vmatprep.subr.mxu0 0.0
          %6736 = vmatpush1.msra.mxu0 0.0
          %6737 = vmatprep.subr.mxu0 0.0
          %6738 = vmatpush1.msra.mxu0 0.0
          %6739 = vmatprep.subr.mxu0 0.0
          %6740 = vmatpush1.msra.mxu0 0.0
          %6741 = vmatprep.subr.mxu0 0.0
          %6742 = vmatpush1.msra.mxu0 0.0
          %6743 = vmatprep.subr.mxu0 0.0
          %6744 = vmatpush1.msra.mxu0 0.0
          %6745 = vmatprep.subr.mxu0 0.0
          %6746 = vmatpush1.msra.mxu0 0.0
          %6747 = vmatprep.subr.mxu0 0.0
          %6748 = vmatpush1.msra.mxu0 0.0
          %6749 = vmatprep.mubr.f32.mxu0 0.0
          %6750 = vmatmul.mubr.f32.gmra.mrb[0].mxu0 %v6590
          %v6751 = vpop.f32.mrb[0].mxu0
          %v6752 = vadd.f32 %v6547, %v6751
          %v6753 = vpop.f32.mrb[0].mxu0
          %6754 = vmatprep.mubr.f32.mxu0 0.0
          %6755 = vmatmul.mubr.f32.gmra.mrb[0].mxu0 %v6593
          %v6756 = vpop.f32.mrb[0].mxu0
          %v6757 = vadd.f32 %v6548, %v6756
          %v6758 = vpop.f32.mrb[0].mxu0
          %6759 = vmatprep.mubr.f32.mxu0 0.0
          %6760 = vmatmul.mubr.f32.gmra.mrb[0].mxu0 %v6596
          %v6761 = vpop.f32.mrb[0].mxu0
          %v6762 = vadd.f32 %v6549, %v6761
          %v6763 = vpop.f32.mrb[0].mxu0
          %6764 = vmatprep.mubr.f32.mxu0 0.0
          %6765 = vmatmul.mubr.f32.gmra.mrb[0].mxu0 %v6599
          %v6766 = vpop.f32.mrb[0].mxu0
          %v6767 = vadd.f32 %v6550, %v6766
          %v6768 = vpop.f32.mrb[0].mxu0
          %6769 = vmatprep.mubr.f32.mxu0 0.0
          %6770 = vmatmul.mubr.f32.gmra.mrb[0].mxu0 %v6602
          %v6771 = vpop.f32.mrb[0].mxu0
          %v6772 = vadd.f32 %v6551, %v6771
          %v6773 = vpop.f32.mrb[0].mxu0
          %6774 = vmatprep.mubr.f32.mxu0 0.0
          %6775 = vmatmul.mubr.f32.gmra.mrb[0].mxu0 %v6605
          %v6776 = vpop.f32.mrb[0].mxu0
          %v6777 = vadd.f32 %v6552, %v6776
          %v6778 = vpop.f32.mrb[0].mxu0
          %6779 = vmatprep.mubr.f32.mxu0 0.0
          %6780 = vmatmul.mubr.f32.gmra.mrb[0].mxu0 %v6608
          %v6781 = vpop.f32.mrb[0].mxu0
          %v6782 = vadd.f32 %v6553, %v6781
          %v6783 = vpop.f32.mrb[0].mxu0
          %6784 = vmatprep.mubr.f32.mxu0 0.0
          %6785 = vmatmul.mubr.f32.gmra.mrb[0].mxu0 %v6611
          %v6786 = vpop.f32.mrb[0].mxu0
          %v6787 = vadd.f32 %v6554, %v6786
          %v6788 = vpop.f32.mrb[0].mxu0
          %6789 = vmatprep.mubr.f32.mxu0 0.0
          %6790 = vmatmul.mubr.f32.gmra.mrb[0].mxu0 %v6614
          %v6791 = vpop.f32.mrb[0].mxu0
          %v6792 = vadd.f32 %v6555, %v6791
          %v6793 = vpop.f32.mrb[0].mxu0
          %6794 = vmatprep.mubr.f32.mxu0 0.0
          %6795 = vmatmul.mubr.f32.gmra.mrb[0].mxu0 %v6617
          %v6796 = vpop.f32.mrb[0].mxu0
          %v6797 = vadd.f32 %v6556, %v6796
          %v6798 = vpop.f32.mrb[0].mxu0
          %6799 = vmatprep.mubr.f32.mxu0 0.0
          %6800 = vmatmul.mubr.f32.gmra.mrb[0].mxu0 %v6620
          %v6801 = vpop.f32.mrb[0].mxu0
          %v6802 = vadd.f32 %v6557, %v6801
          %v6803 = vpop.f32.mrb[0].mxu0
          %6804 = vmatprep.mubr.f32.mxu0 0.0
          %6805 = vmatmul.mubr.f32.gmra.mrb[0].mxu0 %v6623
          %v6806 = vpop.f32.mrb[0].mxu0
          %v6807 = vadd.f32 %v6558, %v6806
          %v6808 = vpop.f32.mrb[0].mxu0
          %6809 = vmatprep.mubr.f32.mxu0 0.0
          %6810 = vmatmul.mubr.f32.gmra.mrb[0].mxu0 %v6626
          %v6811 = vpop.f32.mrb[0].mxu0
          %v6812 = vadd.f32 %v6559, %v6811
          %v6813 = vpop.f32.mrb[0].mxu0
          %6814 = vmatprep.mubr.f32.mxu0 0.0
          %6815 = vmatmul.mubr.f32.gmra.mrb[0].mxu0 %v6629
          %v6816 = vpop.f32.mrb[0].mxu0
          %v6817 = vadd.f32 %v6560, %v6816
          %v6818 = vpop.f32.mrb[0].mxu0
          %6819 = vmatprep.mubr.f32.mxu0 0.0
          %6820 = vmatmul.mubr.f32.gmra.mrb[0].mxu0 %v6632
          %v6821 = vpop.f32.mrb[0].mxu0
          %v6822 = vadd.f32 %v6561, %v6821
          %v6823 = vpop.f32.mrb[0].mxu0
          %6824 = vmatprep.mubr.f32.mxu0 0.0
          %6825 = vmatmul.mubr.f32.gmra.mrb[0].mxu0 %v6635
          %v6826 = vpop.f32.mrb[0].mxu0
          %v6827 = vadd.f32 %v6562, %v6826
          %v6828 = vpop.f32.mrb[0].mxu0
          %6829 = vmatprep.mubr.f32.mxu0 0.0
          %6830 = vmatmul.mubr.f32.gmra.mrb[0].mxu0 %v6638
          %v6831 = vpop.f32.mrb[0].mxu0
          %v6832 = vadd.f32 %v6563, %v6831
          %v6833 = vpop.f32.mrb[0].mxu0
          %6834 = vmatprep.mubr.f32.mxu0 0.0
          %6835 = vmatmul.mubr.f32.gmra.mrb[0].mxu0 %v6641
          %v6836 = vpop.f32.mrb[0].mxu0
          %v6837 = vadd.f32 %v6564, %v6836
          %v6838 = vpop.f32.mrb[0].mxu0
          %6839 = vmatprep.mubr.f32.mxu0 0.0
          %6840 = vmatmul.mubr.f32.gmra.mrb[0].mxu0 %v6644
          %v6841 = vpop.f32.mrb[0].mxu0
          %v6842 = vadd.f32 %v6565, %v6841
          %v6843 = vpop.f32.mrb[0].mxu0
          %6844 = vmatprep.mubr.f32.mxu0 0.0
          %6845 = vmatmul.mubr.f32.gmra.mrb[0].mxu0 %v6647
          %v6846 = vpop.f32.mrb[0].mxu0
          %v6847 = vadd.f32 %v6566, %v6846
          %v6848 = vpop.f32.mrb[0].mxu0
          %6849 = vmatprep.mubr.f32.mxu0 0.0
          %6850 = vmatmul.mubr.f32.gmra.mrb[0].mxu0 %v6650
          %v6851 = vpop.f32.mrb[0].mxu0
          %v6852 = vadd.f32 %v6567, %v6851
          %v6853 = vpop.f32.mrb[0].mxu0
          %6854 = vmatprep.mubr.f32.mxu0 0.0
          %6855 = vmatmul.mubr.f32.gmra.mrb[0].mxu0 %v6653
          %v6856 = vpop.f32.mrb[0].mxu0
          %v6857 = vadd.f32 %v6568, %v6856
          %v6858 = vpop.f32.mrb[0].mxu0
          %6859 = vmatprep.mubr.f32.mxu0 0.0
          %6860 = vmatmul.mubr.f32.gmra.mrb[0].mxu0 %v6656
          %v6861 = vpop.f32.mrb[0].mxu0
          %v6862 = vadd.f32 %v6569, %v6861
          %v6863 = vpop.f32.mrb[0].mxu0
          %6864 = vmatprep.mubr.f32.mxu0 0.0
          %6865 = vmatmul.mubr.f32.gmra.mrb[0].mxu0 %v6659
          %v6866 = vpop.f32.mrb[0].mxu0
          %v6867 = vadd.f32 %v6570, %v6866
          %v6868 = vpop.f32.mrb[0].mxu0
          %6869 = vmatprep.mubr.f32.mxu0 0.0
          %6870 = vmatmul.mubr.f32.gmra.mrb[0].mxu0 %v6662
          %v6871 = vpop.f32.mrb[0].mxu0
          %v6872 = vadd.f32 %v6571, %v6871
          %v6873 = vpop.f32.mrb[0].mxu0
          %6874 = vmatprep.mubr.f32.mxu0 0.0
          %6875 = vmatmul.mubr.f32.gmra.mrb[0].mxu0 %v6665
          %v6876 = vpop.f32.mrb[0].mxu0
          %v6877 = vadd.f32 %v6572, %v6876
          %v6878 = vpop.f32.mrb[0].mxu0
          %6879 = vmatprep.mubr.f32.mxu0 0.0
          %6880 = vmatmul.mubr.f32.gmra.mrb[0].mxu0 %v6668
          %v6881 = vpop.f32.mrb[0].mxu0
          %v6882 = vadd.f32 %v6573, %v6881
          %v6883 = vpop.f32.mrb[0].mxu0
          %6884 = vmatprep.mubr.f32.mxu0 0.0
          %6885 = vmatmul.mubr.f32.gmra.mrb[0].mxu0 %v6671
          %v6886 = vpop.f32.mrb[0].mxu0
          %v6887 = vadd.f32 %v6574, %v6886
          %v6888 = vpop.f32.mrb[0].mxu0
          %6889 = vmatprep.mubr.f32.mxu0 0.0
          %6890 = vmatmul.mubr.f32.gmra.mrb[0].mxu0 %v6674
          %v6891 = vpop.f32.mrb[0].mxu0
          %v6892 = vadd.f32 %v6575, %v6891
          %v6893 = vpop.f32.mrb[0].mxu0
          %6894 = vmatprep.mubr.f32.mxu0 0.0
          %6895 = vmatmul.mubr.f32.gmra.mrb[0].mxu0 %v6677
          %v6896 = vpop.f32.mrb[0].mxu0
          %v6897 = vadd.f32 %v6576, %v6896
          %v6898 = vpop.f32.mrb[0].mxu0
          %6899 = vmatprep.mubr.f32.mxu0 0.0
          %6900 = vmatmul.mubr.f32.gmra.mrb[0].mxu0 %v6680
          %v6901 = vpop.f32.mrb[0].mxu0
          %v6902 = vadd.f32 %v6577, %v6901
          %v6903 = vpop.f32.mrb[0].mxu0
          %6904 = vmatprep.mubr.f32.mxu0 0.0
          %6905 = vmatmul.mubr.f32.gmra.mrb[0].mxu0 %v6683
          %v6906 = vpop.f32.mrb[0].mxu0
          %v6907 = vadd.f32 %v6578, %v6906
          %v6908 = vpop.f32.mrb[0].mxu0
          %6909 = vdwg.mxu0
          %v6910 = vld [vmem:[%s5] sm:$0x1]
          %v6912 = vlaneseq
          %v6913 = vshrl.u32 %v6912, 7
          %v6914 = vsub.s32 0, %v6913
          %v6915 = vrot.slane %v6910, %v6914
          %v6917 = vadd.f32 %v6752, %v6915
          %v6918 = vadd.f32 %v6757, %v6915
          %v6919 = vadd.f32 %v6762, %v6915
          %v6920 = vadd.f32 %v6767, %v6915
          %v6921 = vadd.f32 %v6772, %v6915
          %v6922 = vadd.f32 %v6777, %v6915
          %v6923 = vadd.f32 %v6782, %v6915
          %v6924 = vadd.f32 %v6787, %v6915
          %v6925 = vadd.f32 %v6792, %v6915
          %v6926 = vadd.f32 %v6797, %v6915
          %v6927 = vadd.f32 %v6802, %v6915
          %v6928 = vadd.f32 %v6807, %v6915
          %v6929 = vadd.f32 %v6812, %v6915
          %v6930 = vadd.f32 %v6817, %v6915
          %v6931 = vadd.f32 %v6822, %v6915
          %v6932 = vadd.f32 %v6827, %v6915
          %v6933 = vadd.f32 %v6832, %v6915
          %v6934 = vadd.f32 %v6837, %v6915
          %v6935 = vadd.f32 %v6842, %v6915
          %v6936 = vadd.f32 %v6847, %v6915
          %v6937 = vadd.f32 %v6852, %v6915
          %v6938 = vadd.f32 %v6857, %v6915
          %v6939 = vadd.f32 %v6862, %v6915
          %v6940 = vadd.f32 %v6867, %v6915
          %v6941 = vadd.f32 %v6872, %v6915
          %v6942 = vadd.f32 %v6877, %v6915
          %v6943 = vadd.f32 %v6882, %v6915
          %v6944 = vadd.f32 %v6887, %v6915
          %v6945 = vadd.f32 %v6892, %v6915
          %v6946 = vadd.f32 %v6897, %v6915
          %v6947 = vadd.f32 %v6902, %v6915
          %v6948 = vadd.f32 %v6907, %v6915
          %v6949 = vtanh.pop %v6917
          %v6950 = vtanh.pop %v6918
          %v6951 = vtanh.pop %v6919
          %v6952 = vtanh.pop %v6920
          %v6953 = vtanh.pop %v6921
          %v6954 = vtanh.pop %v6922
          %v6955 = vtanh.pop %v6923
          %v6956 = vtanh.pop %v6924
          %v6957 = vtanh.pop %v6925
          %v6958 = vtanh.pop %v6926
          %v6959 = vtanh.pop %v6927
          %v6960 = vtanh.pop %v6928
          %v6961 = vtanh.pop %v6929
          %v6962 = vtanh.pop %v6930
          %v6963 = vtanh.pop %v6931
          %v6964 = vtanh.pop %v6932
          %v6965 = vtanh.pop %v6933
          %v6966 = vtanh.pop %v6934
          %v6967 = vtanh.pop %v6935
          %v6968 = vtanh.pop %v6936
          %v6969 = vtanh.pop %v6937
          %v6970 = vtanh.pop %v6938
          %v6971 = vtanh.pop %v6939
          %v6972 = vtanh.pop %v6940
          %v6973 = vtanh.pop %v6941
          %v6974 = vtanh.pop %v6942
          %v6975 = vtanh.pop %v6943
          %v6976 = vtanh.pop %v6944
          %v6977 = vtanh.pop %v6945
          %v6978 = vtanh.pop %v6946
          %v6979 = vtanh.pop %v6947
          %v6980 = vtanh.pop %v6948
          %s6981 = scalar_lea.vmem [#allocation5], %s6545
          %v6982 = vld [vmem:[%s6981] sm:$0xff]
          %v6983 = vld [vmem:[%s6981 + $0x8] sm:$0xff]
          %v6984 = vld [vmem:[%s6981 + $0x10] sm:$0xff]
          %v6985 = vld [vmem:[%s6981 + $0x18] sm:$0xff]
          %v6986 = vld [vmem:[%s6981 + $0x20] sm:$0xff]
          %v6987 = vld [vmem:[%s6981 + $0x28] sm:$0xff]
          %v6988 = vld [vmem:[%s6981 + $0x30] sm:$0xff]
          %v6989 = vld [vmem:[%s6981 + $0x38] sm:$0xff]
          %v6990 = vld [vmem:[%s6981 + $0x40] sm:$0xff]
          %v6991 = vld [vmem:[%s6981 + $0x48] sm:$0xff]
          %v6992 = vld [vmem:[%s6981 + $0x50] sm:$0xff]
          %v6993 = vld [vmem:[%s6981 + $0x58] sm:$0xff]
          %v6994 = vld [vmem:[%s6981 + $0x60] sm:$0xff]
          %v6995 = vld [vmem:[%s6981 + $0x68] sm:$0xff]
          %v6996 = vld [vmem:[%s6981 + $0x70] sm:$0xff]
          %v6997 = vld [vmem:[%s6981 + $0x78] sm:$0xff]
          %v6998 = vld [vmem:[%s6981 + $0x100] sm:$0xff]
          %v6999 = vld [vmem:[%s6981 + $0x108] sm:$0xff]
          %v7000 = vld [vmem:[%s6981 + $0x110] sm:$0xff]
          %v7001 = vld [vmem:[%s6981 + $0x118] sm:$0xff]
          %v7002 = vld [vmem:[%s6981 + $0x120] sm:$0xff]
          %v7003 = vld [vmem:[%s6981 + $0x128] sm:$0xff]
          %v7004 = vld [vmem:[%s6981 + $0x130] sm:$0xff]
          %v7005 = vld [vmem:[%s6981 + $0x138] sm:$0xff]
          %v7006 = vld [vmem:[%s6981 + $0x140] sm:$0xff]
          %v7007 = vld [vmem:[%s6981 + $0x148] sm:$0xff]
          %v7008 = vld [vmem:[%s6981 + $0x150] sm:$0xff]
          %v7009 = vld [vmem:[%s6981 + $0x158] sm:$0xff]
          %v7010 = vld [vmem:[%s6981 + $0x160] sm:$0xff]
          %v7011 = vld [vmem:[%s6981 + $0x168] sm:$0xff]
          %v7012 = vld [vmem:[%s6981 + $0x170] sm:$0xff]
          %v7013 = vld [vmem:[%s6981 + $0x178] sm:$0xff]
          %s7014 = sadd.s32 %s5189, 1
          %s7015 = smul.u32 %s7014, 24
          %s7016 = scalar_lea.vmem [#allocation2], %s7015
          %v7017 = vld [vmem:[%s7016 + $0x1] sm:$0xff]
          %v7018 = vld [vmem:[%s7016 + $0x9] sm:$0xff]
          %v7019 = vld [vmem:[%s7016 + $0x19] sm:$0xff]
          %v7020 = vld [vmem:[%s7016 + $0x21] sm:$0xff]
          %v7021 = vld [vmem:[%s7016 + $0x31] sm:$0xff]
          %v7022 = vld [vmem:[%s7016 + $0x39] sm:$0xff]
          %v7023 = vld [vmem:[%s7016 + $0x49] sm:$0xff]
          %v7024 = vld [vmem:[%s7016 + $0x51] sm:$0xff]
          %v7025 = vld [vmem:[%s7016 + $0x61] sm:$0xff]
          %v7026 = vld [vmem:[%s7016 + $0x69] sm:$0xff]
          %v7027 = vld [vmem:[%s7016 + $0x79] sm:$0xff]
          %v7028 = vld [vmem:[%s7016 + $0x81] sm:$0xff]
          %v7029 = vld [vmem:[%s7016 + $0x91] sm:$0xff]
          %v7030 = vld [vmem:[%s7016 + $0x99] sm:$0xff]
          %v7031 = vld [vmem:[%s7016 + $0xa9] sm:$0xff]
          %v7032 = vld [vmem:[%s7016 + $0xb1] sm:$0xff]
          %v7033 = vld [vmem:[%s7016 + $0x1b1] sm:$0xff]
          %v7034 = vld [vmem:[%s7016 + $0x1b9] sm:$0xff]
          %v7035 = vld [vmem:[%s7016 + $0x1c9] sm:$0xff]
          %v7036 = vld [vmem:[%s7016 + $0x1d1] sm:$0xff]
          %v7037 = vld [vmem:[%s7016 + $0x1e1] sm:$0xff]
          %v7038 = vld [vmem:[%s7016 + $0x1e9] sm:$0xff]
          %v7039 = vld [vmem:[%s7016 + $0x1f9] sm:$0xff]
          %v7040 = vld [vmem:[%s7016 + $0x201] sm:$0xff]
          %v7041 = vld [vmem:[%s7016 + $0x211] sm:$0xff]
          %v7042 = vld [vmem:[%s7016 + $0x219] sm:$0xff]
          %v7043 = vld [vmem:[%s7016 + $0x229] sm:$0xff]
          %v7044 = vld [vmem:[%s7016 + $0x231] sm:$0xff]
          %v7045 = vld [vmem:[%s7016 + $0x241] sm:$0xff]
          %v7046 = vld [vmem:[%s7016 + $0x249] sm:$0xff]
          %v7047 = vld [vmem:[%s7016 + $0x259] sm:$0xff]
          %v7048 = vld [vmem:[%s7016 + $0x261] sm:$0xff]
          %v7049 = vsub.f32 1.0, %v6982
          %v7050 = vsub.f32 1.0, %v6983
          %v7051 = vsub.f32 1.0, %v6984
          %v7052 = vsub.f32 1.0, %v6985
          %v7053 = vsub.f32 1.0, %v6986
          %v7054 = vsub.f32 1.0, %v6987
          %v7055 = vsub.f32 1.0, %v6988
          %v7056 = vsub.f32 1.0, %v6989
          %v7057 = vsub.f32 1.0, %v6990
          %v7058 = vsub.f32 1.0, %v6991
          %v7059 = vsub.f32 1.0, %v6992
          %v7060 = vsub.f32 1.0, %v6993
          %v7061 = vsub.f32 1.0, %v6994
          %v7062 = vsub.f32 1.0, %v6995
          %v7063 = vsub.f32 1.0, %v6996
          %v7064 = vsub.f32 1.0, %v6997
          %v7065 = vsub.f32 1.0, %v6998
          %v7066 = vsub.f32 1.0, %v6999
          %v7067 = vsub.f32 1.0, %v7000
          %v7068 = vsub.f32 1.0, %v7001
          %v7069 = vsub.f32 1.0, %v7002
          %v7070 = vsub.f32 1.0, %v7003
          %v7071 = vsub.f32 1.0, %v7004
          %v7072 = vsub.f32 1.0, %v7005
          %v7073 = vsub.f32 1.0, %v7006
          %v7074 = vsub.f32 1.0, %v7007
          %v7075 = vsub.f32 1.0, %v7008
          %v7076 = vsub.f32 1.0, %v7009
          %v7077 = vsub.f32 1.0, %v7010
          %v7078 = vsub.f32 1.0, %v7011
          %v7079 = vsub.f32 1.0, %v7012
          %v7080 = vsub.f32 1.0, %v7013
          %v7081 = vmul.f32 %v7049, %v7017
          %v7082 = vmul.f32 %v7050, %v7018
          %v7083 = vmul.f32 %v7051, %v7019
          %v7084 = vmul.f32 %v7052, %v7020
          %v7085 = vmul.f32 %v7053, %v7021
          %v7086 = vmul.f32 %v7054, %v7022
          %v7087 = vmul.f32 %v7055, %v7023
          %v7088 = vmul.f32 %v7056, %v7024
          %v7089 = vmul.f32 %v7057, %v7025
          %v7090 = vmul.f32 %v7058, %v7026
          %v7091 = vmul.f32 %v7059, %v7027
          %v7092 = vmul.f32 %v7060, %v7028
          %v7093 = vmul.f32 %v7061, %v7029
          %v7094 = vmul.f32 %v7062, %v7030
          %v7095 = vmul.f32 %v7063, %v7031
          %v7096 = vmul.f32 %v7064, %v7032
          %v7097 = vmul.f32 %v7065, %v7033
          %v7098 = vmul.f32 %v7066, %v7034
          %v7099 = vmul.f32 %v7067, %v7035
          %v7100 = vmul.f32 %v7068, %v7036
          %v7101 = vmul.f32 %v7069, %v7037
          %v7102 = vmul.f32 %v7070, %v7038
          %v7103 = vmul.f32 %v7071, %v7039
          %v7104 = vmul.f32 %v7072, %v7040
          %v7105 = vmul.f32 %v7073, %v7041
          %v7106 = vmul.f32 %v7074, %v7042
          %v7107 = vmul.f32 %v7075, %v7043
          %v7108 = vmul.f32 %v7076, %v7044
          %v7109 = vmul.f32 %v7077, %v7045
          %v7110 = vmul.f32 %v7078, %v7046
          %v7111 = vmul.f32 %v7079, %v7047
          %v7112 = vmul.f32 %v7080, %v7048
          %v7113 = vmul.f32 %v6982, %v6949
          %v7114 = vmul.f32 %v6983, %v6950
          %v7115 = vmul.f32 %v6984, %v6951
          %v7116 = vmul.f32 %v6985, %v6952
          %v7117 = vmul.f32 %v6986, %v6953
          %v7118 = vmul.f32 %v6987, %v6954
          %v7119 = vmul.f32 %v6988, %v6955
          %v7120 = vmul.f32 %v6989, %v6956
          %v7121 = vmul.f32 %v6990, %v6957
          %v7122 = vmul.f32 %v6991, %v6958
          %v7123 = vmul.f32 %v6992, %v6959
          %v7124 = vmul.f32 %v6993, %v6960
          %v7125 = vmul.f32 %v6994, %v6961
          %v7126 = vmul.f32 %v6995, %v6962
          %v7127 = vmul.f32 %v6996, %v6963
          %v7128 = vmul.f32 %v6997, %v6964
          %v7129 = vmul.f32 %v6998, %v6965
          %v7130 = vmul.f32 %v6999, %v6966
          %v7131 = vmul.f32 %v7000, %v6967
          %v7132 = vmul.f32 %v7001, %v6968
          %v7133 = vmul.f32 %v7002, %v6969
          %v7134 = vmul.f32 %v7003, %v6970
          %v7135 = vmul.f32 %v7004, %v6971
          %v7136 = vmul.f32 %v7005, %v6972
          %v7137 = vmul.f32 %v7006, %v6973
          %v7138 = vmul.f32 %v7007, %v6974
          %v7139 = vmul.f32 %v7008, %v6975
          %v7140 = vmul.f32 %v7009, %v6976
          %v7141 = vmul.f32 %v7010, %v6977
          %v7142 = vmul.f32 %v7011, %v6978
          %v7143 = vmul.f32 %v7012, %v6979
          %v7144 = vmul.f32 %v7013, %v6980
          %v7145 = vadd.f32 %v7081, %v7113
          %v7146 = vadd.f32 %v7082, %v7114
          %v7147 = vadd.f32 %v7083, %v7115
          %v7148 = vadd.f32 %v7084, %v7116
          %v7149 = vadd.f32 %v7085, %v7117
          %v7150 = vadd.f32 %v7086, %v7118
          %v7151 = vadd.f32 %v7087, %v7119
          %v7152 = vadd.f32 %v7088, %v7120
          %v7153 = vadd.f32 %v7089, %v7121
          %v7154 = vadd.f32 %v7090, %v7122
          %v7155 = vadd.f32 %v7091, %v7123
          %v7156 = vadd.f32 %v7092, %v7124
          %v7157 = vadd.f32 %v7093, %v7125
          %v7158 = vadd.f32 %v7094, %v7126
          %v7159 = vadd.f32 %v7095, %v7127
          %v7160 = vadd.f32 %v7096, %v7128
          %v7161 = vadd.f32 %v7097, %v7129
          %v7162 = vadd.f32 %v7098, %v7130
          %v7163 = vadd.f32 %v7099, %v7131
          %v7164 = vadd.f32 %v7100, %v7132
          %v7165 = vadd.f32 %v7101, %v7133
          %v7166 = vadd.f32 %v7102, %v7134
          %v7167 = vadd.f32 %v7103, %v7135
          %v7168 = vadd.f32 %v7104, %v7136
          %v7169 = vadd.f32 %v7105, %v7137
          %v7170 = vadd.f32 %v7106, %v7138
          %v7171 = vadd.f32 %v7107, %v7139
          %v7172 = vadd.f32 %v7108, %v7140
          %v7173 = vadd.f32 %v7109, %v7141
          %v7174 = vadd.f32 %v7110, %v7142
          %v7175 = vadd.f32 %v7111, %v7143
          %v7176 = vadd.f32 %v7112, %v7144
          %7177 = vst.msk [vmem:[%s7016 + $0x1] sm:$0xff] %vm966, %v7145
          %7178 = vst.msk [vmem:[%s7016 + $0x9] sm:$0xff] %vm966, %v7146
          %7179 = vst.msk [vmem:[%s7016 + $0x19] sm:$0xff] %vm966, %v7147
          %7180 = vst.msk [vmem:[%s7016 + $0x21] sm:$0xff] %vm966, %v7148
          %7181 = vst.msk [vmem:[%s7016 + $0x31] sm:$0xff] %vm966, %v7149
          %7182 = vst.msk [vmem:[%s7016 + $0x39] sm:$0xff] %vm966, %v7150
          %7183 = vst.msk [vmem:[%s7016 + $0x49] sm:$0xff] %vm966, %v7151
          %7184 = vst.msk [vmem:[%s7016 + $0x51] sm:$0xff] %vm966, %v7152
          %7185 = vst.msk [vmem:[%s7016 + $0x61] sm:$0xff] %vm966, %v7153
          %7186 = vst.msk [vmem:[%s7016 + $0x69] sm:$0xff] %vm966, %v7154
          %7187 = vst.msk [vmem:[%s7016 + $0x79] sm:$0xff] %vm966, %v7155
          %7188 = vst.msk [vmem:[%s7016 + $0x81] sm:$0xff] %vm966, %v7156
          %7189 = vst.msk [vmem:[%s7016 + $0x91] sm:$0xff] %vm966, %v7157
          %7190 = vst.msk [vmem:[%s7016 + $0x99] sm:$0xff] %vm966, %v7158
          %7191 = vst.msk [vmem:[%s7016 + $0xa9] sm:$0xff] %vm966, %v7159
          %7192 = vst.msk [vmem:[%s7016 + $0xb1] sm:$0xff] %vm966, %v7160
          %7193 = vst.msk [vmem:[%s7016 + $0x1b1] sm:$0xff] %vm966, %v7161
          %7194 = vst.msk [vmem:[%s7016 + $0x1b9] sm:$0xff] %vm966, %v7162
          %7195 = vst.msk [vmem:[%s7016 + $0x1c9] sm:$0xff] %vm966, %v7163
          %7196 = vst.msk [vmem:[%s7016 + $0x1d1] sm:$0xff] %vm966, %v7164
          %7197 = vst.msk [vmem:[%s7016 + $0x1e1] sm:$0xff] %vm966, %v7165
          %7198 = vst.msk [vmem:[%s7016 + $0x1e9] sm:$0xff] %vm966, %v7166
          %7199 = vst.msk [vmem:[%s7016 + $0x1f9] sm:$0xff] %vm966, %v7167
          %7200 = vst.msk [vmem:[%s7016 + $0x201] sm:$0xff] %vm966, %v7168
          %7201 = vst.msk [vmem:[%s7016 + $0x211] sm:$0xff] %vm966, %v7169
          %7202 = vst.msk [vmem:[%s7016 + $0x219] sm:$0xff] %vm966, %v7170
          %7203 = vst.msk [vmem:[%s7016 + $0x229] sm:$0xff] %vm966, %v7171
          %7204 = vst.msk [vmem:[%s7016 + $0x231] sm:$0xff] %vm966, %v7172
          %7205 = vst.msk [vmem:[%s7016 + $0x241] sm:$0xff] %vm966, %v7173
          %7206 = vst.msk [vmem:[%s7016 + $0x249] sm:$0xff] %vm966, %v7174
          %7207 = vst.msk [vmem:[%s7016 + $0x259] sm:$0xff] %vm966, %v7175
          %7208 = vst.msk [vmem:[%s7016 + $0x261] sm:$0xff] %vm966, %v7176
          %p7209 = scmp.eq.s32.totalorder %s22, %s1032
          // Predicated region
          $region101: #{tpu_custom_call.1} parent=97 // pred_check
            %p7210 = pneg %p7209
          $region102: #{tpu_custom_call.1} parent=97 // pred_check_branch
            %7212 = sbr.rel (%p7210) target = $region104
          $region103: #{tpu_custom_call.1} parent=97 // pred_region
            %s7213 = scalar_lea.vmem %s570, %s6545
            %7214 = vst.msk [vmem:[%s7213] sm:$0xff] %vm966, %v7145
            %7215 = vst.msk [vmem:[%s7213 + $0x8] sm:$0xff] %vm966, %v7146
            %7216 = vst.msk [vmem:[%s7213 + $0x10] sm:$0xff] %vm966, %v7147
            %7217 = vst.msk [vmem:[%s7213 + $0x18] sm:$0xff] %vm966, %v7148
            %7218 = vst.msk [vmem:[%s7213 + $0x20] sm:$0xff] %vm966, %v7149
            %7219 = vst.msk [vmem:[%s7213 + $0x28] sm:$0xff] %vm966, %v7150
            %7220 = vst.msk [vmem:[%s7213 + $0x30] sm:$0xff] %vm966, %v7151
            %7221 = vst.msk [vmem:[%s7213 + $0x38] sm:$0xff] %vm966, %v7152
            %7222 = vst.msk [vmem:[%s7213 + $0x40] sm:$0xff] %vm966, %v7153
            %7223 = vst.msk [vmem:[%s7213 + $0x48] sm:$0xff] %vm966, %v7154
            %7224 = vst.msk [vmem:[%s7213 + $0x50] sm:$0xff] %vm966, %v7155
            %7225 = vst.msk [vmem:[%s7213 + $0x58] sm:$0xff] %vm966, %v7156
            %7226 = vst.msk [vmem:[%s7213 + $0x60] sm:$0xff] %vm966, %v7157
            %7227 = vst.msk [vmem:[%s7213 + $0x68] sm:$0xff] %vm966, %v7158
            %7228 = vst.msk [vmem:[%s7213 + $0x70] sm:$0xff] %vm966, %v7159
            %7229 = vst.msk [vmem:[%s7213 + $0x78] sm:$0xff] %vm966, %v7160
            %7230 = vst.msk [vmem:[%s7213 + $0x100] sm:$0xff] %vm966, %v7161
            %7231 = vst.msk [vmem:[%s7213 + $0x108] sm:$0xff] %vm966, %v7162
            %7232 = vst.msk [vmem:[%s7213 + $0x110] sm:$0xff] %vm966, %v7163
            %7233 = vst.msk [vmem:[%s7213 + $0x118] sm:$0xff] %vm966, %v7164
            %7234 = vst.msk [vmem:[%s7213 + $0x120] sm:$0xff] %vm966, %v7165
            %7235 = vst.msk [vmem:[%s7213 + $0x128] sm:$0xff] %vm966, %v7166
            %7236 = vst.msk [vmem:[%s7213 + $0x130] sm:$0xff] %vm966, %v7167
            %7237 = vst.msk [vmem:[%s7213 + $0x138] sm:$0xff] %vm966, %v7168
            %7238 = vst.msk [vmem:[%s7213 + $0x140] sm:$0xff] %vm966, %v7169
            %7239 = vst.msk [vmem:[%s7213 + $0x148] sm:$0xff] %vm966, %v7170
            %7240 = vst.msk [vmem:[%s7213 + $0x150] sm:$0xff] %vm966, %v7171
            %7241 = vst.msk [vmem:[%s7213 + $0x158] sm:$0xff] %vm966, %v7172
            %7242 = vst.msk [vmem:[%s7213 + $0x160] sm:$0xff] %vm966, %v7173
            %7243 = vst.msk [vmem:[%s7213 + $0x168] sm:$0xff] %vm966, %v7174
            %7244 = vst.msk [vmem:[%s7213 + $0x170] sm:$0xff] %vm966, %v7175
            %7245 = vst.msk [vmem:[%s7213 + $0x178] sm:$0xff] %vm966, %v7176
          $region104: #{tpu_custom_call.1} parent=97 // pred_fallthru
            _
        $region98: #{tpu_custom_call.1} parent=77 // loop_footer
          %s5188 = sadd.s32 1, %s5184
        $region99: #{tpu_custom_call.1} parent=77 // loop_footer_branch
          %5183 = sbr.rel target = $region95
        $region100: #{tpu_custom_call.1} parent=77 // loop_exit
          _
        %p7246 = scmp.lt.s32.totalorder %s21, 1
        %s7247 = scalar_select %p7246, %s21, 1
        %s7248 = smul.addr %s7247, 64
        %s7249 = smul.addr %s7248, 8
        %s7250 = scalar_lea.vmem %s6, %s7249
        // Predicated region
        $region105: #{tpu_custom_call.1} parent=77 // pred_check
          %p7251 = pneg %p188
        $region106: #{tpu_custom_call.1} parent=77 // pred_check_branch
          %7253 = sbr.rel (%p7251) target = $region108
        $region107: #{tpu_custom_call.1} parent=77 // pred_region
          _
        $region108: #{tpu_custom_call.1} parent=77 // pred_fallthru
          _
      $region78: #{tpu_custom_call.1} parent=5 // pred_fallthru
        _
      %p7254 = scmp.le.s32.totalorder 2, %s12
      // Predicated region
      $region109: #{tpu_custom_call.1} parent=5 // pred_check
        %p7255 = pneg %p7254
      $region110: #{tpu_custom_call.1} parent=5 // pred_check_branch
        %7257 = sbr.rel (%p7255) target = $region112
      $region111: #{tpu_custom_call.1} parent=5 // pred_region
        %s7258 = ssub.s32 %s12, 2
        // Predicated region
        $region113: #{tpu_custom_call.1} parent=111 // pred_check
          %p7259 = pneg %p194
        $region114: #{tpu_custom_call.1} parent=111 // pred_check_branch
          %7261 = sbr.rel (%p7259) target = $region116
        $region115: #{tpu_custom_call.1} parent=111 // pred_region
          %p7262 = scmp.lt.s32.totalorder %s23, 1
          %s7263 = scalar_select %p7262, %s23, 1
          %s7264 = smul.addr %s7263, 64
          %s7265 = smul.addr %s7264, 8
          %s7266 = scalar_lea.vmem %s6, %s7265
        $region116: #{tpu_custom_call.1} parent=111 // pred_fallthru
          _
      $region112: #{tpu_custom_call.1} parent=5 // pred_fallthru
        _
    $region6: #{tpu_custom_call.1} parent=1 // loop_footer
      %s16 = sadd.s32 1, %s12
    $region7: #{tpu_custom_call.1} parent=1 // loop_footer_branch
      %11 = sbr.rel target = $region3
    $region8: #{tpu_custom_call.1} parent=1 // loop_exit
      _

</llo_original>
